<compile_context>
chip_gen: v6e
topology: v6e:2x2x1
jax: 0.10.0
libtpu: 0.0.40
codegen_flags: <defaults>
</compile_context>

<pallas_src>
import functools

import jax
import jax.numpy as jnp
from jax.experimental import pallas as pl
from jax.experimental.pallas import tpu as pltpu


# ----------------------------------------------------------------------------
# in-kernel helpers
# ----------------------------------------------------------------------------
def _gelu(x):
    # TODO(synk): PyTorch nn.GELU default is exact (erf-based); tanh approximation
    # is used because erf has no guaranteed Mosaic lowering (~1e-3 rel drift).
    return 0.5 * x * (1.0 + jnp.tanh(0.7978845608028654 * (x + 0.044715 * x * x * x)))


def _layer_norm(x, g, b, eps=1e-5):
    mu = jnp.mean(x, axis=-1, keepdims=True)
    xc = x - mu
    var = jnp.mean(xc * xc, axis=-1, keepdims=True)
    return xc * jax.lax.rsqrt(var + eps) * g + b


def _const_idx(n, l, *, ndim):
    return (0,) * ndim


# ----------------------------------------------------------------------------
# Kernel 1: mini-PointNet group encoder, Gb groups per grid step
# ----------------------------------------------------------------------------
def _encoder_kernel(x_ref, w1, s1, t1, w2, b2, w3g, w3f, s3, t3, w4, b4, o_ref):
    Gb, S, Cin = x_ref.shape
    bf16 = jnp.bfloat16
    x = x_ref[...].reshape(Gb * S, Cin).astype(bf16)
    h = jnp.dot(x, w1[...], preferred_element_type=jnp.float32)
    h = jnp.maximum(h * s1[...] + t1[...], 0.0)                         # Conv1+BN+ReLU
    f = jnp.dot(h.astype(bf16), w2[...],
                preferred_element_type=jnp.float32) + b2[...]           # (Gb*S, 256)
    g = jnp.max(f.reshape(Gb, S, -1), axis=1)                           # per-group max
    # split second-stage conv: rows [:256] act on the broadcast global feature,
    # rows [256:] on the per-point feature -> no (S, 512) concat is materialized.
    gp = jnp.dot(g.astype(bf16), w3g[...], preferred_element_type=jnp.float32)
    fp = jnp.dot(f.astype(bf16), w3f[...], preferred_element_type=jnp.float32)
    h2 = fp.reshape(Gb, S, -1) + gp[:, None, :]
    h2 = jnp.maximum(h2 * s3[...] + t3[...], 0.0)                       # Conv3+BN+ReLU
    f2 = jnp.dot(h2.reshape(Gb * S, -1).astype(bf16), w4[...],
                 preferred_element_type=jnp.float32) + b4[...]          # (Gb*S, E)
    o_ref[...] = jnp.max(f2.reshape(Gb, S, -1), axis=1)                 # (Gb, E)


def encoder_apply(nbr, p, *, group_block=32):
    NG, S, Cin = nbr.shape
    Gb = min(group_block, NG)
    NG_pad = pl.cdiv(NG, Gb) * Gb
    if NG_pad != NG:
        nbr = jnp.pad(nbr, ((0, NG_pad - NG), (0, 0), (0, 0)))
    E = p["w4"].shape[1]
    split = p["w3"].shape[0] // 2
    bfc = lambda w: w.astype(jnp.bfloat16)
    weights = [bfc(p["w1"]), p["s1"], p["t1"], bfc(p["w2"]), p["b2"],
               bfc(p["w3"][:split]), bfc(p["w3"][split:]), p["s3"], p["t3"],
               bfc(p["w4"]), p["b4"]]
    in_specs = ([pl.BlockSpec((Gb, S, Cin), lambda g: (g, 0, 0))] +
                [pl.BlockSpec(w.shape, lambda g: (0, 0)) for w in weights])
    out = pl.pallas_call(
        _encoder_kernel,
        out_shape=jax.ShapeDtypeStruct((NG_pad, E), jnp.float32),
        grid=(NG_pad // Gb,),
        in_specs=in_specs,
        out_specs=pl.BlockSpec((Gb, E), lambda g: (g, 0)),
        compiler_params=pltpu.CompilerParams(dimension_semantics=("parallel",)),
    )(nbr, *weights)
    return out[:NG]


# ----------------------------------------------------------------------------
# Kernel 2: fused tokenize + depth transformer blocks + final LN/head
#   grid = (object-blocks, depth); residual stream kept in VMEM scratch;
#   per-block weights streamed along the depth axis; output written on last step.
# ----------------------------------------------------------------------------
def _transformer_kernel(grp_ref, ctr_ref, cls_tok, cls_pos,
                        wr, br, wp1, bp1, wp2, bp2,
                        g1, b1, wqkv, wo, bo, g2, b2, wm1, bm1, wm2, bm2,
                        gn, bn, o_ref, x_sc, pos_sc, *, num_heads, num_tokens):
    l = pl.program_id(1)
    depth = pl.num_programs(1)
    Nb, T_pad, D = x_sc.shape
    G = num_tokens - 1                      # patch tokens; cls token lives at row G
    hd = D // num_heads
    scale = hd ** -0.5
    bf16 = jnp.bfloat16

    # ---- depth step 0: tokenize (reduce_dim linear + pos-embed MLP), fill scratch
    @pl.when(l == 0)
    def _tokenize():
        E = grp_ref.shape[-1]
        grp = grp_ref[...].reshape(Nb * G, E).astype(bf16)
        tok = (jnp.dot(grp, wr[...], preferred_element_type=jnp.float32)
               + br[...]).reshape(Nb, G, D)
        ctr = ctr_ref[...].reshape(Nb * G, 3)
        ph = _gelu(jnp.dot(ctr, wp1[...], preferred_element_type=jnp.float32)
                   + bp1[...])
        pos = (jnp.dot(ph.astype(bf16), wp2[...],
                       preferred_element_type=jnp.float32)
               + bp2[...]).reshape(Nb, G, D)
        x_sc[...] = jnp.zeros_like(x_sc)
        pos_sc[...] = jnp.zeros_like(pos_sc)
        x_sc[:, 0:G, :] = tok
        pos_sc[:, 0:G, :] = pos
        x_sc[:, G:G + 1, :] = jnp.broadcast_to(cls_tok[...], (Nb, 1, D))
        pos_sc[:, G:G + 1, :] = jnp.broadcast_to(cls_pos[...], (Nb, 1, D))

    # ---- transformer block l: x = block(x + pos), pre-LN MHSA + pre-LN MLP -------
    xp = x_sc[...] + pos_sc[...]                                        # (Nb,T_pad,D)
    xn = _layer_norm(xp, g1[0], b1[0])
    qkv = jnp.dot(xn.reshape(Nb * T_pad, D).astype(bf16), wqkv[0],
                  preferred_element_type=jnp.float32)                   # (Nb*T, 3D)
    qkv3 = qkv.reshape(Nb, T_pad, 3 * D)

    key_idx = jax.lax.broadcasted_iota(jnp.int32, (Nb, T_pad, T_pad), 2)
    kmask = key_idx < num_tokens                                        # mask pad keys

    wo_all = wo[0]
    y = jnp.zeros((Nb * T_pad, D), jnp.float32)
    for h in range(num_heads):                                          # static unroll
        qh = qkv3[:, :, h * hd:(h + 1) * hd].astype(bf16)
        kh = qkv3[:, :, D + h * hd:D + (h + 1) * hd].astype(bf16)
        vh = qkv3[:, :, 2 * D + h * hd:2 * D + (h + 1) * hd].astype(bf16)
        s = jnp.einsum('bqd,bkd->bqk', qh, kh,
                       preferred_element_type=jnp.float32) * scale      # f32 scores
        s = jnp.where(kmask, s, -1e30)
        s = s - jnp.max(s, axis=-1, keepdims=True)
        e = jnp.exp(s)
        p = e * pl.reciprocal(jnp.sum(e, axis=-1, keepdims=True), approx=True)
        oh = jnp.einsum('bqk,bkd->bqd', p.astype(bf16), vh,
                        preferred_element_type=jnp.float32)             # (Nb,T,hd)
        # fold per-head result straight into the output projection (no lane concat)
        y = y + jnp.dot(oh.reshape(Nb * T_pad, hd).astype(bf16),
                        wo_all[h * hd:(h + 1) * hd, :],
                        preferred_element_type=jnp.float32)
    y = y + bo[0]
    x1 = xp + y.reshape(Nb, T_pad, D)

    xn2 = _layer_norm(x1, g2[0], b2[0])
    mh = jnp.dot(xn2.reshape(Nb * T_pad, D).astype(bf16), wm1[0],
                 preferred_element_type=jnp.float32) + bm1[0]
    mh = _gelu(mh).astype(bf16)
    m2 = jnp.dot(mh, wm2[0], preferred_element_type=jnp.float32) + bm2[0]
    x_out = x1 + m2.reshape(Nb, T_pad, D)
    x_sc[...] = x_out

    # ---- last depth step: final LayerNorm + [cls ; max over patch tokens] --------
    @pl.when(l == depth - 1)
    def _head():
        xnf = _layer_norm(x_out, gn[...], bn[...])                      # (Nb,T_pad,D)
        row = jax.lax.broadcasted_iota(jnp.int32, (Nb, T_pad, D), 1)
        cls_f = jnp.max(jnp.where(row == G, xnf, -1e30), axis=1)        # (Nb, D)
        max_f = jnp.max(jnp.where(row < G, xnf, -1e30), axis=1)         # (Nb, D)
        o_ref[...] = jnp.concatenate([cls_f, max_f], axis=-1)           # (Nb, 2D)


def transformer_apply(grp_feat, centers, params, cfg, *, obj_block=8):
    N, G, E = grp_feat.shape
    D = cfg["trans_dim"]
    depth = cfg["depth"]
    H = cfg["num_heads"]
    T = G + 1
    T_pad = pl.cdiv(T, 8) * 8
    Nb = min(obj_block, N)
    N_pad = pl.cdiv(N, Nb) * Nb
    if N_pad != N:
        grp_feat = jnp.pad(grp_feat, ((0, N_pad - N), (0, 0), (0, 0)))
        centers = jnp.pad(centers, ((0, N_pad - N), (0, 0), (0, 0)))

    bfc = lambda w: w.astype(jnp.bfloat16)
    tok_p = params["tok"]

    def stack(name, to_bf16=False):
        w = jnp.stack([blk[name] for blk in params["blocks"]], axis=0)
        return w.astype(jnp.bfloat16) if to_bf16 else w

    wqkv = jnp.stack(
        [jnp.concatenate([blk["wq"], blk["wk"], blk["wv"]], axis=1)
         for blk in params["blocks"]], axis=0).astype(jnp.bfloat16)

    const_in = [params["cls_token"], params["cls_pos"],
                bfc(tok_p["wr"]), tok_p["br"], tok_p["wp1"], tok_p["bp1"],
                bfc(tok_p["wp2"]), tok_p["bp2"]]
    blk_in = [stack("g1"), stack("b1"), wqkv, stack("wo", True), stack("bo"),
              stack("g2"), stack("b2"), stack("wm1", True), stack("bm1"),
              stack("wm2", True), stack("bm2")]
    norm_in = [params["norm"]["g"], params["norm"]["b"]]

    def const_spec(w):
        return pl.BlockSpec(w.shape, functools.partial(_const_idx, ndim=w.ndim))

    in_specs = ([pl.BlockSpec((Nb, G, E), lambda n, l: (n, 0, 0)),
                 pl.BlockSpec((Nb, G, 3), lambda n, l: (n, 0, 0))] +
                [const_spec(w) for w in const_in] +
                [pl.BlockSpec((1,) + w.shape[1:], lambda n, l: (l, 0, 0))
                 for w in blk_in] +
                [const_spec(w) for w in norm_in])

    out = pl.pallas_call(
        functools.partial(_transformer_kernel, num_heads=H, num_tokens=T),
        out_shape=jax.ShapeDtypeStruct((N_pad, 2 * D), jnp.float32),
        grid=(N_pad // Nb, depth),
        in_specs=in_specs,
        out_specs=pl.BlockSpec((Nb, 2 * D), lambda n, l: (n, 0)),
        scratch_shapes=[pltpu.VMEM((Nb, T_pad, D), jnp.float32),
                        pltpu.VMEM((Nb, T_pad, D), jnp.float32)],
        compiler_params=pltpu.CompilerParams(
            dimension_semantics=("parallel", "arbitrary")),
    )(grp_feat, centers, *const_in, *blk_in, *norm_in)
    return out[:N]


# ----------------------------------------------------------------------------
# Glue: FPS + KNN grouping (data-dependent gather -> plain JAX)
# ----------------------------------------------------------------------------
# TODO(synk): FPS / KNN grouping is sequential + data-dependent gather; kept in
# plain JAX.  At production point counts this dominates end-to-end latency and
# should eventually be tiled / moved into a scalar-prefetch Pallas gather kernel.
def farthest_point_sample(xyz, n_samples):
    B, N, _ = xyz.shape
    init = (jnp.full((B, N), 1e10, jnp.float32),
            jnp.zeros((B, n_samples), jnp.int32),
            jnp.zeros((B,), jnp.int32))

    def body(i, st):
        dist, idxs, far = st
        idxs = idxs.at[:, i].set(far)
        centroid = jnp.take_along_axis(xyz, far[:, None, None], axis=1)   # (B,1,3)
        d = jnp.sum((xyz - centroid) ** 2, axis=-1)
        dist = jnp.minimum(dist, d)
        far = jnp.argmax(dist, axis=-1).astype(jnp.int32)
        return dist, idxs, far

    _, idxs, _ = jax.lax.fori_loop(0, n_samples, body, init)
    return idxs


def group_points(points, num_group, group_size):
    xyz = points[..., :3]
    fps_idx = farthest_point_sample(xyz, num_group)                       # (Bn, G)
    centers = jnp.take_along_axis(xyz, fps_idx[..., None], axis=1)        # (Bn, G, 3)
    d2 = jnp.sum((centers[:, :, None, :] - xyz[:, None, :, :]) ** 2, -1)  # (Bn, G, P)
    _, knn_idx = jax.lax.top_k(-d2, group_size)                           # (Bn, G, S)
    nbr = jax.vmap(lambda p, i: p[i])(points, knn_idx)                    # (Bn, G, S, 6)
    nbr = nbr.at[..., :3].add(-centers[:, :, None, :])                    # xyz relative
    return nbr, centers


# ----------------------------------------------------------------------------
# Deterministic synthetic parameter initialization (f32 master copies)
# ----------------------------------------------------------------------------
def init_params(key, *, trans_dim, depth, num_heads, encoder_dims,
                point_dims=6, mlp_ratio=4):
    del num_heads
    keys = iter(jax.random.split(key, 200))

    def nrm(shape, scale=0.02):
        return (scale * jax.random.normal(next(keys), shape)).astype(jnp.float32)

    def fold_bn(conv_b, gamma, beta, mean, var, eps=1e-5):
        s = gamma / jnp.sqrt(var + eps)
        t = beta + (conv_b - mean) * s
        return s[None, :], t[None, :]

    # mini-PointNet encoder (hidden 128/256/512 hard-coded as in Point-BERT)
    w1, b1 = nrm((point_dims, 128)), nrm((128,))
    s1, t1 = fold_bn(b1, 1.0 + nrm((128,)), nrm((128,)), nrm((128,)),
                     1.0 + jnp.abs(nrm((128,))))
    w3, b3 = nrm((512, 512)), nrm((512,))
    s3, t3 = fold_bn(b3, 1.0 + nrm((512,)), nrm((512,)), nrm((512,)),
                     1.0 + jnp.abs(nrm((512,))))
    encoder = dict(w1=w1, s1=s1, t1=t1,
                   w2=nrm((128, 256)), b2=nrm((256,))[None, :],
                   w3=w3, s3=s3, t3=t3,
                   w4=nrm((512, encoder_dims)), b4=nrm((encoder_dims,))[None, :])

    tok = dict(wr=nrm((encoder_dims, trans_dim)), br=nrm((trans_dim,))[None, :],
               wp1=nrm((3, 128)), bp1=nrm((128,))[None, :],
               wp2=nrm((128, trans_dim)), bp2=nrm((trans_dim,))[None, :])

    cls_token = jnp.zeros((1, 1, trans_dim), jnp.float32)   # nn.Parameter(torch.zeros)
    cls_pos = nrm((1, 1, trans_dim), scale=1.0)              # nn.Parameter(torch.randn)

    hidden = trans_dim * mlp_ratio
    blocks = []
    for _ in range(depth):
        blocks.append(dict(
            g1=(1.0 + nrm((trans_dim,)))[None, :], b1=nrm((trans_dim,))[None, :],
            wq=nrm((trans_dim, trans_dim)), wk=nrm((trans_dim, trans_dim)),
            wv=nrm((trans_dim, trans_dim)),                  # qkv_bias=False
            wo=nrm((trans_dim, trans_dim)), bo=nrm((trans_dim,))[None, :],
            g2=(1.0 + nrm((trans_dim,)))[None, :], b2=nrm((trans_dim,))[None, :],
            wm1=nrm((trans_dim, hidden)), bm1=nrm((hidden,))[None, :],
            wm2=nrm((hidden, trans_dim)), bm2=nrm((trans_dim,))[None, :]))

    norm = dict(g=(1.0 + nrm((trans_dim,)))[None, :], b=nrm((trans_dim,))[None, :])
    return dict(encoder=encoder, tok=tok, cls_token=cls_token, cls_pos=cls_pos,
                blocks=blocks, norm=norm)


# ----------------------------------------------------------------------------
# Full forward (PointBERTPcdObjEncoder.forward, inference / freeze semantics)
# ----------------------------------------------------------------------------
def pointbert_pcd_obj_encoder_forward(params, obj_pcds, cfg):
    B, O, P, C = obj_pcds.shape
    pts = obj_pcds.reshape(B * O, P, C)                       # 'b o p d -> (b o) p d'

    nbr, centers = group_points(pts, cfg["num_group"], cfg["group_size"])
    NG = B * O * cfg["num_group"]
    grp = encoder_apply(nbr.reshape(NG, cfg["group_size"], C), params["encoder"])
    grp = grp.reshape(B * O, cfg["num_group"], cfg["encoder_dims"])

    feat = transformer_apply(grp, centers, params, cfg)       # (B*O, 2*trans_dim)
    obj_embeds = feat.reshape(B, O, 2 * cfg["trans_dim"])     # '(b o) d -> b o d'
    return obj_embeds, obj_embeds


if __name__ == "__main__":
    cfg = dict(trans_dim=32, depth=2, drop_path_rate=0.0, cls_dim=40, num_heads=4,
               group_size=8, num_group=8, encoder_dims=64)  # cls head unused in forward
    key = jax.random.PRNGKey(0)
    kp, kx = jax.random.split(key)
    params = init_params(kp, trans_dim=cfg["trans_dim"], depth=cfg["depth"],
                         num_heads=cfg["num_heads"], encoder_dims=cfg["encoder_dims"])
    # obj_pcds: (batch=2, num_objs=2, points=64, xyz+rgb=6)
    obj_pcds = jax.random.normal(kx, (2, 2, 64, 6), jnp.float32)

    fwd = jax.jit(lambda p, x: pointbert_pcd_obj_encoder_forward(p, x, cfg))
    obj_embeds, obj_embeds2 = fwd(params, obj_pcds)
    jax.block_until_ready(obj_embeds)
    assert obj_embeds.shape == (2, 2, 2 * cfg["trans_dim"])
    assert bool(jnp.all(jnp.isfinite(obj_embeds)))
    print("KERNEL_OK")
</pallas_src>

<mosaic_0001>
module attributes {stable_mosaic.version = 11 : i64} {
  func.func @_encoder_kernel(%arg0: i32, %arg1: memref<32x8x6xf32, #tpu.memory_space<vmem>>, %arg2: memref<6x128xbf16, #tpu.memory_space<vmem>>, %arg3: memref<1x128xf32, #tpu.memory_space<vmem>>, %arg4: memref<1x128xf32, #tpu.memory_space<vmem>>, %arg5: memref<128x256xbf16, #tpu.memory_space<vmem>>, %arg6: memref<1x256xf32, #tpu.memory_space<vmem>>, %arg7: memref<256x512xbf16, #tpu.memory_space<vmem>>, %arg8: memref<256x512xbf16, #tpu.memory_space<vmem>>, %arg9: memref<1x512xf32, #tpu.memory_space<vmem>>, %arg10: memref<1x512xf32, #tpu.memory_space<vmem>>, %arg11: memref<512x64xbf16, #tpu.memory_space<vmem>>, %arg12: memref<1x64xf32, #tpu.memory_space<vmem>>, %arg13: memref<32x64xf32, #tpu.memory_space<vmem>>) attributes {dimension_semantics = [#tpu.dimension_semantics<parallel>], iteration_bounds = array<i64: 1>, scalar_prefetch = 0 : i64, scratch_operands = 0 : i64, tpu.core_type = #tpu.core_type<tc>, window_params = [{transform_indices = @transform_0, window_bounds = array<i64: 32, 8, 6>}, {pipeline_mode = #tpu.pipeline_mode<synchronous>, transform_indices = @transform_1, window_bounds = array<i64: 6, 128>}, {pipeline_mode = #tpu.pipeline_mode<synchronous>, transform_indices = @transform_2, window_bounds = array<i64: 1, 128>}, {pipeline_mode = #tpu.pipeline_mode<synchronous>, transform_indices = @transform_3, window_bounds = array<i64: 1, 128>}, {pipeline_mode = #tpu.pipeline_mode<synchronous>, transform_indices = @transform_4, window_bounds = array<i64: 128, 256>}, {pipeline_mode = #tpu.pipeline_mode<synchronous>, transform_indices = @transform_5, window_bounds = array<i64: 1, 256>}, {pipeline_mode = #tpu.pipeline_mode<synchronous>, transform_indices = @transform_6, window_bounds = array<i64: 256, 512>}, {pipeline_mode = #tpu.pipeline_mode<synchronous>, transform_indices = @transform_7, window_bounds = array<i64: 256, 512>}, {pipeline_mode = #tpu.pipeline_mode<synchronous>, transform_indices = @transform_8, window_bounds = array<i64: 1, 512>}, {pipeline_mode = #tpu.pipeline_mode<synchronous>, transform_indices = @transform_9, window_bounds = array<i64: 1, 512>}, {pipeline_mode = #tpu.pipeline_mode<synchronous>, transform_indices = @transform_10, window_bounds = array<i64: 512, 64>}, {pipeline_mode = #tpu.pipeline_mode<synchronous>, transform_indices = @transform_11, window_bounds = array<i64: 1, 64>}, {transform_indices = @transform_12, window_bounds = array<i64: 32, 64>}]} {
    %c0 = arith.constant 0 : index
    %c0_0 = arith.constant 0 : index
    %c0_1 = arith.constant 0 : index
    %0 = vector.load %arg1[%c0, %c0_0, %c0_1] : memref<32x8x6xf32, #tpu.memory_space<vmem>>, vector<32x8x6xf32>
    %1 = vector.shape_cast %0 : vector<32x8x6xf32> to vector<256x6xf32>
    %2 = arith.truncf %1 : vector<256x6xf32> to vector<256x6xbf16>
    %c0_2 = arith.constant 0 : index
    %c0_3 = arith.constant 0 : index
    %3 = vector.load %arg2[%c0_2, %c0_3] : memref<6x128xbf16, #tpu.memory_space<vmem>>, vector<6x128xbf16>
    %cst = arith.constant dense<0.000000e+00> : vector<256x128xf32>
    %4 = tpu.matmul %2, %3, %cst {dimension_numbers = #tpu.dot_dimension_numbers<[1], [0], [0], [1], [0, 0, 1, 1], [], []>} : vector<256x6xbf16>, vector<6x128xbf16>, vector<256x128xf32> -> vector<256x128xf32>
    %c0_4 = arith.constant 0 : index
    %c0_5 = arith.constant 0 : index
    %5 = vector.load %arg3[%c0_4, %c0_5] : memref<1x128xf32, #tpu.memory_space<vmem>>, vector<1x128xf32>
    %6 = vector.broadcast %5 : vector<1x128xf32> to vector<256x128xf32>
    %7 = arith.mulf %4, %6 : vector<256x128xf32>
    %c0_6 = arith.constant 0 : index
    %c0_7 = arith.constant 0 : index
    %8 = vector.load %arg4[%c0_6, %c0_7] : memref<1x128xf32, #tpu.memory_space<vmem>>, vector<1x128xf32>
    %9 = vector.broadcast %8 : vector<1x128xf32> to vector<256x128xf32>
    %10 = arith.addf %7, %9 : vector<256x128xf32>
    %cst_8 = arith.constant 0.000000e+00 : f32
    %11 = vector.broadcast %cst_8 : f32 to vector<256x128xf32>
    %12 = arith.maximumf %10, %11 : vector<256x128xf32>
    %13 = arith.truncf %12 : vector<256x128xf32> to vector<256x128xbf16>
    %c0_9 = arith.constant 0 : index
    %c0_10 = arith.constant 0 : index
    %14 = vector.load %arg5[%c0_9, %c0_10] : memref<128x256xbf16, #tpu.memory_space<vmem>>, vector<128x256xbf16>
    %cst_11 = arith.constant dense<0.000000e+00> : vector<256x256xf32>
    %15 = tpu.matmul %13, %14, %cst_11 {dimension_numbers = #tpu.dot_dimension_numbers<[1], [0], [0], [1], [0, 0, 1, 1], [], []>} : vector<256x128xbf16>, vector<128x256xbf16>, vector<256x256xf32> -> vector<256x256xf32>
    %c0_12 = arith.constant 0 : index
    %c0_13 = arith.constant 0 : index
    %16 = vector.load %arg6[%c0_12, %c0_13] : memref<1x256xf32, #tpu.memory_space<vmem>>, vector<1x256xf32>
    %17 = vector.broadcast %16 : vector<1x256xf32> to vector<256x256xf32>
    %18 = arith.addf %15, %17 : vector<256x256xf32>
    %19 = vector.shape_cast %18 : vector<256x256xf32> to vector<32x8x256xf32>
    %cst_14 = arith.constant dense<0xFF800000> : vector<32x256xf32>
    %20 = vector.multi_reduction <maximumf>, %19, %cst_14 [1] : vector<32x8x256xf32> to vector<32x256xf32>
    %21 = arith.truncf %20 : vector<32x256xf32> to vector<32x256xbf16>
    %c0_15 = arith.constant 0 : index
    %c0_16 = arith.constant 0 : index
    %22 = vector.load %arg7[%c0_15, %c0_16] : memref<256x512xbf16, #tpu.memory_space<vmem>>, vector<256x512xbf16>
    %cst_17 = arith.constant dense<0.000000e+00> : vector<32x512xf32>
    %23 = tpu.matmul %21, %22, %cst_17 {dimension_numbers = #tpu.dot_dimension_numbers<[1], [0], [0], [1], [0, 0, 1, 1], [], []>} : vector<32x256xbf16>, vector<256x512xbf16>, vector<32x512xf32> -> vector<32x512xf32>
    %24 = arith.truncf %18 : vector<256x256xf32> to vector<256x256xbf16>
    %c0_18 = arith.constant 0 : index
    %c0_19 = arith.constant 0 : index
    %25 = vector.load %arg8[%c0_18, %c0_19] : memref<256x512xbf16, #tpu.memory_space<vmem>>, vector<256x512xbf16>
    %cst_20 = arith.constant dense<0.000000e+00> : vector<256x512xf32>
    %26 = tpu.matmul %24, %25, %cst_20 {dimension_numbers = #tpu.dot_dimension_numbers<[1], [0], [0], [1], [0, 0, 1, 1], [], []>} : vector<256x256xbf16>, vector<256x512xbf16>, vector<256x512xf32> -> vector<256x512xf32>
    %27 = vector.shape_cast %26 : vector<256x512xf32> to vector<32x8x512xf32>
    %28 = vector.shape_cast %23 : vector<32x512xf32> to vector<32x1x512xf32>
    %29 = vector.broadcast %28 : vector<32x1x512xf32> to vector<32x8x512xf32>
    %30 = arith.addf %27, %29 : vector<32x8x512xf32>
    %c0_21 = arith.constant 0 : index
    %c0_22 = arith.constant 0 : index
    %31 = vector.load %arg9[%c0_21, %c0_22] : memref<1x512xf32, #tpu.memory_space<vmem>>, vector<1x512xf32>
    %32 = vector.shape_cast %31 : vector<1x512xf32> to vector<1x1x512xf32>
    %33 = vector.broadcast %32 : vector<1x1x512xf32> to vector<32x8x512xf32>
    %34 = arith.mulf %30, %33 : vector<32x8x512xf32>
    %c0_23 = arith.constant 0 : index
    %c0_24 = arith.constant 0 : index
    %35 = vector.load %arg10[%c0_23, %c0_24] : memref<1x512xf32, #tpu.memory_space<vmem>>, vector<1x512xf32>
    %36 = vector.shape_cast %35 : vector<1x512xf32> to vector<1x1x512xf32>
    %37 = vector.broadcast %36 : vector<1x1x512xf32> to vector<32x8x512xf32>
    %38 = arith.addf %34, %37 : vector<32x8x512xf32>
    %cst_25 = arith.constant 0.000000e+00 : f32
    %39 = vector.broadcast %cst_25 : f32 to vector<32x8x512xf32>
    %40 = arith.maximumf %38, %39 : vector<32x8x512xf32>
    %41 = vector.shape_cast %40 : vector<32x8x512xf32> to vector<256x512xf32>
    %42 = arith.truncf %41 : vector<256x512xf32> to vector<256x512xbf16>
    %c0_26 = arith.constant 0 : index
    %c0_27 = arith.constant 0 : index
    %43 = vector.load %arg11[%c0_26, %c0_27] : memref<512x64xbf16, #tpu.memory_space<vmem>>, vector<512x64xbf16>
    %cst_28 = arith.constant dense<0.000000e+00> : vector<256x64xf32>
    %44 = tpu.matmul %42, %43, %cst_28 {dimension_numbers = #tpu.dot_dimension_numbers<[1], [0], [0], [1], [0, 0, 1, 1], [], []>} : vector<256x512xbf16>, vector<512x64xbf16>, vector<256x64xf32> -> vector<256x64xf32>
    %c0_29 = arith.constant 0 : index
    %c0_30 = arith.constant 0 : index
    %45 = vector.load %arg12[%c0_29, %c0_30] : memref<1x64xf32, #tpu.memory_space<vmem>>, vector<1x64xf32>
    %46 = vector.broadcast %45 : vector<1x64xf32> to vector<256x64xf32>
    %47 = arith.addf %44, %46 : vector<256x64xf32>
    %48 = vector.shape_cast %47 : vector<256x64xf32> to vector<32x8x64xf32>
    %cst_31 = arith.constant dense<0xFF800000> : vector<32x64xf32>
    %49 = vector.multi_reduction <maximumf>, %48, %cst_31 [1] : vector<32x8x64xf32> to vector<32x64xf32>
    %c0_32 = arith.constant 0 : index
    %c0_33 = arith.constant 0 : index
    %50 = vector.load %arg13[%c0_32, %c0_33] : memref<32x64xf32, #tpu.memory_space<vmem>>, vector<32x64xf32>
    tpu.vector_store %arg13[%c0_32, %c0_33], %49 {strides = array<i32>} : memref<32x64xf32, #tpu.memory_space<vmem>>, vector<32x64xf32>,
    return
  }
  func.func @transform_0(%arg0: i32) -> (i32, i32, i32) {
    %c0_i32 = arith.constant 0 : i32
    %c0_i32_0 = arith.constant 0 : i32
    %c0_i32_1 = arith.constant 0 : i32
    return %arg0, %c0_i32, %c0_i32_0 : i32, i32, i32
  }
  func.func @transform_1(%arg0: i32) -> (i32, i32) {
    %c0_i32 = arith.constant 0 : i32
    %c0_i32_0 = arith.constant 0 : i32
    %c0_i32_1 = arith.constant 0 : i32
    return %c0_i32, %c0_i32_0 : i32, i32
  }
  func.func @transform_2(%arg0: i32) -> (i32, i32) {
    %c0_i32 = arith.constant 0 : i32
    %c0_i32_0 = arith.constant 0 : i32
    %c0_i32_1 = arith.constant 0 : i32
    return %c0_i32, %c0_i32_0 : i32, i32
  }
  func.func @transform_3(%arg0: i32) -> (i32, i32) {
    %c0_i32 = arith.constant 0 : i32
    %c0_i32_0 = arith.constant 0 : i32
    %c0_i32_1 = arith.constant 0 : i32
    return %c0_i32, %c0_i32_0 : i32, i32
  }
  func.func @transform_4(%arg0: i32) -> (i32, i32) {
    %c0_i32 = arith.constant 0 : i32
    %c0_i32_0 = arith.constant 0 : i32
    %c0_i32_1 = arith.constant 0 : i32
    return %c0_i32, %c0_i32_0 : i32, i32
  }
  func.func @transform_5(%arg0: i32) -> (i32, i32) {
    %c0_i32 = arith.constant 0 : i32
    %c0_i32_0 = arith.constant 0 : i32
    %c0_i32_1 = arith.constant 0 : i32
    return %c0_i32, %c0_i32_0 : i32, i32
  }
  func.func @transform_6(%arg0: i32) -> (i32, i32) {
    %c0_i32 = arith.constant 0 : i32
    %c0_i32_0 = arith.constant 0 : i32
    %c0_i32_1 = arith.constant 0 : i32
    return %c0_i32, %c0_i32_0 : i32, i32
  }
  func.func @transform_7(%arg0: i32) -> (i32, i32) {
    %c0_i32 = arith.constant 0 : i32
    %c0_i32_0 = arith.constant 0 : i32
    %c0_i32_1 = arith.constant 0 : i32
    return %c0_i32, %c0_i32_0 : i32, i32
  }
  func.func @transform_8(%arg0: i32) -> (i32, i32) {
    %c0_i32 = arith.constant 0 : i32
    %c0_i32_0 = arith.constant 0 : i32
    %c0_i32_1 = arith.constant 0 : i32
    return %c0_i32, %c0_i32_0 : i32, i32
  }
  func.func @transform_9(%arg0: i32) -> (i32, i32) {
    %c0_i32 = arith.constant 0 : i32
    %c0_i32_0 = arith.constant 0 : i32
    %c0_i32_1 = arith.constant 0 : i32
    return %c0_i32, %c0_i32_0 : i32, i32
  }
  func.func @transform_10(%arg0: i32) -> (i32, i32) {
    %c0_i32 = arith.constant 0 : i32
    %c0_i32_0 = arith.constant 0 : i32
    %c0_i32_1 = arith.constant 0 : i32
    return %c0_i32, %c0_i32_0 : i32, i32
  }
  func.func @transform_11(%arg0: i32) -> (i32, i32) {
    %c0_i32 = arith.constant 0 : i32
    %c0_i32_0 = arith.constant 0 : i32
    %c0_i32_1 = arith.constant 0 : i32
    return %c0_i32, %c0_i32_0 : i32, i32
  }
  func.func @transform_12(%arg0: i32) -> (i32, i32) {
    %c0_i32 = arith.constant 0 : i32
    %c0_i32_0 = arith.constant 0 : i32
    return %arg0, %c0_i32 : i32, i32
  }
}

module attributes {stable_mosaic.version = 11 : i64} {
  func.func @_transformer_kernel(%arg0: i32, %arg1: i32, %arg2: memref<4x8x64xf32, #tpu.memory_space<vmem>>, %arg3: memref<4x8x3xf32, #tpu.memory_space<vmem>>, %arg4: memref<1x1x32xf32, #tpu.memory_space<vmem>>, %arg5: memref<1x1x32xf32, #tpu.memory_space<vmem>>, %arg6: memref<64x32xbf16, #tpu.memory_space<vmem>>, %arg7: memref<1x32xf32, #tpu.memory_space<vmem>>, %arg8: memref<3x128xf32, #tpu.memory_space<vmem>>, %arg9: memref<1x128xf32, #tpu.memory_space<vmem>>, %arg10: memref<128x32xbf16, #tpu.memory_space<vmem>>, %arg11: memref<1x32xf32, #tpu.memory_space<vmem>>, %arg12: memref<1x1x32xf32, #tpu.memory_space<vmem>>, %arg13: memref<1x1x32xf32, #tpu.memory_space<vmem>>, %arg14: memref<1x32x96xbf16, #tpu.memory_space<vmem>>, %arg15: memref<1x32x32xbf16, #tpu.memory_space<vmem>>, %arg16: memref<1x1x32xf32, #tpu.memory_space<vmem>>, %arg17: memref<1x1x32xf32, #tpu.memory_space<vmem>>, %arg18: memref<1x1x32xf32, #tpu.memory_space<vmem>>, %arg19: memref<1x32x128xbf16, #tpu.memory_space<vmem>>, %arg20: memref<1x1x128xf32, #tpu.memory_space<vmem>>, %arg21: memref<1x128x32xbf16, #tpu.memory_space<vmem>>, %arg22: memref<1x1x32xf32, #tpu.memory_space<vmem>>, %arg23: memref<1x32xf32, #tpu.memory_space<vmem>>, %arg24: memref<1x32xf32, #tpu.memory_space<vmem>>, %arg25: memref<4x64xf32, #tpu.memory_space<vmem>>, %arg26: memref<4x16x32xf32, #tpu.memory_space<vmem>>, %arg27: memref<4x16x32xf32, #tpu.memory_space<vmem>>) attributes {dimension_semantics = [#tpu.dimension_semantics<parallel>, #tpu.dimension_semantics<arbitrary>], iteration_bounds = array<i64: 1, 2>, scalar_prefetch = 0 : i64, scratch_operands = 2 : i64, tpu.core_type = #tpu.core_type<tc>, window_params = [{transform_indices = @transform_0, window_bounds = array<i64: 4, 8, 64>}, {transform_indices = @transform_1, window_bounds = array<i64: 4, 8, 3>}, {pipeline_mode = #tpu.pipeline_mode<synchronous>, transform_indices = @transform_2, window_bounds = array<i64: 1, 1, 32>}, {pipeline_mode = #tpu.pipeline_mode<synchronous>, transform_indices = @transform_3, window_bounds = array<i64: 1, 1, 32>}, {pipeline_mode = #tpu.pipeline_mode<synchronous>, transform_indices = @transform_4, window_bounds = array<i64: 64, 32>}, {pipeline_mode = #tpu.pipeline_mode<synchronous>, transform_indices = @transform_5, window_bounds = array<i64: 1, 32>}, {pipeline_mode = #tpu.pipeline_mode<synchronous>, transform_indices = @transform_6, window_bounds = array<i64: 3, 128>}, {pipeline_mode = #tpu.pipeline_mode<synchronous>, transform_indices = @transform_7, window_bounds = array<i64: 1, 128>}, {pipeline_mode = #tpu.pipeline_mode<synchronous>, transform_indices = @transform_8, window_bounds = array<i64: 128, 32>}, {pipeline_mode = #tpu.pipeline_mode<synchronous>, transform_indices = @transform_9, window_bounds = array<i64: 1, 32>}, {transform_indices = @transform_10, window_bounds = array<i64: 1, 1, 32>}, {transform_indices = @transform_11, window_bounds = array<i64: 1, 1, 32>}, {transform_indices = @transform_12, window_bounds = array<i64: 1, 32, 96>}, {transform_indices = @transform_13, window_bounds = array<i64: 1, 32, 32>}, {transform_indices = @transform_14, window_bounds = array<i64: 1, 1, 32>}, {transform_indices = @transform_15, window_bounds = array<i64: 1, 1, 32>}, {transform_indices = @transform_16, window_bounds = array<i64: 1, 1, 32>}, {transform_indices = @transform_17, window_bounds = array<i64: 1, 32, 128>}, {transform_indices = @transform_18, window_bounds = array<i64: 1, 1, 128>}, {transform_indices = @transform_19, window_bounds = array<i64: 1, 128, 32>}, {transform_indices = @transform_20, window_bounds = array<i64: 1, 1, 32>}, {pipeline_mode = #tpu.pipeline_mode<synchronous>, transform_indices = @transform_21, window_bounds = array<i64: 1, 32>}, {pipeline_mode = #tpu.pipeline_mode<synchronous>, transform_indices = @transform_22, window_bounds = array<i64: 1, 32>}, {transform_indices = @transform_23, window_bounds = array<i64: 4, 64>}]} {
    %c0_i32 = arith.constant 0 : i32
    %0 = arith.cmpi eq, %arg1, %c0_i32 : i32
    %1 = arith.extui %0 : i1 to i32
    %c0_i32_0 = arith.constant 0 : i32
    %2 = arith.cmpi ne, %1, %c0_i32_0 : i32
    scf.if %2 {
      %c0_88 = arith.constant 0 : index
      %c0_89 = arith.constant 0 : index
      %c0_90 = arith.constant 0 : index
      %224 = vector.load %arg2[%c0_88, %c0_89, %c0_90] : memref<4x8x64xf32, #tpu.memory_space<vmem>>, vector<4x8x64xf32>
      %225 = vector.shape_cast %224 : vector<4x8x64xf32> to vector<32x64xf32>
      %226 = arith.truncf %225 : vector<32x64xf32> to vector<32x64xbf16>
      %c0_91 = arith.constant 0 : index
      %c0_92 = arith.constant 0 : index
      %227 = vector.load %arg6[%c0_91, %c0_92] : memref<64x32xbf16, #tpu.memory_space<vmem>>, vector<64x32xbf16>
      %cst_93 = arith.constant dense<0.000000e+00> : vector<32x32xf32>
      %228 = tpu.matmul %226, %227, %cst_93 {dimension_numbers = #tpu.dot_dimension_numbers<[1], [0], [0], [1], [0, 0, 1, 1], [], []>} : vector<32x64xbf16>, vector<64x32xbf16>, vector<32x32xf32> -> vector<32x32xf32>
      %c0_94 = arith.constant 0 : index
      %c0_95 = arith.constant 0 : index
      %229 = vector.load %arg7[%c0_94, %c0_95] : memref<1x32xf32, #tpu.memory_space<vmem>>, vector<1x32xf32>
      %230 = vector.broadcast %229 : vector<1x32xf32> to vector<32x32xf32>
      %231 = arith.addf %228, %230 : vector<32x32xf32>
      %232 = vector.shape_cast %231 : vector<32x32xf32> to vector<4x8x32xf32>
      %c0_96 = arith.constant 0 : index
      %c0_97 = arith.constant 0 : index
      %c0_98 = arith.constant 0 : index
      %233 = vector.load %arg3[%c0_96, %c0_97, %c0_98] : memref<4x8x3xf32, #tpu.memory_space<vmem>>, vector<4x8x3xf32>
      %234 = vector.shape_cast %233 : vector<4x8x3xf32> to vector<32x3xf32>
      %c0_99 = arith.constant 0 : index
      %c0_100 = arith.constant 0 : index
      %235 = vector.load %arg8[%c0_99, %c0_100] : memref<3x128xf32, #tpu.memory_space<vmem>>, vector<3x128xf32>
      %cst_101 = arith.constant dense<0.000000e+00> : vector<32x128xf32>
      %236 = tpu.matmul %234, %235, %cst_101 {dimension_numbers = #tpu.dot_dimension_numbers<[1], [0], [0], [1], [0, 0, 1, 1], [], []>} : vector<32x3xf32>, vector<3x128xf32>, vector<32x128xf32> -> vector<32x128xf32>
      %c0_102 = arith.constant 0 : index
      %c0_103 = arith.constant 0 : index
      %237 = vector.load %arg9[%c0_102, %c0_103] : memref<1x128xf32, #tpu.memory_space<vmem>>, vector<1x128xf32>
      %238 = vector.broadcast %237 : vector<1x128xf32> to vector<32x128xf32>
      %239 = arith.addf %236, %238 : vector<32x128xf32>
      %cst_104 = arith.constant 5.000000e-01 : f32
      %240 = vector.broadcast %cst_104 : f32 to vector<32x128xf32>
      %241 = arith.mulf %240, %239 : vector<32x128xf32>
      %cst_105 = arith.constant 4.471500e-02 : f32
      %242 = vector.broadcast %cst_105 : f32 to vector<32x128xf32>
      %243 = arith.mulf %242, %239 : vector<32x128xf32>
      %244 = arith.mulf %243, %239 : vector<32x128xf32>
      %245 = arith.mulf %244, %239 : vector<32x128xf32>
      %246 = arith.addf %239, %245 : vector<32x128xf32>
      %cst_106 = arith.constant 0.797884583 : f32
      %247 = vector.broadcast %cst_106 : f32 to vector<32x128xf32>
      %248 = arith.mulf %247, %246 : vector<32x128xf32>
      %249 = math.tanh %248 : vector<32x128xf32>
      %cst_107 = arith.constant 1.000000e+00 : f32
      %250 = vector.broadcast %cst_107 : f32 to vector<32x128xf32>
      %251 = arith.addf %250, %249 : vector<32x128xf32>
      %252 = arith.mulf %241, %251 : vector<32x128xf32>
      %253 = arith.truncf %252 : vector<32x128xf32> to vector<32x128xbf16>
      %c0_108 = arith.constant 0 : index
      %c0_109 = arith.constant 0 : index
      %254 = vector.load %arg10[%c0_108, %c0_109] : memref<128x32xbf16, #tpu.memory_space<vmem>>, vector<128x32xbf16>
      %cst_110 = arith.constant dense<0.000000e+00> : vector<32x32xf32>
      %255 = tpu.matmul %253, %254, %cst_110 {dimension_numbers = #tpu.dot_dimension_numbers<[1], [0], [0], [1], [0, 0, 1, 1], [], []>} : vector<32x128xbf16>, vector<128x32xbf16>, vector<32x32xf32> -> vector<32x32xf32>
      %c0_111 = arith.constant 0 : index
      %c0_112 = arith.constant 0 : index
      %256 = vector.load %arg11[%c0_111, %c0_112] : memref<1x32xf32, #tpu.memory_space<vmem>>, vector<1x32xf32>
      %257 = vector.broadcast %256 : vector<1x32xf32> to vector<32x32xf32>
      %258 = arith.addf %255, %257 : vector<32x32xf32>
      %259 = vector.shape_cast %258 : vector<32x32xf32> to vector<4x8x32xf32>
      %cst_113 = arith.constant 0.000000e+00 : f32
      %260 = vector.broadcast %cst_113 : f32 to vector<4x16x32xf32>
      %c0_114 = arith.constant 0 : index
      %c0_115 = arith.constant 0 : index
      %c0_116 = arith.constant 0 : index
      %261 = vector.load %arg26[%c0_114, %c0_115, %c0_116] : memref<4x16x32xf32, #tpu.memory_space<vmem>>, vector<4x16x32xf32>
      tpu.vector_store %arg26[%c0_114, %c0_115, %c0_116], %260 {strides = array<i32>} : memref<4x16x32xf32, #tpu.memory_space<vmem>>, vector<4x16x32xf32>,
      %cst_117 = arith.constant 0.000000e+00 : f32
      %262 = vector.broadcast %cst_117 : f32 to vector<4x16x32xf32>
      %c0_118 = arith.constant 0 : index
      %c0_119 = arith.constant 0 : index
      %c0_120 = arith.constant 0 : index
      %263 = vector.load %arg27[%c0_118, %c0_119, %c0_120] : memref<4x16x32xf32, #tpu.memory_space<vmem>>, vector<4x16x32xf32>
      tpu.vector_store %arg27[%c0_118, %c0_119, %c0_120], %262 {strides = array<i32>} : memref<4x16x32xf32, #tpu.memory_space<vmem>>, vector<4x16x32xf32>,
      %c0_121 = arith.constant 0 : index
      %c0_122 = arith.constant 0 : index
      %c0_123 = arith.constant 0 : index
      %264 = vector.load %arg26[%c0_121, %c0_122, %c0_123] : memref<4x16x32xf32, #tpu.memory_space<vmem>>, vector<4x8x32xf32>
      tpu.vector_store %arg26[%c0_121, %c0_122, %c0_123], %232 {strides = array<i32>} : memref<4x16x32xf32, #tpu.memory_space<vmem>>, vector<4x8x32xf32>,
      %c0_124 = arith.constant 0 : index
      %c0_125 = arith.constant 0 : index
      %c0_126 = arith.constant 0 : index
      %265 = vector.load %arg27[%c0_124, %c0_125, %c0_126] : memref<4x16x32xf32, #tpu.memory_space<vmem>>, vector<4x8x32xf32>
      tpu.vector_store %arg27[%c0_124, %c0_125, %c0_126], %259 {strides = array<i32>} : memref<4x16x32xf32, #tpu.memory_space<vmem>>, vector<4x8x32xf32>,
      %c0_127 = arith.constant 0 : index
      %c0_128 = arith.constant 0 : index
      %c0_129 = arith.constant 0 : index
      %266 = vector.load %arg4[%c0_127, %c0_128, %c0_129] : memref<1x1x32xf32, #tpu.memory_space<vmem>>, vector<1x1x32xf32>
      %267 = vector.shape_cast %266 : vector<1x1x32xf32> to vector<1x1x32xf32>
      %268 = vector.broadcast %267 : vector<1x1x32xf32> to vector<4x1x32xf32>
      %c0_130 = arith.constant 0 : index
      %c8 = arith.constant 8 : index
      %c0_131 = arith.constant 0 : index
      %269 = vector.load %arg26[%c0_130, %c8, %c0_131] : memref<4x16x32xf32, #tpu.memory_space<vmem>>, vector<4x1x32xf32>
      tpu.vector_store %arg26[%c0_130, %c8, %c0_131], %268 {strides = array<i32>} : memref<4x16x32xf32, #tpu.memory_space<vmem>>, vector<4x1x32xf32>,
      %c0_132 = arith.constant 0 : index
      %c0_133 = arith.constant 0 : index
      %c0_134 = arith.constant 0 : index
      %270 = vector.load %arg5[%c0_132, %c0_133, %c0_134] : memref<1x1x32xf32, #tpu.memory_space<vmem>>, vector<1x1x32xf32>
      %271 = vector.shape_cast %270 : vector<1x1x32xf32> to vector<1x1x32xf32>
      %272 = vector.broadcast %271 : vector<1x1x32xf32> to vector<4x1x32xf32>
      %c0_135 = arith.constant 0 : index
      %c8_136 = arith.constant 8 : index
      %c0_137 = arith.constant 0 : index
      %273 = vector.load %arg27[%c0_135, %c8_136, %c0_137] : memref<4x16x32xf32, #tpu.memory_space<vmem>>, vector<4x1x32xf32>
      tpu.vector_store %arg27[%c0_135, %c8_136, %c0_137], %272 {strides = array<i32>} : memref<4x16x32xf32, #tpu.memory_space<vmem>>, vector<4x1x32xf32>,
    } else {
    }
    %c0 = arith.constant 0 : index
    %c0_1 = arith.constant 0 : index
    %c0_2 = arith.constant 0 : index
    %3 = vector.load %arg26[%c0, %c0_1, %c0_2] : memref<4x16x32xf32, #tpu.memory_space<vmem>>, vector<4x16x32xf32>
    %c0_3 = arith.constant 0 : index
    %c0_4 = arith.constant 0 : index
    %c0_5 = arith.constant 0 : index
    %4 = vector.load %arg27[%c0_3, %c0_4, %c0_5] : memref<4x16x32xf32, #tpu.memory_space<vmem>>, vector<4x16x32xf32>
    %5 = arith.addf %3, %4 : vector<4x16x32xf32>
    %c0_6 = arith.constant 0 : index
    %c0_7 = arith.constant 0 : index
    %c0_8 = arith.constant 0 : index
    %6 = vector.load %arg12[%c0_6, %c0_7, %c0_8] : memref<1x1x32xf32, #tpu.memory_space<vmem>>, vector<1x1x32xf32>
    %7 = vector.shape_cast %6 : vector<1x1x32xf32> to vector<1x32xf32>
    %c0_9 = arith.constant 0 : index
    %c0_10 = arith.constant 0 : index
    %c0_11 = arith.constant 0 : index
    %8 = vector.load %arg13[%c0_9, %c0_10, %c0_11] : memref<1x1x32xf32, #tpu.memory_space<vmem>>, vector<1x1x32xf32>
    %9 = vector.shape_cast %8 : vector<1x1x32xf32> to vector<1x32xf32>
    %cst = arith.constant dense<0.000000e+00> : vector<4x16xf32>
    %10 = vector.multi_reduction <add>, %5, %cst [2] : vector<4x16x32xf32> to vector<4x16xf32>
    %11 = vector.shape_cast %10 : vector<4x16xf32> to vector<4x16x1xf32>
    %cst_12 = arith.constant 3.200000e+01 : f32
    %12 = vector.broadcast %cst_12 : f32 to vector<4x16x1xf32>
    %13 = arith.divf %11, %12 : vector<4x16x1xf32>
    %14 = vector.broadcast %13 : vector<4x16x1xf32> to vector<4x16x32xf32>
    %15 = arith.subf %5, %14 : vector<4x16x32xf32>
    %16 = arith.mulf %15, %15 : vector<4x16x32xf32>
    %cst_13 = arith.constant dense<0.000000e+00> : vector<4x16xf32>
    %17 = vector.multi_reduction <add>, %16, %cst_13 [2] : vector<4x16x32xf32> to vector<4x16xf32>
    %18 = vector.shape_cast %17 : vector<4x16xf32> to vector<4x16x1xf32>
    %cst_14 = arith.constant 3.200000e+01 : f32
    %19 = vector.broadcast %cst_14 : f32 to vector<4x16x1xf32>
    %20 = arith.divf %18, %19 : vector<4x16x1xf32>
    %cst_15 = arith.constant 9.99999974E-6 : f32
    %21 = vector.broadcast %cst_15 : f32 to vector<4x16x1xf32>
    %22 = arith.addf %20, %21 : vector<4x16x1xf32>
    %23 = math.rsqrt %22 : vector<4x16x1xf32>
    %24 = vector.broadcast %23 : vector<4x16x1xf32> to vector<4x16x32xf32>
    %25 = arith.mulf %15, %24 : vector<4x16x32xf32>
    %26 = vector.shape_cast %7 : vector<1x32xf32> to vector<1x1x32xf32>
    %27 = vector.broadcast %26 : vector<1x1x32xf32> to vector<4x16x32xf32>
    %28 = arith.mulf %25, %27 : vector<4x16x32xf32>
    %29 = vector.shape_cast %9 : vector<1x32xf32> to vector<1x1x32xf32>
    %30 = vector.broadcast %29 : vector<1x1x32xf32> to vector<4x16x32xf32>
    %31 = arith.addf %28, %30 : vector<4x16x32xf32>
    %32 = vector.shape_cast %31 : vector<4x16x32xf32> to vector<64x32xf32>
    %33 = arith.truncf %32 : vector<64x32xf32> to vector<64x32xbf16>
    %c0_16 = arith.constant 0 : index
    %c0_17 = arith.constant 0 : index
    %c0_18 = arith.constant 0 : index
    %34 = vector.load %arg14[%c0_16, %c0_17, %c0_18] : memref<1x32x96xbf16, #tpu.memory_space<vmem>>, vector<1x32x96xbf16>
    %35 = vector.shape_cast %34 : vector<1x32x96xbf16> to vector<32x96xbf16>
    %cst_19 = arith.constant dense<0.000000e+00> : vector<64x96xf32>
    %36 = tpu.matmul %33, %35, %cst_19 {dimension_numbers = #tpu.dot_dimension_numbers<[1], [0], [0], [1], [0, 0, 1, 1], [], []>} : vector<64x32xbf16>, vector<32x96xbf16>, vector<64x96xf32> -> vector<64x96xf32>
    %37 = vector.shape_cast %36 : vector<64x96xf32> to vector<4x16x96xf32>
    %38 = tpu.iota {dimensions = array<i32: 2>} : vector<4x16x16xi32>
    %c9_i32 = arith.constant 9 : i32
    %39 = vector.broadcast %c9_i32 : i32 to vector<4x16x16xi32>
    %40 = arith.cmpi slt, %38, %39 : vector<4x16x16xi32>
    %c0_20 = arith.constant 0 : index
    %c0_21 = arith.constant 0 : index
    %c0_22 = arith.constant 0 : index
    %41 = vector.load %arg15[%c0_20, %c0_21, %c0_22] : memref<1x32x32xbf16, #tpu.memory_space<vmem>>, vector<1x32x32xbf16>
    %42 = vector.shape_cast %41 : vector<1x32x32xbf16> to vector<32x32xbf16>
    %cst_23 = arith.constant 0.000000e+00 : f32
    %43 = vector.broadcast %cst_23 : f32 to vector<64x32xf32>
    %44 = vector.extract_strided_slice %37 {offsets = [0, 0, 0], sizes = [4, 16, 8], strides = [1, 1, 1]} : vector<4x16x96xf32> to vector<4x16x8xf32>
    %45 = arith.truncf %44 : vector<4x16x8xf32> to vector<4x16x8xbf16>
    %46 = vector.extract_strided_slice %37 {offsets = [0, 0, 32], sizes = [4, 16, 8], strides = [1, 1, 1]} : vector<4x16x96xf32> to vector<4x16x8xf32>
    %47 = arith.truncf %46 : vector<4x16x8xf32> to vector<4x16x8xbf16>
    %48 = vector.extract_strided_slice %37 {offsets = [0, 0, 64], sizes = [4, 16, 8], strides = [1, 1, 1]} : vector<4x16x96xf32> to vector<4x16x8xf32>
    %49 = arith.truncf %48 : vector<4x16x8xf32> to vector<4x16x8xbf16>
    "tpu.trace_start"() <{level = 10 : i32, message = "bqd,bkd->bqk"}> : () -> ()
    %cst_24 = arith.constant dense<0.000000e+00> : vector<4x16x16xf32>
    %50 = tpu.matmul %45, %47, %cst_24 {dimension_numbers = #tpu.dot_dimension_numbers<[2], [2], [1], [1], [0, 0, 0, 1, 1, 1], [0], [0]>} : vector<4x16x8xbf16>, vector<4x16x8xbf16>, vector<4x16x16xf32> -> vector<4x16x16xf32>
    "tpu.trace_stop"() : () -> ()
    %cst_25 = arith.constant 0.353553385 : f32
    %51 = vector.broadcast %cst_25 : f32 to vector<4x16x16xf32>
    %52 = arith.mulf %50, %51 : vector<4x16x16xf32>
    %cst_26 = arith.constant -1.000000e+30 : f32
    %53 = vector.broadcast %cst_26 : f32 to vector<4x16x16xf32>
    %54 = arith.select %40, %52, %53 : vector<4x16x16xi1>, vector<4x16x16xf32>
    %cst_27 = arith.constant dense<0xFF800000> : vector<4x16xf32>
    %55 = vector.multi_reduction <maximumf>, %54, %cst_27 [2] : vector<4x16x16xf32> to vector<4x16xf32>
    %56 = vector.shape_cast %55 : vector<4x16xf32> to vector<4x16x1xf32>
    %57 = vector.broadcast %56 : vector<4x16x1xf32> to vector<4x16x16xf32>
    %58 = arith.subf %54, %57 : vector<4x16x16xf32>
    %59 = math.exp %58 : vector<4x16x16xf32>
    %cst_28 = arith.constant dense<0.000000e+00> : vector<4x16xf32>
    %60 = vector.multi_reduction <add>, %59, %cst_28 [2] : vector<4x16x16xf32> to vector<4x16xf32>
    %61 = vector.shape_cast %60 : vector<4x16xf32> to vector<4x16x1xf32>
    %62 = tpu.reciprocal %61 {approx = true} : vector<4x16x1xf32> -> vector<4x16x1xf32>
    %63 = vector.broadcast %62 : vector<4x16x1xf32> to vector<4x16x16xf32>
    %64 = arith.mulf %59, %63 : vector<4x16x16xf32>
    %65 = arith.truncf %64 : vector<4x16x16xf32> to vector<4x16x16xbf16>
    "tpu.trace_start"() <{level = 10 : i32, message = "bqk,bkd->bqd"}> : () -> ()
    %cst_29 = arith.constant dense<0.000000e+00> : vector<4x16x8xf32>
    %66 = tpu.matmul %65, %49, %cst_29 {dimension_numbers = #tpu.dot_dimension_numbers<[2], [1], [1], [2], [0, 0, 0, 1, 1, 2], [0], [0]>} : vector<4x16x16xbf16>, vector<4x16x8xbf16>, vector<4x16x8xf32> -> vector<4x16x8xf32>
    "tpu.trace_stop"() : () -> ()
    %67 = vector.shape_cast %66 : vector<4x16x8xf32> to vector<64x8xf32>
    %68 = arith.truncf %67 : vector<64x8xf32> to vector<64x8xbf16>
    %69 = vector.extract_strided_slice %42 {offsets = [0, 0], sizes = [8, 32], strides = [1, 1]} : vector<32x32xbf16> to vector<8x32xbf16>
    %cst_30 = arith.constant dense<0.000000e+00> : vector<64x32xf32>
    %70 = tpu.matmul %68, %69, %cst_30 {dimension_numbers = #tpu.dot_dimension_numbers<[1], [0], [0], [1], [0, 0, 1, 1], [], []>} : vector<64x8xbf16>, vector<8x32xbf16>, vector<64x32xf32> -> vector<64x32xf32>
    %71 = arith.addf %43, %70 : vector<64x32xf32>
    %72 = vector.extract_strided_slice %37 {offsets = [0, 0, 8], sizes = [4, 16, 8], strides = [1, 1, 1]} : vector<4x16x96xf32> to vector<4x16x8xf32>
    %73 = arith.truncf %72 : vector<4x16x8xf32> to vector<4x16x8xbf16>
    %74 = vector.extract_strided_slice %37 {offsets = [0, 0, 40], sizes = [4, 16, 8], strides = [1, 1, 1]} : vector<4x16x96xf32> to vector<4x16x8xf32>
    %75 = arith.truncf %74 : vector<4x16x8xf32> to vector<4x16x8xbf16>
    %76 = vector.extract_strided_slice %37 {offsets = [0, 0, 72], sizes = [4, 16, 8], strides = [1, 1, 1]} : vector<4x16x96xf32> to vector<4x16x8xf32>
    %77 = arith.truncf %76 : vector<4x16x8xf32> to vector<4x16x8xbf16>
    "tpu.trace_start"() <{level = 10 : i32, message = "bqd,bkd->bqk"}> : () -> ()
    %cst_31 = arith.constant dense<0.000000e+00> : vector<4x16x16xf32>
    %78 = tpu.matmul %73, %75, %cst_31 {dimension_numbers = #tpu.dot_dimension_numbers<[2], [2], [1], [1], [0, 0, 0, 1, 1, 1], [0], [0]>} : vector<4x16x8xbf16>, vector<4x16x8xbf16>, vector<4x16x16xf32> -> vector<4x16x16xf32>
    "tpu.trace_stop"() : () -> ()
    %cst_32 = arith.constant 0.353553385 : f32
    %79 = vector.broadcast %cst_32 : f32 to vector<4x16x16xf32>
    %80 = arith.mulf %78, %79 : vector<4x16x16xf32>
    %cst_33 = arith.constant -1.000000e+30 : f32
    %81 = vector.broadcast %cst_33 : f32 to vector<4x16x16xf32>
    %82 = arith.select %40, %80, %81 : vector<4x16x16xi1>, vector<4x16x16xf32>
    %cst_34 = arith.constant dense<0xFF800000> : vector<4x16xf32>
    %83 = vector.multi_reduction <maximumf>, %82, %cst_34 [2] : vector<4x16x16xf32> to vector<4x16xf32>
    %84 = vector.shape_cast %83 : vector<4x16xf32> to vector<4x16x1xf32>
    %85 = vector.broadcast %84 : vector<4x16x1xf32> to vector<4x16x16xf32>
    %86 = arith.subf %82, %85 : vector<4x16x16xf32>
    %87 = math.exp %86 : vector<4x16x16xf32>
    %cst_35 = arith.constant dense<0.000000e+00> : vector<4x16xf32>
    %88 = vector.multi_reduction <add>, %87, %cst_35 [2] : vector<4x16x16xf32> to vector<4x16xf32>
    %89 = vector.shape_cast %88 : vector<4x16xf32> to vector<4x16x1xf32>
    %90 = tpu.reciprocal %89 {approx = true} : vector<4x16x1xf32> -> vector<4x16x1xf32>
    %91 = vector.broadcast %90 : vector<4x16x1xf32> to vector<4x16x16xf32>
    %92 = arith.mulf %87, %91 : vector<4x16x16xf32>
    %93 = arith.truncf %92 : vector<4x16x16xf32> to vector<4x16x16xbf16>
    "tpu.trace_start"() <{level = 10 : i32, message = "bqk,bkd->bqd"}> : () -> ()
    %cst_36 = arith.constant dense<0.000000e+00> : vector<4x16x8xf32>
    %94 = tpu.matmul %93, %77, %cst_36 {dimension_numbers = #tpu.dot_dimension_numbers<[2], [1], [1], [2], [0, 0, 0, 1, 1, 2], [0], [0]>} : vector<4x16x16xbf16>, vector<4x16x8xbf16>, vector<4x16x8xf32> -> vector<4x16x8xf32>
    "tpu.trace_stop"() : () -> ()
    %95 = vector.shape_cast %94 : vector<4x16x8xf32> to vector<64x8xf32>
    %96 = arith.truncf %95 : vector<64x8xf32> to vector<64x8xbf16>
    %97 = vector.extract_strided_slice %42 {offsets = [8, 0], sizes = [8, 32], strides = [1, 1]} : vector<32x32xbf16> to vector<8x32xbf16>
    %cst_37 = arith.constant dense<0.000000e+00> : vector<64x32xf32>
    %98 = tpu.matmul %96, %97, %cst_37 {dimension_numbers = #tpu.dot_dimension_numbers<[1], [0], [0], [1], [0, 0, 1, 1], [], []>} : vector<64x8xbf16>, vector<8x32xbf16>, vector<64x32xf32> -> vector<64x32xf32>
    %99 = arith.addf %71, %98 : vector<64x32xf32>
    %100 = vector.extract_strided_slice %37 {offsets = [0, 0, 16], sizes = [4, 16, 8], strides = [1, 1, 1]} : vector<4x16x96xf32> to vector<4x16x8xf32>
    %101 = arith.truncf %100 : vector<4x16x8xf32> to vector<4x16x8xbf16>
    %102 = vector.extract_strided_slice %37 {offsets = [0, 0, 48], sizes = [4, 16, 8], strides = [1, 1, 1]} : vector<4x16x96xf32> to vector<4x16x8xf32>
    %103 = arith.truncf %102 : vector<4x16x8xf32> to vector<4x16x8xbf16>
    %104 = vector.extract_strided_slice %37 {offsets = [0, 0, 80], sizes = [4, 16, 8], strides = [1, 1, 1]} : vector<4x16x96xf32> to vector<4x16x8xf32>
    %105 = arith.truncf %104 : vector<4x16x8xf32> to vector<4x16x8xbf16>
    "tpu.trace_start"() <{level = 10 : i32, message = "bqd,bkd->bqk"}> : () -> ()
    %cst_38 = arith.constant dense<0.000000e+00> : vector<4x16x16xf32>
    %106 = tpu.matmul %101, %103, %cst_38 {dimension_numbers = #tpu.dot_dimension_numbers<[2], [2], [1], [1], [0, 0, 0, 1, 1, 1], [0], [0]>} : vector<4x16x8xbf16>, vector<4x16x8xbf16>, vector<4x16x16xf32> -> vector<4x16x16xf32>
    "tpu.trace_stop"() : () -> ()
    %cst_39 = arith.constant 0.353553385 : f32
    %107 = vector.broadcast %cst_39 : f32 to vector<4x16x16xf32>
    %108 = arith.mulf %106, %107 : vector<4x16x16xf32>
    %cst_40 = arith.constant -1.000000e+30 : f32
    %109 = vector.broadcast %cst_40 : f32 to vector<4x16x16xf32>
    %110 = arith.select %40, %108, %109 : vector<4x16x16xi1>, vector<4x16x16xf32>
    %cst_41 = arith.constant dense<0xFF800000> : vector<4x16xf32>
    %111 = vector.multi_reduction <maximumf>, %110, %cst_41 [2] : vector<4x16x16xf32> to vector<4x16xf32>
    %112 = vector.shape_cast %111 : vector<4x16xf32> to vector<4x16x1xf32>
    %113 = vector.broadcast %112 : vector<4x16x1xf32> to vector<4x16x16xf32>
    %114 = arith.subf %110, %113 : vector<4x16x16xf32>
    %115 = math.exp %114 : vector<4x16x16xf32>
    %cst_42 = arith.constant dense<0.000000e+00> : vector<4x16xf32>
    %116 = vector.multi_reduction <add>, %115, %cst_42 [2] : vector<4x16x16xf32> to vector<4x16xf32>
    %117 = vector.shape_cast %116 : vector<4x16xf32> to vector<4x16x1xf32>
    %118 = tpu.reciprocal %117 {approx = true} : vector<4x16x1xf32> -> vector<4x16x1xf32>
    %119 = vector.broadcast %118 : vector<4x16x1xf32> to vector<4x16x16xf32>
    %120 = arith.mulf %115, %119 : vector<4x16x16xf32>
    %121 = arith.truncf %120 : vector<4x16x16xf32> to vector<4x16x16xbf16>
    "tpu.trace_start"() <{level = 10 : i32, message = "bqk,bkd->bqd"}> : () -> ()
    %cst_43 = arith.constant dense<0.000000e+00> : vector<4x16x8xf32>
    %122 = tpu.matmul %121, %105, %cst_43 {dimension_numbers = #tpu.dot_dimension_numbers<[2], [1], [1], [2], [0, 0, 0, 1, 1, 2], [0], [0]>} : vector<4x16x16xbf16>, vector<4x16x8xbf16>, vector<4x16x8xf32> -> vector<4x16x8xf32>
    "tpu.trace_stop"() : () -> ()
    %123 = vector.shape_cast %122 : vector<4x16x8xf32> to vector<64x8xf32>
    %124 = arith.truncf %123 : vector<64x8xf32> to vector<64x8xbf16>
    %125 = vector.extract_strided_slice %42 {offsets = [16, 0], sizes = [8, 32], strides = [1, 1]} : vector<32x32xbf16> to vector<8x32xbf16>
    %cst_44 = arith.constant dense<0.000000e+00> : vector<64x32xf32>
    %126 = tpu.matmul %124, %125, %cst_44 {dimension_numbers = #tpu.dot_dimension_numbers<[1], [0], [0], [1], [0, 0, 1, 1], [], []>} : vector<64x8xbf16>, vector<8x32xbf16>, vector<64x32xf32> -> vector<64x32xf32>
    %127 = arith.addf %99, %126 : vector<64x32xf32>
    %128 = vector.extract_strided_slice %37 {offsets = [0, 0, 24], sizes = [4, 16, 8], strides = [1, 1, 1]} : vector<4x16x96xf32> to vector<4x16x8xf32>
    %129 = arith.truncf %128 : vector<4x16x8xf32> to vector<4x16x8xbf16>
    %130 = vector.extract_strided_slice %37 {offsets = [0, 0, 56], sizes = [4, 16, 8], strides = [1, 1, 1]} : vector<4x16x96xf32> to vector<4x16x8xf32>
    %131 = arith.truncf %130 : vector<4x16x8xf32> to vector<4x16x8xbf16>
    %132 = vector.extract_strided_slice %37 {offsets = [0, 0, 88], sizes = [4, 16, 8], strides = [1, 1, 1]} : vector<4x16x96xf32> to vector<4x16x8xf32>
    %133 = arith.truncf %132 : vector<4x16x8xf32> to vector<4x16x8xbf16>
    "tpu.trace_start"() <{level = 10 : i32, message = "bqd,bkd->bqk"}> : () -> ()
    %cst_45 = arith.constant dense<0.000000e+00> : vector<4x16x16xf32>
    %134 = tpu.matmul %129, %131, %cst_45 {dimension_numbers = #tpu.dot_dimension_numbers<[2], [2], [1], [1], [0, 0, 0, 1, 1, 1], [0], [0]>} : vector<4x16x8xbf16>, vector<4x16x8xbf16>, vector<4x16x16xf32> -> vector<4x16x16xf32>
    "tpu.trace_stop"() : () -> ()
    %cst_46 = arith.constant 0.353553385 : f32
    %135 = vector.broadcast %cst_46 : f32 to vector<4x16x16xf32>
    %136 = arith.mulf %134, %135 : vector<4x16x16xf32>
    %cst_47 = arith.constant -1.000000e+30 : f32
    %137 = vector.broadcast %cst_47 : f32 to vector<4x16x16xf32>
    %138 = arith.select %40, %136, %137 : vector<4x16x16xi1>, vector<4x16x16xf32>
    %cst_48 = arith.constant dense<0xFF800000> : vector<4x16xf32>
    %139 = vector.multi_reduction <maximumf>, %138, %cst_48 [2] : vector<4x16x16xf32> to vector<4x16xf32>
    %140 = vector.shape_cast %139 : vector<4x16xf32> to vector<4x16x1xf32>
    %141 = vector.broadcast %140 : vector<4x16x1xf32> to vector<4x16x16xf32>
    %142 = arith.subf %138, %141 : vector<4x16x16xf32>
    %143 = math.exp %142 : vector<4x16x16xf32>
    %cst_49 = arith.constant dense<0.000000e+00> : vector<4x16xf32>
    %144 = vector.multi_reduction <add>, %143, %cst_49 [2] : vector<4x16x16xf32> to vector<4x16xf32>
    %145 = vector.shape_cast %144 : vector<4x16xf32> to vector<4x16x1xf32>
    %146 = tpu.reciprocal %145 {approx = true} : vector<4x16x1xf32> -> vector<4x16x1xf32>
    %147 = vector.broadcast %146 : vector<4x16x1xf32> to vector<4x16x16xf32>
    %148 = arith.mulf %143, %147 : vector<4x16x16xf32>
    %149 = arith.truncf %148 : vector<4x16x16xf32> to vector<4x16x16xbf16>
    "tpu.trace_start"() <{level = 10 : i32, message = "bqk,bkd->bqd"}> : () -> ()
    %cst_50 = arith.constant dense<0.000000e+00> : vector<4x16x8xf32>
    %150 = tpu.matmul %149, %133, %cst_50 {dimension_numbers = #tpu.dot_dimension_numbers<[2], [1], [1], [2], [0, 0, 0, 1, 1, 2], [0], [0]>} : vector<4x16x16xbf16>, vector<4x16x8xbf16>, vector<4x16x8xf32> -> vector<4x16x8xf32>
    "tpu.trace_stop"() : () -> ()
    %151 = vector.shape_cast %150 : vector<4x16x8xf32> to vector<64x8xf32>
    %152 = arith.truncf %151 : vector<64x8xf32> to vector<64x8xbf16>
    %153 = vector.extract_strided_slice %42 {offsets = [24, 0], sizes = [8, 32], strides = [1, 1]} : vector<32x32xbf16> to vector<8x32xbf16>
    %cst_51 = arith.constant dense<0.000000e+00> : vector<64x32xf32>
    %154 = tpu.matmul %152, %153, %cst_51 {dimension_numbers = #tpu.dot_dimension_numbers<[1], [0], [0], [1], [0, 0, 1, 1], [], []>} : vector<64x8xbf16>, vector<8x32xbf16>, vector<64x32xf32> -> vector<64x32xf32>
    %155 = arith.addf %127, %154 : vector<64x32xf32>
    %c0_52 = arith.constant 0 : index
    %c0_53 = arith.constant 0 : index
    %c0_54 = arith.constant 0 : index
    %156 = vector.load %arg16[%c0_52, %c0_53, %c0_54] : memref<1x1x32xf32, #tpu.memory_space<vmem>>, vector<1x1x32xf32>
    %157 = vector.shape_cast %156 : vector<1x1x32xf32> to vector<1x32xf32>
    %158 = vector.broadcast %157 : vector<1x32xf32> to vector<64x32xf32>
    %159 = arith.addf %155, %158 : vector<64x32xf32>
    %160 = vector.shape_cast %159 : vector<64x32xf32> to vector<4x16x32xf32>
    %161 = arith.addf %5, %160 : vector<4x16x32xf32>
    %c0_55 = arith.constant 0 : index
    %c0_56 = arith.constant 0 : index
    %c0_57 = arith.constant 0 : index
    %162 = vector.load %arg17[%c0_55, %c0_56, %c0_57] : memref<1x1x32xf32, #tpu.memory_space<vmem>>, vector<1x1x32xf32>
    %163 = vector.shape_cast %162 : vector<1x1x32xf32> to vector<1x32xf32>
    %c0_58 = arith.constant 0 : index
    %c0_59 = arith.constant 0 : index
    %c0_60 = arith.constant 0 : index
    %164 = vector.load %arg18[%c0_58, %c0_59, %c0_60] : memref<1x1x32xf32, #tpu.memory_space<vmem>>, vector<1x1x32xf32>
    %165 = vector.shape_cast %164 : vector<1x1x32xf32> to vector<1x32xf32>
    %cst_61 = arith.constant dense<0.000000e+00> : vector<4x16xf32>
    %166 = vector.multi_reduction <add>, %161, %cst_61 [2] : vector<4x16x32xf32> to vector<4x16xf32>
    %167 = vector.shape_cast %166 : vector<4x16xf32> to vector<4x16x1xf32>
    %cst_62 = arith.constant 3.200000e+01 : f32
    %168 = vector.broadcast %cst_62 : f32 to vector<4x16x1xf32>
    %169 = arith.divf %167, %168 : vector<4x16x1xf32>
    %170 = vector.broadcast %169 : vector<4x16x1xf32> to vector<4x16x32xf32>
    %171 = arith.subf %161, %170 : vector<4x16x32xf32>
    %172 = arith.mulf %171, %171 : vector<4x16x32xf32>
    %cst_63 = arith.constant dense<0.000000e+00> : vector<4x16xf32>
    %173 = vector.multi_reduction <add>, %172, %cst_63 [2] : vector<4x16x32xf32> to vector<4x16xf32>
    %174 = vector.shape_cast %173 : vector<4x16xf32> to vector<4x16x1xf32>
    %cst_64 = arith.constant 3.200000e+01 : f32
    %175 = vector.broadcast %cst_64 : f32 to vector<4x16x1xf32>
    %176 = arith.divf %174, %175 : vector<4x16x1xf32>
    %cst_65 = arith.constant 9.99999974E-6 : f32
    %177 = vector.broadcast %cst_65 : f32 to vector<4x16x1xf32>
    %178 = arith.addf %176, %177 : vector<4x16x1xf32>
    %179 = math.rsqrt %178 : vector<4x16x1xf32>
    %180 = vector.broadcast %179 : vector<4x16x1xf32> to vector<4x16x32xf32>
    %181 = arith.mulf %171, %180 : vector<4x16x32xf32>
    %182 = vector.shape_cast %163 : vector<1x32xf32> to vector<1x1x32xf32>
    %183 = vector.broadcast %182 : vector<1x1x32xf32> to vector<4x16x32xf32>
    %184 = arith.mulf %181, %183 : vector<4x16x32xf32>
    %185 = vector.shape_cast %165 : vector<1x32xf32> to vector<1x1x32xf32>
    %186 = vector.broadcast %185 : vector<1x1x32xf32> to vector<4x16x32xf32>
    %187 = arith.addf %184, %186 : vector<4x16x32xf32>
    %188 = vector.shape_cast %187 : vector<4x16x32xf32> to vector<64x32xf32>
    %189 = arith.truncf %188 : vector<64x32xf32> to vector<64x32xbf16>
    %c0_66 = arith.constant 0 : index
    %c0_67 = arith.constant 0 : index
    %c0_68 = arith.constant 0 : index
    %190 = vector.load %arg19[%c0_66, %c0_67, %c0_68] : memref<1x32x128xbf16, #tpu.memory_space<vmem>>, vector<1x32x128xbf16>
    %191 = vector.shape_cast %190 : vector<1x32x128xbf16> to vector<32x128xbf16>
    %cst_69 = arith.constant dense<0.000000e+00> : vector<64x128xf32>
    %192 = tpu.matmul %189, %191, %cst_69 {dimension_numbers = #tpu.dot_dimension_numbers<[1], [0], [0], [1], [0, 0, 1, 1], [], []>} : vector<64x32xbf16>, vector<32x128xbf16>, vector<64x128xf32> -> vector<64x128xf32>
    %c0_70 = arith.constant 0 : index
    %c0_71 = arith.constant 0 : index
    %c0_72 = arith.constant 0 : index
    %193 = vector.load %arg20[%c0_70, %c0_71, %c0_72] : memref<1x1x128xf32, #tpu.memory_space<vmem>>, vector<1x1x128xf32>
    %194 = vector.shape_cast %193 : vector<1x1x128xf32> to vector<1x128xf32>
    %195 = vector.broadcast %194 : vector<1x128xf32> to vector<64x128xf32>
    %196 = arith.addf %192, %195 : vector<64x128xf32>
    %cst_73 = arith.constant 5.000000e-01 : f32
    %197 = vector.broadcast %cst_73 : f32 to vector<64x128xf32>
    %198 = arith.mulf %197, %196 : vector<64x128xf32>
    %cst_74 = arith.constant 4.471500e-02 : f32
    %199 = vector.broadcast %cst_74 : f32 to vector<64x128xf32>
    %200 = arith.mulf %199, %196 : vector<64x128xf32>
    %201 = arith.mulf %200, %196 : vector<64x128xf32>
    %202 = arith.mulf %201, %196 : vector<64x128xf32>
    %203 = arith.addf %196, %202 : vector<64x128xf32>
    %cst_75 = arith.constant 0.797884583 : f32
    %204 = vector.broadcast %cst_75 : f32 to vector<64x128xf32>
    %205 = arith.mulf %204, %203 : vector<64x128xf32>
    %206 = math.tanh %205 : vector<64x128xf32>
    %cst_76 = arith.constant 1.000000e+00 : f32
    %207 = vector.broadcast %cst_76 : f32 to vector<64x128xf32>
    %208 = arith.addf %207, %206 : vector<64x128xf32>
    %209 = arith.mulf %198, %208 : vector<64x128xf32>
    %210 = arith.truncf %209 : vector<64x128xf32> to vector<64x128xbf16>
    %c0_77 = arith.constant 0 : index
    %c0_78 = arith.constant 0 : index
    %c0_79 = arith.constant 0 : index
    %211 = vector.load %arg21[%c0_77, %c0_78, %c0_79] : memref<1x128x32xbf16, #tpu.memory_space<vmem>>, vector<1x128x32xbf16>
    %212 = vector.shape_cast %211 : vector<1x128x32xbf16> to vector<128x32xbf16>
    %cst_80 = arith.constant dense<0.000000e+00> : vector<64x32xf32>
    %213 = tpu.matmul %210, %212, %cst_80 {dimension_numbers = #tpu.dot_dimension_numbers<[1], [0], [0], [1], [0, 0, 1, 1], [], []>} : vector<64x128xbf16>, vector<128x32xbf16>, vector<64x32xf32> -> vector<64x32xf32>
    %c0_81 = arith.constant 0 : index
    %c0_82 = arith.constant 0 : index
    %c0_83 = arith.constant 0 : index
    %214 = vector.load %arg22[%c0_81, %c0_82, %c0_83] : memref<1x1x32xf32, #tpu.memory_space<vmem>>, vector<1x1x32xf32>
    %215 = vector.shape_cast %214 : vector<1x1x32xf32> to vector<1x32xf32>
    %216 = vector.broadcast %215 : vector<1x32xf32> to vector<64x32xf32>
    %217 = arith.addf %213, %216 : vector<64x32xf32>
    %218 = vector.shape_cast %217 : vector<64x32xf32> to vector<4x16x32xf32>
    %219 = arith.addf %161, %218 : vector<4x16x32xf32>
    %c0_84 = arith.constant 0 : index
    %c0_85 = arith.constant 0 : index
    %c0_86 = arith.constant 0 : index
    %220 = vector.load %arg26[%c0_84, %c0_85, %c0_86] : memref<4x16x32xf32, #tpu.memory_space<vmem>>, vector<4x16x32xf32>
    tpu.vector_store %arg26[%c0_84, %c0_85, %c0_86], %219 {strides = array<i32>} : memref<4x16x32xf32, #tpu.memory_space<vmem>>, vector<4x16x32xf32>,
    %c1_i32 = arith.constant 1 : i32
    %221 = arith.cmpi eq, %arg1, %c1_i32 : i32
    %222 = arith.extui %221 : i1 to i32
    %c0_i32_87 = arith.constant 0 : i32
    %223 = arith.cmpi ne, %222, %c0_i32_87 : i32
    scf.if %223 {
      %c0_88 = arith.constant 0 : index
      %c0_89 = arith.constant 0 : index
      %224 = vector.load %arg23[%c0_88, %c0_89] : memref<1x32xf32, #tpu.memory_space<vmem>>, vector<1x32xf32>
      %c0_90 = arith.constant 0 : index
      %c0_91 = arith.constant 0 : index
      %225 = vector.load %arg24[%c0_90, %c0_91] : memref<1x32xf32, #tpu.memory_space<vmem>>, vector<1x32xf32>
      %cst_92 = arith.constant dense<0.000000e+00> : vector<4x16xf32>
      %226 = vector.multi_reduction <add>, %219, %cst_92 [2] : vector<4x16x32xf32> to vector<4x16xf32>
      %227 = vector.shape_cast %226 : vector<4x16xf32> to vector<4x16x1xf32>
      %cst_93 = arith.constant 3.200000e+01 : f32
      %228 = vector.broadcast %cst_93 : f32 to vector<4x16x1xf32>
      %229 = arith.divf %227, %228 : vector<4x16x1xf32>
      %230 = vector.broadcast %229 : vector<4x16x1xf32> to vector<4x16x32xf32>
      %231 = arith.subf %219, %230 : vector<4x16x32xf32>
      %232 = arith.mulf %231, %231 : vector<4x16x32xf32>
      %cst_94 = arith.constant dense<0.000000e+00> : vector<4x16xf32>
      %233 = vector.multi_reduction <add>, %232, %cst_94 [2] : vector<4x16x32xf32> to vector<4x16xf32>
      %234 = vector.shape_cast %233 : vector<4x16xf32> to vector<4x16x1xf32>
      %cst_95 = arith.constant 3.200000e+01 : f32
      %235 = vector.broadcast %cst_95 : f32 to vector<4x16x1xf32>
      %236 = arith.divf %234, %235 : vector<4x16x1xf32>
      %cst_96 = arith.constant 9.99999974E-6 : f32
      %237 = vector.broadcast %cst_96 : f32 to vector<4x16x1xf32>
      %238 = arith.addf %236, %237 : vector<4x16x1xf32>
      %239 = math.rsqrt %238 : vector<4x16x1xf32>
      %240 = vector.broadcast %239 : vector<4x16x1xf32> to vector<4x16x32xf32>
      %241 = arith.mulf %231, %240 : vector<4x16x32xf32>
      %242 = vector.shape_cast %224 : vector<1x32xf32> to vector<1x1x32xf32>
      %243 = vector.broadcast %242 : vector<1x1x32xf32> to vector<4x16x32xf32>
      %244 = arith.mulf %241, %243 : vector<4x16x32xf32>
      %245 = vector.shape_cast %225 : vector<1x32xf32> to vector<1x1x32xf32>
      %246 = vector.broadcast %245 : vector<1x1x32xf32> to vector<4x16x32xf32>
      %247 = arith.addf %244, %246 : vector<4x16x32xf32>
      %248 = tpu.iota {dimensions = array<i32: 1>} : vector<4x16x32xi32>
      %c8_i32 = arith.constant 8 : i32
      %249 = vector.broadcast %c8_i32 : i32 to vector<4x16x32xi32>
      %250 = arith.cmpi eq, %248, %249 : vector<4x16x32xi32>
      %cst_97 = arith.constant -1.000000e+30 : f32
      %251 = vector.broadcast %cst_97 : f32 to vector<4x16x32xf32>
      %252 = arith.select %250, %247, %251 : vector<4x16x32xi1>, vector<4x16x32xf32>
      %cst_98 = arith.constant dense<0xFF800000> : vector<4x32xf32>
      %253 = vector.multi_reduction <maximumf>, %252, %cst_98 [1] : vector<4x16x32xf32> to vector<4x32xf32>
      %c8_i32_99 = arith.constant 8 : i32
      %254 = vector.broadcast %c8_i32_99 : i32 to vector<4x16x32xi32>
      %255 = arith.cmpi slt, %248, %254 : vector<4x16x32xi32>
      %cst_100 = arith.constant -1.000000e+30 : f32
      %256 = vector.broadcast %cst_100 : f32 to vector<4x16x32xf32>
      %257 = arith.select %255, %247, %256 : vector<4x16x32xi1>, vector<4x16x32xf32>
      %cst_101 = arith.constant dense<0xFF800000> : vector<4x32xf32>
      %258 = vector.multi_reduction <maximumf>, %257, %cst_101 [1] : vector<4x16x32xf32> to vector<4x32xf32>
      %259 = tpu.concatenate %253, %258 in 1 : vector<4x32xf32>, vector<4x32xf32> -> vector<4x64xf32>
      %c0_102 = arith.constant 0 : index
      %c0_103 = arith.constant 0 : index
      %260 = vector.load %arg25[%c0_102, %c0_103] : memref<4x64xf32, #tpu.memory_space<vmem>>, vector<4x64xf32>
      tpu.vector_store %arg25[%c0_102, %c0_103], %259 {strides = array<i32>} : memref<4x64xf32, #tpu.memory_space<vmem>>, vector<4x64xf32>,
    } else {
    }
    return
  }
  func.func @transform_0(%arg0: i32, %arg1: i32) -> (i32, i32, i32) {
    %c0_i32 = arith.constant 0 : i32
    %c0_i32_0 = arith.constant 0 : i32
    %c0_i32_1 = arith.constant 0 : i32
    return %arg0, %c0_i32, %c0_i32_0 : i32, i32, i32
  }
  func.func @transform_1(%arg0: i32, %arg1: i32) -> (i32, i32, i32) {
    %c0_i32 = arith.constant 0 : i32
    %c0_i32_0 = arith.constant 0 : i32
    %c0_i32_1 = arith.constant 0 : i32
    return %arg0, %c0_i32, %c0_i32_0 : i32, i32, i32
  }
  func.func @transform_2(%arg0: i32, %arg1: i32) -> (i32, i32, i32) {
    %c0_i32 = arith.constant 0 : i32
    %c0_i32_0 = arith.constant 0 : i32
    %c0_i32_1 = arith.constant 0 : i32
    %c0_i32_2 = arith.constant 0 : i32
    return %c0_i32, %c0_i32_0, %c0_i32_1 : i32, i32, i32
  }
  func.func @transform_3(%arg0: i32, %arg1: i32) -> (i32, i32, i32) {
    %c0_i32 = arith.constant 0 : i32
    %c0_i32_0 = arith.constant 0 : i32
    %c0_i32_1 = arith.constant 0 : i32
    %c0_i32_2 = arith.constant 0 : i32
    return %c0_i32, %c0_i32_0, %c0_i32_1 : i32, i32, i32
  }
  func.func @transform_4(%arg0: i32, %arg1: i32) -> (i32, i32) {
    %c0_i32 = arith.constant 0 : i32
    %c0_i32_0 = arith.constant 0 : i32
    %c0_i32_1 = arith.constant 0 : i32
    return %c0_i32, %c0_i32_0 : i32, i32
  }
  func.func @transform_5(%arg0: i32, %arg1: i32) -> (i32, i32) {
    %c0_i32 = arith.constant 0 : i32
    %c0_i32_0 = arith.constant 0 : i32
    %c0_i32_1 = arith.constant 0 : i32
    return %c0_i32, %c0_i32_0 : i32, i32
  }
  func.func @transform_6(%arg0: i32, %arg1: i32) -> (i32, i32) {
    %c0_i32 = arith.constant 0 : i32
    %c0_i32_0 = arith.constant 0 : i32
    %c0_i32_1 = arith.constant 0 : i32
    return %c0_i32, %c0_i32_0 : i32, i32
  }
  func.func @transform_7(%arg0: i32, %arg1: i32) -> (i32, i32) {
    %c0_i32 = arith.constant 0 : i32
    %c0_i32_0 = arith.constant 0 : i32
    %c0_i32_1 = arith.constant 0 : i32
    return %c0_i32, %c0_i32_0 : i32, i32
  }
  func.func @transform_8(%arg0: i32, %arg1: i32) -> (i32, i32) {
    %c0_i32 = arith.constant 0 : i32
    %c0_i32_0 = arith.constant 0 : i32
    %c0_i32_1 = arith.constant 0 : i32
    return %c0_i32, %c0_i32_0 : i32, i32
  }
  func.func @transform_9(%arg0: i32, %arg1: i32) -> (i32, i32) {
    %c0_i32 = arith.constant 0 : i32
    %c0_i32_0 = arith.constant 0 : i32
    %c0_i32_1 = arith.constant 0 : i32
    return %c0_i32, %c0_i32_0 : i32, i32
  }
  func.func @transform_10(%arg0: i32, %arg1: i32) -> (i32, i32, i32) {
    %c0_i32 = arith.constant 0 : i32
    %c0_i32_0 = arith.constant 0 : i32
    %c0_i32_1 = arith.constant 0 : i32
    return %arg1, %c0_i32, %c0_i32_0 : i32, i32, i32
  }
  func.func @transform_11(%arg0: i32, %arg1: i32) -> (i32, i32, i32) {
    %c0_i32 = arith.constant 0 : i32
    %c0_i32_0 = arith.constant 0 : i32
    %c0_i32_1 = arith.constant 0 : i32
    return %arg1, %c0_i32, %c0_i32_0 : i32, i32, i32
  }
  func.func @transform_12(%arg0: i32, %arg1: i32) -> (i32, i32, i32) {
    %c0_i32 = arith.constant 0 : i32
    %c0_i32_0 = arith.constant 0 : i32
    %c0_i32_1 = arith.constant 0 : i32
    return %arg1, %c0_i32, %c0_i32_0 : i32, i32, i32
  }
  func.func @transform_13(%arg0: i32, %arg1: i32) -> (i32, i32, i32) {
    %c0_i32 = arith.constant 0 : i32
    %c0_i32_0 = arith.constant 0 : i32
    %c0_i32_1 = arith.constant 0 : i32
    return %arg1, %c0_i32, %c0_i32_0 : i32, i32, i32
  }
  func.func @transform_14(%arg0: i32, %arg1: i32) -> (i32, i32, i32) {
    %c0_i32 = arith.constant 0 : i32
    %c0_i32_0 = arith.constant 0 : i32
    %c0_i32_1 = arith.constant 0 : i32
    return %arg1, %c0_i32, %c0_i32_0 : i32, i32, i32
  }
  func.func @transform_15(%arg0: i32, %arg1: i32) -> (i32, i32, i32) {
    %c0_i32 = arith.constant 0 : i32
    %c0_i32_0 = arith.constant 0 : i32
    %c0_i32_1 = arith.constant 0 : i32
    return %arg1, %c0_i32, %c0_i32_0 : i32, i32, i32
  }
  func.func @transform_16(%arg0: i32, %arg1: i32) -> (i32, i32, i32) {
    %c0_i32 = arith.constant 0 : i32
    %c0_i32_0 = arith.constant 0 : i32
    %c0_i32_1 = arith.constant 0 : i32
    return %arg1, %c0_i32, %c0_i32_0 : i32, i32, i32
  }
  func.func @transform_17(%arg0: i32, %arg1: i32) -> (i32, i32, i32) {
    %c0_i32 = arith.constant 0 : i32
    %c0_i32_0 = arith.constant 0 : i32
    %c0_i32_1 = arith.constant 0 : i32
    return %arg1, %c0_i32, %c0_i32_0 : i32, i32, i32
  }
  func.func @transform_18(%arg0: i32, %arg1: i32) -> (i32, i32, i32) {
    %c0_i32 = arith.constant 0 : i32
    %c0_i32_0 = arith.constant 0 : i32
    %c0_i32_1 = arith.constant 0 : i32
    return %arg1, %c0_i32, %c0_i32_0 : i32, i32, i32
  }
  func.func @transform_19(%arg0: i32, %arg1: i32) -> (i32, i32, i32) {
    %c0_i32 = arith.constant 0 : i32
    %c0_i32_0 = arith.constant 0 : i32
    %c0_i32_1 = arith.constant 0 : i32
    return %arg1, %c0_i32, %c0_i32_0 : i32, i32, i32
  }
  func.func @transform_20(%arg0: i32, %arg1: i32) -> (i32, i32, i32) {
    %c0_i32 = arith.constant 0 : i32
    %c0_i32_0 = arith.constant 0 : i32
    %c0_i32_1 = arith.constant 0 : i32
    return %arg1, %c0_i32, %c0_i32_0 : i32, i32, i32
  }
  func.func @transform_21(%arg0: i32, %arg1: i32) -> (i32, i32) {
    %c0_i32 = arith.constant 0 : i32
    %c0_i32_0 = arith.constant 0 : i32
    %c0_i32_1 = arith.constant 0 : i32
    return %c0_i32, %c0_i32_0 : i32, i32
  }
  func.func @transform_22(%arg0: i32, %arg1: i32) -> (i32, i32) {
    %c0_i32 = arith.constant 0 : i32
    %c0_i32_0 = arith.constant 0 : i32
    %c0_i32_1 = arith.constant 0 : i32
    return %c0_i32, %c0_i32_0 : i32, i32
  }
  func.func @transform_23(%arg0: i32, %arg1: i32) -> (i32, i32) {
    %c0_i32 = arith.constant 0 : i32
    %c0_i32_0 = arith.constant 0 : i32
    return %arg0, %c0_i32 : i32, i32
  }
}

</mosaic_0001>

<llo_original>
// kernel: custom-call.6
$region0: #{custom-call.6}
  %s0 = inlined_call_operand.vmem [shape: f32[4,64], index: 0, kind: output, shape index: {}]

// kernel: neg.2
$region0: #{neg.2}
  #allocation0 [shape = 's32[1]{0}', space=sflag, size = 0x4, scoped, tag = 'scoped memory for neg.2']
  %s0 = inlined_call_operand.vmem [shape: f32[4,8,64], index: 0, kind: input, shape index: {}]
  %s1 = inlined_call_operand.vmem [shape: f32[4,8,64], index: 1, kind: output, shape index: {}]
  %v2 = vld [vmem:[%s0] sm:$0xff]
  %3 = xla_tuple %v2
  %4 = xla_tuple %3
  %v5 = vxor.u32 %v2, 2147483648
  %6 = xla_tuple %v5
  %7 = vst [vmem:[%s1] sm:$0xff] %v5
  %s8 = scalar_lea.vmem %s0, 8
  %v9 = vld [vmem:[%s8] sm:$0xff]
  %10 = xla_tuple %v9
  %11 = xla_tuple %10
  %v12 = vxor.u32 %v9, 2147483648
  %13 = xla_tuple %v12
  %s14 = scalar_lea.vmem %s1, 8
  %15 = vst [vmem:[%s14] sm:$0xff] %v12
  %s16 = scalar_lea.vmem %s0, 16
  %v17 = vld [vmem:[%s16] sm:$0xff]
  %18 = xla_tuple %v17
  %19 = xla_tuple %18
  %v20 = vxor.u32 %v17, 2147483648
  %21 = xla_tuple %v20
  %s22 = scalar_lea.vmem %s1, 16
  %23 = vst [vmem:[%s22] sm:$0xff] %v20
  %s24 = scalar_lea.vmem %s0, 24
  %v25 = vld [vmem:[%s24] sm:$0xff]
  %26 = xla_tuple %v25
  %27 = xla_tuple %26
  %v28 = vxor.u32 %v25, 2147483648
  %29 = xla_tuple %v28
  %s30 = scalar_lea.vmem %s1, 24
  %31 = vst [vmem:[%s30] sm:$0xff] %v28

// kernel: _lambda_.2
$region0: #{_lambda_.2}
  #allocation0 [shape = 'u32[]', space=smem, size = 0x4, offset = 0x4, fixed_abs, tag = 'smem constant byte address 0x4 - core index']
  #allocation1 [shape = 'u32[144,128]{1,0:T(1,128)}', space=vmem, size = 0x12000, scoped, tag = 'internal scratch']
  %s0 = inlined_call_operand.vmem [shape: f32[32,8,6], index: 0, kind: input, shape index: {}]
  %s1 = inlined_call_operand.vmem [shape: bf16[6,128], index: 1, kind: input, shape index: {}]
  %s2 = inlined_call_operand.vmem [shape: f32[1,128], index: 2, kind: input, shape index: {}]
  %s3 = inlined_call_operand.vmem [shape: f32[1,128], index: 3, kind: input, shape index: {}]
  %s4 = inlined_call_operand.vmem [shape: bf16[128,256], index: 4, kind: input, shape index: {}]
  %s5 = inlined_call_operand.vmem [shape: f32[1,256], index: 5, kind: input, shape index: {}]
  %s6 = inlined_call_operand.vmem [shape: bf16[256,512], index: 6, kind: input, shape index: {}]
  %s7 = inlined_call_operand.vmem [shape: bf16[256,512], index: 7, kind: input, shape index: {}]
  %s8 = inlined_call_operand.vmem [shape: f32[1,512], index: 8, kind: input, shape index: {}]
  %s9 = inlined_call_operand.vmem [shape: f32[1,512], index: 9, kind: input, shape index: {}]
  %s10 = inlined_call_operand.vmem [shape: bf16[512,64], index: 10, kind: input, shape index: {}]
  %s11 = inlined_call_operand.vmem [shape: f32[1,64], index: 11, kind: input, shape index: {}]
  %s12 = inlined_call_operand.vmem [shape: f32[32,64], index: 12, kind: output, shape index: {}]
  %s13 = sld [smem:[#allocation0]]
  $region58: #{_lambda_.2} parent=0
    _
  %s15 = ssub.s32 1, %s13
  %s16 = scalar_select 0, %s15, %s13
  // Predicated region
  $region2: #{_lambda_.2} parent=0 // pred_check
    _
  $region3: #{_lambda_.2} parent=0 // pred_check_branch
    %18 = sbr.rel (0) target = $region5
  $region4: #{_lambda_.2} parent=0 // pred_region
    _
  $region5: #{_lambda_.2} parent=0 // pred_fallthru
    _
  // Predicated region
  $region6: #{_lambda_.2} parent=0 // pred_check
    _
  $region7: #{_lambda_.2} parent=0 // pred_check_branch
    %20 = sbr.rel (0) target = $region9
  $region8: #{_lambda_.2} parent=0 // pred_region
    _
  $region9: #{_lambda_.2} parent=0 // pred_fallthru
    _
  // Predicated region
  $region10: #{_lambda_.2} parent=0 // pred_check
    _
  $region11: #{_lambda_.2} parent=0 // pred_check_branch
    %22 = sbr.rel (0) target = $region13
  $region12: #{_lambda_.2} parent=0 // pred_region
    _
  $region13: #{_lambda_.2} parent=0 // pred_fallthru
    _
  // Predicated region
  $region14: #{_lambda_.2} parent=0 // pred_check
    _
  $region15: #{_lambda_.2} parent=0 // pred_check_branch
    %24 = sbr.rel (0) target = $region17
  $region16: #{_lambda_.2} parent=0 // pred_region
    _
  $region17: #{_lambda_.2} parent=0 // pred_fallthru
    _
  // Predicated region
  $region18: #{_lambda_.2} parent=0 // pred_check
    _
  $region19: #{_lambda_.2} parent=0 // pred_check_branch
    %26 = sbr.rel (0) target = $region21
  $region20: #{_lambda_.2} parent=0 // pred_region
    _
  $region21: #{_lambda_.2} parent=0 // pred_fallthru
    _
  // Predicated region
  $region22: #{_lambda_.2} parent=0 // pred_check
    _
  $region23: #{_lambda_.2} parent=0 // pred_check_branch
    %28 = sbr.rel (0) target = $region25
  $region24: #{_lambda_.2} parent=0 // pred_region
    _
  $region25: #{_lambda_.2} parent=0 // pred_fallthru
    _
  // Predicated region
  $region26: #{_lambda_.2} parent=0 // pred_check
    _
  $region27: #{_lambda_.2} parent=0 // pred_check_branch
    %30 = sbr.rel (0) target = $region29
  $region28: #{_lambda_.2} parent=0 // pred_region
    _
  $region29: #{_lambda_.2} parent=0 // pred_fallthru
    _
  // Predicated region
  $region30: #{_lambda_.2} parent=0 // pred_check
    _
  $region31: #{_lambda_.2} parent=0 // pred_check_branch
    %32 = sbr.rel (0) target = $region33
  $region32: #{_lambda_.2} parent=0 // pred_region
    _
  $region33: #{_lambda_.2} parent=0 // pred_fallthru
    _
  // Predicated region
  $region34: #{_lambda_.2} parent=0 // pred_check
    _
  $region35: #{_lambda_.2} parent=0 // pred_check_branch
    %34 = sbr.rel (0) target = $region37
  $region36: #{_lambda_.2} parent=0 // pred_region
    _
  $region37: #{_lambda_.2} parent=0 // pred_fallthru
    _
  // Predicated region
  $region38: #{_lambda_.2} parent=0 // pred_check
    _
  $region39: #{_lambda_.2} parent=0 // pred_check_branch
    %36 = sbr.rel (0) target = $region41
  $region40: #{_lambda_.2} parent=0 // pred_region
    _
  $region41: #{_lambda_.2} parent=0 // pred_fallthru
    _
  // Predicated region
  $region42: #{_lambda_.2} parent=0 // pred_check
    _
  $region43: #{_lambda_.2} parent=0 // pred_check_branch
    %38 = sbr.rel (0) target = $region45
  $region44: #{_lambda_.2} parent=0 // pred_region
    _
  $region45: #{_lambda_.2} parent=0 // pred_fallthru
    _
  // Predicated region
  $region46: #{_lambda_.2} parent=0 // pred_check
    _
  $region47: #{_lambda_.2} parent=0 // pred_check_branch
    %40 = sbr.rel (0) target = $region49
  $region48: #{_lambda_.2} parent=0 // pred_region
    _
  $region49: #{_lambda_.2} parent=0 // pred_fallthru
    _
  %v42 = vld [vmem:[%s0] sm:$0xff]
  %v43 = vld [vmem:[%s0 + $0x8] sm:$0xff]
  %v44 = vld [vmem:[%s0 + $0x10] sm:$0xff]
  %v45 = vld [vmem:[%s0 + $0x18] sm:$0xff]
  %v46 = vld [vmem:[%s0 + $0x20] sm:$0xff]
  %v47 = vld [vmem:[%s0 + $0x28] sm:$0xff]
  %v48 = vld [vmem:[%s0 + $0x30] sm:$0xff]
  %v49 = vld [vmem:[%s0 + $0x38] sm:$0xff]
  %v50 = vld [vmem:[%s0 + $0x40] sm:$0xff]
  %v51 = vld [vmem:[%s0 + $0x48] sm:$0xff]
  %v52 = vld [vmem:[%s0 + $0x50] sm:$0xff]
  %v53 = vld [vmem:[%s0 + $0x58] sm:$0xff]
  %v54 = vld [vmem:[%s0 + $0x60] sm:$0xff]
  %v55 = vld [vmem:[%s0 + $0x68] sm:$0xff]
  %v56 = vld [vmem:[%s0 + $0x70] sm:$0xff]
  %v57 = vld [vmem:[%s0 + $0x78] sm:$0xff]
  %v58 = vld [vmem:[%s0 + $0x80] sm:$0xff]
  %v59 = vld [vmem:[%s0 + $0x88] sm:$0xff]
  %v60 = vld [vmem:[%s0 + $0x90] sm:$0xff]
  %v61 = vld [vmem:[%s0 + $0x98] sm:$0xff]
  %v62 = vld [vmem:[%s0 + $0xa0] sm:$0xff]
  %v63 = vld [vmem:[%s0 + $0xa8] sm:$0xff]
  %v64 = vld [vmem:[%s0 + $0xb0] sm:$0xff]
  %v65 = vld [vmem:[%s0 + $0xb8] sm:$0xff]
  %v66 = vld [vmem:[%s0 + $0xc0] sm:$0xff]
  %v67 = vld [vmem:[%s0 + $0xc8] sm:$0xff]
  %v68 = vld [vmem:[%s0 + $0xd0] sm:$0xff]
  %v69 = vld [vmem:[%s0 + $0xd8] sm:$0xff]
  %v70 = vld [vmem:[%s0 + $0xe0] sm:$0xff]
  %v71 = vld [vmem:[%s0 + $0xe8] sm:$0xff]
  %v72 = vld [vmem:[%s0 + $0xf0] sm:$0xff]
  %v73 = vld [vmem:[%s0 + $0xf8] sm:$0xff]
  %v74 = vpack.c.bf16 %v43, %v42
  %v75 = vpack.c.bf16 %v45, %v44
  %v76 = vpack.c.bf16 %v47, %v46
  %v77 = vpack.c.bf16 %v49, %v48
  %v78 = vpack.c.bf16 %v51, %v50
  %v79 = vpack.c.bf16 %v53, %v52
  %v80 = vpack.c.bf16 %v55, %v54
  %v81 = vpack.c.bf16 %v57, %v56
  %v82 = vpack.c.bf16 %v59, %v58
  %v83 = vpack.c.bf16 %v61, %v60
  %v84 = vpack.c.bf16 %v63, %v62
  %v85 = vpack.c.bf16 %v65, %v64
  %v86 = vpack.c.bf16 %v67, %v66
  %v87 = vpack.c.bf16 %v69, %v68
  %v88 = vpack.c.bf16 %v71, %v70
  %v89 = vpack.c.bf16 %v73, %v72
  %v90 = vld [vmem:[%s1] sm:$0x7]
  %vm91 = vcmask 48128
  %v93 = vsel %vm91, %v74, 0
  %v96 = vsel %vm91, %v75, 0
  %v99 = vsel %vm91, %v76, 0
  %v102 = vsel %vm91, %v77, 0
  %v105 = vsel %vm91, %v78, 0
  %v108 = vsel %vm91, %v79, 0
  %v111 = vsel %vm91, %v80, 0
  %v114 = vsel %vm91, %v81, 0
  %v117 = vsel %vm91, %v82, 0
  %v120 = vsel %vm91, %v83, 0
  %v123 = vsel %vm91, %v84, 0
  %v126 = vsel %vm91, %v85, 0
  %v129 = vsel %vm91, %v86, 0
  %v132 = vsel %vm91, %v87, 0
  %v135 = vsel %vm91, %v88, 0
  %v138 = vsel %vm91, %v89, 0
  %vm140 = vcmask 1042432
  %v142 = vsel %vm140, %v90, 0
  %144 = vmatprep.subr.bf16.mxu0 0
  %145 = vmatpush1.bf16.msra.mxu0 0
  %146 = vmatprep.subr.bf16.mxu0 0
  %147 = vmatpush1.bf16.msra.mxu0 0
  %148 = vmatprep.subr.bf16.mxu0 0
  %149 = vmatpush1.bf16.msra.mxu0 0
  %150 = vmatprep.subr.bf16.mxu0 0
  %151 = vmatpush1.bf16.msra.mxu0 0
  %152 = vmatprep.subr.bf16.mxu0 0
  %153 = vmatpush1.bf16.msra.mxu0 0
  %154 = vmatprep.subr.bf16.mxu0 0
  %155 = vmatpush1.bf16.msra.mxu0 0
  %156 = vmatprep.subr.bf16.mxu0 0
  %157 = vmatpush1.bf16.msra.mxu0 0
  %158 = vmatprep.subr.bf16.mxu0 0
  %159 = vmatpush1.bf16.msra.mxu0 %v142
  %160 = vmatprep.subr.bf16.mxu0 0
  %161 = vmatpush2.bf16.msra.mxu0 0
  %162 = vmatprep.subr.bf16.mxu0 0
  %163 = vmatpush2.bf16.msra.mxu0 0
  %164 = vmatprep.subr.bf16.mxu0 0
  %165 = vmatpush2.bf16.msra.mxu0 0
  %166 = vmatprep.subr.bf16.mxu0 0
  %167 = vmatpush2.bf16.msra.mxu0 0
  %168 = vmatprep.subr.bf16.mxu0 0
  %169 = vmatpush2.bf16.msra.mxu0 0
  %170 = vmatprep.subr.bf16.mxu0 0
  %171 = vmatpush2.bf16.msra.mxu0 0
  %172 = vmatprep.subr.bf16.mxu0 0
  %173 = vmatpush2.bf16.msra.mxu0 0
  %174 = vmatprep.subr.bf16.mxu0 0
  %175 = vmatpush2.bf16.msra.mxu0 0
  %176 = vmatprep.mubr.bf16.mxu0 0
  %177 = vmatmul.mubr.bf16.gmra.mxu0 %v93
  %v178 = vpop.f32.mrf.mxu0
  %v179 = vadd.f32 0.0, %v178
  %v180 = vpop.f32.mrf.mxu0
  %v181 = vpop.f32.mrf.mxu0
  %v182 = vadd.f32 0.0, %v181
  %v183 = vpop.f32.mrf.mxu0
  %184 = vmatprep.mubr.bf16.mxu0 0
  %185 = vmatmul.mubr.bf16.gmra.mxu0 %v96
  %v186 = vpop.f32.mrf.mxu0
  %v187 = vadd.f32 0.0, %v186
  %v188 = vpop.f32.mrf.mxu0
  %v189 = vpop.f32.mrf.mxu0
  %v190 = vadd.f32 0.0, %v189
  %v191 = vpop.f32.mrf.mxu0
  %192 = vmatprep.mubr.bf16.mxu0 0
  %193 = vmatmul.mubr.bf16.gmra.mxu0 %v99
  %v194 = vpop.f32.mrf.mxu0
  %v195 = vadd.f32 0.0, %v194
  %v196 = vpop.f32.mrf.mxu0
  %v197 = vpop.f32.mrf.mxu0
  %v198 = vadd.f32 0.0, %v197
  %v199 = vpop.f32.mrf.mxu0
  %200 = vmatprep.mubr.bf16.mxu0 0
  %201 = vmatmul.mubr.bf16.gmra.mxu0 %v102
  %v202 = vpop.f32.mrf.mxu0
  %v203 = vadd.f32 0.0, %v202
  %v204 = vpop.f32.mrf.mxu0
  %v205 = vpop.f32.mrf.mxu0
  %v206 = vadd.f32 0.0, %v205
  %v207 = vpop.f32.mrf.mxu0
  %208 = vmatprep.mubr.bf16.mxu0 0
  %209 = vmatmul.mubr.bf16.gmra.mxu0 %v105
  %v210 = vpop.f32.mrf.mxu0
  %v211 = vadd.f32 0.0, %v210
  %v212 = vpop.f32.mrf.mxu0
  %v213 = vpop.f32.mrf.mxu0
  %v214 = vadd.f32 0.0, %v213
  %v215 = vpop.f32.mrf.mxu0
  %216 = vmatprep.mubr.bf16.mxu0 0
  %217 = vmatmul.mubr.bf16.gmra.mxu0 %v108
  %v218 = vpop.f32.mrf.mxu0
  %v219 = vadd.f32 0.0, %v218
  %v220 = vpop.f32.mrf.mxu0
  %v221 = vpop.f32.mrf.mxu0
  %v222 = vadd.f32 0.0, %v221
  %v223 = vpop.f32.mrf.mxu0
  %224 = vmatprep.mubr.bf16.mxu0 0
  %225 = vmatmul.mubr.bf16.gmra.mxu0 %v111
  %v226 = vpop.f32.mrf.mxu0
  %v227 = vadd.f32 0.0, %v226
  %v228 = vpop.f32.mrf.mxu0
  %v229 = vpop.f32.mrf.mxu0
  %v230 = vadd.f32 0.0, %v229
  %v231 = vpop.f32.mrf.mxu0
  %232 = vmatprep.mubr.bf16.mxu0 0
  %233 = vmatmul.mubr.bf16.gmra.mxu0 %v114
  %v234 = vpop.f32.mrf.mxu0
  %v235 = vadd.f32 0.0, %v234
  %v236 = vpop.f32.mrf.mxu0
  %v237 = vpop.f32.mrf.mxu0
  %v238 = vadd.f32 0.0, %v237
  %v239 = vpop.f32.mrf.mxu0
  %240 = vmatprep.mubr.bf16.mxu0 0
  %241 = vmatmul.mubr.bf16.gmra.mxu0 %v117
  %v242 = vpop.f32.mrf.mxu0
  %v243 = vadd.f32 0.0, %v242
  %v244 = vpop.f32.mrf.mxu0
  %v245 = vpop.f32.mrf.mxu0
  %v246 = vadd.f32 0.0, %v245
  %v247 = vpop.f32.mrf.mxu0
  %248 = vmatprep.mubr.bf16.mxu0 0
  %249 = vmatmul.mubr.bf16.gmra.mxu0 %v120
  %v250 = vpop.f32.mrf.mxu0
  %v251 = vadd.f32 0.0, %v250
  %v252 = vpop.f32.mrf.mxu0
  %v253 = vpop.f32.mrf.mxu0
  %v254 = vadd.f32 0.0, %v253
  %v255 = vpop.f32.mrf.mxu0
  %256 = vmatprep.mubr.bf16.mxu0 0
  %257 = vmatmul.mubr.bf16.gmra.mxu0 %v123
  %v258 = vpop.f32.mrf.mxu0
  %v259 = vadd.f32 0.0, %v258
  %v260 = vpop.f32.mrf.mxu0
  %v261 = vpop.f32.mrf.mxu0
  %v262 = vadd.f32 0.0, %v261
  %v263 = vpop.f32.mrf.mxu0
  %264 = vmatprep.mubr.bf16.mxu0 0
  %265 = vmatmul.mubr.bf16.gmra.mxu0 %v126
  %v266 = vpop.f32.mrf.mxu0
  %v267 = vadd.f32 0.0, %v266
  %v268 = vpop.f32.mrf.mxu0
  %v269 = vpop.f32.mrf.mxu0
  %v270 = vadd.f32 0.0, %v269
  %v271 = vpop.f32.mrf.mxu0
  %272 = vmatprep.mubr.bf16.mxu0 0
  %273 = vmatmul.mubr.bf16.gmra.mxu0 %v129
  %v274 = vpop.f32.mrf.mxu0
  %v275 = vadd.f32 0.0, %v274
  %v276 = vpop.f32.mrf.mxu0
  %v277 = vpop.f32.mrf.mxu0
  %v278 = vadd.f32 0.0, %v277
  %v279 = vpop.f32.mrf.mxu0
  %280 = vmatprep.mubr.bf16.mxu0 0
  %281 = vmatmul.mubr.bf16.gmra.mxu0 %v132
  %v282 = vpop.f32.mrf.mxu0
  %v283 = vadd.f32 0.0, %v282
  %v284 = vpop.f32.mrf.mxu0
  %v285 = vpop.f32.mrf.mxu0
  %v286 = vadd.f32 0.0, %v285
  %v287 = vpop.f32.mrf.mxu0
  %288 = vmatprep.mubr.bf16.mxu0 0
  %289 = vmatmul.mubr.bf16.gmra.mxu0 %v135
  %v290 = vpop.f32.mrf.mxu0
  %v291 = vadd.f32 0.0, %v290
  %v292 = vpop.f32.mrf.mxu0
  %v293 = vpop.f32.mrf.mxu0
  %v294 = vadd.f32 0.0, %v293
  %v295 = vpop.f32.mrf.mxu0
  %296 = vmatprep.mubr.bf16.mxu0 0
  %297 = vmatmul.mubr.bf16.gmra.mxu0 %v138
  %v298 = vpop.f32.mrf.mxu0
  %v299 = vadd.f32 0.0, %v298
  %v300 = vpop.f32.mrf.mxu0
  %v301 = vpop.f32.mrf.mxu0
  %v302 = vadd.f32 0.0, %v301
  %v303 = vpop.f32.mrf.mxu0
  %304 = vdwg.mxu0
  %v305 = vld [vmem:[%s2] sm:$0x1]
  %v307 = vlaneseq
  %v308 = vshrl.u32 %v307, 7
  %v309 = vsub.s32 0, %v308
  %v310 = vrot.slane %v305, %v309
  %v312 = vmul.f32 %v179, %v310
  %v313 = vmul.f32 %v182, %v310
  %v314 = vmul.f32 %v187, %v310
  %v315 = vmul.f32 %v190, %v310
  %v316 = vmul.f32 %v195, %v310
  %v317 = vmul.f32 %v198, %v310
  %v318 = vmul.f32 %v203, %v310
  %v319 = vmul.f32 %v206, %v310
  %v320 = vmul.f32 %v211, %v310
  %v321 = vmul.f32 %v214, %v310
  %v322 = vmul.f32 %v219, %v310
  %v323 = vmul.f32 %v222, %v310
  %v324 = vmul.f32 %v227, %v310
  %v325 = vmul.f32 %v230, %v310
  %v326 = vmul.f32 %v235, %v310
  %v327 = vmul.f32 %v238, %v310
  %v328 = vmul.f32 %v243, %v310
  %v329 = vmul.f32 %v246, %v310
  %v330 = vmul.f32 %v251, %v310
  %v331 = vmul.f32 %v254, %v310
  %v332 = vmul.f32 %v259, %v310
  %v333 = vmul.f32 %v262, %v310
  %v334 = vmul.f32 %v267, %v310
  %v335 = vmul.f32 %v270, %v310
  %v336 = vmul.f32 %v275, %v310
  %v337 = vmul.f32 %v278, %v310
  %v338 = vmul.f32 %v283, %v310
  %v339 = vmul.f32 %v286, %v310
  %v340 = vmul.f32 %v291, %v310
  %v341 = vmul.f32 %v294, %v310
  %v342 = vmul.f32 %v299, %v310
  %v343 = vmul.f32 %v302, %v310
  %v344 = vld [vmem:[%s3] sm:$0x1]
  %v346 = vlaneseq
  %v347 = vshrl.u32 %v346, 7
  %v348 = vsub.s32 0, %v347
  %v349 = vrot.slane %v344, %v348
  %v351 = vadd.f32 %v312, %v349
  %v352 = vadd.f32 %v313, %v349
  %v353 = vadd.f32 %v314, %v349
  %v354 = vadd.f32 %v315, %v349
  %v355 = vadd.f32 %v316, %v349
  %v356 = vadd.f32 %v317, %v349
  %v357 = vadd.f32 %v318, %v349
  %v358 = vadd.f32 %v319, %v349
  %v359 = vadd.f32 %v320, %v349
  %v360 = vadd.f32 %v321, %v349
  %v361 = vadd.f32 %v322, %v349
  %v362 = vadd.f32 %v323, %v349
  %v363 = vadd.f32 %v324, %v349
  %v364 = vadd.f32 %v325, %v349
  %v365 = vadd.f32 %v326, %v349
  %v366 = vadd.f32 %v327, %v349
  %v367 = vadd.f32 %v328, %v349
  %v368 = vadd.f32 %v329, %v349
  %v369 = vadd.f32 %v330, %v349
  %v370 = vadd.f32 %v331, %v349
  %v371 = vadd.f32 %v332, %v349
  %v372 = vadd.f32 %v333, %v349
  %v373 = vadd.f32 %v334, %v349
  %v374 = vadd.f32 %v335, %v349
  %v375 = vadd.f32 %v336, %v349
  %v376 = vadd.f32 %v337, %v349
  %v377 = vadd.f32 %v338, %v349
  %v378 = vadd.f32 %v339, %v349
  %v379 = vadd.f32 %v340, %v349
  %v380 = vadd.f32 %v341, %v349
  %v381 = vadd.f32 %v342, %v349
  %v382 = vadd.f32 %v343, %v349
  %v383 = vmax.f32 %v351, 0.0
  %v384 = vmax.f32 %v352, 0.0
  %v385 = vmax.f32 %v353, 0.0
  %v386 = vmax.f32 %v354, 0.0
  %v387 = vmax.f32 %v355, 0.0
  %v388 = vmax.f32 %v356, 0.0
  %v389 = vmax.f32 %v357, 0.0
  %v390 = vmax.f32 %v358, 0.0
  %v391 = vmax.f32 %v359, 0.0
  %v392 = vmax.f32 %v360, 0.0
  %v393 = vmax.f32 %v361, 0.0
  %v394 = vmax.f32 %v362, 0.0
  %v395 = vmax.f32 %v363, 0.0
  %v396 = vmax.f32 %v364, 0.0
  %v397 = vmax.f32 %v365, 0.0
  %v398 = vmax.f32 %v366, 0.0
  %v399 = vmax.f32 %v367, 0.0
  %v400 = vmax.f32 %v368, 0.0
  %v401 = vmax.f32 %v369, 0.0
  %v402 = vmax.f32 %v370, 0.0
  %v403 = vmax.f32 %v371, 0.0
  %v404 = vmax.f32 %v372, 0.0
  %v405 = vmax.f32 %v373, 0.0
  %v406 = vmax.f32 %v374, 0.0
  %v407 = vmax.f32 %v375, 0.0
  %v408 = vmax.f32 %v376, 0.0
  %v409 = vmax.f32 %v377, 0.0
  %v410 = vmax.f32 %v378, 0.0
  %v411 = vmax.f32 %v379, 0.0
  %v412 = vmax.f32 %v380, 0.0
  %v413 = vmax.f32 %v381, 0.0
  %v414 = vmax.f32 %v382, 0.0
  %v415 = vpack.c.bf16 %v384, %v383
  %v416 = vpack.c.bf16 %v386, %v385
  %v417 = vpack.c.bf16 %v388, %v387
  %v418 = vpack.c.bf16 %v390, %v389
  %v419 = vpack.c.bf16 %v392, %v391
  %v420 = vpack.c.bf16 %v394, %v393
  %v421 = vpack.c.bf16 %v396, %v395
  %v422 = vpack.c.bf16 %v398, %v397
  %v423 = vpack.c.bf16 %v400, %v399
  %v424 = vpack.c.bf16 %v402, %v401
  %v425 = vpack.c.bf16 %v404, %v403
  %v426 = vpack.c.bf16 %v406, %v405
  %v427 = vpack.c.bf16 %v408, %v407
  %v428 = vpack.c.bf16 %v410, %v409
  %v429 = vpack.c.bf16 %v412, %v411
  %v430 = vpack.c.bf16 %v414, %v413
  %v431 = vld [vmem:[%s4] sm:$0xff]
  %v432 = vld [vmem:[%s4 + $0x8] sm:$0xff]
  %v433 = vld [vmem:[%s4 + $0x10] sm:$0xff]
  %v434 = vld [vmem:[%s4 + $0x18] sm:$0xff]
  %v435 = vld [vmem:[%s4 + $0x20] sm:$0xff]
  %v436 = vld [vmem:[%s4 + $0x28] sm:$0xff]
  %v437 = vld [vmem:[%s4 + $0x30] sm:$0xff]
  %v438 = vld [vmem:[%s4 + $0x38] sm:$0xff]
  %v439 = vld [vmem:[%s4 + $0x40] sm:$0xff]
  %v440 = vld [vmem:[%s4 + $0x48] sm:$0xff]
  %v441 = vld [vmem:[%s4 + $0x50] sm:$0xff]
  %v442 = vld [vmem:[%s4 + $0x58] sm:$0xff]
  %v443 = vld [vmem:[%s4 + $0x60] sm:$0xff]
  %v444 = vld [vmem:[%s4 + $0x68] sm:$0xff]
  %v445 = vld [vmem:[%s4 + $0x70] sm:$0xff]
  %v446 = vld [vmem:[%s4 + $0x78] sm:$0xff]
  %v447 = vld [vmem:[%s5] sm:$0x3]
  %v449 = vlaneseq
  %v450 = vshrl.u32 %v449, 7
  %v451 = vsub.s32 0, %v450
  %v452 = vrot.slane %v447, %v451
  %v453 = vlaneseq
  %v454 = vshrl.u32 %v453, 7
  %v455 = vsub.s32 1, %v454
  %v456 = vrot.slane %v447, %v455
  %v475 = vunpack.c.l.b16 %v431
  %v476 = vunpack.c.h.b16 %v431
  %v477 = vunpack.c.l.b16 %v432
  %v478 = vunpack.c.h.b16 %v432
  %v479 = vunpack.c.l.b16 %v433
  %v480 = vunpack.c.h.b16 %v433
  %v481 = vunpack.c.l.b16 %v434
  %v482 = vunpack.c.h.b16 %v434
  %v483 = vunpack.c.l.b16 %v435
  %v484 = vunpack.c.h.b16 %v435
  %v485 = vunpack.c.l.b16 %v436
  %v486 = vunpack.c.h.b16 %v436
  %v487 = vunpack.c.l.b16 %v437
  %v488 = vunpack.c.h.b16 %v437
  %v489 = vunpack.c.l.b16 %v438
  %v490 = vunpack.c.h.b16 %v438
  %v491 = vunpack.c.l.b16 %v439
  %v492 = vunpack.c.h.b16 %v439
  %v493 = vunpack.c.l.b16 %v440
  %v494 = vunpack.c.h.b16 %v440
  %v495 = vunpack.c.l.b16 %v441
  %v496 = vunpack.c.h.b16 %v441
  %v497 = vunpack.c.l.b16 %v442
  %v498 = vunpack.c.h.b16 %v442
  %v499 = vunpack.c.l.b16 %v443
  %v500 = vunpack.c.h.b16 %v443
  %v501 = vunpack.c.l.b16 %v444
  %v502 = vunpack.c.h.b16 %v444
  %v503 = vunpack.c.l.b16 %v445
  %v504 = vunpack.c.h.b16 %v445
  %v505 = vunpack.c.l.b16 %v446
  %v506 = vunpack.c.h.b16 %v446
  %v507 = vpack.c.b16 %v477, %v475
  %v508 = vpack.c.b16 %v478, %v476
  %v509 = vpack.c.b16 %v481, %v479
  %v510 = vpack.c.b16 %v482, %v480
  %v511 = vpack.c.b16 %v485, %v483
  %v512 = vpack.c.b16 %v486, %v484
  %v513 = vpack.c.b16 %v489, %v487
  %v514 = vpack.c.b16 %v490, %v488
  %v515 = vpack.c.b16 %v493, %v491
  %v516 = vpack.c.b16 %v494, %v492
  %v517 = vpack.c.b16 %v497, %v495
  %v518 = vpack.c.b16 %v498, %v496
  %v519 = vpack.c.b16 %v501, %v499
  %v520 = vpack.c.b16 %v502, %v500
  %v521 = vpack.c.b16 %v505, %v503
  %v522 = vpack.c.b16 %v506, %v504
  %539 = vmatprep.subr.bf16.mxu0 %v522
  %540 = vmatpush1.bf16.msra.mxu0 %v521
  %541 = vmatprep.subr.bf16.mxu0 %v520
  %542 = vmatpush1.bf16.msra.mxu0 %v519
  %543 = vmatprep.subr.bf16.mxu0 %v518
  %544 = vmatpush1.bf16.msra.mxu0 %v517
  %545 = vmatprep.subr.bf16.mxu0 %v516
  %546 = vmatpush1.bf16.msra.mxu0 %v515
  %547 = vmatprep.subr.bf16.mxu0 %v514
  %548 = vmatpush1.bf16.msra.mxu0 %v513
  %549 = vmatprep.subr.bf16.mxu0 %v512
  %550 = vmatpush1.bf16.msra.mxu0 %v511
  %551 = vmatprep.subr.bf16.mxu0 %v510
  %552 = vmatpush1.bf16.msra.mxu0 %v509
  %553 = vmatprep.subr.bf16.mxu0 %v508
  %554 = vmatpush1.bf16.msra.mxu0 %v507
  %555 = vmatprep.subr.bf16.mxu0 0
  %556 = vmatpush2.bf16.msra.mxu0 0
  %557 = vmatprep.subr.bf16.mxu0 0
  %558 = vmatpush2.bf16.msra.mxu0 0
  %559 = vmatprep.subr.bf16.mxu0 0
  %560 = vmatpush2.bf16.msra.mxu0 0
  %561 = vmatprep.subr.bf16.mxu0 0
  %562 = vmatpush2.bf16.msra.mxu0 0
  %563 = vmatprep.subr.bf16.mxu0 0
  %564 = vmatpush2.bf16.msra.mxu0 0
  %565 = vmatprep.subr.bf16.mxu0 0
  %566 = vmatpush2.bf16.msra.mxu0 0
  %567 = vmatprep.subr.bf16.mxu0 0
  %568 = vmatpush2.bf16.msra.mxu0 0
  %569 = vmatprep.subr.bf16.mxu0 0
  %570 = vmatpush2.bf16.msra.mxu0 0
  %571 = vmatprep.mubr.bf16.mxu0 0
  %572 = vmatmul.mubr.bf16.gmra.mxu0 %v415
  %v573 = vpop.f32.mrf.mxu0
  %v574 = vadd.f32 %v452, %v573
  %v575 = vpop.f32.mrf.mxu0
  %v576 = vadd.f32 %v456, %v575
  %v577 = vpop.f32.mrf.mxu0
  %v578 = vadd.f32 %v452, %v577
  %v579 = vpop.f32.mrf.mxu0
  %v580 = vadd.f32 %v456, %v579
  %581 = vmatprep.mubr.bf16.mxu0 0
  %582 = vmatmul.mubr.bf16.gmra.mxu0 %v416
  %v583 = vpop.f32.mrf.mxu0
  %v584 = vadd.f32 %v452, %v583
  %v585 = vpop.f32.mrf.mxu0
  %v586 = vadd.f32 %v456, %v585
  %v587 = vpop.f32.mrf.mxu0
  %v588 = vadd.f32 %v452, %v587
  %v589 = vpop.f32.mrf.mxu0
  %v590 = vadd.f32 %v456, %v589
  %591 = vmatprep.mubr.bf16.mxu0 0
  %592 = vmatmul.mubr.bf16.gmra.mxu0 %v417
  %v593 = vpop.f32.mrf.mxu0
  %v594 = vadd.f32 %v452, %v593
  %v595 = vpop.f32.mrf.mxu0
  %v596 = vadd.f32 %v456, %v595
  %v597 = vpop.f32.mrf.mxu0
  %v598 = vadd.f32 %v452, %v597
  %v599 = vpop.f32.mrf.mxu0
  %v600 = vadd.f32 %v456, %v599
  %601 = vmatprep.mubr.bf16.mxu0 0
  %602 = vmatmul.mubr.bf16.gmra.mxu0 %v418
  %v603 = vpop.f32.mrf.mxu0
  %v604 = vadd.f32 %v452, %v603
  %v605 = vpop.f32.mrf.mxu0
  %v606 = vadd.f32 %v456, %v605
  %v607 = vpop.f32.mrf.mxu0
  %v608 = vadd.f32 %v452, %v607
  %v609 = vpop.f32.mrf.mxu0
  %v610 = vadd.f32 %v456, %v609
  %611 = vmatprep.mubr.bf16.mxu0 0
  %612 = vmatmul.mubr.bf16.gmra.mxu0 %v419
  %v613 = vpop.f32.mrf.mxu0
  %v614 = vadd.f32 %v452, %v613
  %v615 = vpop.f32.mrf.mxu0
  %v616 = vadd.f32 %v456, %v615
  %v617 = vpop.f32.mrf.mxu0
  %v618 = vadd.f32 %v452, %v617
  %v619 = vpop.f32.mrf.mxu0
  %v620 = vadd.f32 %v456, %v619
  %621 = vmatprep.mubr.bf16.mxu0 0
  %622 = vmatmul.mubr.bf16.gmra.mxu0 %v420
  %v623 = vpop.f32.mrf.mxu0
  %v624 = vadd.f32 %v452, %v623
  %v625 = vpop.f32.mrf.mxu0
  %v626 = vadd.f32 %v456, %v625
  %v627 = vpop.f32.mrf.mxu0
  %v628 = vadd.f32 %v452, %v627
  %v629 = vpop.f32.mrf.mxu0
  %v630 = vadd.f32 %v456, %v629
  %631 = vmatprep.mubr.bf16.mxu0 0
  %632 = vmatmul.mubr.bf16.gmra.mxu0 %v421
  %v633 = vpop.f32.mrf.mxu0
  %v634 = vadd.f32 %v452, %v633
  %v635 = vpop.f32.mrf.mxu0
  %v636 = vadd.f32 %v456, %v635
  %v637 = vpop.f32.mrf.mxu0
  %v638 = vadd.f32 %v452, %v637
  %v639 = vpop.f32.mrf.mxu0
  %v640 = vadd.f32 %v456, %v639
  %641 = vmatprep.mubr.bf16.mxu0 0
  %642 = vmatmul.mubr.bf16.gmra.mxu0 %v422
  %v643 = vpop.f32.mrf.mxu0
  %v644 = vadd.f32 %v452, %v643
  %v645 = vpop.f32.mrf.mxu0
  %v646 = vadd.f32 %v456, %v645
  %v647 = vpop.f32.mrf.mxu0
  %v648 = vadd.f32 %v452, %v647
  %v649 = vpop.f32.mrf.mxu0
  %v650 = vadd.f32 %v456, %v649
  %651 = vmatprep.mubr.bf16.mxu0 0
  %652 = vmatmul.mubr.bf16.gmra.mxu0 %v423
  %v653 = vpop.f32.mrf.mxu0
  %v654 = vadd.f32 %v452, %v653
  %v655 = vpop.f32.mrf.mxu0
  %v656 = vadd.f32 %v456, %v655
  %v657 = vpop.f32.mrf.mxu0
  %v658 = vadd.f32 %v452, %v657
  %v659 = vpop.f32.mrf.mxu0
  %v660 = vadd.f32 %v456, %v659
  %661 = vmatprep.mubr.bf16.mxu0 0
  %662 = vmatmul.mubr.bf16.gmra.mxu0 %v424
  %v663 = vpop.f32.mrf.mxu0
  %v664 = vadd.f32 %v452, %v663
  %v665 = vpop.f32.mrf.mxu0
  %v666 = vadd.f32 %v456, %v665
  %v667 = vpop.f32.mrf.mxu0
  %v668 = vadd.f32 %v452, %v667
  %v669 = vpop.f32.mrf.mxu0
  %v670 = vadd.f32 %v456, %v669
  %671 = vmatprep.mubr.bf16.mxu0 0
  %672 = vmatmul.mubr.bf16.gmra.mxu0 %v425
  %v673 = vpop.f32.mrf.mxu0
  %v674 = vadd.f32 %v452, %v673
  %v675 = vpop.f32.mrf.mxu0
  %v676 = vadd.f32 %v456, %v675
  %v677 = vpop.f32.mrf.mxu0
  %v678 = vadd.f32 %v452, %v677
  %v679 = vpop.f32.mrf.mxu0
  %v680 = vadd.f32 %v456, %v679
  %681 = vmatprep.mubr.bf16.mxu0 0
  %682 = vmatmul.mubr.bf16.gmra.mxu0 %v426
  %v683 = vpop.f32.mrf.mxu0
  %v684 = vadd.f32 %v452, %v683
  %v685 = vpop.f32.mrf.mxu0
  %v686 = vadd.f32 %v456, %v685
  %v687 = vpop.f32.mrf.mxu0
  %v688 = vadd.f32 %v452, %v687
  %v689 = vpop.f32.mrf.mxu0
  %v690 = vadd.f32 %v456, %v689
  %691 = vmatprep.mubr.bf16.mxu0 0
  %692 = vmatmul.mubr.bf16.gmra.mxu0 %v427
  %v693 = vpop.f32.mrf.mxu0
  %v694 = vadd.f32 %v452, %v693
  %v695 = vpop.f32.mrf.mxu0
  %v696 = vadd.f32 %v456, %v695
  %v697 = vpop.f32.mrf.mxu0
  %v698 = vadd.f32 %v452, %v697
  %v699 = vpop.f32.mrf.mxu0
  %v700 = vadd.f32 %v456, %v699
  %701 = vmatprep.mubr.bf16.mxu0 0
  %702 = vmatmul.mubr.bf16.gmra.mxu0 %v428
  %v703 = vpop.f32.mrf.mxu0
  %v704 = vadd.f32 %v452, %v703
  %v705 = vpop.f32.mrf.mxu0
  %v706 = vadd.f32 %v456, %v705
  %v707 = vpop.f32.mrf.mxu0
  %v708 = vadd.f32 %v452, %v707
  %v709 = vpop.f32.mrf.mxu0
  %v710 = vadd.f32 %v456, %v709
  %711 = vmatprep.mubr.bf16.mxu0 0
  %712 = vmatmul.mubr.bf16.gmra.mxu0 %v429
  %v713 = vpop.f32.mrf.mxu0
  %v714 = vadd.f32 %v452, %v713
  %v715 = vpop.f32.mrf.mxu0
  %v716 = vadd.f32 %v456, %v715
  %v717 = vpop.f32.mrf.mxu0
  %v718 = vadd.f32 %v452, %v717
  %v719 = vpop.f32.mrf.mxu0
  %v720 = vadd.f32 %v456, %v719
  %721 = vmatprep.mubr.bf16.mxu0 0
  %722 = vmatmul.mubr.bf16.gmra.mxu0 %v430
  %v723 = vpop.f32.mrf.mxu0
  %v724 = vadd.f32 %v452, %v723
  %v725 = vpop.f32.mrf.mxu0
  %v726 = vadd.f32 %v456, %v725
  %v727 = vpop.f32.mrf.mxu0
  %v728 = vadd.f32 %v452, %v727
  %v729 = vpop.f32.mrf.mxu0
  %v730 = vadd.f32 %v456, %v729
  %731 = vdwg.mxu0
  %v732 = vrot.slane %v574, 4
  %v733 = vmax.f32 %v574, %v732
  %v734 = vrot.slane %v733, 2
  %v735 = vmax.f32 %v733, %v734
  %v736 = vrot.slane %v735, 1
  %v737 = vmax.f32 %v735, %v736
  %v738 = vrot.slane %v576, 4
  %v739 = vmax.f32 %v576, %v738
  %v740 = vrot.slane %v739, 2
  %v741 = vmax.f32 %v739, %v740
  %v742 = vrot.slane %v741, 1
  %v743 = vmax.f32 %v741, %v742
  %v744 = vrot.slane %v578, 4
  %v745 = vmax.f32 %v578, %v744
  %v746 = vrot.slane %v745, 2
  %v747 = vmax.f32 %v745, %v746
  %v748 = vrot.slane %v747, 1
  %v749 = vmax.f32 %v747, %v748
  %v750 = vrot.slane %v580, 4
  %v751 = vmax.f32 %v580, %v750
  %v752 = vrot.slane %v751, 2
  %v753 = vmax.f32 %v751, %v752
  %v754 = vrot.slane %v753, 1
  %v755 = vmax.f32 %v753, %v754
  %v756 = vrot.slane %v584, 4
  %v757 = vmax.f32 %v584, %v756
  %v758 = vrot.slane %v757, 2
  %v759 = vmax.f32 %v757, %v758
  %v760 = vrot.slane %v759, 1
  %v761 = vmax.f32 %v759, %v760
  %v762 = vrot.slane %v586, 4
  %v763 = vmax.f32 %v586, %v762
  %v764 = vrot.slane %v763, 2
  %v765 = vmax.f32 %v763, %v764
  %v766 = vrot.slane %v765, 1
  %v767 = vmax.f32 %v765, %v766
  %v768 = vrot.slane %v588, 4
  %v769 = vmax.f32 %v588, %v768
  %v770 = vrot.slane %v769, 2
  %v771 = vmax.f32 %v769, %v770
  %v772 = vrot.slane %v771, 1
  %v773 = vmax.f32 %v771, %v772
  %v774 = vrot.slane %v590, 4
  %v775 = vmax.f32 %v590, %v774
  %v776 = vrot.slane %v775, 2
  %v777 = vmax.f32 %v775, %v776
  %v778 = vrot.slane %v777, 1
  %v779 = vmax.f32 %v777, %v778
  %v780 = vrot.slane %v594, 4
  %v781 = vmax.f32 %v594, %v780
  %v782 = vrot.slane %v781, 2
  %v783 = vmax.f32 %v781, %v782
  %v784 = vrot.slane %v783, 1
  %v785 = vmax.f32 %v783, %v784
  %v786 = vrot.slane %v596, 4
  %v787 = vmax.f32 %v596, %v786
  %v788 = vrot.slane %v787, 2
  %v789 = vmax.f32 %v787, %v788
  %v790 = vrot.slane %v789, 1
  %v791 = vmax.f32 %v789, %v790
  %v792 = vrot.slane %v598, 4
  %v793 = vmax.f32 %v598, %v792
  %v794 = vrot.slane %v793, 2
  %v795 = vmax.f32 %v793, %v794
  %v796 = vrot.slane %v795, 1
  %v797 = vmax.f32 %v795, %v796
  %v798 = vrot.slane %v600, 4
  %v799 = vmax.f32 %v600, %v798
  %v800 = vrot.slane %v799, 2
  %v801 = vmax.f32 %v799, %v800
  %v802 = vrot.slane %v801, 1
  %v803 = vmax.f32 %v801, %v802
  %v804 = vrot.slane %v604, 4
  %v805 = vmax.f32 %v604, %v804
  %v806 = vrot.slane %v805, 2
  %v807 = vmax.f32 %v805, %v806
  %v808 = vrot.slane %v807, 1
  %v809 = vmax.f32 %v807, %v808
  %v810 = vrot.slane %v606, 4
  %v811 = vmax.f32 %v606, %v810
  %v812 = vrot.slane %v811, 2
  %v813 = vmax.f32 %v811, %v812
  %v814 = vrot.slane %v813, 1
  %v815 = vmax.f32 %v813, %v814
  %v816 = vrot.slane %v608, 4
  %v817 = vmax.f32 %v608, %v816
  %v818 = vrot.slane %v817, 2
  %v819 = vmax.f32 %v817, %v818
  %v820 = vrot.slane %v819, 1
  %v821 = vmax.f32 %v819, %v820
  %v822 = vrot.slane %v610, 4
  %v823 = vmax.f32 %v610, %v822
  %v824 = vrot.slane %v823, 2
  %v825 = vmax.f32 %v823, %v824
  %v826 = vrot.slane %v825, 1
  %v827 = vmax.f32 %v825, %v826
  %v828 = vrot.slane %v614, 4
  %v829 = vmax.f32 %v614, %v828
  %v830 = vrot.slane %v829, 2
  %v831 = vmax.f32 %v829, %v830
  %v832 = vrot.slane %v831, 1
  %v833 = vmax.f32 %v831, %v832
  %v834 = vrot.slane %v616, 4
  %v835 = vmax.f32 %v616, %v834
  %v836 = vrot.slane %v835, 2
  %v837 = vmax.f32 %v835, %v836
  %v838 = vrot.slane %v837, 1
  %v839 = vmax.f32 %v837, %v838
  %v840 = vrot.slane %v618, 4
  %v841 = vmax.f32 %v618, %v840
  %v842 = vrot.slane %v841, 2
  %v843 = vmax.f32 %v841, %v842
  %v844 = vrot.slane %v843, 1
  %v845 = vmax.f32 %v843, %v844
  %v846 = vrot.slane %v620, 4
  %v847 = vmax.f32 %v620, %v846
  %v848 = vrot.slane %v847, 2
  %v849 = vmax.f32 %v847, %v848
  %v850 = vrot.slane %v849, 1
  %v851 = vmax.f32 %v849, %v850
  %v852 = vrot.slane %v624, 4
  %v853 = vmax.f32 %v624, %v852
  %v854 = vrot.slane %v853, 2
  %v855 = vmax.f32 %v853, %v854
  %v856 = vrot.slane %v855, 1
  %v857 = vmax.f32 %v855, %v856
  %v858 = vrot.slane %v626, 4
  %v859 = vmax.f32 %v626, %v858
  %v860 = vrot.slane %v859, 2
  %v861 = vmax.f32 %v859, %v860
  %v862 = vrot.slane %v861, 1
  %v863 = vmax.f32 %v861, %v862
  %v864 = vrot.slane %v628, 4
  %v865 = vmax.f32 %v628, %v864
  %v866 = vrot.slane %v865, 2
  %v867 = vmax.f32 %v865, %v866
  %v868 = vrot.slane %v867, 1
  %v869 = vmax.f32 %v867, %v868
  %v870 = vrot.slane %v630, 4
  %v871 = vmax.f32 %v630, %v870
  %v872 = vrot.slane %v871, 2
  %v873 = vmax.f32 %v871, %v872
  %v874 = vrot.slane %v873, 1
  %v875 = vmax.f32 %v873, %v874
  %v876 = vrot.slane %v634, 4
  %v877 = vmax.f32 %v634, %v876
  %v878 = vrot.slane %v877, 2
  %v879 = vmax.f32 %v877, %v878
  %v880 = vrot.slane %v879, 1
  %v881 = vmax.f32 %v879, %v880
  %v882 = vrot.slane %v636, 4
  %v883 = vmax.f32 %v636, %v882
  %v884 = vrot.slane %v883, 2
  %v885 = vmax.f32 %v883, %v884
  %v886 = vrot.slane %v885, 1
  %v887 = vmax.f32 %v885, %v886
  %v888 = vrot.slane %v638, 4
  %v889 = vmax.f32 %v638, %v888
  %v890 = vrot.slane %v889, 2
  %v891 = vmax.f32 %v889, %v890
  %v892 = vrot.slane %v891, 1
  %v893 = vmax.f32 %v891, %v892
  %v894 = vrot.slane %v640, 4
  %v895 = vmax.f32 %v640, %v894
  %v896 = vrot.slane %v895, 2
  %v897 = vmax.f32 %v895, %v896
  %v898 = vrot.slane %v897, 1
  %v899 = vmax.f32 %v897, %v898
  %v900 = vrot.slane %v644, 4
  %v901 = vmax.f32 %v644, %v900
  %v902 = vrot.slane %v901, 2
  %v903 = vmax.f32 %v901, %v902
  %v904 = vrot.slane %v903, 1
  %v905 = vmax.f32 %v903, %v904
  %v906 = vrot.slane %v646, 4
  %v907 = vmax.f32 %v646, %v906
  %v908 = vrot.slane %v907, 2
  %v909 = vmax.f32 %v907, %v908
  %v910 = vrot.slane %v909, 1
  %v911 = vmax.f32 %v909, %v910
  %v912 = vrot.slane %v648, 4
  %v913 = vmax.f32 %v648, %v912
  %v914 = vrot.slane %v913, 2
  %v915 = vmax.f32 %v913, %v914
  %v916 = vrot.slane %v915, 1
  %v917 = vmax.f32 %v915, %v916
  %v918 = vrot.slane %v650, 4
  %v919 = vmax.f32 %v650, %v918
  %v920 = vrot.slane %v919, 2
  %v921 = vmax.f32 %v919, %v920
  %v922 = vrot.slane %v921, 1
  %v923 = vmax.f32 %v921, %v922
  %v924 = vrot.slane %v654, 4
  %v925 = vmax.f32 %v654, %v924
  %v926 = vrot.slane %v925, 2
  %v927 = vmax.f32 %v925, %v926
  %v928 = vrot.slane %v927, 1
  %v929 = vmax.f32 %v927, %v928
  %v930 = vrot.slane %v656, 4
  %v931 = vmax.f32 %v656, %v930
  %v932 = vrot.slane %v931, 2
  %v933 = vmax.f32 %v931, %v932
  %v934 = vrot.slane %v933, 1
  %v935 = vmax.f32 %v933, %v934
  %v936 = vrot.slane %v658, 4
  %v937 = vmax.f32 %v658, %v936
  %v938 = vrot.slane %v937, 2
  %v939 = vmax.f32 %v937, %v938
  %v940 = vrot.slane %v939, 1
  %v941 = vmax.f32 %v939, %v940
  %v942 = vrot.slane %v660, 4
  %v943 = vmax.f32 %v660, %v942
  %v944 = vrot.slane %v943, 2
  %v945 = vmax.f32 %v943, %v944
  %v946 = vrot.slane %v945, 1
  %v947 = vmax.f32 %v945, %v946
  %v948 = vrot.slane %v664, 4
  %v949 = vmax.f32 %v664, %v948
  %v950 = vrot.slane %v949, 2
  %v951 = vmax.f32 %v949, %v950
  %v952 = vrot.slane %v951, 1
  %v953 = vmax.f32 %v951, %v952
  %v954 = vrot.slane %v666, 4
  %v955 = vmax.f32 %v666, %v954
  %v956 = vrot.slane %v955, 2
  %v957 = vmax.f32 %v955, %v956
  %v958 = vrot.slane %v957, 1
  %v959 = vmax.f32 %v957, %v958
  %v960 = vrot.slane %v668, 4
  %v961 = vmax.f32 %v668, %v960
  %v962 = vrot.slane %v961, 2
  %v963 = vmax.f32 %v961, %v962
  %v964 = vrot.slane %v963, 1
  %v965 = vmax.f32 %v963, %v964
  %v966 = vrot.slane %v670, 4
  %v967 = vmax.f32 %v670, %v966
  %v968 = vrot.slane %v967, 2
  %v969 = vmax.f32 %v967, %v968
  %v970 = vrot.slane %v969, 1
  %v971 = vmax.f32 %v969, %v970
  %v972 = vrot.slane %v674, 4
  %v973 = vmax.f32 %v674, %v972
  %v974 = vrot.slane %v973, 2
  %v975 = vmax.f32 %v973, %v974
  %v976 = vrot.slane %v975, 1
  %v977 = vmax.f32 %v975, %v976
  %v978 = vrot.slane %v676, 4
  %v979 = vmax.f32 %v676, %v978
  %v980 = vrot.slane %v979, 2
  %v981 = vmax.f32 %v979, %v980
  %v982 = vrot.slane %v981, 1
  %v983 = vmax.f32 %v981, %v982
  %v984 = vrot.slane %v678, 4
  %v985 = vmax.f32 %v678, %v984
  %v986 = vrot.slane %v985, 2
  %v987 = vmax.f32 %v985, %v986
  %v988 = vrot.slane %v987, 1
  %v989 = vmax.f32 %v987, %v988
  %v990 = vrot.slane %v680, 4
  %v991 = vmax.f32 %v680, %v990
  %v992 = vrot.slane %v991, 2
  %v993 = vmax.f32 %v991, %v992
  %v994 = vrot.slane %v993, 1
  %v995 = vmax.f32 %v993, %v994
  %v996 = vrot.slane %v684, 4
  %v997 = vmax.f32 %v684, %v996
  %v998 = vrot.slane %v997, 2
  %v999 = vmax.f32 %v997, %v998
  %v1000 = vrot.slane %v999, 1
  %v1001 = vmax.f32 %v999, %v1000
  %v1002 = vrot.slane %v686, 4
  %v1003 = vmax.f32 %v686, %v1002
  %v1004 = vrot.slane %v1003, 2
  %v1005 = vmax.f32 %v1003, %v1004
  %v1006 = vrot.slane %v1005, 1
  %v1007 = vmax.f32 %v1005, %v1006
  %v1008 = vrot.slane %v688, 4
  %v1009 = vmax.f32 %v688, %v1008
  %v1010 = vrot.slane %v1009, 2
  %v1011 = vmax.f32 %v1009, %v1010
  %v1012 = vrot.slane %v1011, 1
  %v1013 = vmax.f32 %v1011, %v1012
  %v1014 = vrot.slane %v690, 4
  %v1015 = vmax.f32 %v690, %v1014
  %v1016 = vrot.slane %v1015, 2
  %v1017 = vmax.f32 %v1015, %v1016
  %v1018 = vrot.slane %v1017, 1
  %v1019 = vmax.f32 %v1017, %v1018
  %v1020 = vrot.slane %v694, 4
  %v1021 = vmax.f32 %v694, %v1020
  %v1022 = vrot.slane %v1021, 2
  %v1023 = vmax.f32 %v1021, %v1022
  %v1024 = vrot.slane %v1023, 1
  %v1025 = vmax.f32 %v1023, %v1024
  %v1026 = vrot.slane %v696, 4
  %v1027 = vmax.f32 %v696, %v1026
  %v1028 = vrot.slane %v1027, 2
  %v1029 = vmax.f32 %v1027, %v1028
  %v1030 = vrot.slane %v1029, 1
  %v1031 = vmax.f32 %v1029, %v1030
  %v1032 = vrot.slane %v698, 4
  %v1033 = vmax.f32 %v698, %v1032
  %v1034 = vrot.slane %v1033, 2
  %v1035 = vmax.f32 %v1033, %v1034
  %v1036 = vrot.slane %v1035, 1
  %v1037 = vmax.f32 %v1035, %v1036
  %v1038 = vrot.slane %v700, 4
  %v1039 = vmax.f32 %v700, %v1038
  %v1040 = vrot.slane %v1039, 2
  %v1041 = vmax.f32 %v1039, %v1040
  %v1042 = vrot.slane %v1041, 1
  %v1043 = vmax.f32 %v1041, %v1042
  %v1044 = vrot.slane %v704, 4
  %v1045 = vmax.f32 %v704, %v1044
  %v1046 = vrot.slane %v1045, 2
  %v1047 = vmax.f32 %v1045, %v1046
  %v1048 = vrot.slane %v1047, 1
  %v1049 = vmax.f32 %v1047, %v1048
  %v1050 = vrot.slane %v706, 4
  %v1051 = vmax.f32 %v706, %v1050
  %v1052 = vrot.slane %v1051, 2
  %v1053 = vmax.f32 %v1051, %v1052
  %v1054 = vrot.slane %v1053, 1
  %v1055 = vmax.f32 %v1053, %v1054
  %v1056 = vrot.slane %v708, 4
  %v1057 = vmax.f32 %v708, %v1056
  %v1058 = vrot.slane %v1057, 2
  %v1059 = vmax.f32 %v1057, %v1058
  %v1060 = vrot.slane %v1059, 1
  %v1061 = vmax.f32 %v1059, %v1060
  %v1062 = vrot.slane %v710, 4
  %v1063 = vmax.f32 %v710, %v1062
  %v1064 = vrot.slane %v1063, 2
  %v1065 = vmax.f32 %v1063, %v1064
  %v1066 = vrot.slane %v1065, 1
  %v1067 = vmax.f32 %v1065, %v1066
  %v1068 = vrot.slane %v714, 4
  %v1069 = vmax.f32 %v714, %v1068
  %v1070 = vrot.slane %v1069, 2
  %v1071 = vmax.f32 %v1069, %v1070
  %v1072 = vrot.slane %v1071, 1
  %v1073 = vmax.f32 %v1071, %v1072
  %v1074 = vrot.slane %v716, 4
  %v1075 = vmax.f32 %v716, %v1074
  %v1076 = vrot.slane %v1075, 2
  %v1077 = vmax.f32 %v1075, %v1076
  %v1078 = vrot.slane %v1077, 1
  %v1079 = vmax.f32 %v1077, %v1078
  %v1080 = vrot.slane %v718, 4
  %v1081 = vmax.f32 %v718, %v1080
  %v1082 = vrot.slane %v1081, 2
  %v1083 = vmax.f32 %v1081, %v1082
  %v1084 = vrot.slane %v1083, 1
  %v1085 = vmax.f32 %v1083, %v1084
  %v1086 = vrot.slane %v720, 4
  %v1087 = vmax.f32 %v720, %v1086
  %v1088 = vrot.slane %v1087, 2
  %v1089 = vmax.f32 %v1087, %v1088
  %v1090 = vrot.slane %v1089, 1
  %v1091 = vmax.f32 %v1089, %v1090
  %v1092 = vrot.slane %v724, 4
  %v1093 = vmax.f32 %v724, %v1092
  %v1094 = vrot.slane %v1093, 2
  %v1095 = vmax.f32 %v1093, %v1094
  %v1096 = vrot.slane %v1095, 1
  %v1097 = vmax.f32 %v1095, %v1096
  %v1098 = vrot.slane %v726, 4
  %v1099 = vmax.f32 %v726, %v1098
  %v1100 = vrot.slane %v1099, 2
  %v1101 = vmax.f32 %v1099, %v1100
  %v1102 = vrot.slane %v1101, 1
  %v1103 = vmax.f32 %v1101, %v1102
  %v1104 = vrot.slane %v728, 4
  %v1105 = vmax.f32 %v728, %v1104
  %v1106 = vrot.slane %v1105, 2
  %v1107 = vmax.f32 %v1105, %v1106
  %v1108 = vrot.slane %v1107, 1
  %v1109 = vmax.f32 %v1107, %v1108
  %v1110 = vrot.slane %v730, 4
  %v1111 = vmax.f32 %v730, %v1110
  %v1112 = vrot.slane %v1111, 2
  %v1113 = vmax.f32 %v1111, %v1112
  %v1114 = vrot.slane %v1113, 1
  %v1115 = vmax.f32 %v1113, %v1114
  %v1116 = vpack.c.bf16 %v737, %v737
  %v1117 = vpack.c.bf16 %v743, %v743
  %v1118 = vpack.c.bf16 %v749, %v749
  %v1119 = vpack.c.bf16 %v755, %v755
  %v1120 = vpack.c.bf16 %v761, %v761
  %v1121 = vpack.c.bf16 %v767, %v767
  %v1122 = vpack.c.bf16 %v773, %v773
  %v1123 = vpack.c.bf16 %v779, %v779
  %v1124 = vpack.c.bf16 %v785, %v785
  %v1125 = vpack.c.bf16 %v791, %v791
  %v1126 = vpack.c.bf16 %v797, %v797
  %v1127 = vpack.c.bf16 %v803, %v803
  %v1128 = vpack.c.bf16 %v809, %v809
  %v1129 = vpack.c.bf16 %v815, %v815
  %v1130 = vpack.c.bf16 %v821, %v821
  %v1131 = vpack.c.bf16 %v827, %v827
  %v1132 = vpack.c.bf16 %v833, %v833
  %v1133 = vpack.c.bf16 %v839, %v839
  %v1134 = vpack.c.bf16 %v845, %v845
  %v1135 = vpack.c.bf16 %v851, %v851
  %v1136 = vpack.c.bf16 %v857, %v857
  %v1137 = vpack.c.bf16 %v863, %v863
  %v1138 = vpack.c.bf16 %v869, %v869
  %v1139 = vpack.c.bf16 %v875, %v875
  %v1140 = vpack.c.bf16 %v881, %v881
  %v1141 = vpack.c.bf16 %v887, %v887
  %v1142 = vpack.c.bf16 %v893, %v893
  %v1143 = vpack.c.bf16 %v899, %v899
  %v1144 = vpack.c.bf16 %v905, %v905
  %v1145 = vpack.c.bf16 %v911, %v911
  %v1146 = vpack.c.bf16 %v917, %v917
  %v1147 = vpack.c.bf16 %v923, %v923
  %v1148 = vpack.c.bf16 %v929, %v929
  %v1149 = vpack.c.bf16 %v935, %v935
  %v1150 = vpack.c.bf16 %v941, %v941
  %v1151 = vpack.c.bf16 %v947, %v947
  %v1152 = vpack.c.bf16 %v953, %v953
  %v1153 = vpack.c.bf16 %v959, %v959
  %v1154 = vpack.c.bf16 %v965, %v965
  %v1155 = vpack.c.bf16 %v971, %v971
  %v1156 = vpack.c.bf16 %v977, %v977
  %v1157 = vpack.c.bf16 %v983, %v983
  %v1158 = vpack.c.bf16 %v989, %v989
  %v1159 = vpack.c.bf16 %v995, %v995
  %v1160 = vpack.c.bf16 %v1001, %v1001
  %v1161 = vpack.c.bf16 %v1007, %v1007
  %v1162 = vpack.c.bf16 %v1013, %v1013
  %v1163 = vpack.c.bf16 %v1019, %v1019
  %v1164 = vpack.c.bf16 %v1025, %v1025
  %v1165 = vpack.c.bf16 %v1031, %v1031
  %v1166 = vpack.c.bf16 %v1037, %v1037
  %v1167 = vpack.c.bf16 %v1043, %v1043
  %v1168 = vpack.c.bf16 %v1049, %v1049
  %v1169 = vpack.c.bf16 %v1055, %v1055
  %v1170 = vpack.c.bf16 %v1061, %v1061
  %v1171 = vpack.c.bf16 %v1067, %v1067
  %v1172 = vpack.c.bf16 %v1073, %v1073
  %v1173 = vpack.c.bf16 %v1079, %v1079
  %v1174 = vpack.c.bf16 %v1085, %v1085
  %v1175 = vpack.c.bf16 %v1091, %v1091
  %v1176 = vpack.c.bf16 %v1097, %v1097
  %v1177 = vpack.c.bf16 %v1103, %v1103
  %v1178 = vpack.c.bf16 %v1109, %v1109
  %v1179 = vpack.c.bf16 %v1115, %v1115
  %v1180 = vld [vmem:[%s6] sm:$0xff]
  %v1181 = vld [vmem:[%s6 + $0x8] sm:$0xff]
  %v1182 = vld [vmem:[%s6 + $0x10] sm:$0xff]
  %v1183 = vld [vmem:[%s6 + $0x18] sm:$0xff]
  %v1184 = vld [vmem:[%s6 + $0x20] sm:$0xff]
  %v1185 = vld [vmem:[%s6 + $0x28] sm:$0xff]
  %v1186 = vld [vmem:[%s6 + $0x30] sm:$0xff]
  %v1187 = vld [vmem:[%s6 + $0x38] sm:$0xff]
  %v1188 = vld [vmem:[%s6 + $0x40] sm:$0xff]
  %v1189 = vld [vmem:[%s6 + $0x48] sm:$0xff]
  %v1190 = vld [vmem:[%s6 + $0x50] sm:$0xff]
  %v1191 = vld [vmem:[%s6 + $0x58] sm:$0xff]
  %v1192 = vld [vmem:[%s6 + $0x60] sm:$0xff]
  %v1193 = vld [vmem:[%s6 + $0x68] sm:$0xff]
  %v1194 = vld [vmem:[%s6 + $0x70] sm:$0xff]
  %v1195 = vld [vmem:[%s6 + $0x78] sm:$0xff]
  %v1196 = vld [vmem:[%s6 + $0x80] sm:$0xff]
  %v1197 = vld [vmem:[%s6 + $0x88] sm:$0xff]
  %v1198 = vld [vmem:[%s6 + $0x90] sm:$0xff]
  %v1199 = vld [vmem:[%s6 + $0x98] sm:$0xff]
  %v1200 = vld [vmem:[%s6 + $0xa0] sm:$0xff]
  %v1201 = vld [vmem:[%s6 + $0xa8] sm:$0xff]
  %v1202 = vld [vmem:[%s6 + $0xb0] sm:$0xff]
  %v1203 = vld [vmem:[%s6 + $0xb8] sm:$0xff]
  %v1204 = vld [vmem:[%s6 + $0xc0] sm:$0xff]
  %v1205 = vld [vmem:[%s6 + $0xc8] sm:$0xff]
  %v1206 = vld [vmem:[%s6 + $0xd0] sm:$0xff]
  %v1207 = vld [vmem:[%s6 + $0xd8] sm:$0xff]
  %v1208 = vld [vmem:[%s6 + $0xe0] sm:$0xff]
  %v1209 = vld [vmem:[%s6 + $0xe8] sm:$0xff]
  %v1210 = vld [vmem:[%s6 + $0xf0] sm:$0xff]
  %v1211 = vld [vmem:[%s6 + $0xf8] sm:$0xff]
  %v1212 = vld [vmem:[%s6 + $0x100] sm:$0xff]
  %v1213 = vld [vmem:[%s6 + $0x108] sm:$0xff]
  %v1214 = vld [vmem:[%s6 + $0x110] sm:$0xff]
  %v1215 = vld [vmem:[%s6 + $0x118] sm:$0xff]
  %v1216 = vld [vmem:[%s6 + $0x120] sm:$0xff]
  %v1217 = vld [vmem:[%s6 + $0x128] sm:$0xff]
  %v1218 = vld [vmem:[%s6 + $0x130] sm:$0xff]
  %v1219 = vld [vmem:[%s6 + $0x138] sm:$0xff]
  %v1220 = vld [vmem:[%s6 + $0x140] sm:$0xff]
  %v1221 = vld [vmem:[%s6 + $0x148] sm:$0xff]
  %v1222 = vld [vmem:[%s6 + $0x150] sm:$0xff]
  %v1223 = vld [vmem:[%s6 + $0x158] sm:$0xff]
  %v1224 = vld [vmem:[%s6 + $0x160] sm:$0xff]
  %v1225 = vld [vmem:[%s6 + $0x168] sm:$0xff]
  %v1226 = vld [vmem:[%s6 + $0x170] sm:$0xff]
  %v1227 = vld [vmem:[%s6 + $0x178] sm:$0xff]
  %v1228 = vld [vmem:[%s6 + $0x180] sm:$0xff]
  %v1229 = vld [vmem:[%s6 + $0x188] sm:$0xff]
  %v1230 = vld [vmem:[%s6 + $0x190] sm:$0xff]
  %v1231 = vld [vmem:[%s6 + $0x198] sm:$0xff]
  %v1232 = vld [vmem:[%s6 + $0x1a0] sm:$0xff]
  %v1233 = vld [vmem:[%s6 + $0x1a8] sm:$0xff]
  %v1234 = vld [vmem:[%s6 + $0x1b0] sm:$0xff]
  %v1235 = vld [vmem:[%s6 + $0x1b8] sm:$0xff]
  %v1236 = vld [vmem:[%s6 + $0x1c0] sm:$0xff]
  %v1237 = vld [vmem:[%s6 + $0x1c8] sm:$0xff]
  %v1238 = vld [vmem:[%s6 + $0x1d0] sm:$0xff]
  %v1239 = vld [vmem:[%s6 + $0x1d8] sm:$0xff]
  %v1240 = vld [vmem:[%s6 + $0x1e0] sm:$0xff]
  %v1241 = vld [vmem:[%s6 + $0x1e8] sm:$0xff]
  %v1242 = vld [vmem:[%s6 + $0x1f0] sm:$0xff]
  %v1243 = vld [vmem:[%s6 + $0x1f8] sm:$0xff]
  %v1308 = vunpack.c.l.b16 %v1116
  %v1309 = vunpack.c.l.b16 %v1117
  %v1310 = vunpack.c.l.b16 %v1118
  %v1311 = vunpack.c.l.b16 %v1119
  %v1312 = vunpack.c.l.b16 %v1120
  %v1313 = vunpack.c.l.b16 %v1121
  %v1314 = vunpack.c.l.b16 %v1122
  %v1315 = vunpack.c.l.b16 %v1123
  %v1316 = vunpack.c.l.b16 %v1124
  %v1317 = vunpack.c.l.b16 %v1125
  %v1318 = vunpack.c.l.b16 %v1126
  %v1319 = vunpack.c.l.b16 %v1127
  %v1320 = vunpack.c.l.b16 %v1128
  %v1321 = vunpack.c.l.b16 %v1129
  %v1322 = vunpack.c.l.b16 %v1130
  %v1323 = vunpack.c.l.b16 %v1131
  %v1324 = vunpack.c.l.b16 %v1132
  %v1325 = vunpack.c.l.b16 %v1133
  %v1326 = vunpack.c.l.b16 %v1134
  %v1327 = vunpack.c.l.b16 %v1135
  %v1328 = vunpack.c.l.b16 %v1136
  %v1329 = vunpack.c.l.b16 %v1137
  %v1330 = vunpack.c.l.b16 %v1138
  %v1331 = vunpack.c.l.b16 %v1139
  %v1332 = vunpack.c.l.b16 %v1140
  %v1333 = vunpack.c.l.b16 %v1141
  %v1334 = vunpack.c.l.b16 %v1142
  %v1335 = vunpack.c.l.b16 %v1143
  %v1336 = vunpack.c.l.b16 %v1144
  %v1337 = vunpack.c.l.b16 %v1145
  %v1338 = vunpack.c.l.b16 %v1146
  %v1339 = vunpack.c.l.b16 %v1147
  %v1340 = vunpack.c.l.b16 %v1148
  %v1341 = vunpack.c.l.b16 %v1149
  %v1342 = vunpack.c.l.b16 %v1150
  %v1343 = vunpack.c.l.b16 %v1151
  %v1344 = vunpack.c.l.b16 %v1152
  %v1345 = vunpack.c.l.b16 %v1153
  %v1346 = vunpack.c.l.b16 %v1154
  %v1347 = vunpack.c.l.b16 %v1155
  %v1348 = vunpack.c.l.b16 %v1156
  %v1349 = vunpack.c.l.b16 %v1157
  %v1350 = vunpack.c.l.b16 %v1158
  %v1351 = vunpack.c.l.b16 %v1159
  %v1352 = vunpack.c.l.b16 %v1160
  %v1353 = vunpack.c.l.b16 %v1161
  %v1354 = vunpack.c.l.b16 %v1162
  %v1355 = vunpack.c.l.b16 %v1163
  %v1356 = vunpack.c.l.b16 %v1164
  %v1357 = vunpack.c.l.b16 %v1165
  %v1358 = vunpack.c.l.b16 %v1166
  %v1359 = vunpack.c.l.b16 %v1167
  %v1360 = vunpack.c.l.b16 %v1168
  %v1361 = vunpack.c.l.b16 %v1169
  %v1362 = vunpack.c.l.b16 %v1170
  %v1363 = vunpack.c.l.b16 %v1171
  %v1364 = vunpack.c.l.b16 %v1172
  %v1365 = vunpack.c.l.b16 %v1173
  %v1366 = vunpack.c.l.b16 %v1174
  %v1367 = vunpack.c.l.b16 %v1175
  %v1368 = vunpack.c.l.b16 %v1176
  %v1369 = vunpack.c.l.b16 %v1177
  %v1370 = vunpack.c.l.b16 %v1178
  %v1371 = vunpack.c.l.b16 %v1179
  %vm1372 = vcmask 1041409
  %v1373 = vsel %vm1372, %v1310, %v1308
  %vm1374 = vcmask 1042434
  %v1375 = vsel %vm1374, %v1312, %v1373
  %vm1376 = vcmask 1043459
  %v1377 = vsel %vm1376, %v1314, %v1375
  %vm1378 = vcmask 1044484
  %v1379 = vsel %vm1378, %v1316, %v1377
  %vm1380 = vcmask 1045509
  %v1381 = vsel %vm1380, %v1318, %v1379
  %vm1382 = vcmask 1046534
  %v1383 = vsel %vm1382, %v1320, %v1381
  %vm1384 = vcmask 1047559
  %v1385 = vsel %vm1384, %v1322, %v1383
  %v1386 = vsel %vm1372, %v1311, %v1309
  %v1387 = vsel %vm1374, %v1313, %v1386
  %v1388 = vsel %vm1376, %v1315, %v1387
  %v1389 = vsel %vm1378, %v1317, %v1388
  %v1390 = vsel %vm1380, %v1319, %v1389
  %v1391 = vsel %vm1382, %v1321, %v1390
  %v1392 = vsel %vm1384, %v1323, %v1391
  %v1393 = vsel %vm1372, %v1326, %v1324
  %v1394 = vsel %vm1374, %v1328, %v1393
  %v1395 = vsel %vm1376, %v1330, %v1394
  %v1396 = vsel %vm1378, %v1332, %v1395
  %v1397 = vsel %vm1380, %v1334, %v1396
  %v1398 = vsel %vm1382, %v1336, %v1397
  %v1399 = vsel %vm1384, %v1338, %v1398
  %v1400 = vsel %vm1372, %v1327, %v1325
  %v1401 = vsel %vm1374, %v1329, %v1400
  %v1402 = vsel %vm1376, %v1331, %v1401
  %v1403 = vsel %vm1378, %v1333, %v1402
  %v1404 = vsel %vm1380, %v1335, %v1403
  %v1405 = vsel %vm1382, %v1337, %v1404
  %v1406 = vsel %vm1384, %v1339, %v1405
  %v1407 = vsel %vm1372, %v1342, %v1340
  %v1408 = vsel %vm1374, %v1344, %v1407
  %v1409 = vsel %vm1376, %v1346, %v1408
  %v1410 = vsel %vm1378, %v1348, %v1409
  %v1411 = vsel %vm1380, %v1350, %v1410
  %v1412 = vsel %vm1382, %v1352, %v1411
  %v1413 = vsel %vm1384, %v1354, %v1412
  %v1414 = vsel %vm1372, %v1343, %v1341
  %v1415 = vsel %vm1374, %v1345, %v1414
  %v1416 = vsel %vm1376, %v1347, %v1415
  %v1417 = vsel %vm1378, %v1349, %v1416
  %v1418 = vsel %vm1380, %v1351, %v1417
  %v1419 = vsel %vm1382, %v1353, %v1418
  %v1420 = vsel %vm1384, %v1355, %v1419
  %v1421 = vsel %vm1372, %v1358, %v1356
  %v1422 = vsel %vm1374, %v1360, %v1421
  %v1423 = vsel %vm1376, %v1362, %v1422
  %v1424 = vsel %vm1378, %v1364, %v1423
  %v1425 = vsel %vm1380, %v1366, %v1424
  %v1426 = vsel %vm1382, %v1368, %v1425
  %v1427 = vsel %vm1384, %v1370, %v1426
  %v1428 = vsel %vm1372, %v1359, %v1357
  %v1429 = vsel %vm1374, %v1361, %v1428
  %v1430 = vsel %vm1376, %v1363, %v1429
  %v1431 = vsel %vm1378, %v1365, %v1430
  %v1432 = vsel %vm1380, %v1367, %v1431
  %v1433 = vsel %vm1382, %v1369, %v1432
  %v1434 = vsel %vm1384, %v1371, %v1433
  %v1435 = vpack.c.b16 %v1399, %v1385
  %v1436 = vpack.c.b16 %v1406, %v1392
  %v1437 = vpack.c.b16 %v1427, %v1413
  %v1438 = vpack.c.b16 %v1434, %v1420
  %v1507 = vunpack.c.l.b16 %v1180
  %v1508 = vunpack.c.h.b16 %v1180
  %v1509 = vunpack.c.l.b16 %v1181
  %v1510 = vunpack.c.h.b16 %v1181
  %v1511 = vunpack.c.l.b16 %v1182
  %v1512 = vunpack.c.h.b16 %v1182
  %v1513 = vunpack.c.l.b16 %v1183
  %v1514 = vunpack.c.h.b16 %v1183
  %v1515 = vunpack.c.l.b16 %v1184
  %v1516 = vunpack.c.h.b16 %v1184
  %v1517 = vunpack.c.l.b16 %v1185
  %v1518 = vunpack.c.h.b16 %v1185
  %v1519 = vunpack.c.l.b16 %v1186
  %v1520 = vunpack.c.h.b16 %v1186
  %v1521 = vunpack.c.l.b16 %v1187
  %v1522 = vunpack.c.h.b16 %v1187
  %v1523 = vunpack.c.l.b16 %v1188
  %v1524 = vunpack.c.h.b16 %v1188
  %v1525 = vunpack.c.l.b16 %v1189
  %v1526 = vunpack.c.h.b16 %v1189
  %v1527 = vunpack.c.l.b16 %v1190
  %v1528 = vunpack.c.h.b16 %v1190
  %v1529 = vunpack.c.l.b16 %v1191
  %v1530 = vunpack.c.h.b16 %v1191
  %v1531 = vunpack.c.l.b16 %v1192
  %v1532 = vunpack.c.h.b16 %v1192
  %v1533 = vunpack.c.l.b16 %v1193
  %v1534 = vunpack.c.h.b16 %v1193
  %v1535 = vunpack.c.l.b16 %v1194
  %v1536 = vunpack.c.h.b16 %v1194
  %v1537 = vunpack.c.l.b16 %v1195
  %v1538 = vunpack.c.h.b16 %v1195
  %v1539 = vunpack.c.l.b16 %v1196
  %v1540 = vunpack.c.h.b16 %v1196
  %v1541 = vunpack.c.l.b16 %v1197
  %v1542 = vunpack.c.h.b16 %v1197
  %v1543 = vunpack.c.l.b16 %v1198
  %v1544 = vunpack.c.h.b16 %v1198
  %v1545 = vunpack.c.l.b16 %v1199
  %v1546 = vunpack.c.h.b16 %v1199
  %v1547 = vunpack.c.l.b16 %v1200
  %v1548 = vunpack.c.h.b16 %v1200
  %v1549 = vunpack.c.l.b16 %v1201
  %v1550 = vunpack.c.h.b16 %v1201
  %v1551 = vunpack.c.l.b16 %v1202
  %v1552 = vunpack.c.h.b16 %v1202
  %v1553 = vunpack.c.l.b16 %v1203
  %v1554 = vunpack.c.h.b16 %v1203
  %v1555 = vunpack.c.l.b16 %v1204
  %v1556 = vunpack.c.h.b16 %v1204
  %v1557 = vunpack.c.l.b16 %v1205
  %v1558 = vunpack.c.h.b16 %v1205
  %v1559 = vunpack.c.l.b16 %v1206
  %v1560 = vunpack.c.h.b16 %v1206
  %v1561 = vunpack.c.l.b16 %v1207
  %v1562 = vunpack.c.h.b16 %v1207
  %v1563 = vunpack.c.l.b16 %v1208
  %v1564 = vunpack.c.h.b16 %v1208
  %v1565 = vunpack.c.l.b16 %v1209
  %v1566 = vunpack.c.h.b16 %v1209
  %v1567 = vunpack.c.l.b16 %v1210
  %v1568 = vunpack.c.h.b16 %v1210
  %v1569 = vunpack.c.l.b16 %v1211
  %v1570 = vunpack.c.h.b16 %v1211
  %v1571 = vunpack.c.l.b16 %v1212
  %v1572 = vunpack.c.h.b16 %v1212
  %v1573 = vunpack.c.l.b16 %v1213
  %v1574 = vunpack.c.h.b16 %v1213
  %v1575 = vunpack.c.l.b16 %v1214
  %v1576 = vunpack.c.h.b16 %v1214
  %v1577 = vunpack.c.l.b16 %v1215
  %v1578 = vunpack.c.h.b16 %v1215
  %v1579 = vunpack.c.l.b16 %v1216
  %v1580 = vunpack.c.h.b16 %v1216
  %v1581 = vunpack.c.l.b16 %v1217
  %v1582 = vunpack.c.h.b16 %v1217
  %v1583 = vunpack.c.l.b16 %v1218
  %v1584 = vunpack.c.h.b16 %v1218
  %v1585 = vunpack.c.l.b16 %v1219
  %v1586 = vunpack.c.h.b16 %v1219
  %v1587 = vunpack.c.l.b16 %v1220
  %v1588 = vunpack.c.h.b16 %v1220
  %v1589 = vunpack.c.l.b16 %v1221
  %v1590 = vunpack.c.h.b16 %v1221
  %v1591 = vunpack.c.l.b16 %v1222
  %v1592 = vunpack.c.h.b16 %v1222
  %v1593 = vunpack.c.l.b16 %v1223
  %v1594 = vunpack.c.h.b16 %v1223
  %v1595 = vunpack.c.l.b16 %v1224
  %v1596 = vunpack.c.h.b16 %v1224
  %v1597 = vunpack.c.l.b16 %v1225
  %v1598 = vunpack.c.h.b16 %v1225
  %v1599 = vunpack.c.l.b16 %v1226
  %v1600 = vunpack.c.h.b16 %v1226
  %v1601 = vunpack.c.l.b16 %v1227
  %v1602 = vunpack.c.h.b16 %v1227
  %v1603 = vunpack.c.l.b16 %v1228
  %v1604 = vunpack.c.h.b16 %v1228
  %v1605 = vunpack.c.l.b16 %v1229
  %v1606 = vunpack.c.h.b16 %v1229
  %v1607 = vunpack.c.l.b16 %v1230
  %v1608 = vunpack.c.h.b16 %v1230
  %v1609 = vunpack.c.l.b16 %v1231
  %v1610 = vunpack.c.h.b16 %v1231
  %v1611 = vunpack.c.l.b16 %v1232
  %v1612 = vunpack.c.h.b16 %v1232
  %v1613 = vunpack.c.l.b16 %v1233
  %v1614 = vunpack.c.h.b16 %v1233
  %v1615 = vunpack.c.l.b16 %v1234
  %v1616 = vunpack.c.h.b16 %v1234
  %v1617 = vunpack.c.l.b16 %v1235
  %v1618 = vunpack.c.h.b16 %v1235
  %v1619 = vunpack.c.l.b16 %v1236
  %v1620 = vunpack.c.h.b16 %v1236
  %v1621 = vunpack.c.l.b16 %v1237
  %v1622 = vunpack.c.h.b16 %v1237
  %v1623 = vunpack.c.l.b16 %v1238
  %v1624 = vunpack.c.h.b16 %v1238
  %v1625 = vunpack.c.l.b16 %v1239
  %v1626 = vunpack.c.h.b16 %v1239
  %v1627 = vunpack.c.l.b16 %v1240
  %v1628 = vunpack.c.h.b16 %v1240
  %v1629 = vunpack.c.l.b16 %v1241
  %v1630 = vunpack.c.h.b16 %v1241
  %v1631 = vunpack.c.l.b16 %v1242
  %v1632 = vunpack.c.h.b16 %v1242
  %v1633 = vunpack.c.l.b16 %v1243
  %v1634 = vunpack.c.h.b16 %v1243
  %v1635 = vpack.c.b16 %v1511, %v1507
  %v1636 = vpack.c.b16 %v1512, %v1508
  %v1637 = vpack.c.b16 %v1513, %v1509
  %v1638 = vpack.c.b16 %v1514, %v1510
  %v1639 = vpack.c.b16 %v1519, %v1515
  %v1640 = vpack.c.b16 %v1520, %v1516
  %v1641 = vpack.c.b16 %v1521, %v1517
  %v1642 = vpack.c.b16 %v1522, %v1518
  %v1643 = vpack.c.b16 %v1527, %v1523
  %v1644 = vpack.c.b16 %v1528, %v1524
  %v1645 = vpack.c.b16 %v1529, %v1525
  %v1646 = vpack.c.b16 %v1530, %v1526
  %v1647 = vpack.c.b16 %v1535, %v1531
  %v1648 = vpack.c.b16 %v1536, %v1532
  %v1649 = vpack.c.b16 %v1537, %v1533
  %v1650 = vpack.c.b16 %v1538, %v1534
  %v1651 = vpack.c.b16 %v1543, %v1539
  %v1652 = vpack.c.b16 %v1544, %v1540
  %v1653 = vpack.c.b16 %v1545, %v1541
  %v1654 = vpack.c.b16 %v1546, %v1542
  %v1655 = vpack.c.b16 %v1551, %v1547
  %v1656 = vpack.c.b16 %v1552, %v1548
  %v1657 = vpack.c.b16 %v1553, %v1549
  %v1658 = vpack.c.b16 %v1554, %v1550
  %v1659 = vpack.c.b16 %v1559, %v1555
  %v1660 = vpack.c.b16 %v1560, %v1556
  %v1661 = vpack.c.b16 %v1561, %v1557
  %v1662 = vpack.c.b16 %v1562, %v1558
  %v1663 = vpack.c.b16 %v1567, %v1563
  %v1664 = vpack.c.b16 %v1568, %v1564
  %v1665 = vpack.c.b16 %v1569, %v1565
  %v1666 = vpack.c.b16 %v1570, %v1566
  %v1667 = vpack.c.b16 %v1575, %v1571
  %v1668 = vpack.c.b16 %v1576, %v1572
  %v1669 = vpack.c.b16 %v1577, %v1573
  %v1670 = vpack.c.b16 %v1578, %v1574
  %v1671 = vpack.c.b16 %v1583, %v1579
  %v1672 = vpack.c.b16 %v1584, %v1580
  %v1673 = vpack.c.b16 %v1585, %v1581
  %v1674 = vpack.c.b16 %v1586, %v1582
  %v1675 = vpack.c.b16 %v1591, %v1587
  %v1676 = vpack.c.b16 %v1592, %v1588
  %v1677 = vpack.c.b16 %v1593, %v1589
  %v1678 = vpack.c.b16 %v1594, %v1590
  %v1679 = vpack.c.b16 %v1599, %v1595
  %v1680 = vpack.c.b16 %v1600, %v1596
  %v1681 = vpack.c.b16 %v1601, %v1597
  %v1682 = vpack.c.b16 %v1602, %v1598
  %v1683 = vpack.c.b16 %v1607, %v1603
  %v1684 = vpack.c.b16 %v1608, %v1604
  %v1685 = vpack.c.b16 %v1609, %v1605
  %v1686 = vpack.c.b16 %v1610, %v1606
  %v1687 = vpack.c.b16 %v1615, %v1611
  %v1688 = vpack.c.b16 %v1616, %v1612
  %v1689 = vpack.c.b16 %v1617, %v1613
  %v1690 = vpack.c.b16 %v1618, %v1614
  %v1691 = vpack.c.b16 %v1623, %v1619
  %v1692 = vpack.c.b16 %v1624, %v1620
  %v1693 = vpack.c.b16 %v1625, %v1621
  %v1694 = vpack.c.b16 %v1626, %v1622
  %v1695 = vpack.c.b16 %v1631, %v1627
  %v1696 = vpack.c.b16 %v1632, %v1628
  %v1697 = vpack.c.b16 %v1633, %v1629
  %v1698 = vpack.c.b16 %v1634, %v1630
  %1763 = vmatprep.subr.bf16.mxu0 %v1664
  %1764 = vmatpush1.bf16.msra.mxu0 %v1663
  %1765 = vmatprep.subr.bf16.mxu0 %v1660
  %1766 = vmatpush1.bf16.msra.mxu0 %v1659
  %1767 = vmatprep.subr.bf16.mxu0 %v1656
  %1768 = vmatpush1.bf16.msra.mxu0 %v1655
  %1769 = vmatprep.subr.bf16.mxu0 %v1652
  %1770 = vmatpush1.bf16.msra.mxu0 %v1651
  %1771 = vmatprep.subr.bf16.mxu0 %v1648
  %1772 = vmatpush1.bf16.msra.mxu0 %v1647
  %1773 = vmatprep.subr.bf16.mxu0 %v1644
  %1774 = vmatpush1.bf16.msra.mxu0 %v1643
  %1775 = vmatprep.subr.bf16.mxu0 %v1640
  %1776 = vmatpush1.bf16.msra.mxu0 %v1639
  %1777 = vmatprep.subr.bf16.mxu0 %v1636
  %1778 = vmatpush1.bf16.msra.mxu0 %v1635
  %1779 = vmatprep.subr.bf16.mxu0 %v1696
  %1780 = vmatpush2.bf16.msra.mxu0 %v1695
  %1781 = vmatprep.subr.bf16.mxu0 %v1692
  %1782 = vmatpush2.bf16.msra.mxu0 %v1691
  %1783 = vmatprep.subr.bf16.mxu0 %v1688
  %1784 = vmatpush2.bf16.msra.mxu0 %v1687
  %1785 = vmatprep.subr.bf16.mxu0 %v1684
  %1786 = vmatpush2.bf16.msra.mxu0 %v1683
  %1787 = vmatprep.subr.bf16.mxu0 %v1680
  %1788 = vmatpush2.bf16.msra.mxu0 %v1679
  %1789 = vmatprep.subr.bf16.mxu0 %v1676
  %1790 = vmatpush2.bf16.msra.mxu0 %v1675
  %1791 = vmatprep.subr.bf16.mxu0 %v1672
  %1792 = vmatpush2.bf16.msra.mxu0 %v1671
  %1793 = vmatprep.subr.bf16.mxu0 %v1668
  %1794 = vmatpush2.bf16.msra.mxu0 %v1667
  %1795 = vmatprep.mubr.bf16.mxu0 %v1436
  %1796 = vmatmul.mubr.bf16.gmra.mxu0 %v1435
  %v1797 = vpop.f32.mrf.mxu0
  %v1798 = vadd.f32 0.0, %v1797
  %v1799 = vpop.f32.mrf.mxu0
  %v1800 = vadd.f32 0.0, %v1799
  %v1801 = vpop.f32.mrf.mxu0
  %v1802 = vadd.f32 0.0, %v1801
  %v1803 = vpop.f32.mrf.mxu0
  %v1804 = vadd.f32 0.0, %v1803
  %1805 = vmatprep.mubr.bf16.mxu0 %v1438
  %1806 = vmatmul.mubr.bf16.gmra.mxu0 %v1437
  %v1807 = vpop.f32.mrf.mxu0
  %v1808 = vadd.f32 0.0, %v1807
  %v1809 = vpop.f32.mrf.mxu0
  %v1810 = vadd.f32 0.0, %v1809
  %v1811 = vpop.f32.mrf.mxu0
  %v1812 = vadd.f32 0.0, %v1811
  %v1813 = vpop.f32.mrf.mxu0
  %v1814 = vadd.f32 0.0, %v1813
  %1815 = vdwg.mxu0
  %1816 = vmatprep.subr.bf16.mxu0 %v1666
  %1817 = vmatpush1.bf16.msra.mxu0 %v1665
  %1818 = vmatprep.subr.bf16.mxu0 %v1662
  %1819 = vmatpush1.bf16.msra.mxu0 %v1661
  %1820 = vmatprep.subr.bf16.mxu0 %v1658
  %1821 = vmatpush1.bf16.msra.mxu0 %v1657
  %1822 = vmatprep.subr.bf16.mxu0 %v1654
  %1823 = vmatpush1.bf16.msra.mxu0 %v1653
  %1824 = vmatprep.subr.bf16.mxu0 %v1650
  %1825 = vmatpush1.bf16.msra.mxu0 %v1649
  %1826 = vmatprep.subr.bf16.mxu0 %v1646
  %1827 = vmatpush1.bf16.msra.mxu0 %v1645
  %1828 = vmatprep.subr.bf16.mxu0 %v1642
  %1829 = vmatpush1.bf16.msra.mxu0 %v1641
  %1830 = vmatprep.subr.bf16.mxu0 %v1638
  %1831 = vmatpush1.bf16.msra.mxu0 %v1637
  %1832 = vmatprep.subr.bf16.mxu0 %v1698
  %1833 = vmatpush2.bf16.msra.mxu0 %v1697
  %1834 = vmatprep.subr.bf16.mxu0 %v1694
  %1835 = vmatpush2.bf16.msra.mxu0 %v1693
  %1836 = vmatprep.subr.bf16.mxu0 %v1690
  %1837 = vmatpush2.bf16.msra.mxu0 %v1689
  %1838 = vmatprep.subr.bf16.mxu0 %v1686
  %1839 = vmatpush2.bf16.msra.mxu0 %v1685
  %1840 = vmatprep.subr.bf16.mxu0 %v1682
  %1841 = vmatpush2.bf16.msra.mxu0 %v1681
  %1842 = vmatprep.subr.bf16.mxu0 %v1678
  %1843 = vmatpush2.bf16.msra.mxu0 %v1677
  %1844 = vmatprep.subr.bf16.mxu0 %v1674
  %1845 = vmatpush2.bf16.msra.mxu0 %v1673
  %1846 = vmatprep.subr.bf16.mxu0 %v1670
  %1847 = vmatpush2.bf16.msra.mxu0 %v1669
  %1848 = vmatprep.mubr.bf16.mxu0 %v1436
  %1849 = vmatmul.mubr.bf16.gmra.mxu0 %v1435
  %v1850 = vpop.f32.mrf.mxu0
  %v1851 = vadd.f32 0.0, %v1850
  %v1852 = vpop.f32.mrf.mxu0
  %v1853 = vadd.f32 0.0, %v1852
  %v1854 = vpop.f32.mrf.mxu0
  %v1855 = vadd.f32 0.0, %v1854
  %v1856 = vpop.f32.mrf.mxu0
  %v1857 = vadd.f32 0.0, %v1856
  %1858 = vmatprep.mubr.bf16.mxu0 %v1438
  %1859 = vmatmul.mubr.bf16.gmra.mxu0 %v1437
  %v1860 = vpop.f32.mrf.mxu0
  %v1861 = vadd.f32 0.0, %v1860
  %v1862 = vpop.f32.mrf.mxu0
  %v1863 = vadd.f32 0.0, %v1862
  %v1864 = vpop.f32.mrf.mxu0
  %v1865 = vadd.f32 0.0, %v1864
  %v1866 = vpop.f32.mrf.mxu0
  %v1867 = vadd.f32 0.0, %v1866
  %1868 = vdwg.mxu0
  %v1869 = vpack.c.bf16 %v578, %v574
  %v1870 = vpack.c.bf16 %v580, %v576
  %v1871 = vpack.c.bf16 %v588, %v584
  %v1872 = vpack.c.bf16 %v590, %v586
  %v1873 = vpack.c.bf16 %v598, %v594
  %v1874 = vpack.c.bf16 %v600, %v596
  %v1875 = vpack.c.bf16 %v608, %v604
  %v1876 = vpack.c.bf16 %v610, %v606
  %v1877 = vpack.c.bf16 %v618, %v614
  %v1878 = vpack.c.bf16 %v620, %v616
  %v1879 = vpack.c.bf16 %v628, %v624
  %v1880 = vpack.c.bf16 %v630, %v626
  %v1881 = vpack.c.bf16 %v638, %v634
  %v1882 = vpack.c.bf16 %v640, %v636
  %v1883 = vpack.c.bf16 %v648, %v644
  %v1884 = vpack.c.bf16 %v650, %v646
  %v1885 = vpack.c.bf16 %v658, %v654
  %v1886 = vpack.c.bf16 %v660, %v656
  %v1887 = vpack.c.bf16 %v668, %v664
  %v1888 = vpack.c.bf16 %v670, %v666
  %v1889 = vpack.c.bf16 %v678, %v674
  %v1890 = vpack.c.bf16 %v680, %v676
  %v1891 = vpack.c.bf16 %v688, %v684
  %v1892 = vpack.c.bf16 %v690, %v686
  %v1893 = vpack.c.bf16 %v698, %v694
  %v1894 = vpack.c.bf16 %v700, %v696
  %v1895 = vpack.c.bf16 %v708, %v704
  %v1896 = vpack.c.bf16 %v710, %v706
  %v1897 = vpack.c.bf16 %v718, %v714
  %v1898 = vpack.c.bf16 %v720, %v716
  %v1899 = vpack.c.bf16 %v728, %v724
  %v1900 = vpack.c.bf16 %v730, %v726
  %v1901 = vld [vmem:[%s7] sm:$0xff]
  %v1902 = vld [vmem:[%s7 + $0x8] sm:$0xff]
  %v1903 = vld [vmem:[%s7 + $0x10] sm:$0xff]
  %v1904 = vld [vmem:[%s7 + $0x18] sm:$0xff]
  %v1905 = vld [vmem:[%s7 + $0x20] sm:$0xff]
  %v1906 = vld [vmem:[%s7 + $0x28] sm:$0xff]
  %v1907 = vld [vmem:[%s7 + $0x30] sm:$0xff]
  %v1908 = vld [vmem:[%s7 + $0x38] sm:$0xff]
  %v1909 = vld [vmem:[%s7 + $0x40] sm:$0xff]
  %v1910 = vld [vmem:[%s7 + $0x48] sm:$0xff]
  %v1911 = vld [vmem:[%s7 + $0x50] sm:$0xff]
  %v1912 = vld [vmem:[%s7 + $0x58] sm:$0xff]
  %v1913 = vld [vmem:[%s7 + $0x60] sm:$0xff]
  %v1914 = vld [vmem:[%s7 + $0x68] sm:$0xff]
  %v1915 = vld [vmem:[%s7 + $0x70] sm:$0xff]
  %v1916 = vld [vmem:[%s7 + $0x78] sm:$0xff]
  %v1917 = vld [vmem:[%s7 + $0x80] sm:$0xff]
  %v1918 = vld [vmem:[%s7 + $0x88] sm:$0xff]
  %v1919 = vld [vmem:[%s7 + $0x90] sm:$0xff]
  %v1920 = vld [vmem:[%s7 + $0x98] sm:$0xff]
  %v1921 = vld [vmem:[%s7 + $0xa0] sm:$0xff]
  %v1922 = vld [vmem:[%s7 + $0xa8] sm:$0xff]
  %v1923 = vld [vmem:[%s7 + $0xb0] sm:$0xff]
  %v1924 = vld [vmem:[%s7 + $0xb8] sm:$0xff]
  %v1925 = vld [vmem:[%s7 + $0xc0] sm:$0xff]
  %v1926 = vld [vmem:[%s7 + $0xc8] sm:$0xff]
  %v1927 = vld [vmem:[%s7 + $0xd0] sm:$0xff]
  %v1928 = vld [vmem:[%s7 + $0xd8] sm:$0xff]
  %v1929 = vld [vmem:[%s7 + $0xe0] sm:$0xff]
  %v1930 = vld [vmem:[%s7 + $0xe8] sm:$0xff]
  %v1931 = vld [vmem:[%s7 + $0xf0] sm:$0xff]
  %v1932 = vld [vmem:[%s7 + $0xf8] sm:$0xff]
  %v1933 = vld [vmem:[%s7 + $0x100] sm:$0xff]
  %v1934 = vld [vmem:[%s7 + $0x108] sm:$0xff]
  %v1935 = vld [vmem:[%s7 + $0x110] sm:$0xff]
  %v1936 = vld [vmem:[%s7 + $0x118] sm:$0xff]
  %v1937 = vld [vmem:[%s7 + $0x120] sm:$0xff]
  %v1938 = vld [vmem:[%s7 + $0x128] sm:$0xff]
  %v1939 = vld [vmem:[%s7 + $0x130] sm:$0xff]
  %v1940 = vld [vmem:[%s7 + $0x138] sm:$0xff]
  %v1941 = vld [vmem:[%s7 + $0x140] sm:$0xff]
  %v1942 = vld [vmem:[%s7 + $0x148] sm:$0xff]
  %v1943 = vld [vmem:[%s7 + $0x150] sm:$0xff]
  %v1944 = vld [vmem:[%s7 + $0x158] sm:$0xff]
  %v1945 = vld [vmem:[%s7 + $0x160] sm:$0xff]
  %v1946 = vld [vmem:[%s7 + $0x168] sm:$0xff]
  %v1947 = vld [vmem:[%s7 + $0x170] sm:$0xff]
  %v1948 = vld [vmem:[%s7 + $0x178] sm:$0xff]
  %v1949 = vld [vmem:[%s7 + $0x180] sm:$0xff]
  %v1950 = vld [vmem:[%s7 + $0x188] sm:$0xff]
  %v1951 = vld [vmem:[%s7 + $0x190] sm:$0xff]
  %v1952 = vld [vmem:[%s7 + $0x198] sm:$0xff]
  %v1953 = vld [vmem:[%s7 + $0x1a0] sm:$0xff]
  %v1954 = vld [vmem:[%s7 + $0x1a8] sm:$0xff]
  %v1955 = vld [vmem:[%s7 + $0x1b0] sm:$0xff]
  %v1956 = vld [vmem:[%s7 + $0x1b8] sm:$0xff]
  %v1957 = vld [vmem:[%s7 + $0x1c0] sm:$0xff]
  %v1958 = vld [vmem:[%s7 + $0x1c8] sm:$0xff]
  %v1959 = vld [vmem:[%s7 + $0x1d0] sm:$0xff]
  %v1960 = vld [vmem:[%s7 + $0x1d8] sm:$0xff]
  %v1961 = vld [vmem:[%s7 + $0x1e0] sm:$0xff]
  %v1962 = vld [vmem:[%s7 + $0x1e8] sm:$0xff]
  %v1963 = vld [vmem:[%s7 + $0x1f0] sm:$0xff]
  %v1964 = vld [vmem:[%s7 + $0x1f8] sm:$0xff]
  %v2029 = vunpack.c.l.b16 %v1901
  %v2030 = vunpack.c.h.b16 %v1901
  %v2031 = vunpack.c.l.b16 %v1902
  %v2032 = vunpack.c.h.b16 %v1902
  %v2033 = vunpack.c.l.b16 %v1903
  %v2034 = vunpack.c.h.b16 %v1903
  %v2035 = vunpack.c.l.b16 %v1904
  %v2036 = vunpack.c.h.b16 %v1904
  %v2037 = vunpack.c.l.b16 %v1905
  %v2038 = vunpack.c.h.b16 %v1905
  %v2039 = vunpack.c.l.b16 %v1906
  %v2040 = vunpack.c.h.b16 %v1906
  %v2041 = vunpack.c.l.b16 %v1907
  %v2042 = vunpack.c.h.b16 %v1907
  %v2043 = vunpack.c.l.b16 %v1908
  %v2044 = vunpack.c.h.b16 %v1908
  %v2045 = vunpack.c.l.b16 %v1909
  %v2046 = vunpack.c.h.b16 %v1909
  %v2047 = vunpack.c.l.b16 %v1910
  %v2048 = vunpack.c.h.b16 %v1910
  %v2049 = vunpack.c.l.b16 %v1911
  %v2050 = vunpack.c.h.b16 %v1911
  %v2051 = vunpack.c.l.b16 %v1912
  %v2052 = vunpack.c.h.b16 %v1912
  %v2053 = vunpack.c.l.b16 %v1913
  %v2054 = vunpack.c.h.b16 %v1913
  %v2055 = vunpack.c.l.b16 %v1914
  %v2056 = vunpack.c.h.b16 %v1914
  %v2057 = vunpack.c.l.b16 %v1915
  %v2058 = vunpack.c.h.b16 %v1915
  %v2059 = vunpack.c.l.b16 %v1916
  %v2060 = vunpack.c.h.b16 %v1916
  %v2061 = vunpack.c.l.b16 %v1917
  %v2062 = vunpack.c.h.b16 %v1917
  %v2063 = vunpack.c.l.b16 %v1918
  %v2064 = vunpack.c.h.b16 %v1918
  %v2065 = vunpack.c.l.b16 %v1919
  %v2066 = vunpack.c.h.b16 %v1919
  %v2067 = vunpack.c.l.b16 %v1920
  %v2068 = vunpack.c.h.b16 %v1920
  %v2069 = vunpack.c.l.b16 %v1921
  %v2070 = vunpack.c.h.b16 %v1921
  %v2071 = vunpack.c.l.b16 %v1922
  %v2072 = vunpack.c.h.b16 %v1922
  %v2073 = vunpack.c.l.b16 %v1923
  %v2074 = vunpack.c.h.b16 %v1923
  %v2075 = vunpack.c.l.b16 %v1924
  %v2076 = vunpack.c.h.b16 %v1924
  %v2077 = vunpack.c.l.b16 %v1925
  %v2078 = vunpack.c.h.b16 %v1925
  %v2079 = vunpack.c.l.b16 %v1926
  %v2080 = vunpack.c.h.b16 %v1926
  %v2081 = vunpack.c.l.b16 %v1927
  %v2082 = vunpack.c.h.b16 %v1927
  %v2083 = vunpack.c.l.b16 %v1928
  %v2084 = vunpack.c.h.b16 %v1928
  %v2085 = vunpack.c.l.b16 %v1929
  %v2086 = vunpack.c.h.b16 %v1929
  %v2087 = vunpack.c.l.b16 %v1930
  %v2088 = vunpack.c.h.b16 %v1930
  %v2089 = vunpack.c.l.b16 %v1931
  %v2090 = vunpack.c.h.b16 %v1931
  %v2091 = vunpack.c.l.b16 %v1932
  %v2092 = vunpack.c.h.b16 %v1932
  %v2093 = vunpack.c.l.b16 %v1933
  %v2094 = vunpack.c.h.b16 %v1933
  %v2095 = vunpack.c.l.b16 %v1934
  %v2096 = vunpack.c.h.b16 %v1934
  %v2097 = vunpack.c.l.b16 %v1935
  %v2098 = vunpack.c.h.b16 %v1935
  %v2099 = vunpack.c.l.b16 %v1936
  %v2100 = vunpack.c.h.b16 %v1936
  %v2101 = vunpack.c.l.b16 %v1937
  %v2102 = vunpack.c.h.b16 %v1937
  %v2103 = vunpack.c.l.b16 %v1938
  %v2104 = vunpack.c.h.b16 %v1938
  %v2105 = vunpack.c.l.b16 %v1939
  %v2106 = vunpack.c.h.b16 %v1939
  %v2107 = vunpack.c.l.b16 %v1940
  %v2108 = vunpack.c.h.b16 %v1940
  %v2109 = vunpack.c.l.b16 %v1941
  %v2110 = vunpack.c.h.b16 %v1941
  %v2111 = vunpack.c.l.b16 %v1942
  %v2112 = vunpack.c.h.b16 %v1942
  %v2113 = vunpack.c.l.b16 %v1943
  %v2114 = vunpack.c.h.b16 %v1943
  %v2115 = vunpack.c.l.b16 %v1944
  %v2116 = vunpack.c.h.b16 %v1944
  %v2117 = vunpack.c.l.b16 %v1945
  %v2118 = vunpack.c.h.b16 %v1945
  %v2119 = vunpack.c.l.b16 %v1946
  %v2120 = vunpack.c.h.b16 %v1946
  %v2121 = vunpack.c.l.b16 %v1947
  %v2122 = vunpack.c.h.b16 %v1947
  %v2123 = vunpack.c.l.b16 %v1948
  %v2124 = vunpack.c.h.b16 %v1948
  %v2125 = vunpack.c.l.b16 %v1949
  %v2126 = vunpack.c.h.b16 %v1949
  %v2127 = vunpack.c.l.b16 %v1950
  %v2128 = vunpack.c.h.b16 %v1950
  %v2129 = vunpack.c.l.b16 %v1951
  %v2130 = vunpack.c.h.b16 %v1951
  %v2131 = vunpack.c.l.b16 %v1952
  %v2132 = vunpack.c.h.b16 %v1952
  %v2133 = vunpack.c.l.b16 %v1953
  %v2134 = vunpack.c.h.b16 %v1953
  %v2135 = vunpack.c.l.b16 %v1954
  %v2136 = vunpack.c.h.b16 %v1954
  %v2137 = vunpack.c.l.b16 %v1955
  %v2138 = vunpack.c.h.b16 %v1955
  %v2139 = vunpack.c.l.b16 %v1956
  %v2140 = vunpack.c.h.b16 %v1956
  %v2141 = vunpack.c.l.b16 %v1957
  %v2142 = vunpack.c.h.b16 %v1957
  %v2143 = vunpack.c.l.b16 %v1958
  %v2144 = vunpack.c.h.b16 %v1958
  %v2145 = vunpack.c.l.b16 %v1959
  %v2146 = vunpack.c.h.b16 %v1959
  %v2147 = vunpack.c.l.b16 %v1960
  %v2148 = vunpack.c.h.b16 %v1960
  %v2149 = vunpack.c.l.b16 %v1961
  %v2150 = vunpack.c.h.b16 %v1961
  %v2151 = vunpack.c.l.b16 %v1962
  %v2152 = vunpack.c.h.b16 %v1962
  %v2153 = vunpack.c.l.b16 %v1963
  %v2154 = vunpack.c.h.b16 %v1963
  %v2155 = vunpack.c.l.b16 %v1964
  %v2156 = vunpack.c.h.b16 %v1964
  %v2157 = vpack.c.b16 %v2033, %v2029
  %v2158 = vpack.c.b16 %v2034, %v2030
  %v2159 = vpack.c.b16 %v2035, %v2031
  %v2160 = vpack.c.b16 %v2036, %v2032
  %v2161 = vpack.c.b16 %v2041, %v2037
  %v2162 = vpack.c.b16 %v2042, %v2038
  %v2163 = vpack.c.b16 %v2043, %v2039
  %v2164 = vpack.c.b16 %v2044, %v2040
  %v2165 = vpack.c.b16 %v2049, %v2045
  %v2166 = vpack.c.b16 %v2050, %v2046
  %v2167 = vpack.c.b16 %v2051, %v2047
  %v2168 = vpack.c.b16 %v2052, %v2048
  %v2169 = vpack.c.b16 %v2057, %v2053
  %v2170 = vpack.c.b16 %v2058, %v2054
  %v2171 = vpack.c.b16 %v2059, %v2055
  %v2172 = vpack.c.b16 %v2060, %v2056
  %v2173 = vpack.c.b16 %v2065, %v2061
  %v2174 = vpack.c.b16 %v2066, %v2062
  %v2175 = vpack.c.b16 %v2067, %v2063
  %v2176 = vpack.c.b16 %v2068, %v2064
  %v2177 = vpack.c.b16 %v2073, %v2069
  %v2178 = vpack.c.b16 %v2074, %v2070
  %v2179 = vpack.c.b16 %v2075, %v2071
  %v2180 = vpack.c.b16 %v2076, %v2072
  %v2181 = vpack.c.b16 %v2081, %v2077
  %v2182 = vpack.c.b16 %v2082, %v2078
  %v2183 = vpack.c.b16 %v2083, %v2079
  %v2184 = vpack.c.b16 %v2084, %v2080
  %v2185 = vpack.c.b16 %v2089, %v2085
  %v2186 = vpack.c.b16 %v2090, %v2086
  %v2187 = vpack.c.b16 %v2091, %v2087
  %v2188 = vpack.c.b16 %v2092, %v2088
  %v2189 = vpack.c.b16 %v2097, %v2093
  %v2190 = vpack.c.b16 %v2098, %v2094
  %v2191 = vpack.c.b16 %v2099, %v2095
  %v2192 = vpack.c.b16 %v2100, %v2096
  %v2193 = vpack.c.b16 %v2105, %v2101
  %v2194 = vpack.c.b16 %v2106, %v2102
  %v2195 = vpack.c.b16 %v2107, %v2103
  %v2196 = vpack.c.b16 %v2108, %v2104
  %v2197 = vpack.c.b16 %v2113, %v2109
  %v2198 = vpack.c.b16 %v2114, %v2110
  %v2199 = vpack.c.b16 %v2115, %v2111
  %v2200 = vpack.c.b16 %v2116, %v2112
  %v2201 = vpack.c.b16 %v2121, %v2117
  %v2202 = vpack.c.b16 %v2122, %v2118
  %v2203 = vpack.c.b16 %v2123, %v2119
  %v2204 = vpack.c.b16 %v2124, %v2120
  %v2205 = vpack.c.b16 %v2129, %v2125
  %v2206 = vpack.c.b16 %v2130, %v2126
  %v2207 = vpack.c.b16 %v2131, %v2127
  %v2208 = vpack.c.b16 %v2132, %v2128
  %v2209 = vpack.c.b16 %v2137, %v2133
  %v2210 = vpack.c.b16 %v2138, %v2134
  %v2211 = vpack.c.b16 %v2139, %v2135
  %v2212 = vpack.c.b16 %v2140, %v2136
  %v2213 = vpack.c.b16 %v2145, %v2141
  %v2214 = vpack.c.b16 %v2146, %v2142
  %v2215 = vpack.c.b16 %v2147, %v2143
  %v2216 = vpack.c.b16 %v2148, %v2144
  %v2217 = vpack.c.b16 %v2153, %v2149
  %v2218 = vpack.c.b16 %v2154, %v2150
  %v2219 = vpack.c.b16 %v2155, %v2151
  %v2220 = vpack.c.b16 %v2156, %v2152
  %2285 = vmatprep.subr.bf16.mxu0 %v2186
  %2286 = vmatpush1.bf16.msra.mxu0 %v2185
  %2287 = vmatprep.subr.bf16.mxu0 %v2182
  %2288 = vmatpush1.bf16.msra.mxu0 %v2181
  %2289 = vmatprep.subr.bf16.mxu0 %v2178
  %2290 = vmatpush1.bf16.msra.mxu0 %v2177
  %2291 = vmatprep.subr.bf16.mxu0 %v2174
  %2292 = vmatpush1.bf16.msra.mxu0 %v2173
  %2293 = vmatprep.subr.bf16.mxu0 %v2170
  %2294 = vmatpush1.bf16.msra.mxu0 %v2169
  %2295 = vmatprep.subr.bf16.mxu0 %v2166
  %2296 = vmatpush1.bf16.msra.mxu0 %v2165
  %2297 = vmatprep.subr.bf16.mxu0 %v2162
  %2298 = vmatpush1.bf16.msra.mxu0 %v2161
  %2299 = vmatprep.subr.bf16.mxu0 %v2158
  %2300 = vmatpush1.bf16.msra.mxu0 %v2157
  %2301 = vmatprep.subr.bf16.mxu0 %v2218
  %2302 = vmatpush2.bf16.msra.mxu0 %v2217
  %2303 = vmatprep.subr.bf16.mxu0 %v2214
  %2304 = vmatpush2.bf16.msra.mxu0 %v2213
  %2305 = vmatprep.subr.bf16.mxu0 %v2210
  %2306 = vmatpush2.bf16.msra.mxu0 %v2209
  %2307 = vmatprep.subr.bf16.mxu0 %v2206
  %2308 = vmatpush2.bf16.msra.mxu0 %v2205
  %2309 = vmatprep.subr.bf16.mxu0 %v2202
  %2310 = vmatpush2.bf16.msra.mxu0 %v2201
  %2311 = vmatprep.subr.bf16.mxu0 %v2198
  %2312 = vmatpush2.bf16.msra.mxu0 %v2197
  %2313 = vmatprep.subr.bf16.mxu0 %v2194
  %2314 = vmatpush2.bf16.msra.mxu0 %v2193
  %2315 = vmatprep.subr.bf16.mxu0 %v2190
  %2316 = vmatpush2.bf16.msra.mxu0 %v2189
  %2317 = vmatprep.mubr.bf16.mxu0 %v1870
  %2318 = vmatmul.mubr.bf16.gmra.mxu0 %v1869
  %v2319 = vpop.f32.mrf.mxu0
  %v2320 = vadd.f32 0.0, %v2319
  %v2321 = vpop.f32.mrf.mxu0
  %v2322 = vadd.f32 0.0, %v2321
  %v2323 = vpop.f32.mrf.mxu0
  %v2324 = vadd.f32 0.0, %v2323
  %v2325 = vpop.f32.mrf.mxu0
  %v2326 = vadd.f32 0.0, %v2325
  %2327 = vmatprep.mubr.bf16.mxu0 %v1872
  %2328 = vmatmul.mubr.bf16.gmra.mxu0 %v1871
  %v2329 = vpop.f32.mrf.mxu0
  %v2330 = vadd.f32 0.0, %v2329
  %v2331 = vpop.f32.mrf.mxu0
  %v2332 = vadd.f32 0.0, %v2331
  %v2333 = vpop.f32.mrf.mxu0
  %v2334 = vadd.f32 0.0, %v2333
  %v2335 = vpop.f32.mrf.mxu0
  %v2336 = vadd.f32 0.0, %v2335
  %2337 = vmatprep.mubr.bf16.mxu0 %v1874
  %2338 = vmatmul.mubr.bf16.gmra.mxu0 %v1873
  %v2339 = vpop.f32.mrf.mxu0
  %v2340 = vadd.f32 0.0, %v2339
  %v2341 = vpop.f32.mrf.mxu0
  %v2342 = vadd.f32 0.0, %v2341
  %v2343 = vpop.f32.mrf.mxu0
  %v2344 = vadd.f32 0.0, %v2343
  %v2345 = vpop.f32.mrf.mxu0
  %v2346 = vadd.f32 0.0, %v2345
  %2347 = vmatprep.mubr.bf16.mxu0 %v1876
  %2348 = vmatmul.mubr.bf16.gmra.mxu0 %v1875
  %v2349 = vpop.f32.mrf.mxu0
  %v2350 = vadd.f32 0.0, %v2349
  %v2351 = vpop.f32.mrf.mxu0
  %v2352 = vadd.f32 0.0, %v2351
  %v2353 = vpop.f32.mrf.mxu0
  %v2354 = vadd.f32 0.0, %v2353
  %v2355 = vpop.f32.mrf.mxu0
  %v2356 = vadd.f32 0.0, %v2355
  %2357 = vmatprep.mubr.bf16.mxu0 %v1878
  %2358 = vmatmul.mubr.bf16.gmra.mxu0 %v1877
  %v2359 = vpop.f32.mrf.mxu0
  %v2360 = vadd.f32 0.0, %v2359
  %v2361 = vpop.f32.mrf.mxu0
  %v2362 = vadd.f32 0.0, %v2361
  %v2363 = vpop.f32.mrf.mxu0
  %v2364 = vadd.f32 0.0, %v2363
  %v2365 = vpop.f32.mrf.mxu0
  %v2366 = vadd.f32 0.0, %v2365
  %2367 = vmatprep.mubr.bf16.mxu0 %v1880
  %2368 = vmatmul.mubr.bf16.gmra.mxu0 %v1879
  %v2369 = vpop.f32.mrf.mxu0
  %v2370 = vadd.f32 0.0, %v2369
  %v2371 = vpop.f32.mrf.mxu0
  %v2372 = vadd.f32 0.0, %v2371
  %v2373 = vpop.f32.mrf.mxu0
  %v2374 = vadd.f32 0.0, %v2373
  %v2375 = vpop.f32.mrf.mxu0
  %v2376 = vadd.f32 0.0, %v2375
  %2377 = vmatprep.mubr.bf16.mxu0 %v1882
  %2378 = vmatmul.mubr.bf16.gmra.mxu0 %v1881
  %v2379 = vpop.f32.mrf.mxu0
  %v2380 = vadd.f32 0.0, %v2379
  %v2381 = vpop.f32.mrf.mxu0
  %v2382 = vadd.f32 0.0, %v2381
  %v2383 = vpop.f32.mrf.mxu0
  %v2384 = vadd.f32 0.0, %v2383
  %v2385 = vpop.f32.mrf.mxu0
  %v2386 = vadd.f32 0.0, %v2385
  %2387 = vmatprep.mubr.bf16.mxu0 %v1884
  %2388 = vmatmul.mubr.bf16.gmra.mxu0 %v1883
  %v2389 = vpop.f32.mrf.mxu0
  %v2390 = vadd.f32 0.0, %v2389
  %v2391 = vpop.f32.mrf.mxu0
  %v2392 = vadd.f32 0.0, %v2391
  %v2393 = vpop.f32.mrf.mxu0
  %v2394 = vadd.f32 0.0, %v2393
  %v2395 = vpop.f32.mrf.mxu0
  %v2396 = vadd.f32 0.0, %v2395
  %2397 = vmatprep.mubr.bf16.mxu0 %v1886
  %2398 = vmatmul.mubr.bf16.gmra.mxu0 %v1885
  %v2399 = vpop.f32.mrf.mxu0
  %v2400 = vadd.f32 0.0, %v2399
  %v2401 = vpop.f32.mrf.mxu0
  %v2402 = vadd.f32 0.0, %v2401
  %v2403 = vpop.f32.mrf.mxu0
  %v2404 = vadd.f32 0.0, %v2403
  %v2405 = vpop.f32.mrf.mxu0
  %v2406 = vadd.f32 0.0, %v2405
  %2407 = vmatprep.mubr.bf16.mxu0 %v1888
  %2408 = vmatmul.mubr.bf16.gmra.mxu0 %v1887
  %v2409 = vpop.f32.mrf.mxu0
  %v2410 = vadd.f32 0.0, %v2409
  %v2411 = vpop.f32.mrf.mxu0
  %v2412 = vadd.f32 0.0, %v2411
  %v2413 = vpop.f32.mrf.mxu0
  %v2414 = vadd.f32 0.0, %v2413
  %v2415 = vpop.f32.mrf.mxu0
  %v2416 = vadd.f32 0.0, %v2415
  %2417 = vmatprep.mubr.bf16.mxu0 %v1890
  %2418 = vmatmul.mubr.bf16.gmra.mxu0 %v1889
  %v2419 = vpop.f32.mrf.mxu0
  %v2420 = vadd.f32 0.0, %v2419
  %v2421 = vpop.f32.mrf.mxu0
  %v2422 = vadd.f32 0.0, %v2421
  %v2423 = vpop.f32.mrf.mxu0
  %v2424 = vadd.f32 0.0, %v2423
  %v2425 = vpop.f32.mrf.mxu0
  %v2426 = vadd.f32 0.0, %v2425
  %2427 = vmatprep.mubr.bf16.mxu0 %v1892
  %2428 = vmatmul.mubr.bf16.gmra.mxu0 %v1891
  %v2429 = vpop.f32.mrf.mxu0
  %v2430 = vadd.f32 0.0, %v2429
  %v2431 = vpop.f32.mrf.mxu0
  %v2432 = vadd.f32 0.0, %v2431
  %v2433 = vpop.f32.mrf.mxu0
  %v2434 = vadd.f32 0.0, %v2433
  %v2435 = vpop.f32.mrf.mxu0
  %v2436 = vadd.f32 0.0, %v2435
  %2437 = vmatprep.mubr.bf16.mxu0 %v1894
  %2438 = vmatmul.mubr.bf16.gmra.mxu0 %v1893
  %v2439 = vpop.f32.mrf.mxu0
  %v2440 = vadd.f32 0.0, %v2439
  %v2441 = vpop.f32.mrf.mxu0
  %v2442 = vadd.f32 0.0, %v2441
  %v2443 = vpop.f32.mrf.mxu0
  %v2444 = vadd.f32 0.0, %v2443
  %v2445 = vpop.f32.mrf.mxu0
  %v2446 = vadd.f32 0.0, %v2445
  %2447 = vmatprep.mubr.bf16.mxu0 %v1896
  %2448 = vmatmul.mubr.bf16.gmra.mxu0 %v1895
  %v2449 = vpop.f32.mrf.mxu0
  %v2450 = vadd.f32 0.0, %v2449
  %v2451 = vpop.f32.mrf.mxu0
  %v2452 = vadd.f32 0.0, %v2451
  %v2453 = vpop.f32.mrf.mxu0
  %v2454 = vadd.f32 0.0, %v2453
  %v2455 = vpop.f32.mrf.mxu0
  %v2456 = vadd.f32 0.0, %v2455
  %2457 = vmatprep.mubr.bf16.mxu0 %v1898
  %2458 = vmatmul.mubr.bf16.gmra.mxu0 %v1897
  %v2459 = vpop.f32.mrf.mxu0
  %v2460 = vadd.f32 0.0, %v2459
  %v2461 = vpop.f32.mrf.mxu0
  %v2462 = vadd.f32 0.0, %v2461
  %v2463 = vpop.f32.mrf.mxu0
  %v2464 = vadd.f32 0.0, %v2463
  %v2465 = vpop.f32.mrf.mxu0
  %v2466 = vadd.f32 0.0, %v2465
  %2467 = vmatprep.mubr.bf16.mxu0 %v1900
  %2468 = vmatmul.mubr.bf16.gmra.mxu0 %v1899
  %v2469 = vpop.f32.mrf.mxu0
  %v2470 = vadd.f32 0.0, %v2469
  %v2471 = vpop.f32.mrf.mxu0
  %v2472 = vadd.f32 0.0, %v2471
  %v2473 = vpop.f32.mrf.mxu0
  %v2474 = vadd.f32 0.0, %v2473
  %v2475 = vpop.f32.mrf.mxu0
  %v2476 = vadd.f32 0.0, %v2475
  %2477 = vdwg.mxu0
  %2478 = vmatprep.subr.bf16.mxu0 %v2188
  %2479 = vmatpush1.bf16.msra.mxu0 %v2187
  %2480 = vmatprep.subr.bf16.mxu0 %v2184
  %2481 = vmatpush1.bf16.msra.mxu0 %v2183
  %2482 = vmatprep.subr.bf16.mxu0 %v2180
  %2483 = vmatpush1.bf16.msra.mxu0 %v2179
  %2484 = vmatprep.subr.bf16.mxu0 %v2176
  %2485 = vmatpush1.bf16.msra.mxu0 %v2175
  %2486 = vmatprep.subr.bf16.mxu0 %v2172
  %2487 = vmatpush1.bf16.msra.mxu0 %v2171
  %2488 = vmatprep.subr.bf16.mxu0 %v2168
  %2489 = vmatpush1.bf16.msra.mxu0 %v2167
  %2490 = vmatprep.subr.bf16.mxu0 %v2164
  %2491 = vmatpush1.bf16.msra.mxu0 %v2163
  %2492 = vmatprep.subr.bf16.mxu0 %v2160
  %2493 = vmatpush1.bf16.msra.mxu0 %v2159
  %2494 = vmatprep.subr.bf16.mxu0 %v2220
  %2495 = vmatpush2.bf16.msra.mxu0 %v2219
  %2496 = vmatprep.subr.bf16.mxu0 %v2216
  %2497 = vmatpush2.bf16.msra.mxu0 %v2215
  %2498 = vmatprep.subr.bf16.mxu0 %v2212
  %2499 = vmatpush2.bf16.msra.mxu0 %v2211
  %2500 = vmatprep.subr.bf16.mxu0 %v2208
  %2501 = vmatpush2.bf16.msra.mxu0 %v2207
  %2502 = vmatprep.subr.bf16.mxu0 %v2204
  %2503 = vmatpush2.bf16.msra.mxu0 %v2203
  %2504 = vmatprep.subr.bf16.mxu0 %v2200
  %2505 = vmatpush2.bf16.msra.mxu0 %v2199
  %2506 = vmatprep.subr.bf16.mxu0 %v2196
  %2507 = vmatpush2.bf16.msra.mxu0 %v2195
  %2508 = vmatprep.subr.bf16.mxu0 %v2192
  %2509 = vmatpush2.bf16.msra.mxu0 %v2191
  %2510 = vmatprep.mubr.bf16.mxu0 %v1870
  %2511 = vmatmul.mubr.bf16.gmra.mxu0 %v1869
  %v2512 = vpop.f32.mrf.mxu0
  %v2513 = vadd.f32 0.0, %v2512
  %v2514 = vpop.f32.mrf.mxu0
  %v2515 = vadd.f32 0.0, %v2514
  %v2516 = vpop.f32.mrf.mxu0
  %v2517 = vadd.f32 0.0, %v2516
  %v2518 = vpop.f32.mrf.mxu0
  %v2519 = vadd.f32 0.0, %v2518
  %2520 = vmatprep.mubr.bf16.mxu0 %v1872
  %2521 = vmatmul.mubr.bf16.gmra.mxu0 %v1871
  %v2522 = vpop.f32.mrf.mxu0
  %v2523 = vadd.f32 0.0, %v2522
  %v2524 = vpop.f32.mrf.mxu0
  %v2525 = vadd.f32 0.0, %v2524
  %v2526 = vpop.f32.mrf.mxu0
  %v2527 = vadd.f32 0.0, %v2526
  %v2528 = vpop.f32.mrf.mxu0
  %v2529 = vadd.f32 0.0, %v2528
  %2530 = vmatprep.mubr.bf16.mxu0 %v1874
  %2531 = vmatmul.mubr.bf16.gmra.mxu0 %v1873
  %v2532 = vpop.f32.mrf.mxu0
  %v2533 = vadd.f32 0.0, %v2532
  %v2534 = vpop.f32.mrf.mxu0
  %v2535 = vadd.f32 0.0, %v2534
  %v2536 = vpop.f32.mrf.mxu0
  %v2537 = vadd.f32 0.0, %v2536
  %v2538 = vpop.f32.mrf.mxu0
  %v2539 = vadd.f32 0.0, %v2538
  %2540 = vmatprep.mubr.bf16.mxu0 %v1876
  %2541 = vmatmul.mubr.bf16.gmra.mxu0 %v1875
  %v2542 = vpop.f32.mrf.mxu0
  %v2543 = vadd.f32 0.0, %v2542
  %v2544 = vpop.f32.mrf.mxu0
  %v2545 = vadd.f32 0.0, %v2544
  %v2546 = vpop.f32.mrf.mxu0
  %v2547 = vadd.f32 0.0, %v2546
  %v2548 = vpop.f32.mrf.mxu0
  %v2549 = vadd.f32 0.0, %v2548
  %2550 = vmatprep.mubr.bf16.mxu0 %v1878
  %2551 = vmatmul.mubr.bf16.gmra.mxu0 %v1877
  %v2552 = vpop.f32.mrf.mxu0
  %v2553 = vadd.f32 0.0, %v2552
  %v2554 = vpop.f32.mrf.mxu0
  %v2555 = vadd.f32 0.0, %v2554
  %v2556 = vpop.f32.mrf.mxu0
  %v2557 = vadd.f32 0.0, %v2556
  %v2558 = vpop.f32.mrf.mxu0
  %v2559 = vadd.f32 0.0, %v2558
  %2560 = vmatprep.mubr.bf16.mxu0 %v1880
  %2561 = vmatmul.mubr.bf16.gmra.mxu0 %v1879
  %v2562 = vpop.f32.mrf.mxu0
  %v2563 = vadd.f32 0.0, %v2562
  %v2564 = vpop.f32.mrf.mxu0
  %v2565 = vadd.f32 0.0, %v2564
  %v2566 = vpop.f32.mrf.mxu0
  %v2567 = vadd.f32 0.0, %v2566
  %v2568 = vpop.f32.mrf.mxu0
  %v2569 = vadd.f32 0.0, %v2568
  %2570 = vmatprep.mubr.bf16.mxu0 %v1882
  %2571 = vmatmul.mubr.bf16.gmra.mxu0 %v1881
  %v2572 = vpop.f32.mrf.mxu0
  %v2573 = vadd.f32 0.0, %v2572
  %v2574 = vpop.f32.mrf.mxu0
  %v2575 = vadd.f32 0.0, %v2574
  %v2576 = vpop.f32.mrf.mxu0
  %v2577 = vadd.f32 0.0, %v2576
  %v2578 = vpop.f32.mrf.mxu0
  %v2579 = vadd.f32 0.0, %v2578
  %2580 = vmatprep.mubr.bf16.mxu0 %v1884
  %2581 = vmatmul.mubr.bf16.gmra.mxu0 %v1883
  %v2582 = vpop.f32.mrf.mxu0
  %v2583 = vadd.f32 0.0, %v2582
  %v2584 = vpop.f32.mrf.mxu0
  %v2585 = vadd.f32 0.0, %v2584
  %v2586 = vpop.f32.mrf.mxu0
  %v2587 = vadd.f32 0.0, %v2586
  %v2588 = vpop.f32.mrf.mxu0
  %v2589 = vadd.f32 0.0, %v2588
  %2590 = vmatprep.mubr.bf16.mxu0 %v1886
  %2591 = vmatmul.mubr.bf16.gmra.mxu0 %v1885
  %v2592 = vpop.f32.mrf.mxu0
  %v2593 = vadd.f32 0.0, %v2592
  %v2594 = vpop.f32.mrf.mxu0
  %v2595 = vadd.f32 0.0, %v2594
  %v2596 = vpop.f32.mrf.mxu0
  %v2597 = vadd.f32 0.0, %v2596
  %v2598 = vpop.f32.mrf.mxu0
  %v2599 = vadd.f32 0.0, %v2598
  %2600 = vmatprep.mubr.bf16.mxu0 %v1888
  %2601 = vmatmul.mubr.bf16.gmra.mxu0 %v1887
  %v2602 = vpop.f32.mrf.mxu0
  %v2603 = vadd.f32 0.0, %v2602
  %v2604 = vpop.f32.mrf.mxu0
  %v2605 = vadd.f32 0.0, %v2604
  %v2606 = vpop.f32.mrf.mxu0
  %v2607 = vadd.f32 0.0, %v2606
  %v2608 = vpop.f32.mrf.mxu0
  %v2609 = vadd.f32 0.0, %v2608
  %2610 = vmatprep.mubr.bf16.mxu0 %v1890
  %2611 = vmatmul.mubr.bf16.gmra.mxu0 %v1889
  %v2612 = vpop.f32.mrf.mxu0
  %v2613 = vadd.f32 0.0, %v2612
  %v2614 = vpop.f32.mrf.mxu0
  %v2615 = vadd.f32 0.0, %v2614
  %v2616 = vpop.f32.mrf.mxu0
  %v2617 = vadd.f32 0.0, %v2616
  %v2618 = vpop.f32.mrf.mxu0
  %v2619 = vadd.f32 0.0, %v2618
  %2620 = vmatprep.mubr.bf16.mxu0 %v1892
  %2621 = vmatmul.mubr.bf16.gmra.mxu0 %v1891
  %v2622 = vpop.f32.mrf.mxu0
  %v2623 = vadd.f32 0.0, %v2622
  %v2624 = vpop.f32.mrf.mxu0
  %v2625 = vadd.f32 0.0, %v2624
  %v2626 = vpop.f32.mrf.mxu0
  %v2627 = vadd.f32 0.0, %v2626
  %v2628 = vpop.f32.mrf.mxu0
  %v2629 = vadd.f32 0.0, %v2628
  %2630 = vmatprep.mubr.bf16.mxu0 %v1894
  %2631 = vmatmul.mubr.bf16.gmra.mxu0 %v1893
  %v2632 = vpop.f32.mrf.mxu0
  %v2633 = vadd.f32 0.0, %v2632
  %v2634 = vpop.f32.mrf.mxu0
  %v2635 = vadd.f32 0.0, %v2634
  %v2636 = vpop.f32.mrf.mxu0
  %v2637 = vadd.f32 0.0, %v2636
  %v2638 = vpop.f32.mrf.mxu0
  %v2639 = vadd.f32 0.0, %v2638
  %2640 = vmatprep.mubr.bf16.mxu0 %v1896
  %2641 = vmatmul.mubr.bf16.gmra.mxu0 %v1895
  %v2642 = vpop.f32.mrf.mxu0
  %v2643 = vadd.f32 0.0, %v2642
  %v2644 = vpop.f32.mrf.mxu0
  %v2645 = vadd.f32 0.0, %v2644
  %v2646 = vpop.f32.mrf.mxu0
  %v2647 = vadd.f32 0.0, %v2646
  %v2648 = vpop.f32.mrf.mxu0
  %v2649 = vadd.f32 0.0, %v2648
  %2650 = vmatprep.mubr.bf16.mxu0 %v1898
  %2651 = vmatmul.mubr.bf16.gmra.mxu0 %v1897
  %v2652 = vpop.f32.mrf.mxu0
  %v2653 = vadd.f32 0.0, %v2652
  %v2654 = vpop.f32.mrf.mxu0
  %v2655 = vadd.f32 0.0, %v2654
  %v2656 = vpop.f32.mrf.mxu0
  %v2657 = vadd.f32 0.0, %v2656
  %v2658 = vpop.f32.mrf.mxu0
  %v2659 = vadd.f32 0.0, %v2658
  %2660 = vmatprep.mubr.bf16.mxu0 %v1900
  %2661 = vmatmul.mubr.bf16.gmra.mxu0 %v1899
  %v2662 = vpop.f32.mrf.mxu0
  %v2663 = vadd.f32 0.0, %v2662
  %v2664 = vpop.f32.mrf.mxu0
  %v2665 = vadd.f32 0.0, %v2664
  %v2666 = vpop.f32.mrf.mxu0
  %v2667 = vadd.f32 0.0, %v2666
  %v2668 = vpop.f32.mrf.mxu0
  %v2669 = vadd.f32 0.0, %v2668
  %2670 = vdwg.mxu0
  %v2687 = vcombine.low %v1798, %v1800
  %v2688 = vcombine.high %v1798, %v1800
  %v2689 = vcombine.low %v1851, %v1853
  %v2690 = vcombine.high %v1851, %v1853
  %v2692 = vunpack.c.l.s4 1966171168
  %v2693 = vunpack.c.0.s8 %v2692
  %v2694 = vlaneseq
  %v2695 = vshrl.u32 %v2694, 7
  %v2696 = vsub.s32 %v2693, %v2695
  %v2697 = vrot.slane %v2687, %v2696
  %v2699 = vunpack.c.l.s4 1966171168
  %v2700 = vunpack.c.0.s8 %v2699
  %v2701 = vlaneseq
  %v2702 = vshrl.u32 %v2701, 7
  %v2703 = vsub.s32 %v2700, %v2702
  %v2704 = vrot.slane %v2688, %v2703
  %v2706 = vunpack.c.l.s4 1966171168
  %v2707 = vunpack.c.0.s8 %v2706
  %v2708 = vlaneseq
  %v2709 = vshrl.u32 %v2708, 7
  %v2710 = vsub.s32 %v2707, %v2709
  %v2711 = vrot.slane %v2689, %v2710
  %v2713 = vunpack.c.l.s4 1966171168
  %v2714 = vunpack.c.0.s8 %v2713
  %v2715 = vlaneseq
  %v2716 = vshrl.u32 %v2715, 7
  %v2717 = vsub.s32 %v2714, %v2716
  %v2718 = vrot.slane %v2690, %v2717
  %v2719 = vcombine.low %v2697, %v2711
  %v2720 = vcombine.high %v2697, %v2711
  %v2721 = vcombine.low %v2704, %v2718
  %v2722 = vcombine.high %v2704, %v2718
  %v2724 = vunpack.c.l.s4 1966171168
  %v2725 = vunpack.c.0.s8 %v2724
  %v2726 = vlaneseq
  %v2727 = vshrl.u32 %v2726, 7
  %v2728 = vsub.s32 %v2725, %v2727
  %v2729 = vrot.slane %v2719, %v2728
  %v2731 = vunpack.c.l.s4 1966171168
  %v2732 = vunpack.c.0.s8 %v2731
  %v2733 = vlaneseq
  %v2734 = vshrl.u32 %v2733, 7
  %v2735 = vsub.s32 %v2732, %v2734
  %v2736 = vrot.slane %v2721, %v2735
  %v2738 = vunpack.c.l.s4 1966171168
  %v2739 = vunpack.c.0.s8 %v2738
  %v2740 = vlaneseq
  %v2741 = vshrl.u32 %v2740, 7
  %v2742 = vsub.s32 %v2739, %v2741
  %v2743 = vrot.slane %v2720, %v2742
  %v2745 = vunpack.c.l.s4 1966171168
  %v2746 = vunpack.c.0.s8 %v2745
  %v2747 = vlaneseq
  %v2748 = vshrl.u32 %v2747, 7
  %v2749 = vsub.s32 %v2746, %v2748
  %v2750 = vrot.slane %v2722, %v2749
  %v2751 = vcombine.high %v2729, %v2729
  %v2752 = vcombine.high %v2736, %v2736
  %v2753 = vcombine.high %v2743, %v2743
  %v2754 = vcombine.high %v2750, %v2750
  %v2755 = vcombine.low %v1802, %v1804
  %v2756 = vcombine.high %v1802, %v1804
  %v2757 = vcombine.low %v1855, %v1857
  %v2758 = vcombine.high %v1855, %v1857
  %v2760 = vunpack.c.l.s4 1966171168
  %v2761 = vunpack.c.0.s8 %v2760
  %v2762 = vlaneseq
  %v2763 = vshrl.u32 %v2762, 7
  %v2764 = vsub.s32 %v2761, %v2763
  %v2765 = vrot.slane %v2755, %v2764
  %v2767 = vunpack.c.l.s4 1966171168
  %v2768 = vunpack.c.0.s8 %v2767
  %v2769 = vlaneseq
  %v2770 = vshrl.u32 %v2769, 7
  %v2771 = vsub.s32 %v2768, %v2770
  %v2772 = vrot.slane %v2756, %v2771
  %v2774 = vunpack.c.l.s4 1966171168
  %v2775 = vunpack.c.0.s8 %v2774
  %v2776 = vlaneseq
  %v2777 = vshrl.u32 %v2776, 7
  %v2778 = vsub.s32 %v2775, %v2777
  %v2779 = vrot.slane %v2757, %v2778
  %v2781 = vunpack.c.l.s4 1966171168
  %v2782 = vunpack.c.0.s8 %v2781
  %v2783 = vlaneseq
  %v2784 = vshrl.u32 %v2783, 7
  %v2785 = vsub.s32 %v2782, %v2784
  %v2786 = vrot.slane %v2758, %v2785
  %v2787 = vcombine.low %v2765, %v2779
  %v2788 = vcombine.high %v2765, %v2779
  %v2789 = vcombine.low %v2772, %v2786
  %v2790 = vcombine.high %v2772, %v2786
  %v2792 = vunpack.c.l.s4 1966171168
  %v2793 = vunpack.c.0.s8 %v2792
  %v2794 = vlaneseq
  %v2795 = vshrl.u32 %v2794, 7
  %v2796 = vsub.s32 %v2793, %v2795
  %v2797 = vrot.slane %v2787, %v2796
  %v2799 = vunpack.c.l.s4 1966171168
  %v2800 = vunpack.c.0.s8 %v2799
  %v2801 = vlaneseq
  %v2802 = vshrl.u32 %v2801, 7
  %v2803 = vsub.s32 %v2800, %v2802
  %v2804 = vrot.slane %v2789, %v2803
  %v2806 = vunpack.c.l.s4 1966171168
  %v2807 = vunpack.c.0.s8 %v2806
  %v2808 = vlaneseq
  %v2809 = vshrl.u32 %v2808, 7
  %v2810 = vsub.s32 %v2807, %v2809
  %v2811 = vrot.slane %v2788, %v2810
  %v2813 = vunpack.c.l.s4 1966171168
  %v2814 = vunpack.c.0.s8 %v2813
  %v2815 = vlaneseq
  %v2816 = vshrl.u32 %v2815, 7
  %v2817 = vsub.s32 %v2814, %v2816
  %v2818 = vrot.slane %v2790, %v2817
  %v2819 = vcombine.high %v2797, %v2797
  %v2820 = vcombine.high %v2804, %v2804
  %v2821 = vcombine.high %v2811, %v2811
  %v2822 = vcombine.high %v2818, %v2818
  %v2823 = vcombine.low %v1808, %v1810
  %v2824 = vcombine.high %v1808, %v1810
  %v2825 = vcombine.low %v1861, %v1863
  %v2826 = vcombine.high %v1861, %v1863
  %v2828 = vunpack.c.l.s4 1966171168
  %v2829 = vunpack.c.0.s8 %v2828
  %v2830 = vlaneseq
  %v2831 = vshrl.u32 %v2830, 7
  %v2832 = vsub.s32 %v2829, %v2831
  %v2833 = vrot.slane %v2823, %v2832
  %v2835 = vunpack.c.l.s4 1966171168
  %v2836 = vunpack.c.0.s8 %v2835
  %v2837 = vlaneseq
  %v2838 = vshrl.u32 %v2837, 7
  %v2839 = vsub.s32 %v2836, %v2838
  %v2840 = vrot.slane %v2824, %v2839
  %v2842 = vunpack.c.l.s4 1966171168
  %v2843 = vunpack.c.0.s8 %v2842
  %v2844 = vlaneseq
  %v2845 = vshrl.u32 %v2844, 7
  %v2846 = vsub.s32 %v2843, %v2845
  %v2847 = vrot.slane %v2825, %v2846
  %v2849 = vunpack.c.l.s4 1966171168
  %v2850 = vunpack.c.0.s8 %v2849
  %v2851 = vlaneseq
  %v2852 = vshrl.u32 %v2851, 7
  %v2853 = vsub.s32 %v2850, %v2852
  %v2854 = vrot.slane %v2826, %v2853
  %v2855 = vcombine.low %v2833, %v2847
  %v2856 = vcombine.high %v2833, %v2847
  %v2857 = vcombine.low %v2840, %v2854
  %v2858 = vcombine.high %v2840, %v2854
  %v2860 = vunpack.c.l.s4 1966171168
  %v2861 = vunpack.c.0.s8 %v2860
  %v2862 = vlaneseq
  %v2863 = vshrl.u32 %v2862, 7
  %v2864 = vsub.s32 %v2861, %v2863
  %v2865 = vrot.slane %v2855, %v2864
  %v2867 = vunpack.c.l.s4 1966171168
  %v2868 = vunpack.c.0.s8 %v2867
  %v2869 = vlaneseq
  %v2870 = vshrl.u32 %v2869, 7
  %v2871 = vsub.s32 %v2868, %v2870
  %v2872 = vrot.slane %v2857, %v2871
  %v2874 = vunpack.c.l.s4 1966171168
  %v2875 = vunpack.c.0.s8 %v2874
  %v2876 = vlaneseq
  %v2877 = vshrl.u32 %v2876, 7
  %v2878 = vsub.s32 %v2875, %v2877
  %v2879 = vrot.slane %v2856, %v2878
  %v2881 = vunpack.c.l.s4 1966171168
  %v2882 = vunpack.c.0.s8 %v2881
  %v2883 = vlaneseq
  %v2884 = vshrl.u32 %v2883, 7
  %v2885 = vsub.s32 %v2882, %v2884
  %v2886 = vrot.slane %v2858, %v2885
  %v2887 = vcombine.high %v2865, %v2865
  %v2888 = vcombine.high %v2872, %v2872
  %v2889 = vcombine.high %v2879, %v2879
  %v2890 = vcombine.high %v2886, %v2886
  %v2891 = vcombine.low %v1812, %v1814
  %v2892 = vcombine.high %v1812, %v1814
  %v2893 = vcombine.low %v1865, %v1867
  %v2894 = vcombine.high %v1865, %v1867
  %v2896 = vunpack.c.l.s4 1966171168
  %v2897 = vunpack.c.0.s8 %v2896
  %v2898 = vlaneseq
  %v2899 = vshrl.u32 %v2898, 7
  %v2900 = vsub.s32 %v2897, %v2899
  %v2901 = vrot.slane %v2891, %v2900
  %v2903 = vunpack.c.l.s4 1966171168
  %v2904 = vunpack.c.0.s8 %v2903
  %v2905 = vlaneseq
  %v2906 = vshrl.u32 %v2905, 7
  %v2907 = vsub.s32 %v2904, %v2906
  %v2908 = vrot.slane %v2892, %v2907
  %v2910 = vunpack.c.l.s4 1966171168
  %v2911 = vunpack.c.0.s8 %v2910
  %v2912 = vlaneseq
  %v2913 = vshrl.u32 %v2912, 7
  %v2914 = vsub.s32 %v2911, %v2913
  %v2915 = vrot.slane %v2893, %v2914
  %v2917 = vunpack.c.l.s4 1966171168
  %v2918 = vunpack.c.0.s8 %v2917
  %v2919 = vlaneseq
  %v2920 = vshrl.u32 %v2919, 7
  %v2921 = vsub.s32 %v2918, %v2920
  %v2922 = vrot.slane %v2894, %v2921
  %v2923 = vcombine.low %v2901, %v2915
  %v2924 = vcombine.high %v2901, %v2915
  %v2925 = vcombine.low %v2908, %v2922
  %v2926 = vcombine.high %v2908, %v2922
  %v2928 = vunpack.c.l.s4 1966171168
  %v2929 = vunpack.c.0.s8 %v2928
  %v2930 = vlaneseq
  %v2931 = vshrl.u32 %v2930, 7
  %v2932 = vsub.s32 %v2929, %v2931
  %v2933 = vrot.slane %v2923, %v2932
  %v2935 = vunpack.c.l.s4 1966171168
  %v2936 = vunpack.c.0.s8 %v2935
  %v2937 = vlaneseq
  %v2938 = vshrl.u32 %v2937, 7
  %v2939 = vsub.s32 %v2936, %v2938
  %v2940 = vrot.slane %v2925, %v2939
  %v2942 = vunpack.c.l.s4 1966171168
  %v2943 = vunpack.c.0.s8 %v2942
  %v2944 = vlaneseq
  %v2945 = vshrl.u32 %v2944, 7
  %v2946 = vsub.s32 %v2943, %v2945
  %v2947 = vrot.slane %v2924, %v2946
  %v2949 = vunpack.c.l.s4 1966171168
  %v2950 = vunpack.c.0.s8 %v2949
  %v2951 = vlaneseq
  %v2952 = vshrl.u32 %v2951, 7
  %v2953 = vsub.s32 %v2950, %v2952
  %v2954 = vrot.slane %v2926, %v2953
  %v2955 = vcombine.high %v2933, %v2933
  %v2956 = vcombine.high %v2940, %v2940
  %v2957 = vcombine.high %v2947, %v2947
  %v2958 = vcombine.high %v2954, %v2954
  %v2959 = vlaneseq
  %v2960 = vshrl.u32 %v2959, 7
  %v2961 = vsub.s32 0, %v2960
  %v2962 = vrot.slane %v2729, %v2961
  %v2963 = vlaneseq
  %v2964 = vshrl.u32 %v2963, 7
  %v2965 = vsub.s32 1, %v2964
  %v2966 = vrot.slane %v2729, %v2965
  %v2967 = vlaneseq
  %v2968 = vshrl.u32 %v2967, 7
  %v2969 = vsub.s32 2, %v2968
  %v2970 = vrot.slane %v2729, %v2969
  %v2971 = vlaneseq
  %v2972 = vshrl.u32 %v2971, 7
  %v2973 = vsub.s32 3, %v2972
  %v2974 = vrot.slane %v2729, %v2973
  %v2975 = vlaneseq
  %v2976 = vshrl.u32 %v2975, 7
  %v2977 = vsub.s32 0, %v2976
  %v2978 = vrot.slane %v2743, %v2977
  %v2979 = vlaneseq
  %v2980 = vshrl.u32 %v2979, 7
  %v2981 = vsub.s32 1, %v2980
  %v2982 = vrot.slane %v2743, %v2981
  %v2983 = vlaneseq
  %v2984 = vshrl.u32 %v2983, 7
  %v2985 = vsub.s32 2, %v2984
  %v2986 = vrot.slane %v2743, %v2985
  %v2987 = vlaneseq
  %v2988 = vshrl.u32 %v2987, 7
  %v2989 = vsub.s32 3, %v2988
  %v2990 = vrot.slane %v2743, %v2989
  %v2991 = vlaneseq
  %v2992 = vshrl.u32 %v2991, 7
  %v2993 = vsub.s32 0, %v2992
  %v2994 = vrot.slane %v2751, %v2993
  %v2995 = vlaneseq
  %v2996 = vshrl.u32 %v2995, 7
  %v2997 = vsub.s32 1, %v2996
  %v2998 = vrot.slane %v2751, %v2997
  %v2999 = vlaneseq
  %v3000 = vshrl.u32 %v2999, 7
  %v3001 = vsub.s32 2, %v3000
  %v3002 = vrot.slane %v2751, %v3001
  %v3003 = vlaneseq
  %v3004 = vshrl.u32 %v3003, 7
  %v3005 = vsub.s32 3, %v3004
  %v3006 = vrot.slane %v2751, %v3005
  %v3007 = vlaneseq
  %v3008 = vshrl.u32 %v3007, 7
  %v3009 = vsub.s32 0, %v3008
  %v3010 = vrot.slane %v2753, %v3009
  %v3011 = vlaneseq
  %v3012 = vshrl.u32 %v3011, 7
  %v3013 = vsub.s32 1, %v3012
  %v3014 = vrot.slane %v2753, %v3013
  %v3015 = vlaneseq
  %v3016 = vshrl.u32 %v3015, 7
  %v3017 = vsub.s32 2, %v3016
  %v3018 = vrot.slane %v2753, %v3017
  %v3019 = vlaneseq
  %v3020 = vshrl.u32 %v3019, 7
  %v3021 = vsub.s32 3, %v3020
  %v3022 = vrot.slane %v2753, %v3021
  %v3023 = vlaneseq
  %v3024 = vshrl.u32 %v3023, 7
  %v3025 = vsub.s32 0, %v3024
  %v3026 = vrot.slane %v2736, %v3025
  %v3027 = vlaneseq
  %v3028 = vshrl.u32 %v3027, 7
  %v3029 = vsub.s32 1, %v3028
  %v3030 = vrot.slane %v2736, %v3029
  %v3031 = vlaneseq
  %v3032 = vshrl.u32 %v3031, 7
  %v3033 = vsub.s32 2, %v3032
  %v3034 = vrot.slane %v2736, %v3033
  %v3035 = vlaneseq
  %v3036 = vshrl.u32 %v3035, 7
  %v3037 = vsub.s32 3, %v3036
  %v3038 = vrot.slane %v2736, %v3037
  %v3039 = vlaneseq
  %v3040 = vshrl.u32 %v3039, 7
  %v3041 = vsub.s32 0, %v3040
  %v3042 = vrot.slane %v2750, %v3041
  %v3043 = vlaneseq
  %v3044 = vshrl.u32 %v3043, 7
  %v3045 = vsub.s32 1, %v3044
  %v3046 = vrot.slane %v2750, %v3045
  %v3047 = vlaneseq
  %v3048 = vshrl.u32 %v3047, 7
  %v3049 = vsub.s32 2, %v3048
  %v3050 = vrot.slane %v2750, %v3049
  %v3051 = vlaneseq
  %v3052 = vshrl.u32 %v3051, 7
  %v3053 = vsub.s32 3, %v3052
  %v3054 = vrot.slane %v2750, %v3053
  %v3055 = vlaneseq
  %v3056 = vshrl.u32 %v3055, 7
  %v3057 = vsub.s32 0, %v3056
  %v3058 = vrot.slane %v2752, %v3057
  %v3059 = vlaneseq
  %v3060 = vshrl.u32 %v3059, 7
  %v3061 = vsub.s32 1, %v3060
  %v3062 = vrot.slane %v2752, %v3061
  %v3063 = vlaneseq
  %v3064 = vshrl.u32 %v3063, 7
  %v3065 = vsub.s32 2, %v3064
  %v3066 = vrot.slane %v2752, %v3065
  %v3067 = vlaneseq
  %v3068 = vshrl.u32 %v3067, 7
  %v3069 = vsub.s32 3, %v3068
  %v3070 = vrot.slane %v2752, %v3069
  %v3071 = vlaneseq
  %v3072 = vshrl.u32 %v3071, 7
  %v3073 = vsub.s32 0, %v3072
  %v3074 = vrot.slane %v2754, %v3073
  %v3075 = vlaneseq
  %v3076 = vshrl.u32 %v3075, 7
  %v3077 = vsub.s32 1, %v3076
  %v3078 = vrot.slane %v2754, %v3077
  %v3079 = vlaneseq
  %v3080 = vshrl.u32 %v3079, 7
  %v3081 = vsub.s32 2, %v3080
  %v3082 = vrot.slane %v2754, %v3081
  %v3083 = vlaneseq
  %v3084 = vshrl.u32 %v3083, 7
  %v3085 = vsub.s32 3, %v3084
  %v3086 = vrot.slane %v2754, %v3085
  %v3087 = vlaneseq
  %v3088 = vshrl.u32 %v3087, 7
  %v3089 = vsub.s32 0, %v3088
  %v3090 = vrot.slane %v2797, %v3089
  %v3091 = vlaneseq
  %v3092 = vshrl.u32 %v3091, 7
  %v3093 = vsub.s32 1, %v3092
  %v3094 = vrot.slane %v2797, %v3093
  %v3095 = vlaneseq
  %v3096 = vshrl.u32 %v3095, 7
  %v3097 = vsub.s32 2, %v3096
  %v3098 = vrot.slane %v2797, %v3097
  %v3099 = vlaneseq
  %v3100 = vshrl.u32 %v3099, 7
  %v3101 = vsub.s32 3, %v3100
  %v3102 = vrot.slane %v2797, %v3101
  %v3103 = vlaneseq
  %v3104 = vshrl.u32 %v3103, 7
  %v3105 = vsub.s32 0, %v3104
  %v3106 = vrot.slane %v2811, %v3105
  %v3107 = vlaneseq
  %v3108 = vshrl.u32 %v3107, 7
  %v3109 = vsub.s32 1, %v3108
  %v3110 = vrot.slane %v2811, %v3109
  %v3111 = vlaneseq
  %v3112 = vshrl.u32 %v3111, 7
  %v3113 = vsub.s32 2, %v3112
  %v3114 = vrot.slane %v2811, %v3113
  %v3115 = vlaneseq
  %v3116 = vshrl.u32 %v3115, 7
  %v3117 = vsub.s32 3, %v3116
  %v3118 = vrot.slane %v2811, %v3117
  %v3119 = vlaneseq
  %v3120 = vshrl.u32 %v3119, 7
  %v3121 = vsub.s32 0, %v3120
  %v3122 = vrot.slane %v2819, %v3121
  %v3123 = vlaneseq
  %v3124 = vshrl.u32 %v3123, 7
  %v3125 = vsub.s32 1, %v3124
  %v3126 = vrot.slane %v2819, %v3125
  %v3127 = vlaneseq
  %v3128 = vshrl.u32 %v3127, 7
  %v3129 = vsub.s32 2, %v3128
  %v3130 = vrot.slane %v2819, %v3129
  %v3131 = vlaneseq
  %v3132 = vshrl.u32 %v3131, 7
  %v3133 = vsub.s32 3, %v3132
  %v3134 = vrot.slane %v2819, %v3133
  %v3135 = vlaneseq
  %v3136 = vshrl.u32 %v3135, 7
  %v3137 = vsub.s32 0, %v3136
  %v3138 = vrot.slane %v2821, %v3137
  %v3139 = vlaneseq
  %v3140 = vshrl.u32 %v3139, 7
  %v3141 = vsub.s32 1, %v3140
  %v3142 = vrot.slane %v2821, %v3141
  %v3143 = vlaneseq
  %v3144 = vshrl.u32 %v3143, 7
  %v3145 = vsub.s32 2, %v3144
  %v3146 = vrot.slane %v2821, %v3145
  %v3147 = vlaneseq
  %v3148 = vshrl.u32 %v3147, 7
  %v3149 = vsub.s32 3, %v3148
  %v3150 = vrot.slane %v2821, %v3149
  %v3151 = vlaneseq
  %v3152 = vshrl.u32 %v3151, 7
  %v3153 = vsub.s32 0, %v3152
  %v3154 = vrot.slane %v2804, %v3153
  %v3155 = vlaneseq
  %v3156 = vshrl.u32 %v3155, 7
  %v3157 = vsub.s32 1, %v3156
  %v3158 = vrot.slane %v2804, %v3157
  %v3159 = vlaneseq
  %v3160 = vshrl.u32 %v3159, 7
  %v3161 = vsub.s32 2, %v3160
  %v3162 = vrot.slane %v2804, %v3161
  %v3163 = vlaneseq
  %v3164 = vshrl.u32 %v3163, 7
  %v3165 = vsub.s32 3, %v3164
  %v3166 = vrot.slane %v2804, %v3165
  %v3167 = vlaneseq
  %v3168 = vshrl.u32 %v3167, 7
  %v3169 = vsub.s32 0, %v3168
  %v3170 = vrot.slane %v2818, %v3169
  %v3171 = vlaneseq
  %v3172 = vshrl.u32 %v3171, 7
  %v3173 = vsub.s32 1, %v3172
  %v3174 = vrot.slane %v2818, %v3173
  %v3175 = vlaneseq
  %v3176 = vshrl.u32 %v3175, 7
  %v3177 = vsub.s32 2, %v3176
  %v3178 = vrot.slane %v2818, %v3177
  %v3179 = vlaneseq
  %v3180 = vshrl.u32 %v3179, 7
  %v3181 = vsub.s32 3, %v3180
  %v3182 = vrot.slane %v2818, %v3181
  %v3183 = vlaneseq
  %v3184 = vshrl.u32 %v3183, 7
  %v3185 = vsub.s32 0, %v3184
  %v3186 = vrot.slane %v2820, %v3185
  %v3187 = vlaneseq
  %v3188 = vshrl.u32 %v3187, 7
  %v3189 = vsub.s32 1, %v3188
  %v3190 = vrot.slane %v2820, %v3189
  %v3191 = vlaneseq
  %v3192 = vshrl.u32 %v3191, 7
  %v3193 = vsub.s32 2, %v3192
  %v3194 = vrot.slane %v2820, %v3193
  %v3195 = vlaneseq
  %v3196 = vshrl.u32 %v3195, 7
  %v3197 = vsub.s32 3, %v3196
  %v3198 = vrot.slane %v2820, %v3197
  %v3199 = vlaneseq
  %v3200 = vshrl.u32 %v3199, 7
  %v3201 = vsub.s32 0, %v3200
  %v3202 = vrot.slane %v2822, %v3201
  %v3203 = vlaneseq
  %v3204 = vshrl.u32 %v3203, 7
  %v3205 = vsub.s32 1, %v3204
  %v3206 = vrot.slane %v2822, %v3205
  %v3207 = vlaneseq
  %v3208 = vshrl.u32 %v3207, 7
  %v3209 = vsub.s32 2, %v3208
  %v3210 = vrot.slane %v2822, %v3209
  %v3211 = vlaneseq
  %v3212 = vshrl.u32 %v3211, 7
  %v3213 = vsub.s32 3, %v3212
  %v3214 = vrot.slane %v2822, %v3213
  %v3215 = vlaneseq
  %v3216 = vshrl.u32 %v3215, 7
  %v3217 = vsub.s32 0, %v3216
  %v3218 = vrot.slane %v2865, %v3217
  %v3219 = vlaneseq
  %v3220 = vshrl.u32 %v3219, 7
  %v3221 = vsub.s32 1, %v3220
  %v3222 = vrot.slane %v2865, %v3221
  %v3223 = vlaneseq
  %v3224 = vshrl.u32 %v3223, 7
  %v3225 = vsub.s32 2, %v3224
  %v3226 = vrot.slane %v2865, %v3225
  %v3227 = vlaneseq
  %v3228 = vshrl.u32 %v3227, 7
  %v3229 = vsub.s32 3, %v3228
  %v3230 = vrot.slane %v2865, %v3229
  %v3231 = vlaneseq
  %v3232 = vshrl.u32 %v3231, 7
  %v3233 = vsub.s32 0, %v3232
  %v3234 = vrot.slane %v2879, %v3233
  %v3235 = vlaneseq
  %v3236 = vshrl.u32 %v3235, 7
  %v3237 = vsub.s32 1, %v3236
  %v3238 = vrot.slane %v2879, %v3237
  %v3239 = vlaneseq
  %v3240 = vshrl.u32 %v3239, 7
  %v3241 = vsub.s32 2, %v3240
  %v3242 = vrot.slane %v2879, %v3241
  %v3243 = vlaneseq
  %v3244 = vshrl.u32 %v3243, 7
  %v3245 = vsub.s32 3, %v3244
  %v3246 = vrot.slane %v2879, %v3245
  %v3247 = vlaneseq
  %v3248 = vshrl.u32 %v3247, 7
  %v3249 = vsub.s32 0, %v3248
  %v3250 = vrot.slane %v2887, %v3249
  %v3251 = vlaneseq
  %v3252 = vshrl.u32 %v3251, 7
  %v3253 = vsub.s32 1, %v3252
  %v3254 = vrot.slane %v2887, %v3253
  %v3255 = vlaneseq
  %v3256 = vshrl.u32 %v3255, 7
  %v3257 = vsub.s32 2, %v3256
  %v3258 = vrot.slane %v2887, %v3257
  %v3259 = vlaneseq
  %v3260 = vshrl.u32 %v3259, 7
  %v3261 = vsub.s32 3, %v3260
  %v3262 = vrot.slane %v2887, %v3261
  %v3263 = vlaneseq
  %v3264 = vshrl.u32 %v3263, 7
  %v3265 = vsub.s32 0, %v3264
  %v3266 = vrot.slane %v2889, %v3265
  %v3267 = vlaneseq
  %v3268 = vshrl.u32 %v3267, 7
  %v3269 = vsub.s32 1, %v3268
  %v3270 = vrot.slane %v2889, %v3269
  %v3271 = vlaneseq
  %v3272 = vshrl.u32 %v3271, 7
  %v3273 = vsub.s32 2, %v3272
  %v3274 = vrot.slane %v2889, %v3273
  %v3275 = vlaneseq
  %v3276 = vshrl.u32 %v3275, 7
  %v3277 = vsub.s32 3, %v3276
  %v3278 = vrot.slane %v2889, %v3277
  %v3279 = vlaneseq
  %v3280 = vshrl.u32 %v3279, 7
  %v3281 = vsub.s32 0, %v3280
  %v3282 = vrot.slane %v2872, %v3281
  %v3283 = vlaneseq
  %v3284 = vshrl.u32 %v3283, 7
  %v3285 = vsub.s32 1, %v3284
  %v3286 = vrot.slane %v2872, %v3285
  %v3287 = vlaneseq
  %v3288 = vshrl.u32 %v3287, 7
  %v3289 = vsub.s32 2, %v3288
  %v3290 = vrot.slane %v2872, %v3289
  %v3291 = vlaneseq
  %v3292 = vshrl.u32 %v3291, 7
  %v3293 = vsub.s32 3, %v3292
  %v3294 = vrot.slane %v2872, %v3293
  %v3295 = vlaneseq
  %v3296 = vshrl.u32 %v3295, 7
  %v3297 = vsub.s32 0, %v3296
  %v3298 = vrot.slane %v2886, %v3297
  %v3299 = vlaneseq
  %v3300 = vshrl.u32 %v3299, 7
  %v3301 = vsub.s32 1, %v3300
  %v3302 = vrot.slane %v2886, %v3301
  %v3303 = vlaneseq
  %v3304 = vshrl.u32 %v3303, 7
  %v3305 = vsub.s32 2, %v3304
  %v3306 = vrot.slane %v2886, %v3305
  %v3307 = vlaneseq
  %v3308 = vshrl.u32 %v3307, 7
  %v3309 = vsub.s32 3, %v3308
  %v3310 = vrot.slane %v2886, %v3309
  %v3311 = vlaneseq
  %v3312 = vshrl.u32 %v3311, 7
  %v3313 = vsub.s32 0, %v3312
  %v3314 = vrot.slane %v2888, %v3313
  %v3315 = vlaneseq
  %v3316 = vshrl.u32 %v3315, 7
  %v3317 = vsub.s32 1, %v3316
  %v3318 = vrot.slane %v2888, %v3317
  %v3319 = vlaneseq
  %v3320 = vshrl.u32 %v3319, 7
  %v3321 = vsub.s32 2, %v3320
  %v3322 = vrot.slane %v2888, %v3321
  %v3323 = vlaneseq
  %v3324 = vshrl.u32 %v3323, 7
  %v3325 = vsub.s32 3, %v3324
  %v3326 = vrot.slane %v2888, %v3325
  %v3327 = vlaneseq
  %v3328 = vshrl.u32 %v3327, 7
  %v3329 = vsub.s32 0, %v3328
  %v3330 = vrot.slane %v2890, %v3329
  %v3331 = vlaneseq
  %v3332 = vshrl.u32 %v3331, 7
  %v3333 = vsub.s32 1, %v3332
  %v3334 = vrot.slane %v2890, %v3333
  %v3335 = vlaneseq
  %v3336 = vshrl.u32 %v3335, 7
  %v3337 = vsub.s32 2, %v3336
  %v3338 = vrot.slane %v2890, %v3337
  %v3339 = vlaneseq
  %v3340 = vshrl.u32 %v3339, 7
  %v3341 = vsub.s32 3, %v3340
  %v3342 = vrot.slane %v2890, %v3341
  %v3343 = vlaneseq
  %v3344 = vshrl.u32 %v3343, 7
  %v3345 = vsub.s32 0, %v3344
  %v3346 = vrot.slane %v2933, %v3345
  %v3347 = vlaneseq
  %v3348 = vshrl.u32 %v3347, 7
  %v3349 = vsub.s32 1, %v3348
  %v3350 = vrot.slane %v2933, %v3349
  %v3351 = vlaneseq
  %v3352 = vshrl.u32 %v3351, 7
  %v3353 = vsub.s32 2, %v3352
  %v3354 = vrot.slane %v2933, %v3353
  %v3355 = vlaneseq
  %v3356 = vshrl.u32 %v3355, 7
  %v3357 = vsub.s32 3, %v3356
  %v3358 = vrot.slane %v2933, %v3357
  %v3359 = vlaneseq
  %v3360 = vshrl.u32 %v3359, 7
  %v3361 = vsub.s32 0, %v3360
  %v3362 = vrot.slane %v2947, %v3361
  %v3363 = vlaneseq
  %v3364 = vshrl.u32 %v3363, 7
  %v3365 = vsub.s32 1, %v3364
  %v3366 = vrot.slane %v2947, %v3365
  %v3367 = vlaneseq
  %v3368 = vshrl.u32 %v3367, 7
  %v3369 = vsub.s32 2, %v3368
  %v3370 = vrot.slane %v2947, %v3369
  %v3371 = vlaneseq
  %v3372 = vshrl.u32 %v3371, 7
  %v3373 = vsub.s32 3, %v3372
  %v3374 = vrot.slane %v2947, %v3373
  %v3375 = vlaneseq
  %v3376 = vshrl.u32 %v3375, 7
  %v3377 = vsub.s32 0, %v3376
  %v3378 = vrot.slane %v2955, %v3377
  %v3379 = vlaneseq
  %v3380 = vshrl.u32 %v3379, 7
  %v3381 = vsub.s32 1, %v3380
  %v3382 = vrot.slane %v2955, %v3381
  %v3383 = vlaneseq
  %v3384 = vshrl.u32 %v3383, 7
  %v3385 = vsub.s32 2, %v3384
  %v3386 = vrot.slane %v2955, %v3385
  %v3387 = vlaneseq
  %v3388 = vshrl.u32 %v3387, 7
  %v3389 = vsub.s32 3, %v3388
  %v3390 = vrot.slane %v2955, %v3389
  %v3391 = vlaneseq
  %v3392 = vshrl.u32 %v3391, 7
  %v3393 = vsub.s32 0, %v3392
  %v3394 = vrot.slane %v2957, %v3393
  %v3395 = vlaneseq
  %v3396 = vshrl.u32 %v3395, 7
  %v3397 = vsub.s32 1, %v3396
  %v3398 = vrot.slane %v2957, %v3397
  %v3399 = vlaneseq
  %v3400 = vshrl.u32 %v3399, 7
  %v3401 = vsub.s32 2, %v3400
  %v3402 = vrot.slane %v2957, %v3401
  %v3403 = vlaneseq
  %v3404 = vshrl.u32 %v3403, 7
  %v3405 = vsub.s32 3, %v3404
  %v3406 = vrot.slane %v2957, %v3405
  %v3407 = vlaneseq
  %v3408 = vshrl.u32 %v3407, 7
  %v3409 = vsub.s32 0, %v3408
  %v3410 = vrot.slane %v2940, %v3409
  %v3411 = vlaneseq
  %v3412 = vshrl.u32 %v3411, 7
  %v3413 = vsub.s32 1, %v3412
  %v3414 = vrot.slane %v2940, %v3413
  %v3415 = vlaneseq
  %v3416 = vshrl.u32 %v3415, 7
  %v3417 = vsub.s32 2, %v3416
  %v3418 = vrot.slane %v2940, %v3417
  %v3419 = vlaneseq
  %v3420 = vshrl.u32 %v3419, 7
  %v3421 = vsub.s32 3, %v3420
  %v3422 = vrot.slane %v2940, %v3421
  %v3423 = vlaneseq
  %v3424 = vshrl.u32 %v3423, 7
  %v3425 = vsub.s32 0, %v3424
  %v3426 = vrot.slane %v2954, %v3425
  %v3427 = vlaneseq
  %v3428 = vshrl.u32 %v3427, 7
  %v3429 = vsub.s32 1, %v3428
  %v3430 = vrot.slane %v2954, %v3429
  %v3431 = vlaneseq
  %v3432 = vshrl.u32 %v3431, 7
  %v3433 = vsub.s32 2, %v3432
  %v3434 = vrot.slane %v2954, %v3433
  %v3435 = vlaneseq
  %v3436 = vshrl.u32 %v3435, 7
  %v3437 = vsub.s32 3, %v3436
  %v3438 = vrot.slane %v2954, %v3437
  %v3439 = vlaneseq
  %v3440 = vshrl.u32 %v3439, 7
  %v3441 = vsub.s32 0, %v3440
  %v3442 = vrot.slane %v2956, %v3441
  %v3443 = vlaneseq
  %v3444 = vshrl.u32 %v3443, 7
  %v3445 = vsub.s32 1, %v3444
  %v3446 = vrot.slane %v2956, %v3445
  %v3447 = vlaneseq
  %v3448 = vshrl.u32 %v3447, 7
  %v3449 = vsub.s32 2, %v3448
  %v3450 = vrot.slane %v2956, %v3449
  %v3451 = vlaneseq
  %v3452 = vshrl.u32 %v3451, 7
  %v3453 = vsub.s32 3, %v3452
  %v3454 = vrot.slane %v2956, %v3453
  %v3455 = vlaneseq
  %v3456 = vshrl.u32 %v3455, 7
  %v3457 = vsub.s32 0, %v3456
  %v3458 = vrot.slane %v2958, %v3457
  %v3459 = vlaneseq
  %v3460 = vshrl.u32 %v3459, 7
  %v3461 = vsub.s32 1, %v3460
  %v3462 = vrot.slane %v2958, %v3461
  %v3463 = vlaneseq
  %v3464 = vshrl.u32 %v3463, 7
  %v3465 = vsub.s32 2, %v3464
  %v3466 = vrot.slane %v2958, %v3465
  %v3467 = vlaneseq
  %v3468 = vshrl.u32 %v3467, 7
  %v3469 = vsub.s32 3, %v3468
  %v3470 = vrot.slane %v2958, %v3469
  %v3599 = vadd.f32 %v2320, %v2962
  %v3600 = vadd.f32 %v2322, %v2966
  %v3601 = vadd.f32 %v2513, %v2970
  %v3602 = vadd.f32 %v2515, %v2974
  %v3603 = vadd.f32 %v2324, %v2978
  %v3604 = vadd.f32 %v2326, %v2982
  %v3605 = vadd.f32 %v2517, %v2986
  %v3606 = vadd.f32 %v2519, %v2990
  %v3607 = vadd.f32 %v2330, %v2994
  %v3608 = vadd.f32 %v2332, %v2998
  %v3609 = vadd.f32 %v2523, %v3002
  %v3610 = vadd.f32 %v2525, %v3006
  %v3611 = vadd.f32 %v2334, %v3010
  %v3612 = vadd.f32 %v2336, %v3014
  %v3613 = vadd.f32 %v2527, %v3018
  %v3614 = vadd.f32 %v2529, %v3022
  %v3615 = vadd.f32 %v2340, %v3026
  %v3616 = vadd.f32 %v2342, %v3030
  %v3617 = vadd.f32 %v2533, %v3034
  %v3618 = vadd.f32 %v2535, %v3038
  %v3619 = vadd.f32 %v2344, %v3042
  %v3620 = vadd.f32 %v2346, %v3046
  %v3621 = vadd.f32 %v2537, %v3050
  %v3622 = vadd.f32 %v2539, %v3054
  %v3623 = vadd.f32 %v2350, %v3058
  %v3624 = vadd.f32 %v2352, %v3062
  %v3625 = vadd.f32 %v2543, %v3066
  %v3626 = vadd.f32 %v2545, %v3070
  %v3627 = vadd.f32 %v2354, %v3074
  %v3628 = vadd.f32 %v2356, %v3078
  %v3629 = vadd.f32 %v2547, %v3082
  %v3630 = vadd.f32 %v2549, %v3086
  %v3631 = vadd.f32 %v2360, %v3090
  %v3632 = vadd.f32 %v2362, %v3094
  %v3633 = vadd.f32 %v2553, %v3098
  %v3634 = vadd.f32 %v2555, %v3102
  %v3635 = vadd.f32 %v2364, %v3106
  %v3636 = vadd.f32 %v2366, %v3110
  %v3637 = vadd.f32 %v2557, %v3114
  %v3638 = vadd.f32 %v2559, %v3118
  %v3639 = vadd.f32 %v2370, %v3122
  %v3640 = vadd.f32 %v2372, %v3126
  %v3641 = vadd.f32 %v2563, %v3130
  %v3642 = vadd.f32 %v2565, %v3134
  %v3643 = vadd.f32 %v2374, %v3138
  %v3644 = vadd.f32 %v2376, %v3142
  %v3645 = vadd.f32 %v2567, %v3146
  %v3646 = vadd.f32 %v2569, %v3150
  %v3647 = vadd.f32 %v2380, %v3154
  %v3648 = vadd.f32 %v2382, %v3158
  %v3649 = vadd.f32 %v2573, %v3162
  %v3650 = vadd.f32 %v2575, %v3166
  %v3651 = vadd.f32 %v2384, %v3170
  %v3652 = vadd.f32 %v2386, %v3174
  %v3653 = vadd.f32 %v2577, %v3178
  %v3654 = vadd.f32 %v2579, %v3182
  %v3655 = vadd.f32 %v2390, %v3186
  %v3656 = vadd.f32 %v2392, %v3190
  %v3657 = vadd.f32 %v2583, %v3194
  %v3658 = vadd.f32 %v2585, %v3198
  %v3659 = vadd.f32 %v2394, %v3202
  %v3660 = vadd.f32 %v2396, %v3206
  %v3661 = vadd.f32 %v2587, %v3210
  %v3662 = vadd.f32 %v2589, %v3214
  %v3663 = vadd.f32 %v2400, %v3218
  %v3664 = vadd.f32 %v2402, %v3222
  %v3665 = vadd.f32 %v2593, %v3226
  %v3666 = vadd.f32 %v2595, %v3230
  %v3667 = vadd.f32 %v2404, %v3234
  %v3668 = vadd.f32 %v2406, %v3238
  %v3669 = vadd.f32 %v2597, %v3242
  %v3670 = vadd.f32 %v2599, %v3246
  %v3671 = vadd.f32 %v2410, %v3250
  %v3672 = vadd.f32 %v2412, %v3254
  %v3673 = vadd.f32 %v2603, %v3258
  %v3674 = vadd.f32 %v2605, %v3262
  %v3675 = vadd.f32 %v2414, %v3266
  %v3676 = vadd.f32 %v2416, %v3270
  %v3677 = vadd.f32 %v2607, %v3274
  %v3678 = vadd.f32 %v2609, %v3278
  %v3679 = vadd.f32 %v2420, %v3282
  %v3680 = vadd.f32 %v2422, %v3286
  %v3681 = vadd.f32 %v2613, %v3290
  %v3682 = vadd.f32 %v2615, %v3294
  %v3683 = vadd.f32 %v2424, %v3298
  %v3684 = vadd.f32 %v2426, %v3302
  %v3685 = vadd.f32 %v2617, %v3306
  %v3686 = vadd.f32 %v2619, %v3310
  %v3687 = vadd.f32 %v2430, %v3314
  %v3688 = vadd.f32 %v2432, %v3318
  %v3689 = vadd.f32 %v2623, %v3322
  %v3690 = vadd.f32 %v2625, %v3326
  %v3691 = vadd.f32 %v2434, %v3330
  %v3692 = vadd.f32 %v2436, %v3334
  %v3693 = vadd.f32 %v2627, %v3338
  %v3694 = vadd.f32 %v2629, %v3342
  %v3695 = vadd.f32 %v2440, %v3346
  %v3696 = vadd.f32 %v2442, %v3350
  %v3697 = vadd.f32 %v2633, %v3354
  %v3698 = vadd.f32 %v2635, %v3358
  %v3699 = vadd.f32 %v2444, %v3362
  %v3700 = vadd.f32 %v2446, %v3366
  %v3701 = vadd.f32 %v2637, %v3370
  %v3702 = vadd.f32 %v2639, %v3374
  %v3703 = vadd.f32 %v2450, %v3378
  %v3704 = vadd.f32 %v2452, %v3382
  %v3705 = vadd.f32 %v2643, %v3386
  %v3706 = vadd.f32 %v2645, %v3390
  %v3707 = vadd.f32 %v2454, %v3394
  %v3708 = vadd.f32 %v2456, %v3398
  %v3709 = vadd.f32 %v2647, %v3402
  %v3710 = vadd.f32 %v2649, %v3406
  %v3711 = vadd.f32 %v2460, %v3410
  %v3712 = vadd.f32 %v2462, %v3414
  %v3713 = vadd.f32 %v2653, %v3418
  %v3714 = vadd.f32 %v2655, %v3422
  %v3715 = vadd.f32 %v2464, %v3426
  %v3716 = vadd.f32 %v2466, %v3430
  %v3717 = vadd.f32 %v2657, %v3434
  %v3718 = vadd.f32 %v2659, %v3438
  %v3719 = vadd.f32 %v2470, %v3442
  %v3720 = vadd.f32 %v2472, %v3446
  %v3721 = vadd.f32 %v2663, %v3450
  %v3722 = vadd.f32 %v2665, %v3454
  %v3723 = vadd.f32 %v2474, %v3458
  %v3724 = vadd.f32 %v2476, %v3462
  %v3725 = vadd.f32 %v2667, %v3466
  %v3726 = vadd.f32 %v2669, %v3470
  %v3727 = vld [vmem:[%s8] sm:$0xf]
  %v3729 = vlaneseq
  %v3730 = vshrl.u32 %v3729, 7
  %v3731 = vsub.s32 0, %v3730
  %v3732 = vrot.slane %v3727, %v3731
  %v3733 = vlaneseq
  %v3734 = vshrl.u32 %v3733, 7
  %v3735 = vsub.s32 1, %v3734
  %v3736 = vrot.slane %v3727, %v3735
  %v3737 = vlaneseq
  %v3738 = vshrl.u32 %v3737, 7
  %v3739 = vsub.s32 2, %v3738
  %v3740 = vrot.slane %v3727, %v3739
  %v3741 = vlaneseq
  %v3742 = vshrl.u32 %v3741, 7
  %v3743 = vsub.s32 3, %v3742
  %v3744 = vrot.slane %v3727, %v3743
  %v3749 = vmul.f32 %v3599, %v3732
  %v3750 = vmul.f32 %v3600, %v3736
  %v3751 = vmul.f32 %v3601, %v3740
  %v3752 = vmul.f32 %v3602, %v3744
  %v3753 = vmul.f32 %v3603, %v3732
  %v3754 = vmul.f32 %v3604, %v3736
  %v3755 = vmul.f32 %v3605, %v3740
  %v3756 = vmul.f32 %v3606, %v3744
  %v3757 = vmul.f32 %v3607, %v3732
  %v3758 = vmul.f32 %v3608, %v3736
  %v3759 = vmul.f32 %v3609, %v3740
  %v3760 = vmul.f32 %v3610, %v3744
  %v3761 = vmul.f32 %v3611, %v3732
  %v3762 = vmul.f32 %v3612, %v3736
  %v3763 = vmul.f32 %v3613, %v3740
  %v3764 = vmul.f32 %v3614, %v3744
  %v3765 = vmul.f32 %v3615, %v3732
  %v3766 = vmul.f32 %v3616, %v3736
  %v3767 = vmul.f32 %v3617, %v3740
  %v3768 = vmul.f32 %v3618, %v3744
  %v3769 = vmul.f32 %v3619, %v3732
  %v3770 = vmul.f32 %v3620, %v3736
  %v3771 = vmul.f32 %v3621, %v3740
  %v3772 = vmul.f32 %v3622, %v3744
  %v3773 = vmul.f32 %v3623, %v3732
  %v3774 = vmul.f32 %v3624, %v3736
  %v3775 = vmul.f32 %v3625, %v3740
  %v3776 = vmul.f32 %v3626, %v3744
  %v3777 = vmul.f32 %v3627, %v3732
  %v3778 = vmul.f32 %v3628, %v3736
  %v3779 = vmul.f32 %v3629, %v3740
  %v3780 = vmul.f32 %v3630, %v3744
  %v3781 = vmul.f32 %v3631, %v3732
  %v3782 = vmul.f32 %v3632, %v3736
  %v3783 = vmul.f32 %v3633, %v3740
  %v3784 = vmul.f32 %v3634, %v3744
  %v3785 = vmul.f32 %v3635, %v3732
  %v3786 = vmul.f32 %v3636, %v3736
  %v3787 = vmul.f32 %v3637, %v3740
  %v3788 = vmul.f32 %v3638, %v3744
  %v3789 = vmul.f32 %v3639, %v3732
  %v3790 = vmul.f32 %v3640, %v3736
  %v3791 = vmul.f32 %v3641, %v3740
  %v3792 = vmul.f32 %v3642, %v3744
  %v3793 = vmul.f32 %v3643, %v3732
  %v3794 = vmul.f32 %v3644, %v3736
  %v3795 = vmul.f32 %v3645, %v3740
  %v3796 = vmul.f32 %v3646, %v3744
  %v3797 = vmul.f32 %v3647, %v3732
  %v3798 = vmul.f32 %v3648, %v3736
  %v3799 = vmul.f32 %v3649, %v3740
  %v3800 = vmul.f32 %v3650, %v3744
  %v3801 = vmul.f32 %v3651, %v3732
  %v3802 = vmul.f32 %v3652, %v3736
  %v3803 = vmul.f32 %v3653, %v3740
  %v3804 = vmul.f32 %v3654, %v3744
  %v3805 = vmul.f32 %v3655, %v3732
  %v3806 = vmul.f32 %v3656, %v3736
  %v3807 = vmul.f32 %v3657, %v3740
  %v3808 = vmul.f32 %v3658, %v3744
  %v3809 = vmul.f32 %v3659, %v3732
  %v3810 = vmul.f32 %v3660, %v3736
  %v3811 = vmul.f32 %v3661, %v3740
  %v3812 = vmul.f32 %v3662, %v3744
  %v3813 = vmul.f32 %v3663, %v3732
  %v3814 = vmul.f32 %v3664, %v3736
  %v3815 = vmul.f32 %v3665, %v3740
  %v3816 = vmul.f32 %v3666, %v3744
  %v3817 = vmul.f32 %v3667, %v3732
  %v3818 = vmul.f32 %v3668, %v3736
  %v3819 = vmul.f32 %v3669, %v3740
  %v3820 = vmul.f32 %v3670, %v3744
  %v3821 = vmul.f32 %v3671, %v3732
  %v3822 = vmul.f32 %v3672, %v3736
  %v3823 = vmul.f32 %v3673, %v3740
  %v3824 = vmul.f32 %v3674, %v3744
  %v3825 = vmul.f32 %v3675, %v3732
  %v3826 = vmul.f32 %v3676, %v3736
  %v3827 = vmul.f32 %v3677, %v3740
  %v3828 = vmul.f32 %v3678, %v3744
  %v3829 = vmul.f32 %v3679, %v3732
  %v3830 = vmul.f32 %v3680, %v3736
  %v3831 = vmul.f32 %v3681, %v3740
  %v3832 = vmul.f32 %v3682, %v3744
  %v3833 = vmul.f32 %v3683, %v3732
  %v3834 = vmul.f32 %v3684, %v3736
  %v3835 = vmul.f32 %v3685, %v3740
  %v3836 = vmul.f32 %v3686, %v3744
  %v3837 = vmul.f32 %v3687, %v3732
  %v3838 = vmul.f32 %v3688, %v3736
  %v3839 = vmul.f32 %v3689, %v3740
  %v3840 = vmul.f32 %v3690, %v3744
  %v3841 = vmul.f32 %v3691, %v3732
  %v3842 = vmul.f32 %v3692, %v3736
  %v3843 = vmul.f32 %v3693, %v3740
  %v3844 = vmul.f32 %v3694, %v3744
  %v3845 = vmul.f32 %v3695, %v3732
  %v3846 = vmul.f32 %v3696, %v3736
  %v3847 = vmul.f32 %v3697, %v3740
  %v3848 = vmul.f32 %v3698, %v3744
  %v3849 = vmul.f32 %v3699, %v3732
  %v3850 = vmul.f32 %v3700, %v3736
  %v3851 = vmul.f32 %v3701, %v3740
  %v3852 = vmul.f32 %v3702, %v3744
  %v3853 = vmul.f32 %v3703, %v3732
  %v3854 = vmul.f32 %v3704, %v3736
  %v3855 = vmul.f32 %v3705, %v3740
  %v3856 = vmul.f32 %v3706, %v3744
  %v3857 = vmul.f32 %v3707, %v3732
  %v3858 = vmul.f32 %v3708, %v3736
  %v3859 = vmul.f32 %v3709, %v3740
  %v3860 = vmul.f32 %v3710, %v3744
  %v3861 = vmul.f32 %v3711, %v3732
  %v3862 = vmul.f32 %v3712, %v3736
  %v3863 = vmul.f32 %v3713, %v3740
  %v3864 = vmul.f32 %v3714, %v3744
  %v3865 = vmul.f32 %v3715, %v3732
  %v3866 = vmul.f32 %v3716, %v3736
  %v3867 = vmul.f32 %v3717, %v3740
  %v3868 = vmul.f32 %v3718, %v3744
  %v3869 = vmul.f32 %v3719, %v3732
  %v3870 = vmul.f32 %v3720, %v3736
  %v3871 = vmul.f32 %v3721, %v3740
  %v3872 = vmul.f32 %v3722, %v3744
  %v3873 = vmul.f32 %v3723, %v3732
  %v3874 = vmul.f32 %v3724, %v3736
  %v3875 = vmul.f32 %v3725, %v3740
  %v3876 = vmul.f32 %v3726, %v3744
  %v3877 = vld [vmem:[%s9] sm:$0xf]
  %v3879 = vlaneseq
  %v3880 = vshrl.u32 %v3879, 7
  %v3881 = vsub.s32 0, %v3880
  %v3882 = vrot.slane %v3877, %v3881
  %v3883 = vlaneseq
  %v3884 = vshrl.u32 %v3883, 7
  %v3885 = vsub.s32 1, %v3884
  %v3886 = vrot.slane %v3877, %v3885
  %v3887 = vlaneseq
  %v3888 = vshrl.u32 %v3887, 7
  %v3889 = vsub.s32 2, %v3888
  %v3890 = vrot.slane %v3877, %v3889
  %v3891 = vlaneseq
  %v3892 = vshrl.u32 %v3891, 7
  %v3893 = vsub.s32 3, %v3892
  %v3894 = vrot.slane %v3877, %v3893
  %v3899 = vadd.f32 %v3749, %v3882
  %v3900 = vadd.f32 %v3750, %v3886
  %v3901 = vadd.f32 %v3751, %v3890
  %v3902 = vadd.f32 %v3752, %v3894
  %v3903 = vadd.f32 %v3753, %v3882
  %v3904 = vadd.f32 %v3754, %v3886
  %v3905 = vadd.f32 %v3755, %v3890
  %v3906 = vadd.f32 %v3756, %v3894
  %v3907 = vadd.f32 %v3757, %v3882
  %v3908 = vadd.f32 %v3758, %v3886
  %v3909 = vadd.f32 %v3759, %v3890
  %v3910 = vadd.f32 %v3760, %v3894
  %v3911 = vadd.f32 %v3761, %v3882
  %v3912 = vadd.f32 %v3762, %v3886
  %v3913 = vadd.f32 %v3763, %v3890
  %v3914 = vadd.f32 %v3764, %v3894
  %v3915 = vadd.f32 %v3765, %v3882
  %v3916 = vadd.f32 %v3766, %v3886
  %v3917 = vadd.f32 %v3767, %v3890
  %v3918 = vadd.f32 %v3768, %v3894
  %v3919 = vadd.f32 %v3769, %v3882
  %v3920 = vadd.f32 %v3770, %v3886
  %v3921 = vadd.f32 %v3771, %v3890
  %v3922 = vadd.f32 %v3772, %v3894
  %v3923 = vadd.f32 %v3773, %v3882
  %v3924 = vadd.f32 %v3774, %v3886
  %v3925 = vadd.f32 %v3775, %v3890
  %v3926 = vadd.f32 %v3776, %v3894
  %v3927 = vadd.f32 %v3777, %v3882
  %v3928 = vadd.f32 %v3778, %v3886
  %v3929 = vadd.f32 %v3779, %v3890
  %v3930 = vadd.f32 %v3780, %v3894
  %v3931 = vadd.f32 %v3781, %v3882
  %v3932 = vadd.f32 %v3782, %v3886
  %v3933 = vadd.f32 %v3783, %v3890
  %v3934 = vadd.f32 %v3784, %v3894
  %v3935 = vadd.f32 %v3785, %v3882
  %v3936 = vadd.f32 %v3786, %v3886
  %v3937 = vadd.f32 %v3787, %v3890
  %v3938 = vadd.f32 %v3788, %v3894
  %v3939 = vadd.f32 %v3789, %v3882
  %v3940 = vadd.f32 %v3790, %v3886
  %v3941 = vadd.f32 %v3791, %v3890
  %v3942 = vadd.f32 %v3792, %v3894
  %v3943 = vadd.f32 %v3793, %v3882
  %v3944 = vadd.f32 %v3794, %v3886
  %v3945 = vadd.f32 %v3795, %v3890
  %v3946 = vadd.f32 %v3796, %v3894
  %v3947 = vadd.f32 %v3797, %v3882
  %v3948 = vadd.f32 %v3798, %v3886
  %v3949 = vadd.f32 %v3799, %v3890
  %v3950 = vadd.f32 %v3800, %v3894
  %v3951 = vadd.f32 %v3801, %v3882
  %v3952 = vadd.f32 %v3802, %v3886
  %v3953 = vadd.f32 %v3803, %v3890
  %v3954 = vadd.f32 %v3804, %v3894
  %v3955 = vadd.f32 %v3805, %v3882
  %v3956 = vadd.f32 %v3806, %v3886
  %v3957 = vadd.f32 %v3807, %v3890
  %v3958 = vadd.f32 %v3808, %v3894
  %v3959 = vadd.f32 %v3809, %v3882
  %v3960 = vadd.f32 %v3810, %v3886
  %v3961 = vadd.f32 %v3811, %v3890
  %v3962 = vadd.f32 %v3812, %v3894
  %v3963 = vadd.f32 %v3813, %v3882
  %v3964 = vadd.f32 %v3814, %v3886
  %v3965 = vadd.f32 %v3815, %v3890
  %v3966 = vadd.f32 %v3816, %v3894
  %v3967 = vadd.f32 %v3817, %v3882
  %v3968 = vadd.f32 %v3818, %v3886
  %v3969 = vadd.f32 %v3819, %v3890
  %v3970 = vadd.f32 %v3820, %v3894
  %v3971 = vadd.f32 %v3821, %v3882
  %v3972 = vadd.f32 %v3822, %v3886
  %v3973 = vadd.f32 %v3823, %v3890
  %v3974 = vadd.f32 %v3824, %v3894
  %v3975 = vadd.f32 %v3825, %v3882
  %v3976 = vadd.f32 %v3826, %v3886
  %v3977 = vadd.f32 %v3827, %v3890
  %v3978 = vadd.f32 %v3828, %v3894
  %v3979 = vadd.f32 %v3829, %v3882
  %v3980 = vadd.f32 %v3830, %v3886
  %v3981 = vadd.f32 %v3831, %v3890
  %v3982 = vadd.f32 %v3832, %v3894
  %v3983 = vadd.f32 %v3833, %v3882
  %v3984 = vadd.f32 %v3834, %v3886
  %v3985 = vadd.f32 %v3835, %v3890
  %v3986 = vadd.f32 %v3836, %v3894
  %v3987 = vadd.f32 %v3837, %v3882
  %v3988 = vadd.f32 %v3838, %v3886
  %v3989 = vadd.f32 %v3839, %v3890
  %v3990 = vadd.f32 %v3840, %v3894
  %v3991 = vadd.f32 %v3841, %v3882
  %v3992 = vadd.f32 %v3842, %v3886
  %v3993 = vadd.f32 %v3843, %v3890
  %v3994 = vadd.f32 %v3844, %v3894
  %v3995 = vadd.f32 %v3845, %v3882
  %v3996 = vadd.f32 %v3846, %v3886
  %v3997 = vadd.f32 %v3847, %v3890
  %v3998 = vadd.f32 %v3848, %v3894
  %v3999 = vadd.f32 %v3849, %v3882
  %v4000 = vadd.f32 %v3850, %v3886
  %v4001 = vadd.f32 %v3851, %v3890
  %v4002 = vadd.f32 %v3852, %v3894
  %v4003 = vadd.f32 %v3853, %v3882
  %v4004 = vadd.f32 %v3854, %v3886
  %v4005 = vadd.f32 %v3855, %v3890
  %v4006 = vadd.f32 %v3856, %v3894
  %v4007 = vadd.f32 %v3857, %v3882
  %v4008 = vadd.f32 %v3858, %v3886
  %v4009 = vadd.f32 %v3859, %v3890
  %v4010 = vadd.f32 %v3860, %v3894
  %v4011 = vadd.f32 %v3861, %v3882
  %v4012 = vadd.f32 %v3862, %v3886
  %v4013 = vadd.f32 %v3863, %v3890
  %v4014 = vadd.f32 %v3864, %v3894
  %v4015 = vadd.f32 %v3865, %v3882
  %v4016 = vadd.f32 %v3866, %v3886
  %v4017 = vadd.f32 %v3867, %v3890
  %v4018 = vadd.f32 %v3868, %v3894
  %v4019 = vadd.f32 %v3869, %v3882
  %v4020 = vadd.f32 %v3870, %v3886
  %v4021 = vadd.f32 %v3871, %v3890
  %v4022 = vadd.f32 %v3872, %v3894
  %v4023 = vadd.f32 %v3873, %v3882
  %v4024 = vadd.f32 %v3874, %v3886
  %v4025 = vadd.f32 %v3875, %v3890
  %v4026 = vadd.f32 %v3876, %v3894
  %v4027 = vmax.f32 %v3899, 0.0
  %v4028 = vmax.f32 %v3900, 0.0
  %v4029 = vmax.f32 %v3901, 0.0
  %v4030 = vmax.f32 %v3902, 0.0
  %v4031 = vmax.f32 %v3903, 0.0
  %v4032 = vmax.f32 %v3904, 0.0
  %v4033 = vmax.f32 %v3905, 0.0
  %v4034 = vmax.f32 %v3906, 0.0
  %v4035 = vmax.f32 %v3907, 0.0
  %v4036 = vmax.f32 %v3908, 0.0
  %v4037 = vmax.f32 %v3909, 0.0
  %v4038 = vmax.f32 %v3910, 0.0
  %v4039 = vmax.f32 %v3911, 0.0
  %v4040 = vmax.f32 %v3912, 0.0
  %v4041 = vmax.f32 %v3913, 0.0
  %v4042 = vmax.f32 %v3914, 0.0
  %v4043 = vmax.f32 %v3915, 0.0
  %v4044 = vmax.f32 %v3916, 0.0
  %v4045 = vmax.f32 %v3917, 0.0
  %v4046 = vmax.f32 %v3918, 0.0
  %v4047 = vmax.f32 %v3919, 0.0
  %v4048 = vmax.f32 %v3920, 0.0
  %v4049 = vmax.f32 %v3921, 0.0
  %v4050 = vmax.f32 %v3922, 0.0
  %v4051 = vmax.f32 %v3923, 0.0
  %v4052 = vmax.f32 %v3924, 0.0
  %v4053 = vmax.f32 %v3925, 0.0
  %v4054 = vmax.f32 %v3926, 0.0
  %v4055 = vmax.f32 %v3927, 0.0
  %v4056 = vmax.f32 %v3928, 0.0
  %v4057 = vmax.f32 %v3929, 0.0
  %v4058 = vmax.f32 %v3930, 0.0
  %v4059 = vmax.f32 %v3931, 0.0
  %v4060 = vmax.f32 %v3932, 0.0
  %v4061 = vmax.f32 %v3933, 0.0
  %v4062 = vmax.f32 %v3934, 0.0
  %v4063 = vmax.f32 %v3935, 0.0
  %v4064 = vmax.f32 %v3936, 0.0
  %v4065 = vmax.f32 %v3937, 0.0
  %v4066 = vmax.f32 %v3938, 0.0
  %v4067 = vmax.f32 %v3939, 0.0
  %v4068 = vmax.f32 %v3940, 0.0
  %v4069 = vmax.f32 %v3941, 0.0
  %v4070 = vmax.f32 %v3942, 0.0
  %v4071 = vmax.f32 %v3943, 0.0
  %v4072 = vmax.f32 %v3944, 0.0
  %v4073 = vmax.f32 %v3945, 0.0
  %v4074 = vmax.f32 %v3946, 0.0
  %v4075 = vmax.f32 %v3947, 0.0
  %v4076 = vmax.f32 %v3948, 0.0
  %v4077 = vmax.f32 %v3949, 0.0
  %v4078 = vmax.f32 %v3950, 0.0
  %v4079 = vmax.f32 %v3951, 0.0
  %v4080 = vmax.f32 %v3952, 0.0
  %v4081 = vmax.f32 %v3953, 0.0
  %v4082 = vmax.f32 %v3954, 0.0
  %v4083 = vmax.f32 %v3955, 0.0
  %v4084 = vmax.f32 %v3956, 0.0
  %v4085 = vmax.f32 %v3957, 0.0
  %v4086 = vmax.f32 %v3958, 0.0
  %v4087 = vmax.f32 %v3959, 0.0
  %v4088 = vmax.f32 %v3960, 0.0
  %v4089 = vmax.f32 %v3961, 0.0
  %v4090 = vmax.f32 %v3962, 0.0
  %v4091 = vmax.f32 %v3963, 0.0
  %v4092 = vmax.f32 %v3964, 0.0
  %v4093 = vmax.f32 %v3965, 0.0
  %v4094 = vmax.f32 %v3966, 0.0
  %v4095 = vmax.f32 %v3967, 0.0
  %v4096 = vmax.f32 %v3968, 0.0
  %v4097 = vmax.f32 %v3969, 0.0
  %v4098 = vmax.f32 %v3970, 0.0
  %v4099 = vmax.f32 %v3971, 0.0
  %v4100 = vmax.f32 %v3972, 0.0
  %v4101 = vmax.f32 %v3973, 0.0
  %v4102 = vmax.f32 %v3974, 0.0
  %v4103 = vmax.f32 %v3975, 0.0
  %v4104 = vmax.f32 %v3976, 0.0
  %v4105 = vmax.f32 %v3977, 0.0
  %v4106 = vmax.f32 %v3978, 0.0
  %v4107 = vmax.f32 %v3979, 0.0
  %v4108 = vmax.f32 %v3980, 0.0
  %v4109 = vmax.f32 %v3981, 0.0
  %v4110 = vmax.f32 %v3982, 0.0
  %v4111 = vmax.f32 %v3983, 0.0
  %v4112 = vmax.f32 %v3984, 0.0
  %v4113 = vmax.f32 %v3985, 0.0
  %v4114 = vmax.f32 %v3986, 0.0
  %v4115 = vmax.f32 %v3987, 0.0
  %v4116 = vmax.f32 %v3988, 0.0
  %v4117 = vmax.f32 %v3989, 0.0
  %v4118 = vmax.f32 %v3990, 0.0
  %v4119 = vmax.f32 %v3991, 0.0
  %v4120 = vmax.f32 %v3992, 0.0
  %v4121 = vmax.f32 %v3993, 0.0
  %v4122 = vmax.f32 %v3994, 0.0
  %v4123 = vmax.f32 %v3995, 0.0
  %v4124 = vmax.f32 %v3996, 0.0
  %v4125 = vmax.f32 %v3997, 0.0
  %v4126 = vmax.f32 %v3998, 0.0
  %v4127 = vmax.f32 %v3999, 0.0
  %v4128 = vmax.f32 %v4000, 0.0
  %v4129 = vmax.f32 %v4001, 0.0
  %v4130 = vmax.f32 %v4002, 0.0
  %v4131 = vmax.f32 %v4003, 0.0
  %v4132 = vmax.f32 %v4004, 0.0
  %v4133 = vmax.f32 %v4005, 0.0
  %v4134 = vmax.f32 %v4006, 0.0
  %v4135 = vmax.f32 %v4007, 0.0
  %v4136 = vmax.f32 %v4008, 0.0
  %v4137 = vmax.f32 %v4009, 0.0
  %v4138 = vmax.f32 %v4010, 0.0
  %v4139 = vmax.f32 %v4011, 0.0
  %v4140 = vmax.f32 %v4012, 0.0
  %v4141 = vmax.f32 %v4013, 0.0
  %v4142 = vmax.f32 %v4014, 0.0
  %v4143 = vmax.f32 %v4015, 0.0
  %v4144 = vmax.f32 %v4016, 0.0
  %v4145 = vmax.f32 %v4017, 0.0
  %v4146 = vmax.f32 %v4018, 0.0
  %v4147 = vmax.f32 %v4019, 0.0
  %v4148 = vmax.f32 %v4020, 0.0
  %v4149 = vmax.f32 %v4021, 0.0
  %v4150 = vmax.f32 %v4022, 0.0
  %v4151 = vmax.f32 %v4023, 0.0
  %v4152 = vmax.f32 %v4024, 0.0
  %v4153 = vmax.f32 %v4025, 0.0
  %v4154 = vmax.f32 %v4026, 0.0
  %v4155 = vpack.c.bf16 %v4031, %v4027
  %v4156 = vpack.c.bf16 %v4032, %v4028
  %v4157 = vpack.c.bf16 %v4033, %v4029
  %v4158 = vpack.c.bf16 %v4034, %v4030
  %v4159 = vpack.c.bf16 %v4039, %v4035
  %v4160 = vpack.c.bf16 %v4040, %v4036
  %v4161 = vpack.c.bf16 %v4041, %v4037
  %v4162 = vpack.c.bf16 %v4042, %v4038
  %v4163 = vpack.c.bf16 %v4047, %v4043
  %v4164 = vpack.c.bf16 %v4048, %v4044
  %v4165 = vpack.c.bf16 %v4049, %v4045
  %v4166 = vpack.c.bf16 %v4050, %v4046
  %v4167 = vpack.c.bf16 %v4055, %v4051
  %v4168 = vpack.c.bf16 %v4056, %v4052
  %v4169 = vpack.c.bf16 %v4057, %v4053
  %v4170 = vpack.c.bf16 %v4058, %v4054
  %v4171 = vpack.c.bf16 %v4063, %v4059
  %v4172 = vpack.c.bf16 %v4064, %v4060
  %v4173 = vpack.c.bf16 %v4065, %v4061
  %v4174 = vpack.c.bf16 %v4066, %v4062
  %v4175 = vpack.c.bf16 %v4071, %v4067
  %v4176 = vpack.c.bf16 %v4072, %v4068
  %v4177 = vpack.c.bf16 %v4073, %v4069
  %v4178 = vpack.c.bf16 %v4074, %v4070
  %v4179 = vpack.c.bf16 %v4079, %v4075
  %v4180 = vpack.c.bf16 %v4080, %v4076
  %v4181 = vpack.c.bf16 %v4081, %v4077
  %v4182 = vpack.c.bf16 %v4082, %v4078
  %v4183 = vpack.c.bf16 %v4087, %v4083
  %v4184 = vpack.c.bf16 %v4088, %v4084
  %v4185 = vpack.c.bf16 %v4089, %v4085
  %v4186 = vpack.c.bf16 %v4090, %v4086
  %v4187 = vpack.c.bf16 %v4095, %v4091
  %v4188 = vpack.c.bf16 %v4096, %v4092
  %v4189 = vpack.c.bf16 %v4097, %v4093
  %v4190 = vpack.c.bf16 %v4098, %v4094
  %v4191 = vpack.c.bf16 %v4103, %v4099
  %v4192 = vpack.c.bf16 %v4104, %v4100
  %v4193 = vpack.c.bf16 %v4105, %v4101
  %v4194 = vpack.c.bf16 %v4106, %v4102
  %v4195 = vpack.c.bf16 %v4111, %v4107
  %v4196 = vpack.c.bf16 %v4112, %v4108
  %v4197 = vpack.c.bf16 %v4113, %v4109
  %v4198 = vpack.c.bf16 %v4114, %v4110
  %v4199 = vpack.c.bf16 %v4119, %v4115
  %v4200 = vpack.c.bf16 %v4120, %v4116
  %v4201 = vpack.c.bf16 %v4121, %v4117
  %v4202 = vpack.c.bf16 %v4122, %v4118
  %v4203 = vpack.c.bf16 %v4127, %v4123
  %v4204 = vpack.c.bf16 %v4128, %v4124
  %v4205 = vpack.c.bf16 %v4129, %v4125
  %v4206 = vpack.c.bf16 %v4130, %v4126
  %v4207 = vpack.c.bf16 %v4135, %v4131
  %v4208 = vpack.c.bf16 %v4136, %v4132
  %v4209 = vpack.c.bf16 %v4137, %v4133
  %v4210 = vpack.c.bf16 %v4138, %v4134
  %v4211 = vpack.c.bf16 %v4143, %v4139
  %v4212 = vpack.c.bf16 %v4144, %v4140
  %v4213 = vpack.c.bf16 %v4145, %v4141
  %v4214 = vpack.c.bf16 %v4146, %v4142
  %v4215 = vpack.c.bf16 %v4151, %v4147
  %v4216 = vpack.c.bf16 %v4152, %v4148
  %v4217 = vpack.c.bf16 %v4153, %v4149
  %v4218 = vpack.c.bf16 %v4154, %v4150
  %v4219 = vld [vmem:[%s10] sm:$0xf]
  %v4220 = vld [vmem:[%s10 + $0x4] sm:$0xf]
  %v4221 = vld [vmem:[%s10 + $0x8] sm:$0xf]
  %v4222 = vld [vmem:[%s10 + $0xc] sm:$0xf]
  %v4223 = vld [vmem:[%s10 + $0x10] sm:$0xf]
  %v4224 = vld [vmem:[%s10 + $0x14] sm:$0xf]
  %v4225 = vld [vmem:[%s10 + $0x18] sm:$0xf]
  %v4226 = vld [vmem:[%s10 + $0x1c] sm:$0xf]
  %v4227 = vld [vmem:[%s10 + $0x20] sm:$0xf]
  %v4228 = vld [vmem:[%s10 + $0x24] sm:$0xf]
  %v4229 = vld [vmem:[%s10 + $0x28] sm:$0xf]
  %v4230 = vld [vmem:[%s10 + $0x2c] sm:$0xf]
  %v4231 = vld [vmem:[%s10 + $0x30] sm:$0xf]
  %v4232 = vld [vmem:[%s10 + $0x34] sm:$0xf]
  %v4233 = vld [vmem:[%s10 + $0x38] sm:$0xf]
  %v4234 = vld [vmem:[%s10 + $0x3c] sm:$0xf]
  %v4235 = vld [vmem:[%s10 + $0x40] sm:$0xf]
  %v4236 = vld [vmem:[%s10 + $0x44] sm:$0xf]
  %v4237 = vld [vmem:[%s10 + $0x48] sm:$0xf]
  %v4238 = vld [vmem:[%s10 + $0x4c] sm:$0xf]
  %v4239 = vld [vmem:[%s10 + $0x50] sm:$0xf]
  %v4240 = vld [vmem:[%s10 + $0x54] sm:$0xf]
  %v4241 = vld [vmem:[%s10 + $0x58] sm:$0xf]
  %v4242 = vld [vmem:[%s10 + $0x5c] sm:$0xf]
  %v4243 = vld [vmem:[%s10 + $0x60] sm:$0xf]
  %v4244 = vld [vmem:[%s10 + $0x64] sm:$0xf]
  %v4245 = vld [vmem:[%s10 + $0x68] sm:$0xf]
  %v4246 = vld [vmem:[%s10 + $0x6c] sm:$0xf]
  %v4247 = vld [vmem:[%s10 + $0x70] sm:$0xf]
  %v4248 = vld [vmem:[%s10 + $0x74] sm:$0xf]
  %v4249 = vld [vmem:[%s10 + $0x78] sm:$0xf]
  %v4250 = vld [vmem:[%s10 + $0x7c] sm:$0xf]
  %v4251 = vld [vmem:[%s10 + $0x80] sm:$0xf]
  %v4252 = vld [vmem:[%s10 + $0x84] sm:$0xf]
  %v4253 = vld [vmem:[%s10 + $0x88] sm:$0xf]
  %v4254 = vld [vmem:[%s10 + $0x8c] sm:$0xf]
  %v4255 = vld [vmem:[%s10 + $0x90] sm:$0xf]
  %v4256 = vld [vmem:[%s10 + $0x94] sm:$0xf]
  %v4257 = vld [vmem:[%s10 + $0x98] sm:$0xf]
  %v4258 = vld [vmem:[%s10 + $0x9c] sm:$0xf]
  %v4259 = vld [vmem:[%s10 + $0xa0] sm:$0xf]
  %v4260 = vld [vmem:[%s10 + $0xa4] sm:$0xf]
  %v4261 = vld [vmem:[%s10 + $0xa8] sm:$0xf]
  %v4262 = vld [vmem:[%s10 + $0xac] sm:$0xf]
  %v4263 = vld [vmem:[%s10 + $0xb0] sm:$0xf]
  %v4264 = vld [vmem:[%s10 + $0xb4] sm:$0xf]
  %v4265 = vld [vmem:[%s10 + $0xb8] sm:$0xf]
  %v4266 = vld [vmem:[%s10 + $0xbc] sm:$0xf]
  %v4267 = vld [vmem:[%s10 + $0xc0] sm:$0xf]
  %v4268 = vld [vmem:[%s10 + $0xc4] sm:$0xf]
  %v4269 = vld [vmem:[%s10 + $0xc8] sm:$0xf]
  %v4270 = vld [vmem:[%s10 + $0xcc] sm:$0xf]
  %v4271 = vld [vmem:[%s10 + $0xd0] sm:$0xf]
  %v4272 = vld [vmem:[%s10 + $0xd4] sm:$0xf]
  %v4273 = vld [vmem:[%s10 + $0xd8] sm:$0xf]
  %v4274 = vld [vmem:[%s10 + $0xdc] sm:$0xf]
  %v4275 = vld [vmem:[%s10 + $0xe0] sm:$0xf]
  %v4276 = vld [vmem:[%s10 + $0xe4] sm:$0xf]
  %v4277 = vld [vmem:[%s10 + $0xe8] sm:$0xf]
  %v4278 = vld [vmem:[%s10 + $0xec] sm:$0xf]
  %v4279 = vld [vmem:[%s10 + $0xf0] sm:$0xf]
  %v4280 = vld [vmem:[%s10 + $0xf4] sm:$0xf]
  %v4281 = vld [vmem:[%s10 + $0xf8] sm:$0xf]
  %v4282 = vld [vmem:[%s10 + $0xfc] sm:$0xf]
  %v4283 = vld [vmem:[%s11] sm:$0x1]
  %v4285 = vlaneseq
  %v4286 = vshrl.u32 %v4285, 7
  %v4287 = vsub.s32 0, %v4286
  %v4288 = vrot.slane %v4283, %v4287
  %v4354 = vunpack.c.l.b16 %v4219
  %v4355 = vunpack.c.l.b16 %v4220
  %v4356 = vunpack.c.l.b16 %v4221
  %v4357 = vunpack.c.l.b16 %v4222
  %v4358 = vunpack.c.l.b16 %v4223
  %v4359 = vunpack.c.l.b16 %v4224
  %v4360 = vunpack.c.l.b16 %v4225
  %v4361 = vunpack.c.l.b16 %v4226
  %v4362 = vunpack.c.l.b16 %v4227
  %v4363 = vunpack.c.l.b16 %v4228
  %v4364 = vunpack.c.l.b16 %v4229
  %v4365 = vunpack.c.l.b16 %v4230
  %v4366 = vunpack.c.l.b16 %v4231
  %v4367 = vunpack.c.l.b16 %v4232
  %v4368 = vunpack.c.l.b16 %v4233
  %v4369 = vunpack.c.l.b16 %v4234
  %v4370 = vunpack.c.l.b16 %v4235
  %v4371 = vunpack.c.l.b16 %v4236
  %v4372 = vunpack.c.l.b16 %v4237
  %v4373 = vunpack.c.l.b16 %v4238
  %v4374 = vunpack.c.l.b16 %v4239
  %v4375 = vunpack.c.l.b16 %v4240
  %v4376 = vunpack.c.l.b16 %v4241
  %v4377 = vunpack.c.l.b16 %v4242
  %v4378 = vunpack.c.l.b16 %v4243
  %v4379 = vunpack.c.l.b16 %v4244
  %v4380 = vunpack.c.l.b16 %v4245
  %v4381 = vunpack.c.l.b16 %v4246
  %v4382 = vunpack.c.l.b16 %v4247
  %v4383 = vunpack.c.l.b16 %v4248
  %v4384 = vunpack.c.l.b16 %v4249
  %v4385 = vunpack.c.l.b16 %v4250
  %v4386 = vunpack.c.l.b16 %v4251
  %v4387 = vunpack.c.l.b16 %v4252
  %v4388 = vunpack.c.l.b16 %v4253
  %v4389 = vunpack.c.l.b16 %v4254
  %v4390 = vunpack.c.l.b16 %v4255
  %v4391 = vunpack.c.l.b16 %v4256
  %v4392 = vunpack.c.l.b16 %v4257
  %v4393 = vunpack.c.l.b16 %v4258
  %v4394 = vunpack.c.l.b16 %v4259
  %v4395 = vunpack.c.l.b16 %v4260
  %v4396 = vunpack.c.l.b16 %v4261
  %v4397 = vunpack.c.l.b16 %v4262
  %v4398 = vunpack.c.l.b16 %v4263
  %v4399 = vunpack.c.l.b16 %v4264
  %v4400 = vunpack.c.l.b16 %v4265
  %v4401 = vunpack.c.l.b16 %v4266
  %v4402 = vunpack.c.l.b16 %v4267
  %v4403 = vunpack.c.l.b16 %v4268
  %v4404 = vunpack.c.l.b16 %v4269
  %v4405 = vunpack.c.l.b16 %v4270
  %v4406 = vunpack.c.l.b16 %v4271
  %v4407 = vunpack.c.l.b16 %v4272
  %v4408 = vunpack.c.l.b16 %v4273
  %v4409 = vunpack.c.l.b16 %v4274
  %v4410 = vunpack.c.l.b16 %v4275
  %v4411 = vunpack.c.l.b16 %v4276
  %v4412 = vunpack.c.l.b16 %v4277
  %v4413 = vunpack.c.l.b16 %v4278
  %v4414 = vunpack.c.l.b16 %v4279
  %v4415 = vunpack.c.l.b16 %v4280
  %v4416 = vunpack.c.l.b16 %v4281
  %v4417 = vunpack.c.l.b16 %v4282
  %v4418 = vpack.c.b16 %v4355, %v4354
  %v4419 = vpack.c.b16 %v4357, %v4356
  %v4420 = vpack.c.b16 %v4359, %v4358
  %v4421 = vpack.c.b16 %v4361, %v4360
  %v4422 = vpack.c.b16 %v4363, %v4362
  %v4423 = vpack.c.b16 %v4365, %v4364
  %v4424 = vpack.c.b16 %v4367, %v4366
  %v4425 = vpack.c.b16 %v4369, %v4368
  %v4426 = vpack.c.b16 %v4371, %v4370
  %v4427 = vpack.c.b16 %v4373, %v4372
  %v4428 = vpack.c.b16 %v4375, %v4374
  %v4429 = vpack.c.b16 %v4377, %v4376
  %v4430 = vpack.c.b16 %v4379, %v4378
  %v4431 = vpack.c.b16 %v4381, %v4380
  %v4432 = vpack.c.b16 %v4383, %v4382
  %v4433 = vpack.c.b16 %v4385, %v4384
  %v4434 = vpack.c.b16 %v4387, %v4386
  %v4435 = vpack.c.b16 %v4389, %v4388
  %v4436 = vpack.c.b16 %v4391, %v4390
  %v4437 = vpack.c.b16 %v4393, %v4392
  %v4438 = vpack.c.b16 %v4395, %v4394
  %v4439 = vpack.c.b16 %v4397, %v4396
  %v4440 = vpack.c.b16 %v4399, %v4398
  %v4441 = vpack.c.b16 %v4401, %v4400
  %v4442 = vpack.c.b16 %v4403, %v4402
  %v4443 = vpack.c.b16 %v4405, %v4404
  %v4444 = vpack.c.b16 %v4407, %v4406
  %v4445 = vpack.c.b16 %v4409, %v4408
  %v4446 = vpack.c.b16 %v4411, %v4410
  %v4447 = vpack.c.b16 %v4413, %v4412
  %v4448 = vpack.c.b16 %v4415, %v4414
  %v4449 = vpack.c.b16 %v4417, %v4416
  %4482 = vmatprep.subr.bf16.mxu0 0
  %4483 = vmatpush1.bf16.msra.mxu0 %v4425
  %4484 = vmatprep.subr.bf16.mxu0 0
  %4485 = vmatpush1.bf16.msra.mxu0 %v4424
  %4486 = vmatprep.subr.bf16.mxu0 0
  %4487 = vmatpush1.bf16.msra.mxu0 %v4423
  %4488 = vmatprep.subr.bf16.mxu0 0
  %4489 = vmatpush1.bf16.msra.mxu0 %v4422
  %4490 = vmatprep.subr.bf16.mxu0 0
  %4491 = vmatpush1.bf16.msra.mxu0 %v4421
  %4492 = vmatprep.subr.bf16.mxu0 0
  %4493 = vmatpush1.bf16.msra.mxu0 %v4420
  %4494 = vmatprep.subr.bf16.mxu0 0
  %4495 = vmatpush1.bf16.msra.mxu0 %v4419
  %4496 = vmatprep.subr.bf16.mxu0 0
  %4497 = vmatpush1.bf16.msra.mxu0 %v4418
  %4498 = vmatprep.subr.bf16.mxu0 0
  %4499 = vmatpush2.bf16.msra.mxu0 %v4433
  %4500 = vmatprep.subr.bf16.mxu0 0
  %4501 = vmatpush2.bf16.msra.mxu0 %v4432
  %4502 = vmatprep.subr.bf16.mxu0 0
  %4503 = vmatpush2.bf16.msra.mxu0 %v4431
  %4504 = vmatprep.subr.bf16.mxu0 0
  %4505 = vmatpush2.bf16.msra.mxu0 %v4430
  %4506 = vmatprep.subr.bf16.mxu0 0
  %4507 = vmatpush2.bf16.msra.mxu0 %v4429
  %4508 = vmatprep.subr.bf16.mxu0 0
  %4509 = vmatpush2.bf16.msra.mxu0 %v4428
  %4510 = vmatprep.subr.bf16.mxu0 0
  %4511 = vmatpush2.bf16.msra.mxu0 %v4427
  %4512 = vmatprep.subr.bf16.mxu0 0
  %4513 = vmatpush2.bf16.msra.mxu0 %v4426
  %4514 = vmatprep.mubr.bf16.mxu0 %v4156
  %4515 = vmatmul.mubr.bf16.gmra.mxu0 %v4155
  %v4516 = vpop.f32.mrf.mxu0
  %v4517 = vadd.f32 %v4288, %v4516
  %v4518 = vpop.f32.mrf.mxu0
  %v4519 = vpop.f32.mrf.mxu0
  %v4520 = vadd.f32 %v4288, %v4519
  %v4521 = vpop.f32.mrf.mxu0
  %4522 = vmatprep.mubr.bf16.mxu0 %v4160
  %4523 = vmatmul.mubr.bf16.gmra.mxu0 %v4159
  %v4524 = vpop.f32.mrf.mxu0
  %v4525 = vadd.f32 %v4288, %v4524
  %v4526 = vpop.f32.mrf.mxu0
  %v4527 = vpop.f32.mrf.mxu0
  %v4528 = vadd.f32 %v4288, %v4527
  %v4529 = vpop.f32.mrf.mxu0
  %4530 = vmatprep.mubr.bf16.mxu0 %v4164
  %4531 = vmatmul.mubr.bf16.gmra.mxu0 %v4163
  %v4532 = vpop.f32.mrf.mxu0
  %v4533 = vadd.f32 %v4288, %v4532
  %v4534 = vpop.f32.mrf.mxu0
  %v4535 = vpop.f32.mrf.mxu0
  %v4536 = vadd.f32 %v4288, %v4535
  %v4537 = vpop.f32.mrf.mxu0
  %4538 = vmatprep.mubr.bf16.mxu0 %v4168
  %4539 = vmatmul.mubr.bf16.gmra.mxu0 %v4167
  %v4540 = vpop.f32.mrf.mxu0
  %v4541 = vadd.f32 %v4288, %v4540
  %v4542 = vpop.f32.mrf.mxu0
  %v4543 = vpop.f32.mrf.mxu0
  %v4544 = vadd.f32 %v4288, %v4543
  %v4545 = vpop.f32.mrf.mxu0
  %4546 = vmatprep.mubr.bf16.mxu0 %v4172
  %4547 = vmatmul.mubr.bf16.gmra.mxu0 %v4171
  %v4548 = vpop.f32.mrf.mxu0
  %v4549 = vadd.f32 %v4288, %v4548
  %v4550 = vpop.f32.mrf.mxu0
  %v4551 = vpop.f32.mrf.mxu0
  %v4552 = vadd.f32 %v4288, %v4551
  %v4553 = vpop.f32.mrf.mxu0
  %4554 = vmatprep.mubr.bf16.mxu0 %v4176
  %4555 = vmatmul.mubr.bf16.gmra.mxu0 %v4175
  %v4556 = vpop.f32.mrf.mxu0
  %v4557 = vadd.f32 %v4288, %v4556
  %v4558 = vpop.f32.mrf.mxu0
  %v4559 = vpop.f32.mrf.mxu0
  %v4560 = vadd.f32 %v4288, %v4559
  %v4561 = vpop.f32.mrf.mxu0
  %4562 = vmatprep.mubr.bf16.mxu0 %v4180
  %4563 = vmatmul.mubr.bf16.gmra.mxu0 %v4179
  %v4564 = vpop.f32.mrf.mxu0
  %v4565 = vadd.f32 %v4288, %v4564
  %v4566 = vpop.f32.mrf.mxu0
  %v4567 = vpop.f32.mrf.mxu0
  %v4568 = vadd.f32 %v4288, %v4567
  %v4569 = vpop.f32.mrf.mxu0
  %4570 = vmatprep.mubr.bf16.mxu0 %v4184
  %4571 = vmatmul.mubr.bf16.gmra.mxu0 %v4183
  %v4572 = vpop.f32.mrf.mxu0
  %v4573 = vadd.f32 %v4288, %v4572
  %v4574 = vpop.f32.mrf.mxu0
  %v4575 = vpop.f32.mrf.mxu0
  %v4576 = vadd.f32 %v4288, %v4575
  %v4577 = vpop.f32.mrf.mxu0
  %4578 = vmatprep.mubr.bf16.mxu0 %v4188
  %4579 = vmatmul.mubr.bf16.gmra.mxu0 %v4187
  %v4580 = vpop.f32.mrf.mxu0
  %v4581 = vadd.f32 %v4288, %v4580
  %v4582 = vpop.f32.mrf.mxu0
  %v4583 = vpop.f32.mrf.mxu0
  %v4584 = vadd.f32 %v4288, %v4583
  %v4585 = vpop.f32.mrf.mxu0
  %4586 = vmatprep.mubr.bf16.mxu0 %v4192
  %4587 = vmatmul.mubr.bf16.gmra.mxu0 %v4191
  %v4588 = vpop.f32.mrf.mxu0
  %v4589 = vadd.f32 %v4288, %v4588
  %v4590 = vpop.f32.mrf.mxu0
  %v4591 = vpop.f32.mrf.mxu0
  %v4592 = vadd.f32 %v4288, %v4591
  %v4593 = vpop.f32.mrf.mxu0
  %4594 = vmatprep.mubr.bf16.mxu0 %v4196
  %4595 = vmatmul.mubr.bf16.gmra.mxu0 %v4195
  %v4596 = vpop.f32.mrf.mxu0
  %v4597 = vadd.f32 %v4288, %v4596
  %v4598 = vpop.f32.mrf.mxu0
  %v4599 = vpop.f32.mrf.mxu0
  %v4600 = vadd.f32 %v4288, %v4599
  %v4601 = vpop.f32.mrf.mxu0
  %4602 = vmatprep.mubr.bf16.mxu0 %v4200
  %4603 = vmatmul.mubr.bf16.gmra.mxu0 %v4199
  %v4604 = vpop.f32.mrf.mxu0
  %v4605 = vadd.f32 %v4288, %v4604
  %v4606 = vpop.f32.mrf.mxu0
  %v4607 = vpop.f32.mrf.mxu0
  %v4608 = vadd.f32 %v4288, %v4607
  %v4609 = vpop.f32.mrf.mxu0
  %4610 = vmatprep.mubr.bf16.mxu0 %v4204
  %4611 = vmatmul.mubr.bf16.gmra.mxu0 %v4203
  %v4612 = vpop.f32.mrf.mxu0
  %v4613 = vadd.f32 %v4288, %v4612
  %v4614 = vpop.f32.mrf.mxu0
  %v4615 = vpop.f32.mrf.mxu0
  %v4616 = vadd.f32 %v4288, %v4615
  %v4617 = vpop.f32.mrf.mxu0
  %4618 = vmatprep.mubr.bf16.mxu0 %v4208
  %4619 = vmatmul.mubr.bf16.gmra.mxu0 %v4207
  %v4620 = vpop.f32.mrf.mxu0
  %v4621 = vadd.f32 %v4288, %v4620
  %v4622 = vpop.f32.mrf.mxu0
  %v4623 = vpop.f32.mrf.mxu0
  %v4624 = vadd.f32 %v4288, %v4623
  %v4625 = vpop.f32.mrf.mxu0
  %4626 = vmatprep.mubr.bf16.mxu0 %v4212
  %4627 = vmatmul.mubr.bf16.gmra.mxu0 %v4211
  %v4628 = vpop.f32.mrf.mxu0
  %v4629 = vadd.f32 %v4288, %v4628
  %v4630 = vpop.f32.mrf.mxu0
  %v4631 = vpop.f32.mrf.mxu0
  %v4632 = vadd.f32 %v4288, %v4631
  %v4633 = vpop.f32.mrf.mxu0
  %4634 = vmatprep.mubr.bf16.mxu0 %v4216
  %4635 = vmatmul.mubr.bf16.gmra.mxu0 %v4215
  %v4636 = vpop.f32.mrf.mxu0
  %v4637 = vadd.f32 %v4288, %v4636
  %v4638 = vpop.f32.mrf.mxu0
  %v4639 = vpop.f32.mrf.mxu0
  %v4640 = vadd.f32 %v4288, %v4639
  %v4641 = vpop.f32.mrf.mxu0
  %4642 = vdwg.mxu0
  %4643 = vmatprep.subr.bf16.mxu0 0
  %4644 = vmatpush1.bf16.msra.mxu0 %v4441
  %4645 = vmatprep.subr.bf16.mxu0 0
  %4646 = vmatpush1.bf16.msra.mxu0 %v4440
  %4647 = vmatprep.subr.bf16.mxu0 0
  %4648 = vmatpush1.bf16.msra.mxu0 %v4439
  %4649 = vmatprep.subr.bf16.mxu0 0
  %4650 = vmatpush1.bf16.msra.mxu0 %v4438
  %4651 = vmatprep.subr.bf16.mxu0 0
  %4652 = vmatpush1.bf16.msra.mxu0 %v4437
  %4653 = vmatprep.subr.bf16.mxu0 0
  %4654 = vmatpush1.bf16.msra.mxu0 %v4436
  %4655 = vmatprep.subr.bf16.mxu0 0
  %4656 = vmatpush1.bf16.msra.mxu0 %v4435
  %4657 = vmatprep.subr.bf16.mxu0 0
  %4658 = vmatpush1.bf16.msra.mxu0 %v4434
  %4659 = vmatprep.subr.bf16.mxu0 0
  %4660 = vmatpush2.bf16.msra.mxu0 %v4449
  %4661 = vmatprep.subr.bf16.mxu0 0
  %4662 = vmatpush2.bf16.msra.mxu0 %v4448
  %4663 = vmatprep.subr.bf16.mxu0 0
  %4664 = vmatpush2.bf16.msra.mxu0 %v4447
  %4665 = vmatprep.subr.bf16.mxu0 0
  %4666 = vmatpush2.bf16.msra.mxu0 %v4446
  %4667 = vmatprep.subr.bf16.mxu0 0
  %4668 = vmatpush2.bf16.msra.mxu0 %v4445
  %4669 = vmatprep.subr.bf16.mxu0 0
  %4670 = vmatpush2.bf16.msra.mxu0 %v4444
  %4671 = vmatprep.subr.bf16.mxu0 0
  %4672 = vmatpush2.bf16.msra.mxu0 %v4443
  %4673 = vmatprep.subr.bf16.mxu0 0
  %4674 = vmatpush2.bf16.msra.mxu0 %v4442
  %4675 = vmatprep.mubr.bf16.mxu0 %v4158
  %4676 = vmatmul.mubr.bf16.gmra.mxu0 %v4157
  %v4677 = vpop.f32.mrf.mxu0
  %v4678 = vadd.f32 %v4517, %v4677
  %v4679 = vpop.f32.mrf.mxu0
  %v4680 = vpop.f32.mrf.mxu0
  %v4681 = vadd.f32 %v4520, %v4680
  %v4682 = vpop.f32.mrf.mxu0
  %4683 = vmatprep.mubr.bf16.mxu0 %v4162
  %4684 = vmatmul.mubr.bf16.gmra.mxu0 %v4161
  %v4685 = vpop.f32.mrf.mxu0
  %v4686 = vadd.f32 %v4525, %v4685
  %v4687 = vpop.f32.mrf.mxu0
  %v4688 = vpop.f32.mrf.mxu0
  %v4689 = vadd.f32 %v4528, %v4688
  %v4690 = vpop.f32.mrf.mxu0
  %4691 = vmatprep.mubr.bf16.mxu0 %v4166
  %4692 = vmatmul.mubr.bf16.gmra.mxu0 %v4165
  %v4693 = vpop.f32.mrf.mxu0
  %v4694 = vadd.f32 %v4533, %v4693
  %v4695 = vpop.f32.mrf.mxu0
  %v4696 = vpop.f32.mrf.mxu0
  %v4697 = vadd.f32 %v4536, %v4696
  %v4698 = vpop.f32.mrf.mxu0
  %4699 = vmatprep.mubr.bf16.mxu0 %v4170
  %4700 = vmatmul.mubr.bf16.gmra.mxu0 %v4169
  %v4701 = vpop.f32.mrf.mxu0
  %v4702 = vadd.f32 %v4541, %v4701
  %v4703 = vpop.f32.mrf.mxu0
  %v4704 = vpop.f32.mrf.mxu0
  %v4705 = vadd.f32 %v4544, %v4704
  %v4706 = vpop.f32.mrf.mxu0
  %4707 = vmatprep.mubr.bf16.mxu0 %v4174
  %4708 = vmatmul.mubr.bf16.gmra.mxu0 %v4173
  %v4709 = vpop.f32.mrf.mxu0
  %v4710 = vadd.f32 %v4549, %v4709
  %v4711 = vpop.f32.mrf.mxu0
  %v4712 = vpop.f32.mrf.mxu0
  %v4713 = vadd.f32 %v4552, %v4712
  %v4714 = vpop.f32.mrf.mxu0
  %4715 = vmatprep.mubr.bf16.mxu0 %v4178
  %4716 = vmatmul.mubr.bf16.gmra.mxu0 %v4177
  %v4717 = vpop.f32.mrf.mxu0
  %v4718 = vadd.f32 %v4557, %v4717
  %v4719 = vpop.f32.mrf.mxu0
  %v4720 = vpop.f32.mrf.mxu0
  %v4721 = vadd.f32 %v4560, %v4720
  %v4722 = vpop.f32.mrf.mxu0
  %4723 = vmatprep.mubr.bf16.mxu0 %v4182
  %4724 = vmatmul.mubr.bf16.gmra.mxu0 %v4181
  %v4725 = vpop.f32.mrf.mxu0
  %v4726 = vadd.f32 %v4565, %v4725
  %v4727 = vpop.f32.mrf.mxu0
  %v4728 = vpop.f32.mrf.mxu0
  %v4729 = vadd.f32 %v4568, %v4728
  %v4730 = vpop.f32.mrf.mxu0
  %4731 = vmatprep.mubr.bf16.mxu0 %v4186
  %4732 = vmatmul.mubr.bf16.gmra.mxu0 %v4185
  %v4733 = vpop.f32.mrf.mxu0
  %v4734 = vadd.f32 %v4573, %v4733
  %v4735 = vpop.f32.mrf.mxu0
  %v4736 = vpop.f32.mrf.mxu0
  %v4737 = vadd.f32 %v4576, %v4736
  %v4738 = vpop.f32.mrf.mxu0
  %4739 = vmatprep.mubr.bf16.mxu0 %v4190
  %4740 = vmatmul.mubr.bf16.gmra.mxu0 %v4189
  %v4741 = vpop.f32.mrf.mxu0
  %v4742 = vadd.f32 %v4581, %v4741
  %v4743 = vpop.f32.mrf.mxu0
  %v4744 = vpop.f32.mrf.mxu0
  %v4745 = vadd.f32 %v4584, %v4744
  %v4746 = vpop.f32.mrf.mxu0
  %4747 = vmatprep.mubr.bf16.mxu0 %v4194
  %4748 = vmatmul.mubr.bf16.gmra.mxu0 %v4193
  %v4749 = vpop.f32.mrf.mxu0
  %v4750 = vadd.f32 %v4589, %v4749
  %v4751 = vpop.f32.mrf.mxu0
  %v4752 = vpop.f32.mrf.mxu0
  %v4753 = vadd.f32 %v4592, %v4752
  %v4754 = vpop.f32.mrf.mxu0
  %4755 = vmatprep.mubr.bf16.mxu0 %v4198
  %4756 = vmatmul.mubr.bf16.gmra.mxu0 %v4197
  %v4757 = vpop.f32.mrf.mxu0
  %v4758 = vadd.f32 %v4597, %v4757
  %v4759 = vpop.f32.mrf.mxu0
  %v4760 = vpop.f32.mrf.mxu0
  %v4761 = vadd.f32 %v4600, %v4760
  %v4762 = vpop.f32.mrf.mxu0
  %4763 = vmatprep.mubr.bf16.mxu0 %v4202
  %4764 = vmatmul.mubr.bf16.gmra.mxu0 %v4201
  %v4765 = vpop.f32.mrf.mxu0
  %v4766 = vadd.f32 %v4605, %v4765
  %v4767 = vpop.f32.mrf.mxu0
  %v4768 = vpop.f32.mrf.mxu0
  %v4769 = vadd.f32 %v4608, %v4768
  %v4770 = vpop.f32.mrf.mxu0
  %4771 = vmatprep.mubr.bf16.mxu0 %v4206
  %4772 = vmatmul.mubr.bf16.gmra.mxu0 %v4205
  %v4773 = vpop.f32.mrf.mxu0
  %v4774 = vadd.f32 %v4613, %v4773
  %v4775 = vpop.f32.mrf.mxu0
  %v4776 = vpop.f32.mrf.mxu0
  %v4777 = vadd.f32 %v4616, %v4776
  %v4778 = vpop.f32.mrf.mxu0
  %4779 = vmatprep.mubr.bf16.mxu0 %v4210
  %4780 = vmatmul.mubr.bf16.gmra.mxu0 %v4209
  %v4781 = vpop.f32.mrf.mxu0
  %v4782 = vadd.f32 %v4621, %v4781
  %v4783 = vpop.f32.mrf.mxu0
  %v4784 = vpop.f32.mrf.mxu0
  %v4785 = vadd.f32 %v4624, %v4784
  %v4786 = vpop.f32.mrf.mxu0
  %4787 = vmatprep.mubr.bf16.mxu0 %v4214
  %4788 = vmatmul.mubr.bf16.gmra.mxu0 %v4213
  %v4789 = vpop.f32.mrf.mxu0
  %v4790 = vadd.f32 %v4629, %v4789
  %v4791 = vpop.f32.mrf.mxu0
  %v4792 = vpop.f32.mrf.mxu0
  %v4793 = vadd.f32 %v4632, %v4792
  %v4794 = vpop.f32.mrf.mxu0
  %4795 = vmatprep.mubr.bf16.mxu0 %v4218
  %4796 = vmatmul.mubr.bf16.gmra.mxu0 %v4217
  %v4797 = vpop.f32.mrf.mxu0
  %v4798 = vadd.f32 %v4637, %v4797
  %v4799 = vpop.f32.mrf.mxu0
  %v4800 = vpop.f32.mrf.mxu0
  %v4801 = vadd.f32 %v4640, %v4800
  %v4802 = vpop.f32.mrf.mxu0
  %4803 = vdwg.mxu0
  %vm4804 = vcmask 523264
  %v4805 = vsel %vm4804, %v4678, -inf
  %v4806 = vrot.slane %v4805, 4
  %v4807 = vmax.f32 %v4805, %v4806
  %v4808 = vrot.slane %v4807, 2
  %v4809 = vmax.f32 %v4807, %v4808
  %v4810 = vrot.slane %v4809, 1
  %v4811 = vmax.f32 %v4809, %v4810
  %v4812 = vsel %vm4804, %v4681, -inf
  %v4813 = vrot.slane %v4812, 4
  %v4814 = vmax.f32 %v4812, %v4813
  %v4815 = vrot.slane %v4814, 2
  %v4816 = vmax.f32 %v4814, %v4815
  %v4817 = vrot.slane %v4816, 1
  %v4818 = vmax.f32 %v4816, %v4817
  %v4819 = vsel %vm4804, %v4686, -inf
  %v4820 = vrot.slane %v4819, 4
  %v4821 = vmax.f32 %v4819, %v4820
  %v4822 = vrot.slane %v4821, 2
  %v4823 = vmax.f32 %v4821, %v4822
  %v4824 = vrot.slane %v4823, 1
  %v4825 = vmax.f32 %v4823, %v4824
  %v4826 = vsel %vm4804, %v4689, -inf
  %v4827 = vrot.slane %v4826, 4
  %v4828 = vmax.f32 %v4826, %v4827
  %v4829 = vrot.slane %v4828, 2
  %v4830 = vmax.f32 %v4828, %v4829
  %v4831 = vrot.slane %v4830, 1
  %v4832 = vmax.f32 %v4830, %v4831
  %v4833 = vsel %vm4804, %v4694, -inf
  %v4834 = vrot.slane %v4833, 4
  %v4835 = vmax.f32 %v4833, %v4834
  %v4836 = vrot.slane %v4835, 2
  %v4837 = vmax.f32 %v4835, %v4836
  %v4838 = vrot.slane %v4837, 1
  %v4839 = vmax.f32 %v4837, %v4838
  %v4840 = vsel %vm4804, %v4697, -inf
  %v4841 = vrot.slane %v4840, 4
  %v4842 = vmax.f32 %v4840, %v4841
  %v4843 = vrot.slane %v4842, 2
  %v4844 = vmax.f32 %v4842, %v4843
  %v4845 = vrot.slane %v4844, 1
  %v4846 = vmax.f32 %v4844, %v4845
  %v4847 = vsel %vm4804, %v4702, -inf
  %v4848 = vrot.slane %v4847, 4
  %v4849 = vmax.f32 %v4847, %v4848
  %v4850 = vrot.slane %v4849, 2
  %v4851 = vmax.f32 %v4849, %v4850
  %v4852 = vrot.slane %v4851, 1
  %v4853 = vmax.f32 %v4851, %v4852
  %v4854 = vsel %vm4804, %v4705, -inf
  %v4855 = vrot.slane %v4854, 4
  %v4856 = vmax.f32 %v4854, %v4855
  %v4857 = vrot.slane %v4856, 2
  %v4858 = vmax.f32 %v4856, %v4857
  %v4859 = vrot.slane %v4858, 1
  %v4860 = vmax.f32 %v4858, %v4859
  %v4861 = vsel %vm4804, %v4710, -inf
  %v4862 = vrot.slane %v4861, 4
  %v4863 = vmax.f32 %v4861, %v4862
  %v4864 = vrot.slane %v4863, 2
  %v4865 = vmax.f32 %v4863, %v4864
  %v4866 = vrot.slane %v4865, 1
  %v4867 = vmax.f32 %v4865, %v4866
  %v4868 = vsel %vm4804, %v4713, -inf
  %v4869 = vrot.slane %v4868, 4
  %v4870 = vmax.f32 %v4868, %v4869
  %v4871 = vrot.slane %v4870, 2
  %v4872 = vmax.f32 %v4870, %v4871
  %v4873 = vrot.slane %v4872, 1
  %v4874 = vmax.f32 %v4872, %v4873
  %v4875 = vsel %vm4804, %v4718, -inf
  %v4876 = vrot.slane %v4875, 4
  %v4877 = vmax.f32 %v4875, %v4876
  %v4878 = vrot.slane %v4877, 2
  %v4879 = vmax.f32 %v4877, %v4878
  %v4880 = vrot.slane %v4879, 1
  %v4881 = vmax.f32 %v4879, %v4880
  %v4882 = vsel %vm4804, %v4721, -inf
  %v4883 = vrot.slane %v4882, 4
  %v4884 = vmax.f32 %v4882, %v4883
  %v4885 = vrot.slane %v4884, 2
  %v4886 = vmax.f32 %v4884, %v4885
  %v4887 = vrot.slane %v4886, 1
  %v4888 = vmax.f32 %v4886, %v4887
  %v4889 = vsel %vm4804, %v4726, -inf
  %v4890 = vrot.slane %v4889, 4
  %v4891 = vmax.f32 %v4889, %v4890
  %v4892 = vrot.slane %v4891, 2
  %v4893 = vmax.f32 %v4891, %v4892
  %v4894 = vrot.slane %v4893, 1
  %v4895 = vmax.f32 %v4893, %v4894
  %v4896 = vsel %vm4804, %v4729, -inf
  %v4897 = vrot.slane %v4896, 4
  %v4898 = vmax.f32 %v4896, %v4897
  %v4899 = vrot.slane %v4898, 2
  %v4900 = vmax.f32 %v4898, %v4899
  %v4901 = vrot.slane %v4900, 1
  %v4902 = vmax.f32 %v4900, %v4901
  %v4903 = vsel %vm4804, %v4734, -inf
  %v4904 = vrot.slane %v4903, 4
  %v4905 = vmax.f32 %v4903, %v4904
  %v4906 = vrot.slane %v4905, 2
  %v4907 = vmax.f32 %v4905, %v4906
  %v4908 = vrot.slane %v4907, 1
  %v4909 = vmax.f32 %v4907, %v4908
  %v4910 = vsel %vm4804, %v4737, -inf
  %v4911 = vrot.slane %v4910, 4
  %v4912 = vmax.f32 %v4910, %v4911
  %v4913 = vrot.slane %v4912, 2
  %v4914 = vmax.f32 %v4912, %v4913
  %v4915 = vrot.slane %v4914, 1
  %v4916 = vmax.f32 %v4914, %v4915
  %v4917 = vsel %vm4804, %v4742, -inf
  %v4918 = vrot.slane %v4917, 4
  %v4919 = vmax.f32 %v4917, %v4918
  %v4920 = vrot.slane %v4919, 2
  %v4921 = vmax.f32 %v4919, %v4920
  %v4922 = vrot.slane %v4921, 1
  %v4923 = vmax.f32 %v4921, %v4922
  %v4924 = vsel %vm4804, %v4745, -inf
  %v4925 = vrot.slane %v4924, 4
  %v4926 = vmax.f32 %v4924, %v4925
  %v4927 = vrot.slane %v4926, 2
  %v4928 = vmax.f32 %v4926, %v4927
  %v4929 = vrot.slane %v4928, 1
  %v4930 = vmax.f32 %v4928, %v4929
  %v4931 = vsel %vm4804, %v4750, -inf
  %v4932 = vrot.slane %v4931, 4
  %v4933 = vmax.f32 %v4931, %v4932
  %v4934 = vrot.slane %v4933, 2
  %v4935 = vmax.f32 %v4933, %v4934
  %v4936 = vrot.slane %v4935, 1
  %v4937 = vmax.f32 %v4935, %v4936
  %v4938 = vsel %vm4804, %v4753, -inf
  %v4939 = vrot.slane %v4938, 4
  %v4940 = vmax.f32 %v4938, %v4939
  %v4941 = vrot.slane %v4940, 2
  %v4942 = vmax.f32 %v4940, %v4941
  %v4943 = vrot.slane %v4942, 1
  %v4944 = vmax.f32 %v4942, %v4943
  %v4945 = vsel %vm4804, %v4758, -inf
  %v4946 = vrot.slane %v4945, 4
  %v4947 = vmax.f32 %v4945, %v4946
  %v4948 = vrot.slane %v4947, 2
  %v4949 = vmax.f32 %v4947, %v4948
  %v4950 = vrot.slane %v4949, 1
  %v4951 = vmax.f32 %v4949, %v4950
  %v4952 = vsel %vm4804, %v4761, -inf
  %v4953 = vrot.slane %v4952, 4
  %v4954 = vmax.f32 %v4952, %v4953
  %v4955 = vrot.slane %v4954, 2
  %v4956 = vmax.f32 %v4954, %v4955
  %v4957 = vrot.slane %v4956, 1
  %v4958 = vmax.f32 %v4956, %v4957
  %v4959 = vsel %vm4804, %v4766, -inf
  %v4960 = vrot.slane %v4959, 4
  %v4961 = vmax.f32 %v4959, %v4960
  %v4962 = vrot.slane %v4961, 2
  %v4963 = vmax.f32 %v4961, %v4962
  %v4964 = vrot.slane %v4963, 1
  %v4965 = vmax.f32 %v4963, %v4964
  %v4966 = vsel %vm4804, %v4769, -inf
  %v4967 = vrot.slane %v4966, 4
  %v4968 = vmax.f32 %v4966, %v4967
  %v4969 = vrot.slane %v4968, 2
  %v4970 = vmax.f32 %v4968, %v4969
  %v4971 = vrot.slane %v4970, 1
  %v4972 = vmax.f32 %v4970, %v4971
  %v4973 = vsel %vm4804, %v4774, -inf
  %v4974 = vrot.slane %v4973, 4
  %v4975 = vmax.f32 %v4973, %v4974
  %v4976 = vrot.slane %v4975, 2
  %v4977 = vmax.f32 %v4975, %v4976
  %v4978 = vrot.slane %v4977, 1
  %v4979 = vmax.f32 %v4977, %v4978
  %v4980 = vsel %vm4804, %v4777, -inf
  %v4981 = vrot.slane %v4980, 4
  %v4982 = vmax.f32 %v4980, %v4981
  %v4983 = vrot.slane %v4982, 2
  %v4984 = vmax.f32 %v4982, %v4983
  %v4985 = vrot.slane %v4984, 1
  %v4986 = vmax.f32 %v4984, %v4985
  %v4987 = vsel %vm4804, %v4782, -inf
  %v4988 = vrot.slane %v4987, 4
  %v4989 = vmax.f32 %v4987, %v4988
  %v4990 = vrot.slane %v4989, 2
  %v4991 = vmax.f32 %v4989, %v4990
  %v4992 = vrot.slane %v4991, 1
  %v4993 = vmax.f32 %v4991, %v4992
  %v4994 = vsel %vm4804, %v4785, -inf
  %v4995 = vrot.slane %v4994, 4
  %v4996 = vmax.f32 %v4994, %v4995
  %v4997 = vrot.slane %v4996, 2
  %v4998 = vmax.f32 %v4996, %v4997
  %v4999 = vrot.slane %v4998, 1
  %v5000 = vmax.f32 %v4998, %v4999
  %v5001 = vsel %vm4804, %v4790, -inf
  %v5002 = vrot.slane %v5001, 4
  %v5003 = vmax.f32 %v5001, %v5002
  %v5004 = vrot.slane %v5003, 2
  %v5005 = vmax.f32 %v5003, %v5004
  %v5006 = vrot.slane %v5005, 1
  %v5007 = vmax.f32 %v5005, %v5006
  %v5008 = vsel %vm4804, %v4793, -inf
  %v5009 = vrot.slane %v5008, 4
  %v5010 = vmax.f32 %v5008, %v5009
  %v5011 = vrot.slane %v5010, 2
  %v5012 = vmax.f32 %v5010, %v5011
  %v5013 = vrot.slane %v5012, 1
  %v5014 = vmax.f32 %v5012, %v5013
  %v5015 = vsel %vm4804, %v4798, -inf
  %v5016 = vrot.slane %v5015, 4
  %v5017 = vmax.f32 %v5015, %v5016
  %v5018 = vrot.slane %v5017, 2
  %v5019 = vmax.f32 %v5017, %v5018
  %v5020 = vrot.slane %v5019, 1
  %v5021 = vmax.f32 %v5019, %v5020
  %v5022 = vsel %vm4804, %v4801, -inf
  %v5023 = vrot.slane %v5022, 4
  %v5024 = vmax.f32 %v5022, %v5023
  %v5025 = vrot.slane %v5024, 2
  %v5026 = vmax.f32 %v5024, %v5025
  %v5027 = vrot.slane %v5026, 1
  %v5028 = vmax.f32 %v5026, %v5027
  %v5061 = vsel %vm1372, %v4818, %v4811
  %v5062 = vsel %vm1374, %v4825, %v5061
  %v5063 = vsel %vm1376, %v4832, %v5062
  %v5064 = vsel %vm1378, %v4839, %v5063
  %v5065 = vsel %vm1380, %v4846, %v5064
  %v5066 = vsel %vm1382, %v4853, %v5065
  %v5067 = vsel %vm1384, %v4860, %v5066
  %v5068 = vsel %vm1372, %v4874, %v4867
  %v5069 = vsel %vm1374, %v4881, %v5068
  %v5070 = vsel %vm1376, %v4888, %v5069
  %v5071 = vsel %vm1378, %v4895, %v5070
  %v5072 = vsel %vm1380, %v4902, %v5071
  %v5073 = vsel %vm1382, %v4909, %v5072
  %v5074 = vsel %vm1384, %v4916, %v5073
  %v5075 = vsel %vm1372, %v4930, %v4923
  %v5076 = vsel %vm1374, %v4937, %v5075
  %v5077 = vsel %vm1376, %v4944, %v5076
  %v5078 = vsel %vm1378, %v4951, %v5077
  %v5079 = vsel %vm1380, %v4958, %v5078
  %v5080 = vsel %vm1382, %v4965, %v5079
  %v5081 = vsel %vm1384, %v4972, %v5080
  %v5082 = vsel %vm1372, %v4986, %v4979
  %v5083 = vsel %vm1374, %v4993, %v5082
  %v5084 = vsel %vm1376, %v5000, %v5083
  %v5085 = vsel %vm1378, %v5007, %v5084
  %v5086 = vsel %vm1380, %v5014, %v5085
  %v5087 = vsel %vm1382, %v5021, %v5086
  %v5088 = vsel %vm1384, %v5028, %v5087
  %5093 = vst.msk [vmem:[%s12] sm:$0xff] %vm4804, %v5067
  %5094 = vst.msk [vmem:[%s12 + $0x8] sm:$0xff] %vm4804, %v5074
  %5095 = vst.msk [vmem:[%s12 + $0x10] sm:$0xff] %vm4804, %v5081
  %5096 = vst.msk [vmem:[%s12 + $0x18] sm:$0xff] %vm4804, %v5088
  // Predicated region
  $region50: #{_lambda_.2} parent=0 // pred_check
    _
  $region51: #{_lambda_.2} parent=0 // pred_check_branch
    %5098 = sbr.rel (0) target = $region53
  $region52: #{_lambda_.2} parent=0 // pred_region
    _
  $region53: #{_lambda_.2} parent=0 // pred_fallthru
    _
  // Predicated region
  $region54: #{_lambda_.2} parent=0 // pred_check
    _
  $region55: #{_lambda_.2} parent=0 // pred_check_branch
    %5100 = sbr.rel (0) target = $region57
  $region56: #{_lambda_.2} parent=0 // pred_region
    _
  $region57: #{_lambda_.2} parent=0 // pred_fallthru
    _

// kernel: _lambda_.3
$region0: #{_lambda_.3}
  #allocation0 [shape = 'u32[]', space=smem, size = 0x4, offset = 0x4, fixed_abs, tag = 'smem constant byte address 0x4 - core index']
  #allocation1 [shape = 'u32[144,128]{1,0:T(1,128)}', space=vmem, size = 0x12000, scoped, tag = 'internal scratch']
  #allocation2 [shape = 'f32[4,16,32]{2,1,0:T(8,128)}', space=vmem, size = 0x8000, scoped, tag = 'scratch operand']
  #allocation3 [shape = 'f32[4,16,32]{2,1,0:T(8,128)}', space=vmem, size = 0x8000, scoped, tag = 'scratch operand']
  %s0 = inlined_call_operand.vmem [shape: f32[4,8,64], index: 0, kind: input, shape index: {}]
  %s1 = inlined_call_operand.vmem [shape: f32[4,8,3], index: 1, kind: input, shape index: {}]
  %s2 = inlined_call_operand.vmem [shape: f32[1,1,32], index: 2, kind: input, shape index: {}]
  %s3 = inlined_call_operand.vmem [shape: f32[1,1,32], index: 3, kind: input, shape index: {}]
  %s4 = inlined_call_operand.vmem [shape: bf16[64,32], index: 4, kind: input, shape index: {}]
  %s5 = inlined_call_operand.vmem [shape: f32[1,32], index: 5, kind: input, shape index: {}]
  %s6 = inlined_call_operand.vmem [shape: f32[3,128], index: 6, kind: input, shape index: {}]
  %s7 = inlined_call_operand.vmem [shape: f32[1,128], index: 7, kind: input, shape index: {}]
  %s8 = inlined_call_operand.vmem [shape: bf16[128,32], index: 8, kind: input, shape index: {}]
  %s9 = inlined_call_operand.vmem [shape: f32[1,32], index: 9, kind: input, shape index: {}]
  %s10 = inlined_call_operand.vmem [shape: f32[2,1,32], index: 10, kind: input, shape index: {}]
  %s11 = inlined_call_operand.vmem [shape: f32[2,1,32], index: 11, kind: input, shape index: {}]
  %s12 = inlined_call_operand.vmem [shape: bf16[2,32,96], index: 12, kind: input, shape index: {}]
  %s13 = inlined_call_operand.vmem [shape: bf16[2,32,32], index: 13, kind: input, shape index: {}]
  %s14 = inlined_call_operand.vmem [shape: f32[2,1,32], index: 14, kind: input, shape index: {}]
  %s15 = inlined_call_operand.vmem [shape: f32[2,1,32], index: 15, kind: input, shape index: {}]
  %s16 = inlined_call_operand.vmem [shape: f32[2,1,32], index: 16, kind: input, shape index: {}]
  %s17 = inlined_call_operand.vmem [shape: bf16[2,32,128], index: 17, kind: input, shape index: {}]
  %s18 = inlined_call_operand.vmem [shape: f32[2,1,128], index: 18, kind: input, shape index: {}]
  %s19 = inlined_call_operand.vmem [shape: bf16[2,128,32], index: 19, kind: input, shape index: {}]
  %s20 = inlined_call_operand.vmem [shape: f32[2,1,32], index: 20, kind: input, shape index: {}]
  %s21 = inlined_call_operand.vmem [shape: f32[1,32], index: 21, kind: input, shape index: {}]
  %s22 = inlined_call_operand.vmem [shape: f32[1,32], index: 22, kind: input, shape index: {}]
  %s23 = inlined_call_operand.vmem [shape: f32[4,64], index: 23, kind: output, shape index: {}]
  %s24 = sld [smem:[#allocation0]]
  $region133: #{_lambda_.3} parent=0
    _
  %s26 = ssub.s32 1, %s24
  %s27 = scalar_select 0, %s26, %s24
  loop: start=0, step=1, limit=4
  $region2: #{_lambda_.3} parent=0 // loop_pre_header
    _
  $region3: #{_lambda_.3} parent=0 // loop_header
    %s29 = sphi 0, %s33
    %p30 = scmp.ge.s32.totalorder %s29, 4
    %s36 = sphi 0, %s48
    %s37 = sphi 0, %s44
    %s38 = sphi 0, %s36
    %s39 = sphi 0, %s37
    %s40 = sphi 0, %s38
    %s41 = sphi 0, %s39
    %s51 = sphi 0, %s53
    %s54 = sphi 0, %s51
    %s55 = sphi 0, %s54
    %s71 = sphi 0, %s55
    %s77 = sphi 0, %s79
    %s80 = sphi 0, %s77
    %s81 = sphi 0, %s80
    %s97 = sphi 0, %s81
    %s101 = sphi 0, %s101
    %s103 = sphi 0, %s101
    %s104 = sphi 0, %s103
    %s118 = sphi 0, %s104
    %s122 = sphi 0, %s122
    %s124 = sphi 0, %s122
    %s125 = sphi 0, %s124
    %s139 = sphi 0, %s125
    %s143 = sphi 0, %s143
    %s145 = sphi 0, %s143
    %s146 = sphi 0, %s145
    %s160 = sphi 0, %s146
    %s164 = sphi 0, %s164
    %s166 = sphi 0, %s164
    %s167 = sphi 0, %s166
    %s181 = sphi 0, %s167
    %s185 = sphi 0, %s185
    %s187 = sphi 0, %s185
    %s188 = sphi 0, %s187
    %s202 = sphi 0, %s188
    %s206 = sphi 0, %s206
    %s208 = sphi 0, %s206
    %s209 = sphi 0, %s208
    %s223 = sphi 0, %s209
    %s227 = sphi 0, %s227
    %s229 = sphi 0, %s227
    %s230 = sphi 0, %s229
    %s244 = sphi 0, %s230
    %s248 = sphi 0, %s248
    %s250 = sphi 0, %s248
    %s251 = sphi 0, %s250
    %s265 = sphi 0, %s251
    %s271 = sphi 0, %s273
    %s274 = sphi 0, %s271
    %s275 = sphi 0, %s274
    %s291 = sphi 0, %s275
    %s297 = sphi 0, %s299
    %s300 = sphi 0, %s297
    %s301 = sphi 0, %s300
    %s317 = sphi 0, %s301
    %s323 = sphi 0, %s325
    %s326 = sphi 0, %s323
    %s327 = sphi 0, %s326
    %s343 = sphi 0, %s327
    %s349 = sphi 0, %s351
    %s352 = sphi 0, %s349
    %s353 = sphi 0, %s352
    %s369 = sphi 0, %s353
    %s375 = sphi 0, %s377
    %s378 = sphi 0, %s375
    %s379 = sphi 0, %s378
    %s395 = sphi 0, %s379
    %s401 = sphi 0, %s403
    %s404 = sphi 0, %s401
    %s405 = sphi 0, %s404
    %s421 = sphi 0, %s405
    %s427 = sphi 0, %s429
    %s430 = sphi 0, %s427
    %s431 = sphi 0, %s430
    %s447 = sphi 0, %s431
    %s453 = sphi 0, %s455
    %s456 = sphi 0, %s453
    %s457 = sphi 0, %s456
    %s473 = sphi 0, %s457
    %s479 = sphi 0, %s481
    %s482 = sphi 0, %s479
    %s483 = sphi 0, %s482
    %s499 = sphi 0, %s483
    %s505 = sphi 0, %s507
    %s508 = sphi 0, %s505
    %s509 = sphi 0, %s508
    %s525 = sphi 0, %s509
    %s531 = sphi 0, %s533
    %s534 = sphi 0, %s531
    %s535 = sphi 0, %s534
    %s551 = sphi 0, %s535
    %s555 = sphi 0, %s555
    %s557 = sphi 0, %s555
    %s558 = sphi 0, %s557
    %s572 = sphi 0, %s558
    %s576 = sphi 0, %s576
    %s578 = sphi 0, %s576
    %s579 = sphi 0, %s578
    %s593 = sphi 0, %s579
    %s599 = sphi 0, %s601
    %s602 = sphi 0, %s599
    %s603 = sphi 0, %s602
    %s619 = sphi 0, %s603
  $region4: #{_lambda_.3} parent=0 // loop_header_branch
    %32 = sbr.rel (%p30) target = $region8
  $region5: #{_lambda_.3} parent=0 // loop_body
    %s34 = ssub.s32 %s29, 1
    %s35 = ssub.s32 %s29, 2
    %s42 = sadd.s32 1, %s37
    %p43 = scmp.ge.s32.totalorder %s42, 2
    %s44 = scalar_select %p43, 0, %s42
    %s45 = sadd.s32 1, %s36
    %s46 = scalar_select %p43, %s45, %s36
    %p47 = scmp.ge.s32.totalorder %s46, 1
    %s48 = scalar_select %p47, 0, %s46
    %s49 = ssub.s32 %s36, %s48
    %p50 = scmp.eq.s32.totalorder %s49, 0
    %s52 = sadd.s32 %s51, 1
    %s53 = scalar_select %p50, %s51, %s52
    %p56 = pneg %p50
    %p57 = scmp.eq.s32.totalorder %s29, 1
    %p58 = por %p56, %p57
    %p59 = scmp.ne.s32.totalorder %s51, %s54
    %p60 = scmp.eq.s32.totalorder %s29, 0
    %p61 = por %p59, %p60
    %p62 = scmp.ne.s32.totalorder %s51, %s54
    %p63 = scmp.eq.s32.totalorder %s34, 1
    %p64 = por %p62, %p63
    %p65 = scmp.ne.s32.totalorder %s54, %s55
    %p66 = scmp.eq.s32.totalorder %s34, 0
    %p67 = por %p65, %p66
    %p68 = scmp.ne.s32.totalorder %s54, %s55
    %p69 = scmp.eq.s32.totalorder %s35, 1
    %p70 = por %p68, %p69
    %p72 = scmp.ne.s32.totalorder %s55, %s71
    %p73 = scmp.eq.s32.totalorder %s35, 0
    %p74 = por %p72, %p73
    %s75 = ssub.s32 %s36, %s48
    %p76 = scmp.eq.s32.totalorder %s75, 0
    %s78 = sadd.s32 %s77, 1
    %s79 = scalar_select %p76, %s77, %s78
    %p82 = pneg %p76
    %p83 = scmp.eq.s32.totalorder %s29, 1
    %p84 = por %p82, %p83
    %p85 = scmp.ne.s32.totalorder %s77, %s80
    %p86 = scmp.eq.s32.totalorder %s29, 0
    %p87 = por %p85, %p86
    %p88 = scmp.ne.s32.totalorder %s77, %s80
    %p89 = scmp.eq.s32.totalorder %s34, 1
    %p90 = por %p88, %p89
    %p91 = scmp.ne.s32.totalorder %s80, %s81
    %p92 = scmp.eq.s32.totalorder %s34, 0
    %p93 = por %p91, %p92
    %p94 = scmp.ne.s32.totalorder %s80, %s81
    %p95 = scmp.eq.s32.totalorder %s35, 1
    %p96 = por %p94, %p95
    %p98 = scmp.ne.s32.totalorder %s81, %s97
    %p99 = scmp.eq.s32.totalorder %s35, 0
    %p100 = por %p98, %p99
    %s102 = sadd.s32 %s101, 1
    %p105 = scmp.eq.s32.totalorder %s29, 1
    %p106 = scmp.ne.s32.totalorder %s101, %s103
    %p107 = scmp.eq.s32.totalorder %s29, 0
    %p108 = por %p106, %p107
    %p109 = scmp.ne.s32.totalorder %s101, %s103
    %p110 = scmp.eq.s32.totalorder %s34, 1
    %p111 = por %p109, %p110
    %p112 = scmp.ne.s32.totalorder %s103, %s104
    %p113 = scmp.eq.s32.totalorder %s34, 0
    %p114 = por %p112, %p113
    %p115 = scmp.ne.s32.totalorder %s103, %s104
    %p116 = scmp.eq.s32.totalorder %s35, 1
    %p117 = por %p115, %p116
    %p119 = scmp.ne.s32.totalorder %s104, %s118
    %p120 = scmp.eq.s32.totalorder %s35, 0
    %p121 = por %p119, %p120
    %s123 = sadd.s32 %s122, 1
    %p126 = scmp.eq.s32.totalorder %s29, 1
    %p127 = scmp.ne.s32.totalorder %s122, %s124
    %p128 = scmp.eq.s32.totalorder %s29, 0
    %p129 = por %p127, %p128
    %p130 = scmp.ne.s32.totalorder %s122, %s124
    %p131 = scmp.eq.s32.totalorder %s34, 1
    %p132 = por %p130, %p131
    %p133 = scmp.ne.s32.totalorder %s124, %s125
    %p134 = scmp.eq.s32.totalorder %s34, 0
    %p135 = por %p133, %p134
    %p136 = scmp.ne.s32.totalorder %s124, %s125
    %p137 = scmp.eq.s32.totalorder %s35, 1
    %p138 = por %p136, %p137
    %p140 = scmp.ne.s32.totalorder %s125, %s139
    %p141 = scmp.eq.s32.totalorder %s35, 0
    %p142 = por %p140, %p141
    %s144 = sadd.s32 %s143, 1
    %p147 = scmp.eq.s32.totalorder %s29, 1
    %p148 = scmp.ne.s32.totalorder %s143, %s145
    %p149 = scmp.eq.s32.totalorder %s29, 0
    %p150 = por %p148, %p149
    %p151 = scmp.ne.s32.totalorder %s143, %s145
    %p152 = scmp.eq.s32.totalorder %s34, 1
    %p153 = por %p151, %p152
    %p154 = scmp.ne.s32.totalorder %s145, %s146
    %p155 = scmp.eq.s32.totalorder %s34, 0
    %p156 = por %p154, %p155
    %p157 = scmp.ne.s32.totalorder %s145, %s146
    %p158 = scmp.eq.s32.totalorder %s35, 1
    %p159 = por %p157, %p158
    %p161 = scmp.ne.s32.totalorder %s146, %s160
    %p162 = scmp.eq.s32.totalorder %s35, 0
    %p163 = por %p161, %p162
    %s165 = sadd.s32 %s164, 1
    %p168 = scmp.eq.s32.totalorder %s29, 1
    %p169 = scmp.ne.s32.totalorder %s164, %s166
    %p170 = scmp.eq.s32.totalorder %s29, 0
    %p171 = por %p169, %p170
    %p172 = scmp.ne.s32.totalorder %s164, %s166
    %p173 = scmp.eq.s32.totalorder %s34, 1
    %p174 = por %p172, %p173
    %p175 = scmp.ne.s32.totalorder %s166, %s167
    %p176 = scmp.eq.s32.totalorder %s34, 0
    %p177 = por %p175, %p176
    %p178 = scmp.ne.s32.totalorder %s166, %s167
    %p179 = scmp.eq.s32.totalorder %s35, 1
    %p180 = por %p178, %p179
    %p182 = scmp.ne.s32.totalorder %s167, %s181
    %p183 = scmp.eq.s32.totalorder %s35, 0
    %p184 = por %p182, %p183
    %s186 = sadd.s32 %s185, 1
    %p189 = scmp.eq.s32.totalorder %s29, 1
    %p190 = scmp.ne.s32.totalorder %s185, %s187
    %p191 = scmp.eq.s32.totalorder %s29, 0
    %p192 = por %p190, %p191
    %p193 = scmp.ne.s32.totalorder %s185, %s187
    %p194 = scmp.eq.s32.totalorder %s34, 1
    %p195 = por %p193, %p194
    %p196 = scmp.ne.s32.totalorder %s187, %s188
    %p197 = scmp.eq.s32.totalorder %s34, 0
    %p198 = por %p196, %p197
    %p199 = scmp.ne.s32.totalorder %s187, %s188
    %p200 = scmp.eq.s32.totalorder %s35, 1
    %p201 = por %p199, %p200
    %p203 = scmp.ne.s32.totalorder %s188, %s202
    %p204 = scmp.eq.s32.totalorder %s35, 0
    %p205 = por %p203, %p204
    %s207 = sadd.s32 %s206, 1
    %p210 = scmp.eq.s32.totalorder %s29, 1
    %p211 = scmp.ne.s32.totalorder %s206, %s208
    %p212 = scmp.eq.s32.totalorder %s29, 0
    %p213 = por %p211, %p212
    %p214 = scmp.ne.s32.totalorder %s206, %s208
    %p215 = scmp.eq.s32.totalorder %s34, 1
    %p216 = por %p214, %p215
    %p217 = scmp.ne.s32.totalorder %s208, %s209
    %p218 = scmp.eq.s32.totalorder %s34, 0
    %p219 = por %p217, %p218
    %p220 = scmp.ne.s32.totalorder %s208, %s209
    %p221 = scmp.eq.s32.totalorder %s35, 1
    %p222 = por %p220, %p221
    %p224 = scmp.ne.s32.totalorder %s209, %s223
    %p225 = scmp.eq.s32.totalorder %s35, 0
    %p226 = por %p224, %p225
    %s228 = sadd.s32 %s227, 1
    %p231 = scmp.eq.s32.totalorder %s29, 1
    %p232 = scmp.ne.s32.totalorder %s227, %s229
    %p233 = scmp.eq.s32.totalorder %s29, 0
    %p234 = por %p232, %p233
    %p235 = scmp.ne.s32.totalorder %s227, %s229
    %p236 = scmp.eq.s32.totalorder %s34, 1
    %p237 = por %p235, %p236
    %p238 = scmp.ne.s32.totalorder %s229, %s230
    %p239 = scmp.eq.s32.totalorder %s34, 0
    %p240 = por %p238, %p239
    %p241 = scmp.ne.s32.totalorder %s229, %s230
    %p242 = scmp.eq.s32.totalorder %s35, 1
    %p243 = por %p241, %p242
    %p245 = scmp.ne.s32.totalorder %s230, %s244
    %p246 = scmp.eq.s32.totalorder %s35, 0
    %p247 = por %p245, %p246
    %s249 = sadd.s32 %s248, 1
    %p252 = scmp.eq.s32.totalorder %s29, 1
    %p253 = scmp.ne.s32.totalorder %s248, %s250
    %p254 = scmp.eq.s32.totalorder %s29, 0
    %p255 = por %p253, %p254
    %p256 = scmp.ne.s32.totalorder %s248, %s250
    %p257 = scmp.eq.s32.totalorder %s34, 1
    %p258 = por %p256, %p257
    %p259 = scmp.ne.s32.totalorder %s250, %s251
    %p260 = scmp.eq.s32.totalorder %s34, 0
    %p261 = por %p259, %p260
    %p262 = scmp.ne.s32.totalorder %s250, %s251
    %p263 = scmp.eq.s32.totalorder %s35, 1
    %p264 = por %p262, %p263
    %p266 = scmp.ne.s32.totalorder %s251, %s265
    %p267 = scmp.eq.s32.totalorder %s35, 0
    %p268 = por %p266, %p267
    %s269 = ssub.s32 %s37, %s44
    %p270 = scmp.eq.s32.totalorder %s269, 0
    %s272 = sadd.s32 %s271, 1
    %s273 = scalar_select %p270, %s271, %s272
    %p276 = pneg %p270
    %p277 = scmp.eq.s32.totalorder %s29, 1
    %p278 = por %p276, %p277
    %p279 = scmp.ne.s32.totalorder %s271, %s274
    %p280 = scmp.eq.s32.totalorder %s29, 0
    %p281 = por %p279, %p280
    %p282 = scmp.ne.s32.totalorder %s271, %s274
    %p283 = scmp.eq.s32.totalorder %s34, 1
    %p284 = por %p282, %p283
    %p285 = scmp.ne.s32.totalorder %s274, %s275
    %p286 = scmp.eq.s32.totalorder %s34, 0
    %p287 = por %p285, %p286
    %p288 = scmp.ne.s32.totalorder %s274, %s275
    %p289 = scmp.eq.s32.totalorder %s35, 1
    %p290 = por %p288, %p289
    %p292 = scmp.ne.s32.totalorder %s275, %s291
    %p293 = scmp.eq.s32.totalorder %s35, 0
    %p294 = por %p292, %p293
    %s295 = ssub.s32 %s37, %s44
    %p296 = scmp.eq.s32.totalorder %s295, 0
    %s298 = sadd.s32 %s297, 1
    %s299 = scalar_select %p296, %s297, %s298
    %p302 = pneg %p296
    %p303 = scmp.eq.s32.totalorder %s29, 1
    %p304 = por %p302, %p303
    %p305 = scmp.ne.s32.totalorder %s297, %s300
    %p306 = scmp.eq.s32.totalorder %s29, 0
    %p307 = por %p305, %p306
    %p308 = scmp.ne.s32.totalorder %s297, %s300
    %p309 = scmp.eq.s32.totalorder %s34, 1
    %p310 = por %p308, %p309
    %p311 = scmp.ne.s32.totalorder %s300, %s301
    %p312 = scmp.eq.s32.totalorder %s34, 0
    %p313 = por %p311, %p312
    %p314 = scmp.ne.s32.totalorder %s300, %s301
    %p315 = scmp.eq.s32.totalorder %s35, 1
    %p316 = por %p314, %p315
    %p318 = scmp.ne.s32.totalorder %s301, %s317
    %p319 = scmp.eq.s32.totalorder %s35, 0
    %p320 = por %p318, %p319
    %s321 = ssub.s32 %s37, %s44
    %p322 = scmp.eq.s32.totalorder %s321, 0
    %s324 = sadd.s32 %s323, 1
    %s325 = scalar_select %p322, %s323, %s324
    %p328 = pneg %p322
    %p329 = scmp.eq.s32.totalorder %s29, 1
    %p330 = por %p328, %p329
    %p331 = scmp.ne.s32.totalorder %s323, %s326
    %p332 = scmp.eq.s32.totalorder %s29, 0
    %p333 = por %p331, %p332
    %p334 = scmp.ne.s32.totalorder %s323, %s326
    %p335 = scmp.eq.s32.totalorder %s34, 1
    %p336 = por %p334, %p335
    %p337 = scmp.ne.s32.totalorder %s326, %s327
    %p338 = scmp.eq.s32.totalorder %s34, 0
    %p339 = por %p337, %p338
    %p340 = scmp.ne.s32.totalorder %s326, %s327
    %p341 = scmp.eq.s32.totalorder %s35, 1
    %p342 = por %p340, %p341
    %p344 = scmp.ne.s32.totalorder %s327, %s343
    %p345 = scmp.eq.s32.totalorder %s35, 0
    %p346 = por %p344, %p345
    %s347 = ssub.s32 %s37, %s44
    %p348 = scmp.eq.s32.totalorder %s347, 0
    %s350 = sadd.s32 %s349, 1
    %s351 = scalar_select %p348, %s349, %s350
    %p354 = pneg %p348
    %p355 = scmp.eq.s32.totalorder %s29, 1
    %p356 = por %p354, %p355
    %p357 = scmp.ne.s32.totalorder %s349, %s352
    %p358 = scmp.eq.s32.totalorder %s29, 0
    %p359 = por %p357, %p358
    %p360 = scmp.ne.s32.totalorder %s349, %s352
    %p361 = scmp.eq.s32.totalorder %s34, 1
    %p362 = por %p360, %p361
    %p363 = scmp.ne.s32.totalorder %s352, %s353
    %p364 = scmp.eq.s32.totalorder %s34, 0
    %p365 = por %p363, %p364
    %p366 = scmp.ne.s32.totalorder %s352, %s353
    %p367 = scmp.eq.s32.totalorder %s35, 1
    %p368 = por %p366, %p367
    %p370 = scmp.ne.s32.totalorder %s353, %s369
    %p371 = scmp.eq.s32.totalorder %s35, 0
    %p372 = por %p370, %p371
    %s373 = ssub.s32 %s37, %s44
    %p374 = scmp.eq.s32.totalorder %s373, 0
    %s376 = sadd.s32 %s375, 1
    %s377 = scalar_select %p374, %s375, %s376
    %p380 = pneg %p374
    %p381 = scmp.eq.s32.totalorder %s29, 1
    %p382 = por %p380, %p381
    %p383 = scmp.ne.s32.totalorder %s375, %s378
    %p384 = scmp.eq.s32.totalorder %s29, 0
    %p385 = por %p383, %p384
    %p386 = scmp.ne.s32.totalorder %s375, %s378
    %p387 = scmp.eq.s32.totalorder %s34, 1
    %p388 = por %p386, %p387
    %p389 = scmp.ne.s32.totalorder %s378, %s379
    %p390 = scmp.eq.s32.totalorder %s34, 0
    %p391 = por %p389, %p390
    %p392 = scmp.ne.s32.totalorder %s378, %s379
    %p393 = scmp.eq.s32.totalorder %s35, 1
    %p394 = por %p392, %p393
    %p396 = scmp.ne.s32.totalorder %s379, %s395
    %p397 = scmp.eq.s32.totalorder %s35, 0
    %p398 = por %p396, %p397
    %s399 = ssub.s32 %s37, %s44
    %p400 = scmp.eq.s32.totalorder %s399, 0
    %s402 = sadd.s32 %s401, 1
    %s403 = scalar_select %p400, %s401, %s402
    %p406 = pneg %p400
    %p407 = scmp.eq.s32.totalorder %s29, 1
    %p408 = por %p406, %p407
    %p409 = scmp.ne.s32.totalorder %s401, %s404
    %p410 = scmp.eq.s32.totalorder %s29, 0
    %p411 = por %p409, %p410
    %p412 = scmp.ne.s32.totalorder %s401, %s404
    %p413 = scmp.eq.s32.totalorder %s34, 1
    %p414 = por %p412, %p413
    %p415 = scmp.ne.s32.totalorder %s404, %s405
    %p416 = scmp.eq.s32.totalorder %s34, 0
    %p417 = por %p415, %p416
    %p418 = scmp.ne.s32.totalorder %s404, %s405
    %p419 = scmp.eq.s32.totalorder %s35, 1
    %p420 = por %p418, %p419
    %p422 = scmp.ne.s32.totalorder %s405, %s421
    %p423 = scmp.eq.s32.totalorder %s35, 0
    %p424 = por %p422, %p423
    %s425 = ssub.s32 %s37, %s44
    %p426 = scmp.eq.s32.totalorder %s425, 0
    %s428 = sadd.s32 %s427, 1
    %s429 = scalar_select %p426, %s427, %s428
    %p432 = pneg %p426
    %p433 = scmp.eq.s32.totalorder %s29, 1
    %p434 = por %p432, %p433
    %p435 = scmp.ne.s32.totalorder %s427, %s430
    %p436 = scmp.eq.s32.totalorder %s29, 0
    %p437 = por %p435, %p436
    %p438 = scmp.ne.s32.totalorder %s427, %s430
    %p439 = scmp.eq.s32.totalorder %s34, 1
    %p440 = por %p438, %p439
    %p441 = scmp.ne.s32.totalorder %s430, %s431
    %p442 = scmp.eq.s32.totalorder %s34, 0
    %p443 = por %p441, %p442
    %p444 = scmp.ne.s32.totalorder %s430, %s431
    %p445 = scmp.eq.s32.totalorder %s35, 1
    %p446 = por %p444, %p445
    %p448 = scmp.ne.s32.totalorder %s431, %s447
    %p449 = scmp.eq.s32.totalorder %s35, 0
    %p450 = por %p448, %p449
    %s451 = ssub.s32 %s37, %s44
    %p452 = scmp.eq.s32.totalorder %s451, 0
    %s454 = sadd.s32 %s453, 1
    %s455 = scalar_select %p452, %s453, %s454
    %p458 = pneg %p452
    %p459 = scmp.eq.s32.totalorder %s29, 1
    %p460 = por %p458, %p459
    %p461 = scmp.ne.s32.totalorder %s453, %s456
    %p462 = scmp.eq.s32.totalorder %s29, 0
    %p463 = por %p461, %p462
    %p464 = scmp.ne.s32.totalorder %s453, %s456
    %p465 = scmp.eq.s32.totalorder %s34, 1
    %p466 = por %p464, %p465
    %p467 = scmp.ne.s32.totalorder %s456, %s457
    %p468 = scmp.eq.s32.totalorder %s34, 0
    %p469 = por %p467, %p468
    %p470 = scmp.ne.s32.totalorder %s456, %s457
    %p471 = scmp.eq.s32.totalorder %s35, 1
    %p472 = por %p470, %p471
    %p474 = scmp.ne.s32.totalorder %s457, %s473
    %p475 = scmp.eq.s32.totalorder %s35, 0
    %p476 = por %p474, %p475
    %s477 = ssub.s32 %s37, %s44
    %p478 = scmp.eq.s32.totalorder %s477, 0
    %s480 = sadd.s32 %s479, 1
    %s481 = scalar_select %p478, %s479, %s480
    %p484 = pneg %p478
    %p485 = scmp.eq.s32.totalorder %s29, 1
    %p486 = por %p484, %p485
    %p487 = scmp.ne.s32.totalorder %s479, %s482
    %p488 = scmp.eq.s32.totalorder %s29, 0
    %p489 = por %p487, %p488
    %p490 = scmp.ne.s32.totalorder %s479, %s482
    %p491 = scmp.eq.s32.totalorder %s34, 1
    %p492 = por %p490, %p491
    %p493 = scmp.ne.s32.totalorder %s482, %s483
    %p494 = scmp.eq.s32.totalorder %s34, 0
    %p495 = por %p493, %p494
    %p496 = scmp.ne.s32.totalorder %s482, %s483
    %p497 = scmp.eq.s32.totalorder %s35, 1
    %p498 = por %p496, %p497
    %p500 = scmp.ne.s32.totalorder %s483, %s499
    %p501 = scmp.eq.s32.totalorder %s35, 0
    %p502 = por %p500, %p501
    %s503 = ssub.s32 %s37, %s44
    %p504 = scmp.eq.s32.totalorder %s503, 0
    %s506 = sadd.s32 %s505, 1
    %s507 = scalar_select %p504, %s505, %s506
    %p510 = pneg %p504
    %p511 = scmp.eq.s32.totalorder %s29, 1
    %p512 = por %p510, %p511
    %p513 = scmp.ne.s32.totalorder %s505, %s508
    %p514 = scmp.eq.s32.totalorder %s29, 0
    %p515 = por %p513, %p514
    %p516 = scmp.ne.s32.totalorder %s505, %s508
    %p517 = scmp.eq.s32.totalorder %s34, 1
    %p518 = por %p516, %p517
    %p519 = scmp.ne.s32.totalorder %s508, %s509
    %p520 = scmp.eq.s32.totalorder %s34, 0
    %p521 = por %p519, %p520
    %p522 = scmp.ne.s32.totalorder %s508, %s509
    %p523 = scmp.eq.s32.totalorder %s35, 1
    %p524 = por %p522, %p523
    %p526 = scmp.ne.s32.totalorder %s509, %s525
    %p527 = scmp.eq.s32.totalorder %s35, 0
    %p528 = por %p526, %p527
    %s529 = ssub.s32 %s37, %s44
    %p530 = scmp.eq.s32.totalorder %s529, 0
    %s532 = sadd.s32 %s531, 1
    %s533 = scalar_select %p530, %s531, %s532
    %p536 = pneg %p530
    %p537 = scmp.eq.s32.totalorder %s29, 1
    %p538 = por %p536, %p537
    %p539 = scmp.ne.s32.totalorder %s531, %s534
    %p540 = scmp.eq.s32.totalorder %s29, 0
    %p541 = por %p539, %p540
    %p542 = scmp.ne.s32.totalorder %s531, %s534
    %p543 = scmp.eq.s32.totalorder %s34, 1
    %p544 = por %p542, %p543
    %p545 = scmp.ne.s32.totalorder %s534, %s535
    %p546 = scmp.eq.s32.totalorder %s34, 0
    %p547 = por %p545, %p546
    %p548 = scmp.ne.s32.totalorder %s534, %s535
    %p549 = scmp.eq.s32.totalorder %s35, 1
    %p550 = por %p548, %p549
    %p552 = scmp.ne.s32.totalorder %s535, %s551
    %p553 = scmp.eq.s32.totalorder %s35, 0
    %p554 = por %p552, %p553
    %s556 = sadd.s32 %s555, 1
    %p559 = scmp.eq.s32.totalorder %s29, 1
    %p560 = scmp.ne.s32.totalorder %s555, %s557
    %p561 = scmp.eq.s32.totalorder %s29, 0
    %p562 = por %p560, %p561
    %p563 = scmp.ne.s32.totalorder %s555, %s557
    %p564 = scmp.eq.s32.totalorder %s34, 1
    %p565 = por %p563, %p564
    %p566 = scmp.ne.s32.totalorder %s557, %s558
    %p567 = scmp.eq.s32.totalorder %s34, 0
    %p568 = por %p566, %p567
    %p569 = scmp.ne.s32.totalorder %s557, %s558
    %p570 = scmp.eq.s32.totalorder %s35, 1
    %p571 = por %p569, %p570
    %p573 = scmp.ne.s32.totalorder %s558, %s572
    %p574 = scmp.eq.s32.totalorder %s35, 0
    %p575 = por %p573, %p574
    %s577 = sadd.s32 %s576, 1
    %p580 = scmp.eq.s32.totalorder %s29, 1
    %p581 = scmp.ne.s32.totalorder %s576, %s578
    %p582 = scmp.eq.s32.totalorder %s29, 0
    %p583 = por %p581, %p582
    %p584 = scmp.ne.s32.totalorder %s576, %s578
    %p585 = scmp.eq.s32.totalorder %s34, 1
    %p586 = por %p584, %p585
    %p587 = scmp.ne.s32.totalorder %s578, %s579
    %p588 = scmp.eq.s32.totalorder %s34, 0
    %p589 = por %p587, %p588
    %p590 = scmp.ne.s32.totalorder %s578, %s579
    %p591 = scmp.eq.s32.totalorder %s35, 1
    %p592 = por %p590, %p591
    %p594 = scmp.ne.s32.totalorder %s579, %s593
    %p595 = scmp.eq.s32.totalorder %s35, 0
    %p596 = por %p594, %p595
    %s597 = ssub.s32 %s36, %s48
    %p598 = scmp.eq.s32.totalorder %s597, 0
    %s600 = sadd.s32 %s599, 1
    %s601 = scalar_select %p598, %s599, %s600
    %p604 = pneg %p598
    %p605 = scmp.eq.s32.totalorder %s29, 1
    %p606 = por %p604, %p605
    %p607 = scmp.ne.s32.totalorder %s599, %s602
    %p608 = scmp.eq.s32.totalorder %s29, 0
    %p609 = por %p607, %p608
    %p610 = scmp.ne.s32.totalorder %s599, %s602
    %p611 = scmp.eq.s32.totalorder %s34, 1
    %p612 = por %p610, %p611
    %p613 = scmp.ne.s32.totalorder %s602, %s603
    %p614 = scmp.eq.s32.totalorder %s34, 0
    %p615 = por %p613, %p614
    %p616 = scmp.ne.s32.totalorder %s602, %s603
    %p617 = scmp.eq.s32.totalorder %s35, 1
    %p618 = por %p616, %p617
    %p620 = scmp.ne.s32.totalorder %s603, %s619
    %p621 = scmp.eq.s32.totalorder %s35, 0
    %p622 = por %p620, %p621
    %p623 = scmp.le.s32.totalorder 1, %s29
    %p624 = scmp.lt.s32.totalorder %s29, 3
    %p625 = pnand %p623, %p624
    %p626 = pneg %p625
    // Predicated region
    $region9: #{_lambda_.3} parent=5 // pred_check
      _
    $region10: #{_lambda_.3} parent=5 // pred_check_branch
      %628 = sbr.rel (%p625) target = $region12
    $region11: #{_lambda_.3} parent=5 // pred_region
      %s629 = ssub.s32 %s29, 1
      // Predicated region
      $region13: #{_lambda_.3} parent=11 // pred_check
        %p630 = pneg %p67
      $region14: #{_lambda_.3} parent=11 // pred_check_branch
        %632 = sbr.rel (%p630) target = $region16
      $region15: #{_lambda_.3} parent=11 // pred_region
        %s633 = smul.u32 4, %s38
        %p634 = scmp.lt.s32.totalorder %s633, 3
        %s635 = scalar_select %p634, %s633, 3
        %s636 = smul.addr %s635, 8
        %s637 = scalar_lea.vmem %s0, %s636
        %s638 = smul.u32 4, %s38
      $region16: #{_lambda_.3} parent=11 // pred_fallthru
        _
      // Predicated region
      $region17: #{_lambda_.3} parent=11 // pred_check
        %p639 = pneg %p93
      $region18: #{_lambda_.3} parent=11 // pred_check_branch
        %641 = sbr.rel (%p639) target = $region20
      $region19: #{_lambda_.3} parent=11 // pred_region
        %s642 = smul.u32 4, %s38
        %p643 = scmp.lt.s32.totalorder %s642, 3
        %s644 = scalar_select %p643, %s642, 3
        %s645 = smul.addr %s644, 8
        %s646 = scalar_lea.vmem %s1, %s645
        %s647 = smul.u32 4, %s38
      $region20: #{_lambda_.3} parent=11 // pred_fallthru
        _
      // Predicated region
      $region21: #{_lambda_.3} parent=11 // pred_check
        %p648 = pneg %p114
      $region22: #{_lambda_.3} parent=11 // pred_check_branch
        %650 = sbr.rel (%p648) target = $region24
      $region23: #{_lambda_.3} parent=11 // pred_region
        _
      $region24: #{_lambda_.3} parent=11 // pred_fallthru
        _
      // Predicated region
      $region25: #{_lambda_.3} parent=11 // pred_check
        %p651 = pneg %p135
      $region26: #{_lambda_.3} parent=11 // pred_check_branch
        %653 = sbr.rel (%p651) target = $region28
      $region27: #{_lambda_.3} parent=11 // pred_region
        _
      $region28: #{_lambda_.3} parent=11 // pred_fallthru
        _
      // Predicated region
      $region29: #{_lambda_.3} parent=11 // pred_check
        %p654 = pneg %p156
      $region30: #{_lambda_.3} parent=11 // pred_check_branch
        %656 = sbr.rel (%p654) target = $region32
      $region31: #{_lambda_.3} parent=11 // pred_region
        _
      $region32: #{_lambda_.3} parent=11 // pred_fallthru
        _
      // Predicated region
      $region33: #{_lambda_.3} parent=11 // pred_check
        %p657 = pneg %p177
      $region34: #{_lambda_.3} parent=11 // pred_check_branch
        %659 = sbr.rel (%p657) target = $region36
      $region35: #{_lambda_.3} parent=11 // pred_region
        _
      $region36: #{_lambda_.3} parent=11 // pred_fallthru
        _
      // Predicated region
      $region37: #{_lambda_.3} parent=11 // pred_check
        %p660 = pneg %p198
      $region38: #{_lambda_.3} parent=11 // pred_check_branch
        %662 = sbr.rel (%p660) target = $region40
      $region39: #{_lambda_.3} parent=11 // pred_region
        _
      $region40: #{_lambda_.3} parent=11 // pred_fallthru
        _
      // Predicated region
      $region41: #{_lambda_.3} parent=11 // pred_check
        %p663 = pneg %p219
      $region42: #{_lambda_.3} parent=11 // pred_check_branch
        %665 = sbr.rel (%p663) target = $region44
      $region43: #{_lambda_.3} parent=11 // pred_region
        _
      $region44: #{_lambda_.3} parent=11 // pred_fallthru
        _
      // Predicated region
      $region45: #{_lambda_.3} parent=11 // pred_check
        %p666 = pneg %p240
      $region46: #{_lambda_.3} parent=11 // pred_check_branch
        %668 = sbr.rel (%p666) target = $region48
      $region47: #{_lambda_.3} parent=11 // pred_region
        _
      $region48: #{_lambda_.3} parent=11 // pred_fallthru
        _
      // Predicated region
      $region49: #{_lambda_.3} parent=11 // pred_check
        %p669 = pneg %p261
      $region50: #{_lambda_.3} parent=11 // pred_check_branch
        %671 = sbr.rel (%p669) target = $region52
      $region51: #{_lambda_.3} parent=11 // pred_region
        _
      $region52: #{_lambda_.3} parent=11 // pred_fallthru
        _
      // Predicated region
      $region53: #{_lambda_.3} parent=11 // pred_check
        %p672 = pneg %p568
      $region54: #{_lambda_.3} parent=11 // pred_check_branch
        %674 = sbr.rel (%p672) target = $region56
      $region55: #{_lambda_.3} parent=11 // pred_region
        _
      $region56: #{_lambda_.3} parent=11 // pred_fallthru
        _
      // Predicated region
      $region57: #{_lambda_.3} parent=11 // pred_check
        %p675 = pneg %p589
      $region58: #{_lambda_.3} parent=11 // pred_check_branch
        %677 = sbr.rel (%p675) target = $region60
      $region59: #{_lambda_.3} parent=11 // pred_region
        _
      $region60: #{_lambda_.3} parent=11 // pred_fallthru
        _
    $region12: #{_lambda_.3} parent=5 // pred_fallthru
      _
    %p678 = scmp.lt.s32.totalorder %s29, 2
    // Predicated region
    $region61: #{_lambda_.3} parent=5 // pred_check
      %p679 = pneg %p678
    $region62: #{_lambda_.3} parent=5 // pred_check_branch
      %681 = sbr.rel (%p679) target = $region64
    $region63: #{_lambda_.3} parent=5 // pred_region
      // Predicated region
      $region65: #{_lambda_.3} parent=63 // pred_check
        %p682 = pneg %p281
      $region66: #{_lambda_.3} parent=63 // pred_check_branch
        %684 = sbr.rel (%p682) target = $region68
      $region67: #{_lambda_.3} parent=63 // pred_region
        %p685 = scmp.lt.s32.totalorder %s37, 1
        %s686 = scalar_select %p685, %s37, 1
        %s687 = scalar_lea.vmem %s10, %s686
      $region68: #{_lambda_.3} parent=63 // pred_fallthru
        _
      // Predicated region
      $region69: #{_lambda_.3} parent=63 // pred_check
        %p688 = pneg %p307
      $region70: #{_lambda_.3} parent=63 // pred_check_branch
        %690 = sbr.rel (%p688) target = $region72
      $region71: #{_lambda_.3} parent=63 // pred_region
        %p691 = scmp.lt.s32.totalorder %s37, 1
        %s692 = scalar_select %p691, %s37, 1
        %s693 = scalar_lea.vmem %s11, %s692
      $region72: #{_lambda_.3} parent=63 // pred_fallthru
        _
      // Predicated region
      $region73: #{_lambda_.3} parent=63 // pred_check
        %p694 = pneg %p333
      $region74: #{_lambda_.3} parent=63 // pred_check_branch
        %696 = sbr.rel (%p694) target = $region76
      $region75: #{_lambda_.3} parent=63 // pred_region
        %p697 = scmp.lt.s32.totalorder %s37, 1
        %s698 = scalar_select %p697, %s37, 1
        %s699 = smul.addr %s698, 4
        %s700 = smul.addr %s699, 4
        %s701 = scalar_lea.vmem %s12, %s700
      $region76: #{_lambda_.3} parent=63 // pred_fallthru
        _
      // Predicated region
      $region77: #{_lambda_.3} parent=63 // pred_check
        %p702 = pneg %p359
      $region78: #{_lambda_.3} parent=63 // pred_check_branch
        %704 = sbr.rel (%p702) target = $region80
      $region79: #{_lambda_.3} parent=63 // pred_region
        %p705 = scmp.lt.s32.totalorder %s37, 1
        %s706 = scalar_select %p705, %s37, 1
        %s707 = smul.addr %s706, 4
        %s708 = smul.addr %s707, 4
        %s709 = scalar_lea.vmem %s13, %s708
      $region80: #{_lambda_.3} parent=63 // pred_fallthru
        _
      // Predicated region
      $region81: #{_lambda_.3} parent=63 // pred_check
        %p710 = pneg %p385
      $region82: #{_lambda_.3} parent=63 // pred_check_branch
        %712 = sbr.rel (%p710) target = $region84
      $region83: #{_lambda_.3} parent=63 // pred_region
        %p713 = scmp.lt.s32.totalorder %s37, 1
        %s714 = scalar_select %p713, %s37, 1
        %s715 = scalar_lea.vmem %s14, %s714
      $region84: #{_lambda_.3} parent=63 // pred_fallthru
        _
      // Predicated region
      $region85: #{_lambda_.3} parent=63 // pred_check
        %p716 = pneg %p411
      $region86: #{_lambda_.3} parent=63 // pred_check_branch
        %718 = sbr.rel (%p716) target = $region88
      $region87: #{_lambda_.3} parent=63 // pred_region
        %p719 = scmp.lt.s32.totalorder %s37, 1
        %s720 = scalar_select %p719, %s37, 1
        %s721 = scalar_lea.vmem %s15, %s720
      $region88: #{_lambda_.3} parent=63 // pred_fallthru
        _
      // Predicated region
      $region89: #{_lambda_.3} parent=63 // pred_check
        %p722 = pneg %p437
      $region90: #{_lambda_.3} parent=63 // pred_check_branch
        %724 = sbr.rel (%p722) target = $region92
      $region91: #{_lambda_.3} parent=63 // pred_region
        %p725 = scmp.lt.s32.totalorder %s37, 1
        %s726 = scalar_select %p725, %s37, 1
        %s727 = scalar_lea.vmem %s16, %s726
      $region92: #{_lambda_.3} parent=63 // pred_fallthru
        _
      // Predicated region
      $region93: #{_lambda_.3} parent=63 // pred_check
        %p728 = pneg %p463
      $region94: #{_lambda_.3} parent=63 // pred_check_branch
        %730 = sbr.rel (%p728) target = $region96
      $region95: #{_lambda_.3} parent=63 // pred_region
        %p731 = scmp.lt.s32.totalorder %s37, 1
        %s732 = scalar_select %p731, %s37, 1
        %s733 = smul.addr %s732, 4
        %s734 = smul.addr %s733, 4
        %s735 = scalar_lea.vmem %s17, %s734
      $region96: #{_lambda_.3} parent=63 // pred_fallthru
        _
      // Predicated region
      $region97: #{_lambda_.3} parent=63 // pred_check
        %p736 = pneg %p489
      $region98: #{_lambda_.3} parent=63 // pred_check_branch
        %738 = sbr.rel (%p736) target = $region100
      $region99: #{_lambda_.3} parent=63 // pred_region
        %p739 = scmp.lt.s32.totalorder %s37, 1
        %s740 = scalar_select %p739, %s37, 1
        %s741 = scalar_lea.vmem %s18, %s740
      $region100: #{_lambda_.3} parent=63 // pred_fallthru
        _
      // Predicated region
      $region101: #{_lambda_.3} parent=63 // pred_check
        %p742 = pneg %p515
      $region102: #{_lambda_.3} parent=63 // pred_check_branch
        %744 = sbr.rel (%p742) target = $region104
      $region103: #{_lambda_.3} parent=63 // pred_region
        %p745 = scmp.lt.s32.totalorder %s37, 1
        %s746 = scalar_select %p745, %s37, 1
        %s747 = smul.addr %s746, 16
        %s748 = smul.addr %s747, 4
        %s749 = scalar_lea.vmem %s19, %s748
      $region104: #{_lambda_.3} parent=63 // pred_fallthru
        _
      // Predicated region
      $region105: #{_lambda_.3} parent=63 // pred_check
        %p750 = pneg %p541
      $region106: #{_lambda_.3} parent=63 // pred_check_branch
        %752 = sbr.rel (%p750) target = $region108
      $region107: #{_lambda_.3} parent=63 // pred_region
        %p753 = scmp.lt.s32.totalorder %s37, 1
        %s754 = scalar_select %p753, %s37, 1
        %s755 = scalar_lea.vmem %s20, %s754
      $region108: #{_lambda_.3} parent=63 // pred_fallthru
        _
    $region64: #{_lambda_.3} parent=5 // pred_fallthru
      _
    %p756 = scmp.le.s32.totalorder 1, %s29
    %p757 = scmp.lt.s32.totalorder %s29, 3
    %p758 = pnand %p756, %p757
    %p759 = pneg %p758
    // Predicated region
    $region109: #{_lambda_.3} parent=5 // pred_check
      _
    $region110: #{_lambda_.3} parent=5 // pred_check_branch
      %761 = sbr.rel (%p758) target = $region112
    $region111: #{_lambda_.3} parent=5 // pred_region
      %s762 = ssub.s32 %s29, 1
      %s763 = smul.u32 4, %s38
      %p764 = scmp.lt.s32.totalorder %s763, 3
      %s765 = scalar_select %p764, %s763, 3
      %s766 = smul.addr %s765, 8
      %s767 = scalar_lea.vmem %s0, %s766
      %p768 = pneg %p67
      %p769 = pneg %p64
      %s770 = smul.u32 4, %s38
      %p771 = scmp.lt.s32.totalorder %s770, 3
      %s772 = scalar_select %p771, %s770, 3
      %s773 = smul.addr %s772, 8
      %s774 = scalar_lea.vmem %s1, %s773
      %p775 = pneg %p93
      %p776 = pneg %p90
      %p777 = pneg %p114
      %p778 = pneg %p111
      %p779 = pneg %p135
      %p780 = pneg %p132
      %p781 = pneg %p156
      %p782 = pneg %p153
      %p783 = pneg %p177
      %p784 = pneg %p174
      %p785 = pneg %p198
      %p786 = pneg %p195
      %p787 = pneg %p219
      %p788 = pneg %p216
      %p789 = pneg %p240
      %p790 = pneg %p237
      %p791 = pneg %p261
      %p792 = pneg %p258
      %p793 = scmp.lt.s32.totalorder %s39, 1
      %s794 = scalar_select %p793, %s39, 1
      %s795 = scalar_lea.vmem %s10, %s794
      %p796 = pneg %p287
      %p797 = pneg %p284
      %p798 = scmp.lt.s32.totalorder %s39, 1
      %s799 = scalar_select %p798, %s39, 1
      %s800 = scalar_lea.vmem %s11, %s799
      %p801 = pneg %p313
      %p802 = pneg %p310
      %p803 = scmp.lt.s32.totalorder %s39, 1
      %s804 = scalar_select %p803, %s39, 1
      %s805 = smul.addr %s804, 4
      %s806 = smul.addr %s805, 4
      %s807 = scalar_lea.vmem %s12, %s806
      %p808 = pneg %p339
      %p809 = pneg %p336
      %p810 = scmp.lt.s32.totalorder %s39, 1
      %s811 = scalar_select %p810, %s39, 1
      %s812 = smul.addr %s811, 4
      %s813 = smul.addr %s812, 4
      %s814 = scalar_lea.vmem %s13, %s813
      %p815 = pneg %p365
      %p816 = pneg %p362
      %p817 = scmp.lt.s32.totalorder %s39, 1
      %s818 = scalar_select %p817, %s39, 1
      %s819 = scalar_lea.vmem %s14, %s818
      %p820 = pneg %p391
      %p821 = pneg %p388
      %p822 = scmp.lt.s32.totalorder %s39, 1
      %s823 = scalar_select %p822, %s39, 1
      %s824 = scalar_lea.vmem %s15, %s823
      %p825 = pneg %p417
      %p826 = pneg %p414
      %p827 = scmp.lt.s32.totalorder %s39, 1
      %s828 = scalar_select %p827, %s39, 1
      %s829 = scalar_lea.vmem %s16, %s828
      %p830 = pneg %p443
      %p831 = pneg %p440
      %p832 = scmp.lt.s32.totalorder %s39, 1
      %s833 = scalar_select %p832, %s39, 1
      %s834 = smul.addr %s833, 4
      %s835 = smul.addr %s834, 4
      %s836 = scalar_lea.vmem %s17, %s835
      %p837 = pneg %p469
      %p838 = pneg %p466
      %p839 = scmp.lt.s32.totalorder %s39, 1
      %s840 = scalar_select %p839, %s39, 1
      %s841 = scalar_lea.vmem %s18, %s840
      %p842 = pneg %p495
      %p843 = pneg %p492
      %p844 = scmp.lt.s32.totalorder %s39, 1
      %s845 = scalar_select %p844, %s39, 1
      %s846 = smul.addr %s845, 16
      %s847 = smul.addr %s846, 4
      %s848 = scalar_lea.vmem %s19, %s847
      %p849 = pneg %p521
      %p850 = pneg %p518
      %p851 = scmp.lt.s32.totalorder %s39, 1
      %s852 = scalar_select %p851, %s39, 1
      %s853 = scalar_lea.vmem %s20, %s852
      %p854 = pneg %p547
      %p855 = pneg %p544
      %p856 = pneg %p568
      %p857 = pneg %p565
      %p858 = pneg %p589
      %p859 = pneg %p586
      %p860 = pneg %p615
      %p861 = pneg %p612
      %p862 = scmp.lt.s32.totalorder %s38, 0
      %s863 = scalar_select %p862, %s38, 0
      %s864 = smul.addr %s863, 4
      %s865 = scalar_lea.vmem %s23, %s864
      %s866 = smul.u32 4, %s38
      %p867 = scmp.lt.s32.totalorder %s866, 3
      %s868 = scalar_select %p867, %s866, 3
      %s869 = smul.addr %s868, 8
      %s870 = scalar_lea.vmem %s0, %s869
      %s871 = smul.u32 4, %s38
      %s872 = smul.u32 4, %s38
      %p873 = scmp.lt.s32.totalorder %s872, 3
      %s874 = scalar_select %p873, %s872, 3
      %s875 = smul.addr %s874, 8
      %s876 = scalar_lea.vmem %s1, %s875
      %s877 = smul.u32 4, %s38
      %p878 = scmp.lt.s32.totalorder %s39, 1
      %s879 = scalar_select %p878, %s39, 1
      %s880 = scalar_lea.vmem %s10, %s879
      %p881 = scmp.lt.s32.totalorder %s39, 1
      %s882 = scalar_select %p881, %s39, 1
      %s883 = scalar_lea.vmem %s11, %s882
      %p884 = scmp.lt.s32.totalorder %s39, 1
      %s885 = scalar_select %p884, %s39, 1
      %s886 = smul.addr %s885, 4
      %s887 = smul.addr %s886, 4
      %s888 = scalar_lea.vmem %s12, %s887
      %p889 = scmp.lt.s32.totalorder %s39, 1
      %s890 = scalar_select %p889, %s39, 1
      %s891 = smul.addr %s890, 4
      %s892 = smul.addr %s891, 4
      %s893 = scalar_lea.vmem %s13, %s892
      %p894 = scmp.lt.s32.totalorder %s39, 1
      %s895 = scalar_select %p894, %s39, 1
      %s896 = scalar_lea.vmem %s14, %s895
      %p897 = scmp.lt.s32.totalorder %s39, 1
      %s898 = scalar_select %p897, %s39, 1
      %s899 = scalar_lea.vmem %s15, %s898
      %p900 = scmp.lt.s32.totalorder %s39, 1
      %s901 = scalar_select %p900, %s39, 1
      %s902 = scalar_lea.vmem %s16, %s901
      %p903 = scmp.lt.s32.totalorder %s39, 1
      %s904 = scalar_select %p903, %s39, 1
      %s905 = smul.addr %s904, 4
      %s906 = smul.addr %s905, 4
      %s907 = scalar_lea.vmem %s17, %s906
      %p908 = scmp.lt.s32.totalorder %s39, 1
      %s909 = scalar_select %p908, %s39, 1
      %s910 = scalar_lea.vmem %s18, %s909
      %p911 = scmp.lt.s32.totalorder %s39, 1
      %s912 = scalar_select %p911, %s39, 1
      %s913 = smul.addr %s912, 16
      %s914 = smul.addr %s913, 4
      %s915 = scalar_lea.vmem %s19, %s914
      %p916 = scmp.lt.s32.totalorder %s39, 1
      %s917 = scalar_select %p916, %s39, 1
      %s918 = scalar_lea.vmem %s20, %s917
      %p919 = scmp.lt.s32.totalorder %s38, 0
      %s920 = scalar_select %p919, %s38, 0
      %s921 = smul.addr %s920, 4
      %s922 = scalar_lea.vmem %s23, %s921
      %p924 = scmp.eq.s32.totalorder %s39, 0
      // Predicated region
      $region113: #{_lambda_.3} parent=111 // pred_check
        %p925 = pneg %p924
      $region114: #{_lambda_.3} parent=111 // pred_check_branch
        %927 = sbr.rel (%p925) target = $region116
      $region115: #{_lambda_.3} parent=111 // pred_region
        %v928 = vld [vmem:[%s870] sm:$0xff]
        %v929 = vld [vmem:[%s870 + $0x8] sm:$0xff]
        %v930 = vld [vmem:[%s870 + $0x10] sm:$0xff]
        %v931 = vld [vmem:[%s870 + $0x18] sm:$0xff]
        %v932 = vpack.c.bf16 %v929, %v928
        %v933 = vpack.c.bf16 %v931, %v930
        %v934 = vld [vmem:[%s4] sm:$0xf]
        %v935 = vld [vmem:[%s4 + $0x4] sm:$0xf]
        %v936 = vld [vmem:[%s4 + $0x8] sm:$0xf]
        %v937 = vld [vmem:[%s4 + $0xc] sm:$0xf]
        %v938 = vld [vmem:[%s4 + $0x10] sm:$0xf]
        %v939 = vld [vmem:[%s4 + $0x14] sm:$0xf]
        %v940 = vld [vmem:[%s4 + $0x18] sm:$0xf]
        %v941 = vld [vmem:[%s4 + $0x1c] sm:$0xf]
        %v942 = vld [vmem:[%s5] sm:$0x1]
        %v944 = vlaneseq
        %v945 = vshrl.u32 %v944, 7
        %v946 = vsub.s32 0, %v945
        %v947 = vrot.slane %v942, %v946
        %v957 = vunpack.c.l.b16 %v934
        %v958 = vunpack.c.l.b16 %v935
        %v959 = vunpack.c.l.b16 %v936
        %v960 = vunpack.c.l.b16 %v937
        %v961 = vunpack.c.l.b16 %v938
        %v962 = vunpack.c.l.b16 %v939
        %v963 = vunpack.c.l.b16 %v940
        %v964 = vunpack.c.l.b16 %v941
        %v965 = vpack.c.b16 %v958, %v957
        %v966 = vpack.c.b16 %v960, %v959
        %v967 = vpack.c.b16 %v962, %v961
        %v968 = vpack.c.b16 %v964, %v963
        %vm973 = vcmask 523264
        %v975 = vsel %vm973, %v932, 0
        %v978 = vsel %vm973, %v933, 0
        %980 = vmatprep.subr.bf16.mxu0 0
        %981 = vmatpush1.bf16.msra.mxu0 0
        %982 = vmatprep.subr.bf16.mxu0 0
        %983 = vmatpush1.bf16.msra.mxu0 0
        %984 = vmatprep.subr.bf16.mxu0 0
        %985 = vmatpush1.bf16.msra.mxu0 0
        %986 = vmatprep.subr.bf16.mxu0 0
        %987 = vmatpush1.bf16.msra.mxu0 0
        %988 = vmatprep.subr.bf16.mxu0 0
        %989 = vmatpush1.bf16.msra.mxu0 %v968
        %990 = vmatprep.subr.bf16.mxu0 0
        %991 = vmatpush1.bf16.msra.mxu0 %v967
        %992 = vmatprep.subr.bf16.mxu0 0
        %993 = vmatpush1.bf16.msra.mxu0 %v966
        %994 = vmatprep.subr.bf16.mxu0 0
        %995 = vmatpush1.bf16.msra.mxu0 %v965
        %996 = vmatprep.subr.bf16.mxu0 0
        %997 = vmatpush2.bf16.msra.mxu0 0
        %998 = vmatprep.subr.bf16.mxu0 0
        %999 = vmatpush2.bf16.msra.mxu0 0
        %1000 = vmatprep.subr.bf16.mxu0 0
        %1001 = vmatpush2.bf16.msra.mxu0 0
        %1002 = vmatprep.subr.bf16.mxu0 0
        %1003 = vmatpush2.bf16.msra.mxu0 0
        %1004 = vmatprep.subr.bf16.mxu0 0
        %1005 = vmatpush2.bf16.msra.mxu0 0
        %1006 = vmatprep.subr.bf16.mxu0 0
        %1007 = vmatpush2.bf16.msra.mxu0 0
        %1008 = vmatprep.subr.bf16.mxu0 0
        %1009 = vmatpush2.bf16.msra.mxu0 0
        %1010 = vmatprep.subr.bf16.mxu0 0
        %1011 = vmatpush2.bf16.msra.mxu0 0
        %1012 = vmatprep.mubr.bf16.mxu0 0
        %1013 = vmatmul.mubr.bf16.gmra.mxu0 %v975
        %v1014 = vpop.f32.mrf.mxu0
        %v1015 = vadd.f32 %v947, %v1014
        %v1016 = vpop.f32.mrf.mxu0
        %v1017 = vpop.f32.mrf.mxu0
        %v1018 = vadd.f32 %v947, %v1017
        %v1019 = vpop.f32.mrf.mxu0
        %1020 = vmatprep.mubr.bf16.mxu0 0
        %1021 = vmatmul.mubr.bf16.gmra.mxu0 %v978
        %v1022 = vpop.f32.mrf.mxu0
        %v1023 = vadd.f32 %v947, %v1022
        %v1024 = vpop.f32.mrf.mxu0
        %v1025 = vpop.f32.mrf.mxu0
        %v1026 = vadd.f32 %v947, %v1025
        %v1027 = vpop.f32.mrf.mxu0
        %1028 = vdwg.mxu0
        %v1029 = vld [vmem:[%s876] sm:$0xff]
        %v1030 = vld [vmem:[%s876 + $0x8] sm:$0xff]
        %v1031 = vld [vmem:[%s876 + $0x10] sm:$0xff]
        %v1032 = vld [vmem:[%s876 + $0x18] sm:$0xff]
        %v1033 = vld [vmem:[%s6] sm:$0x7]
        %v1034 = vld [vmem:[%s7] sm:$0x1]
        %v1036 = vlaneseq
        %v1037 = vshrl.u32 %v1036, 7
        %v1038 = vsub.s32 0, %v1037
        %v1039 = vrot.slane %v1034, %v1038
        %vm1041 = vcmask 23552
        %v1043 = vsel %vm1041, %v1029, 0
        %v1046 = vsel %vm1041, %v1030, 0
        %v1049 = vsel %vm1041, %v1031, 0
        %v1052 = vsel %vm1041, %v1032, 0
        %vm1054 = vcmask 1042432
        %v1056 = vsel %vm1054, %v1033, 0
        %1058 = vmatprep.subr.mxu0 0.0
        %1059 = vmatpush1.msra.mxu0 0.0
        %1060 = vmatprep.subr.mxu0 0.0
        %1061 = vmatpush1.msra.mxu0 0.0
        %1062 = vmatprep.subr.mxu0 0.0
        %1063 = vmatpush1.msra.mxu0 0.0
        %1064 = vmatprep.subr.mxu0 0.0
        %1065 = vmatpush1.msra.mxu0 0.0
        %1066 = vmatprep.subr.mxu0 0.0
        %1067 = vmatpush1.msra.mxu0 0.0
        %1068 = vmatprep.subr.mxu0 0.0
        %1069 = vmatpush1.msra.mxu0 0.0
        %1070 = vmatprep.subr.mxu0 0.0
        %1071 = vmatpush1.msra.mxu0 0.0
        %1072 = vmatprep.subr.mxu0 0.0
        %1073 = vmatpush1.msra.mxu0 0.0
        %1074 = vmatprep.subr.mxu0 0.0
        %1075 = vmatpush1.msra.mxu0 0.0
        %1076 = vmatprep.subr.mxu0 0.0
        %1077 = vmatpush1.msra.mxu0 0.0
        %1078 = vmatprep.subr.mxu0 0.0
        %1079 = vmatpush1.msra.mxu0 0.0
        %1080 = vmatprep.subr.mxu0 0.0
        %1081 = vmatpush1.msra.mxu0 0.0
        %1082 = vmatprep.subr.mxu0 0.0
        %1083 = vmatpush1.msra.mxu0 0.0
        %1084 = vmatprep.subr.mxu0 0.0
        %1085 = vmatpush1.msra.mxu0 0.0
        %1086 = vmatprep.subr.mxu0 0.0
        %1087 = vmatpush1.msra.mxu0 0.0
        %1088 = vmatprep.subr.mxu0 0.0
        %1089 = vmatpush1.msra.mxu0 %v1056
        %1090 = vmatprep.subr.mxu0 0.0
        %1091 = vmatpush2.msra.mxu0 0.0
        %1092 = vmatprep.subr.mxu0 0.0
        %1093 = vmatpush2.msra.mxu0 0.0
        %1094 = vmatprep.subr.mxu0 0.0
        %1095 = vmatpush2.msra.mxu0 0.0
        %1096 = vmatprep.subr.mxu0 0.0
        %1097 = vmatpush2.msra.mxu0 0.0
        %1098 = vmatprep.subr.mxu0 0.0
        %1099 = vmatpush2.msra.mxu0 0.0
        %1100 = vmatprep.subr.mxu0 0.0
        %1101 = vmatpush2.msra.mxu0 0.0
        %1102 = vmatprep.subr.mxu0 0.0
        %1103 = vmatpush2.msra.mxu0 0.0
        %1104 = vmatprep.subr.mxu0 0.0
        %1105 = vmatpush2.msra.mxu0 0.0
        %1106 = vmatprep.subr.mxu0 0.0
        %1107 = vmatpush2.msra.mxu0 0.0
        %1108 = vmatprep.subr.mxu0 0.0
        %1109 = vmatpush2.msra.mxu0 0.0
        %1110 = vmatprep.subr.mxu0 0.0
        %1111 = vmatpush2.msra.mxu0 0.0
        %1112 = vmatprep.subr.mxu0 0.0
        %1113 = vmatpush2.msra.mxu0 0.0
        %1114 = vmatprep.subr.mxu0 0.0
        %1115 = vmatpush2.msra.mxu0 0.0
        %1116 = vmatprep.subr.mxu0 0.0
        %1117 = vmatpush2.msra.mxu0 0.0
        %1118 = vmatprep.subr.mxu0 0.0
        %1119 = vmatpush2.msra.mxu0 0.0
        %1120 = vmatprep.subr.mxu0 0.0
        %1121 = vmatpush2.msra.mxu0 0.0
        %1122 = vmatprep.mubr.f32.mxu0 0.0
        %1123 = vmatmul.mubr.f32.gmra.mxu0 %v1043
        %v1124 = vpop.f32.mrf.mxu0
        %v1125 = vadd.f32 %v1039, %v1124
        %v1126 = vpop.f32.mrf.mxu0
        %1127 = vmatprep.mubr.f32.mxu0 0.0
        %1128 = vmatmul.mubr.f32.gmra.mxu0 %v1046
        %v1129 = vpop.f32.mrf.mxu0
        %v1130 = vadd.f32 %v1039, %v1129
        %v1131 = vpop.f32.mrf.mxu0
        %1132 = vmatprep.mubr.f32.mxu0 0.0
        %1133 = vmatmul.mubr.f32.gmra.mxu0 %v1049
        %v1134 = vpop.f32.mrf.mxu0
        %v1135 = vadd.f32 %v1039, %v1134
        %v1136 = vpop.f32.mrf.mxu0
        %1137 = vmatprep.mubr.f32.mxu0 0.0
        %1138 = vmatmul.mubr.f32.gmra.mxu0 %v1052
        %v1139 = vpop.f32.mrf.mxu0
        %v1140 = vadd.f32 %v1039, %v1139
        %v1141 = vpop.f32.mrf.mxu0
        %1142 = vdwg.mxu0
        %v1143 = vmul.f32 %v1125, 0.5
        %v1144 = vmul.f32 %v1130, 0.5
        %v1145 = vmul.f32 %v1135, 0.5
        %v1146 = vmul.f32 %v1140, 0.5
        %v1147 = vmul.f32 %v1125, 0.044715
        %v1148 = vmul.f32 %v1130, 0.044715
        %v1149 = vmul.f32 %v1135, 0.044715
        %v1150 = vmul.f32 %v1140, 0.044715
        %v1151 = vmul.f32 %v1147, %v1125
        %v1152 = vmul.f32 %v1148, %v1130
        %v1153 = vmul.f32 %v1149, %v1135
        %v1154 = vmul.f32 %v1150, %v1140
        %v1155 = vmul.f32 %v1151, %v1125
        %v1156 = vmul.f32 %v1152, %v1130
        %v1157 = vmul.f32 %v1153, %v1135
        %v1158 = vmul.f32 %v1154, %v1140
        %v1159 = vadd.f32 %v1125, %v1155
        %v1160 = vadd.f32 %v1130, %v1156
        %v1161 = vadd.f32 %v1135, %v1157
        %v1162 = vadd.f32 %v1140, %v1158
        %v1163 = vmul.f32 %v1159, 0.7978846
        %v1164 = vmul.f32 %v1160, 0.7978846
        %v1165 = vmul.f32 %v1161, 0.7978846
        %v1166 = vmul.f32 %v1162, 0.7978846
        %v1167 = vtanh.pop %v1163
        %v1168 = vtanh.pop %v1164
        %v1169 = vtanh.pop %v1165
        %v1170 = vtanh.pop %v1166
        %v1171 = vadd.f32 %v1167, 1.0
        %v1172 = vadd.f32 %v1168, 1.0
        %v1173 = vadd.f32 %v1169, 1.0
        %v1174 = vadd.f32 %v1170, 1.0
        %v1175 = vmul.f32 %v1143, %v1171
        %v1176 = vmul.f32 %v1144, %v1172
        %v1177 = vmul.f32 %v1145, %v1173
        %v1178 = vmul.f32 %v1146, %v1174
        %v1179 = vpack.c.bf16 %v1176, %v1175
        %v1180 = vpack.c.bf16 %v1178, %v1177
        %v1181 = vld [vmem:[%s8] sm:$0xf]
        %v1182 = vld [vmem:[%s8 + $0x4] sm:$0xf]
        %v1183 = vld [vmem:[%s8 + $0x8] sm:$0xf]
        %v1184 = vld [vmem:[%s8 + $0xc] sm:$0xf]
        %v1185 = vld [vmem:[%s8 + $0x10] sm:$0xf]
        %v1186 = vld [vmem:[%s8 + $0x14] sm:$0xf]
        %v1187 = vld [vmem:[%s8 + $0x18] sm:$0xf]
        %v1188 = vld [vmem:[%s8 + $0x1c] sm:$0xf]
        %v1189 = vld [vmem:[%s8 + $0x20] sm:$0xf]
        %v1190 = vld [vmem:[%s8 + $0x24] sm:$0xf]
        %v1191 = vld [vmem:[%s8 + $0x28] sm:$0xf]
        %v1192 = vld [vmem:[%s8 + $0x2c] sm:$0xf]
        %v1193 = vld [vmem:[%s8 + $0x30] sm:$0xf]
        %v1194 = vld [vmem:[%s8 + $0x34] sm:$0xf]
        %v1195 = vld [vmem:[%s8 + $0x38] sm:$0xf]
        %v1196 = vld [vmem:[%s8 + $0x3c] sm:$0xf]
        %v1197 = vld [vmem:[%s9] sm:$0x1]
        %v1199 = vlaneseq
        %v1200 = vshrl.u32 %v1199, 7
        %v1201 = vsub.s32 0, %v1200
        %v1202 = vrot.slane %v1197, %v1201
        %v1220 = vunpack.c.l.b16 %v1181
        %v1221 = vunpack.c.l.b16 %v1182
        %v1222 = vunpack.c.l.b16 %v1183
        %v1223 = vunpack.c.l.b16 %v1184
        %v1224 = vunpack.c.l.b16 %v1185
        %v1225 = vunpack.c.l.b16 %v1186
        %v1226 = vunpack.c.l.b16 %v1187
        %v1227 = vunpack.c.l.b16 %v1188
        %v1228 = vunpack.c.l.b16 %v1189
        %v1229 = vunpack.c.l.b16 %v1190
        %v1230 = vunpack.c.l.b16 %v1191
        %v1231 = vunpack.c.l.b16 %v1192
        %v1232 = vunpack.c.l.b16 %v1193
        %v1233 = vunpack.c.l.b16 %v1194
        %v1234 = vunpack.c.l.b16 %v1195
        %v1235 = vunpack.c.l.b16 %v1196
        %v1236 = vpack.c.b16 %v1221, %v1220
        %v1237 = vpack.c.b16 %v1223, %v1222
        %v1238 = vpack.c.b16 %v1225, %v1224
        %v1239 = vpack.c.b16 %v1227, %v1226
        %v1240 = vpack.c.b16 %v1229, %v1228
        %v1241 = vpack.c.b16 %v1231, %v1230
        %v1242 = vpack.c.b16 %v1233, %v1232
        %v1243 = vpack.c.b16 %v1235, %v1234
        %1252 = vmatprep.subr.bf16.mxu0 0
        %1253 = vmatpush1.bf16.msra.mxu0 %v1243
        %1254 = vmatprep.subr.bf16.mxu0 0
        %1255 = vmatpush1.bf16.msra.mxu0 %v1242
        %1256 = vmatprep.subr.bf16.mxu0 0
        %1257 = vmatpush1.bf16.msra.mxu0 %v1241
        %1258 = vmatprep.subr.bf16.mxu0 0
        %1259 = vmatpush1.bf16.msra.mxu0 %v1240
        %1260 = vmatprep.subr.bf16.mxu0 0
        %1261 = vmatpush1.bf16.msra.mxu0 %v1239
        %1262 = vmatprep.subr.bf16.mxu0 0
        %1263 = vmatpush1.bf16.msra.mxu0 %v1238
        %1264 = vmatprep.subr.bf16.mxu0 0
        %1265 = vmatpush1.bf16.msra.mxu0 %v1237
        %1266 = vmatprep.subr.bf16.mxu0 0
        %1267 = vmatpush1.bf16.msra.mxu0 %v1236
        %1268 = vmatprep.subr.bf16.mxu0 0
        %1269 = vmatpush2.bf16.msra.mxu0 0
        %1270 = vmatprep.subr.bf16.mxu0 0
        %1271 = vmatpush2.bf16.msra.mxu0 0
        %1272 = vmatprep.subr.bf16.mxu0 0
        %1273 = vmatpush2.bf16.msra.mxu0 0
        %1274 = vmatprep.subr.bf16.mxu0 0
        %1275 = vmatpush2.bf16.msra.mxu0 0
        %1276 = vmatprep.subr.bf16.mxu0 0
        %1277 = vmatpush2.bf16.msra.mxu0 0
        %1278 = vmatprep.subr.bf16.mxu0 0
        %1279 = vmatpush2.bf16.msra.mxu0 0
        %1280 = vmatprep.subr.bf16.mxu0 0
        %1281 = vmatpush2.bf16.msra.mxu0 0
        %1282 = vmatprep.subr.bf16.mxu0 0
        %1283 = vmatpush2.bf16.msra.mxu0 0
        %1284 = vmatprep.mubr.bf16.mxu0 0
        %1285 = vmatmul.mubr.bf16.gmra.mxu0 %v1179
        %v1286 = vpop.f32.mrf.mxu0
        %v1287 = vadd.f32 %v1202, %v1286
        %v1288 = vpop.f32.mrf.mxu0
        %v1289 = vpop.f32.mrf.mxu0
        %v1290 = vadd.f32 %v1202, %v1289
        %v1291 = vpop.f32.mrf.mxu0
        %1292 = vmatprep.mubr.bf16.mxu0 0
        %1293 = vmatmul.mubr.bf16.gmra.mxu0 %v1180
        %v1294 = vpop.f32.mrf.mxu0
        %v1295 = vadd.f32 %v1202, %v1294
        %v1296 = vpop.f32.mrf.mxu0
        %v1297 = vpop.f32.mrf.mxu0
        %v1298 = vadd.f32 %v1202, %v1297
        %v1299 = vpop.f32.mrf.mxu0
        %1300 = vdwg.mxu0
        %vm1301 = vcmask 261120
        %1302 = vst.msk [vmem:[#allocation2] sm:$0xff] %vm1301, 0.0
        %1303 = vst.msk [vmem:[#allocation2 + $0x8] sm:$0xff] %vm1301, 0.0
        %1304 = vst.msk [vmem:[#allocation2 + $0x10] sm:$0xff] %vm1301, 0.0
        %1305 = vst.msk [vmem:[#allocation2 + $0x18] sm:$0xff] %vm1301, 0.0
        %1306 = vst.msk [vmem:[#allocation2 + $0x20] sm:$0xff] %vm1301, 0.0
        %1307 = vst.msk [vmem:[#allocation2 + $0x28] sm:$0xff] %vm1301, 0.0
        %1308 = vst.msk [vmem:[#allocation2 + $0x30] sm:$0xff] %vm1301, 0.0
        %1309 = vst.msk [vmem:[#allocation2 + $0x38] sm:$0xff] %vm1301, 0.0
        %1310 = vst.msk [vmem:[#allocation3] sm:$0xff] %vm1301, 0.0
        %1311 = vst.msk [vmem:[#allocation3 + $0x8] sm:$0xff] %vm1301, 0.0
        %1312 = vst.msk [vmem:[#allocation3 + $0x10] sm:$0xff] %vm1301, 0.0
        %1313 = vst.msk [vmem:[#allocation3 + $0x18] sm:$0xff] %vm1301, 0.0
        %1314 = vst.msk [vmem:[#allocation3 + $0x20] sm:$0xff] %vm1301, 0.0
        %1315 = vst.msk [vmem:[#allocation3 + $0x28] sm:$0xff] %vm1301, 0.0
        %1316 = vst.msk [vmem:[#allocation3 + $0x30] sm:$0xff] %vm1301, 0.0
        %1317 = vst.msk [vmem:[#allocation3 + $0x38] sm:$0xff] %vm1301, 0.0
        %1318 = vst.msk [vmem:[#allocation2] sm:$0xff] %vm1301, %v1015
        %1319 = vst.msk [vmem:[#allocation2 + $0x10] sm:$0xff] %vm1301, %v1018
        %1320 = vst.msk [vmem:[#allocation2 + $0x20] sm:$0xff] %vm1301, %v1023
        %1321 = vst.msk [vmem:[#allocation2 + $0x30] sm:$0xff] %vm1301, %v1026
        %1322 = vst.msk [vmem:[#allocation3] sm:$0xff] %vm1301, %v1287
        %1323 = vst.msk [vmem:[#allocation3 + $0x10] sm:$0xff] %vm1301, %v1290
        %1324 = vst.msk [vmem:[#allocation3 + $0x20] sm:$0xff] %vm1301, %v1295
        %1325 = vst.msk [vmem:[#allocation3 + $0x30] sm:$0xff] %vm1301, %v1298
        %v1326 = vld [vmem:[%s2] sm:$0x1]
        %vm1327 = vcmask 253952
        %1328 = vst.msk [vmem:[#allocation2 + $0x8] sm:$0x1] %vm1327, %v1326
        %1329 = vst.msk [vmem:[#allocation2 + $0x18] sm:$0x1] %vm1327, %v1326
        %1330 = vst.msk [vmem:[#allocation2 + $0x28] sm:$0x1] %vm1327, %v1326
        %1331 = vst.msk [vmem:[#allocation2 + $0x38] sm:$0x1] %vm1327, %v1326
        %v1332 = vld [vmem:[%s3] sm:$0x1]
        %1333 = vst.msk [vmem:[#allocation3 + $0x8] sm:$0x1] %vm1327, %v1332
        %1334 = vst.msk [vmem:[#allocation3 + $0x18] sm:$0x1] %vm1327, %v1332
        %1335 = vst.msk [vmem:[#allocation3 + $0x28] sm:$0x1] %vm1327, %v1332
        %1336 = vst.msk [vmem:[#allocation3 + $0x38] sm:$0x1] %vm1327, %v1332
      $region116: #{_lambda_.3} parent=111 // pred_fallthru
        _
      %v1337 = vld [vmem:[#allocation2] sm:$0xff]
      %v1338 = vld [vmem:[#allocation2 + $0x8] sm:$0xff]
      %v1339 = vld [vmem:[#allocation2 + $0x10] sm:$0xff]
      %v1340 = vld [vmem:[#allocation2 + $0x18] sm:$0xff]
      %v1341 = vld [vmem:[#allocation2 + $0x20] sm:$0xff]
      %v1342 = vld [vmem:[#allocation2 + $0x28] sm:$0xff]
      %v1343 = vld [vmem:[#allocation2 + $0x30] sm:$0xff]
      %v1344 = vld [vmem:[#allocation2 + $0x38] sm:$0xff]
      %v1345 = vld [vmem:[#allocation3] sm:$0xff]
      %v1346 = vld [vmem:[#allocation3 + $0x8] sm:$0xff]
      %v1347 = vld [vmem:[#allocation3 + $0x10] sm:$0xff]
      %v1348 = vld [vmem:[#allocation3 + $0x18] sm:$0xff]
      %v1349 = vld [vmem:[#allocation3 + $0x20] sm:$0xff]
      %v1350 = vld [vmem:[#allocation3 + $0x28] sm:$0xff]
      %v1351 = vld [vmem:[#allocation3 + $0x30] sm:$0xff]
      %v1352 = vld [vmem:[#allocation3 + $0x38] sm:$0xff]
      %v1353 = vadd.f32 %v1337, %v1345
      %v1354 = vadd.f32 %v1338, %v1346
      %v1355 = vadd.f32 %v1339, %v1347
      %v1356 = vadd.f32 %v1340, %v1348
      %v1357 = vadd.f32 %v1341, %v1349
      %v1358 = vadd.f32 %v1342, %v1350
      %v1359 = vadd.f32 %v1343, %v1351
      %v1360 = vadd.f32 %v1344, %v1352
      %v1361 = vld [vmem:[%s880] sm:$0x1]
      %v1362 = vld [vmem:[%s883] sm:$0x1]
      %vm1363 = vcmask 261120
      %v1364 = vsel %vm1363, %v1353, 0.0
      %1365 = vadd.xlane.f32.xlu0 %v1364
      %v1366 = vpop.xlane.xlu0 %1365
      %v1367 = vsel %vm1363, %v1354, 0.0
      %1368 = vadd.xlane.f32.xlu0 %v1367
      %v1369 = vpop.xlane.xlu0 %1368
      %v1370 = vsel %vm1363, %v1355, 0.0
      %1371 = vadd.xlane.f32.xlu0 %v1370
      %v1372 = vpop.xlane.xlu0 %1371
      %v1373 = vsel %vm1363, %v1356, 0.0
      %1374 = vadd.xlane.f32.xlu0 %v1373
      %v1375 = vpop.xlane.xlu0 %1374
      %v1376 = vsel %vm1363, %v1357, 0.0
      %1377 = vadd.xlane.f32.xlu0 %v1376
      %v1378 = vpop.xlane.xlu0 %1377
      %v1379 = vsel %vm1363, %v1358, 0.0
      %1380 = vadd.xlane.f32.xlu0 %v1379
      %v1381 = vpop.xlane.xlu0 %1380
      %v1382 = vsel %vm1363, %v1359, 0.0
      %1383 = vadd.xlane.f32.xlu0 %v1382
      %v1384 = vpop.xlane.xlu0 %1383
      %v1385 = vsel %vm1363, %v1360, 0.0
      %1386 = vadd.xlane.f32.xlu0 %v1385
      %v1387 = vpop.xlane.xlu0 %1386
      %v1388 = vrcp.pop 32.0
      %v1389 = vmul.f32 %v1366, %v1388
      %v1390 = vmul.f32 %v1369, %v1388
      %v1391 = vmul.f32 %v1372, %v1388
      %v1392 = vmul.f32 %v1375, %v1388
      %v1393 = vmul.f32 %v1378, %v1388
      %v1394 = vmul.f32 %v1381, %v1388
      %v1395 = vmul.f32 %v1384, %v1388
      %v1396 = vmul.f32 %v1387, %v1388
      %v1397 = vsub.f32 %v1353, %v1389
      %v1398 = vsub.f32 %v1354, %v1390
      %v1399 = vsub.f32 %v1355, %v1391
      %v1400 = vsub.f32 %v1356, %v1392
      %v1401 = vsub.f32 %v1357, %v1393
      %v1402 = vsub.f32 %v1358, %v1394
      %v1403 = vsub.f32 %v1359, %v1395
      %v1404 = vsub.f32 %v1360, %v1396
      %v1405 = vmul.f32 %v1397, %v1397
      %v1406 = vmul.f32 %v1398, %v1398
      %v1407 = vmul.f32 %v1399, %v1399
      %v1408 = vmul.f32 %v1400, %v1400
      %v1409 = vmul.f32 %v1401, %v1401
      %v1410 = vmul.f32 %v1402, %v1402
      %v1411 = vmul.f32 %v1403, %v1403
      %v1412 = vmul.f32 %v1404, %v1404
      %v1413 = vsel %vm1363, %v1405, 0.0
      %1414 = vadd.xlane.f32.xlu0 %v1413
      %v1415 = vpop.xlane.xlu0 %1414
      %v1416 = vsel %vm1363, %v1406, 0.0
      %1417 = vadd.xlane.f32.xlu0 %v1416
      %v1418 = vpop.xlane.xlu0 %1417
      %v1419 = vsel %vm1363, %v1407, 0.0
      %1420 = vadd.xlane.f32.xlu0 %v1419
      %v1421 = vpop.xlane.xlu0 %1420
      %v1422 = vsel %vm1363, %v1408, 0.0
      %1423 = vadd.xlane.f32.xlu0 %v1422
      %v1424 = vpop.xlane.xlu0 %1423
      %v1425 = vsel %vm1363, %v1409, 0.0
      %1426 = vadd.xlane.f32.xlu0 %v1425
      %v1427 = vpop.xlane.xlu0 %1426
      %v1428 = vsel %vm1363, %v1410, 0.0
      %1429 = vadd.xlane.f32.xlu0 %v1428
      %v1430 = vpop.xlane.xlu0 %1429
      %v1431 = vsel %vm1363, %v1411, 0.0
      %1432 = vadd.xlane.f32.xlu0 %v1431
      %v1433 = vpop.xlane.xlu0 %1432
      %v1434 = vsel %vm1363, %v1412, 0.0
      %1435 = vadd.xlane.f32.xlu0 %v1434
      %v1436 = vpop.xlane.xlu0 %1435
      %v1437 = vmul.f32 %v1415, %v1388
      %v1438 = vmul.f32 %v1418, %v1388
      %v1439 = vmul.f32 %v1421, %v1388
      %v1440 = vmul.f32 %v1424, %v1388
      %v1441 = vmul.f32 %v1427, %v1388
      %v1442 = vmul.f32 %v1430, %v1388
      %v1443 = vmul.f32 %v1433, %v1388
      %v1444 = vmul.f32 %v1436, %v1388
      %v1445 = vadd.f32 %v1437, 1e-05
      %v1446 = vadd.f32 %v1438, 1e-05
      %v1447 = vadd.f32 %v1439, 1e-05
      %v1448 = vadd.f32 %v1440, 1e-05
      %v1449 = vadd.f32 %v1441, 1e-05
      %v1450 = vadd.f32 %v1442, 1e-05
      %v1451 = vadd.f32 %v1443, 1e-05
      %v1452 = vadd.f32 %v1444, 1e-05
      %v1453 = vrsqrt.pop %v1445
      %v1454 = vrsqrt.pop %v1446
      %v1455 = vrsqrt.pop %v1447
      %v1456 = vrsqrt.pop %v1448
      %v1457 = vrsqrt.pop %v1449
      %v1458 = vrsqrt.pop %v1450
      %v1459 = vrsqrt.pop %v1451
      %v1460 = vrsqrt.pop %v1452
      %v1461 = vmul.f32 %v1397, %v1453
      %v1462 = vmul.f32 %v1398, %v1454
      %v1463 = vmul.f32 %v1399, %v1455
      %v1464 = vmul.f32 %v1400, %v1456
      %v1465 = vmul.f32 %v1401, %v1457
      %v1466 = vmul.f32 %v1402, %v1458
      %v1467 = vmul.f32 %v1403, %v1459
      %v1468 = vmul.f32 %v1404, %v1460
      %v1470 = vlaneseq
      %v1471 = vshrl.u32 %v1470, 7
      %v1472 = vsub.s32 0, %v1471
      %v1473 = vrot.slane %v1361, %v1472
      %v1475 = vmul.f32 %v1461, %v1473
      %v1476 = vmul.f32 %v1462, %v1473
      %v1477 = vmul.f32 %v1463, %v1473
      %v1478 = vmul.f32 %v1464, %v1473
      %v1479 = vmul.f32 %v1465, %v1473
      %v1480 = vmul.f32 %v1466, %v1473
      %v1481 = vmul.f32 %v1467, %v1473
      %v1482 = vmul.f32 %v1468, %v1473
      %v1484 = vlaneseq
      %v1485 = vshrl.u32 %v1484, 7
      %v1486 = vsub.s32 0, %v1485
      %v1487 = vrot.slane %v1362, %v1486
      %v1489 = vadd.f32 %v1475, %v1487
      %v1490 = vadd.f32 %v1476, %v1487
      %v1491 = vadd.f32 %v1477, %v1487
      %v1492 = vadd.f32 %v1478, %v1487
      %v1493 = vadd.f32 %v1479, %v1487
      %v1494 = vadd.f32 %v1480, %v1487
      %v1495 = vadd.f32 %v1481, %v1487
      %v1496 = vadd.f32 %v1482, %v1487
      %v1497 = vpack.c.bf16 %v1490, %v1489
      %v1498 = vpack.c.bf16 %v1492, %v1491
      %v1499 = vpack.c.bf16 %v1494, %v1493
      %v1500 = vpack.c.bf16 %v1496, %v1495
      %v1501 = vld [vmem:[%s888] sm:$0xf]
      %v1502 = vld [vmem:[%s888 + $0x4] sm:$0xf]
      %v1503 = vld [vmem:[%s888 + $0x8] sm:$0xf]
      %v1504 = vld [vmem:[%s888 + $0xc] sm:$0xf]
      %v1509 = vunpack.c.l.b16 %v1501
      %v1510 = vunpack.c.l.b16 %v1502
      %v1511 = vunpack.c.l.b16 %v1503
      %v1512 = vunpack.c.l.b16 %v1504
      %v1513 = vpack.c.b16 %v1510, %v1509
      %v1514 = vpack.c.b16 %v1512, %v1511
      %v1518 = vsel %vm1363, %v1497, 0
      %v1521 = vsel %vm1363, %v1498, 0
      %v1524 = vsel %vm1363, %v1499, 0
      %v1527 = vsel %vm1363, %v1500, 0
      %1529 = vmatprep.subr.bf16.mxu0 0
      %1530 = vmatpush1.bf16.msra.mxu0 0
      %1531 = vmatprep.subr.bf16.mxu0 0
      %1532 = vmatpush1.bf16.msra.mxu0 0
      %1533 = vmatprep.subr.bf16.mxu0 0
      %1534 = vmatpush1.bf16.msra.mxu0 0
      %1535 = vmatprep.subr.bf16.mxu0 0
      %1536 = vmatpush1.bf16.msra.mxu0 0
      %1537 = vmatprep.subr.bf16.mxu0 0
      %1538 = vmatpush1.bf16.msra.mxu0 0
      %1539 = vmatprep.subr.bf16.mxu0 0
      %1540 = vmatpush1.bf16.msra.mxu0 0
      %1541 = vmatprep.subr.bf16.mxu0 0
      %1542 = vmatpush1.bf16.msra.mxu0 %v1514
      %1543 = vmatprep.subr.bf16.mxu0 0
      %1544 = vmatpush1.bf16.msra.mxu0 %v1513
      %1545 = vmatprep.subr.bf16.mxu0 0
      %1546 = vmatpush2.bf16.msra.mxu0 0
      %1547 = vmatprep.subr.bf16.mxu0 0
      %1548 = vmatpush2.bf16.msra.mxu0 0
      %1549 = vmatprep.subr.bf16.mxu0 0
      %1550 = vmatpush2.bf16.msra.mxu0 0
      %1551 = vmatprep.subr.bf16.mxu0 0
      %1552 = vmatpush2.bf16.msra.mxu0 0
      %1553 = vmatprep.subr.bf16.mxu0 0
      %1554 = vmatpush2.bf16.msra.mxu0 0
      %1555 = vmatprep.subr.bf16.mxu0 0
      %1556 = vmatpush2.bf16.msra.mxu0 0
      %1557 = vmatprep.subr.bf16.mxu0 0
      %1558 = vmatpush2.bf16.msra.mxu0 0
      %1559 = vmatprep.subr.bf16.mxu0 0
      %1560 = vmatpush2.bf16.msra.mxu0 0
      %1561 = vmatprep.mubr.bf16.mxu0 0
      %1562 = vmatmul.mubr.bf16.gmra.mxu0 %v1518
      %v1563 = vpop.f32.mrf.mxu0
      %v1564 = vadd.f32 0.0, %v1563
      %v1565 = vpop.f32.mrf.mxu0
      %v1566 = vpop.f32.mrf.mxu0
      %v1567 = vadd.f32 0.0, %v1566
      %v1568 = vpop.f32.mrf.mxu0
      %1569 = vmatprep.mubr.bf16.mxu0 0
      %1570 = vmatmul.mubr.bf16.gmra.mxu0 %v1521
      %v1571 = vpop.f32.mrf.mxu0
      %v1572 = vadd.f32 0.0, %v1571
      %v1573 = vpop.f32.mrf.mxu0
      %v1574 = vpop.f32.mrf.mxu0
      %v1575 = vadd.f32 0.0, %v1574
      %v1576 = vpop.f32.mrf.mxu0
      %1577 = vmatprep.mubr.bf16.mxu0 0
      %1578 = vmatmul.mubr.bf16.gmra.mxu0 %v1524
      %v1579 = vpop.f32.mrf.mxu0
      %v1580 = vadd.f32 0.0, %v1579
      %v1581 = vpop.f32.mrf.mxu0
      %v1582 = vpop.f32.mrf.mxu0
      %v1583 = vadd.f32 0.0, %v1582
      %v1584 = vpop.f32.mrf.mxu0
      %1585 = vmatprep.mubr.bf16.mxu0 0
      %1586 = vmatmul.mubr.bf16.gmra.mxu0 %v1527
      %v1587 = vpop.f32.mrf.mxu0
      %v1588 = vadd.f32 0.0, %v1587
      %v1589 = vpop.f32.mrf.mxu0
      %v1590 = vpop.f32.mrf.mxu0
      %v1591 = vadd.f32 0.0, %v1590
      %v1592 = vpop.f32.mrf.mxu0
      %1593 = vdwg.mxu0
      %v1594 = vlaneseq
      %v1595 = vand.u32 %v1594, 127
      %vm1596 = vcmp.lt.s32.totalorder %v1595, 9
      %v1597 = vld [vmem:[%s893] sm:$0xf]
      %v1598 = vld [vmem:[%s893 + $0x4] sm:$0xf]
      %v1599 = vld [vmem:[%s893 + $0x8] sm:$0xf]
      %v1600 = vld [vmem:[%s893 + $0xc] sm:$0xf]
      %v1601 = vpack.c.bf16 %v1567, %v1564
      %v1602 = vpack.c.bf16 %v1575, %v1572
      %v1603 = vpack.c.bf16 %v1583, %v1580
      %v1604 = vpack.c.bf16 %v1591, %v1588
      %1606 = vrot.lane.b32.xlu0 %v1601, 96
      %v1607 = vpop.permute.xlu0 %1606
      %vm1608 = vcmask 64512
      %v1610 = vsel %vm1608, %v1601, 0
      %v1613 = vsel %vm1608, %v1607, 0
      %1615 = vmatprep.subr.bf16.mxu0 0
      %1616 = vmatpush1.bf16.xpose.msra.mxu0 0
      %1617 = vmatprep.subr.bf16.mxu0 0
      %1618 = vmatpush1.bf16.xpose.msra.mxu0 0
      %1619 = vmatprep.subr.bf16.mxu0 0
      %1620 = vmatpush1.bf16.xpose.msra.mxu0 0
      %1621 = vmatprep.subr.bf16.mxu0 0
      %1622 = vmatpush1.bf16.xpose.msra.mxu0 0
      %1623 = vmatprep.subr.bf16.mxu0 0
      %1624 = vmatpush1.bf16.xpose.msra.mxu0 0
      %1625 = vmatprep.subr.bf16.mxu0 0
      %1626 = vmatpush1.bf16.xpose.msra.mxu0 0
      %1627 = vmatprep.subr.bf16.mxu0 0
      %1628 = vmatpush1.bf16.xpose.msra.mxu0 0
      %1629 = vmatprep.subr.bf16.mxu0 0
      %1630 = vmatpush1.bf16.xpose.msra.mxu0 %v1613
      %1631 = vmatprep.subr.bf16.mxu0 0
      %1632 = vmatpush2.bf16.xpose.msra.mxu0 0
      %1633 = vmatprep.subr.bf16.mxu0 0
      %1634 = vmatpush2.bf16.xpose.msra.mxu0 0
      %1635 = vmatprep.subr.bf16.mxu0 0
      %1636 = vmatpush2.bf16.xpose.msra.mxu0 0
      %1637 = vmatprep.subr.bf16.mxu0 0
      %1638 = vmatpush2.bf16.xpose.msra.mxu0 0
      %1639 = vmatprep.subr.bf16.mxu0 0
      %1640 = vmatpush2.bf16.xpose.msra.mxu0 0
      %1641 = vmatprep.subr.bf16.mxu0 0
      %1642 = vmatpush2.bf16.xpose.msra.mxu0 0
      %1643 = vmatprep.subr.bf16.mxu0 0
      %1644 = vmatpush2.bf16.xpose.msra.mxu0 0
      %1645 = vmatprep.subr.bf16.mxu0 0
      %1646 = vmatpush2.bf16.xpose.msra.mxu0 0
      %1647 = vmatprep.mubr.bf16.mxu0 0
      %1648 = vmatmul.mubr.bf16.gmra.mxu0 %v1610
      %v1649 = vpop.f32.mrf.mxu0
      %v1650 = vadd.f32 0.0, %v1649
      %v1651 = vpop.f32.mrf.mxu0
      %v1652 = vpop.f32.mrf.mxu0
      %v1653 = vadd.f32 0.0, %v1652
      %v1654 = vpop.f32.mrf.mxu0
      %1655 = vdwg.mxu0
      %1657 = vrot.lane.b32.xlu0 %v1602, 96
      %v1658 = vpop.permute.xlu0 %1657
      %v1660 = vsel %vm1608, %v1602, 0
      %v1663 = vsel %vm1608, %v1658, 0
      %1665 = vmatprep.subr.bf16.mxu0 0
      %1666 = vmatpush1.bf16.xpose.msra.mxu0 0
      %1667 = vmatprep.subr.bf16.mxu0 0
      %1668 = vmatpush1.bf16.xpose.msra.mxu0 0
      %1669 = vmatprep.subr.bf16.mxu0 0
      %1670 = vmatpush1.bf16.xpose.msra.mxu0 0
      %1671 = vmatprep.subr.bf16.mxu0 0
      %1672 = vmatpush1.bf16.xpose.msra.mxu0 0
      %1673 = vmatprep.subr.bf16.mxu0 0
      %1674 = vmatpush1.bf16.xpose.msra.mxu0 0
      %1675 = vmatprep.subr.bf16.mxu0 0
      %1676 = vmatpush1.bf16.xpose.msra.mxu0 0
      %1677 = vmatprep.subr.bf16.mxu0 0
      %1678 = vmatpush1.bf16.xpose.msra.mxu0 0
      %1679 = vmatprep.subr.bf16.mxu0 0
      %1680 = vmatpush1.bf16.xpose.msra.mxu0 %v1663
      %1681 = vmatprep.subr.bf16.mxu0 0
      %1682 = vmatpush2.bf16.xpose.msra.mxu0 0
      %1683 = vmatprep.subr.bf16.mxu0 0
      %1684 = vmatpush2.bf16.xpose.msra.mxu0 0
      %1685 = vmatprep.subr.bf16.mxu0 0
      %1686 = vmatpush2.bf16.xpose.msra.mxu0 0
      %1687 = vmatprep.subr.bf16.mxu0 0
      %1688 = vmatpush2.bf16.xpose.msra.mxu0 0
      %1689 = vmatprep.subr.bf16.mxu0 0
      %1690 = vmatpush2.bf16.xpose.msra.mxu0 0
      %1691 = vmatprep.subr.bf16.mxu0 0
      %1692 = vmatpush2.bf16.xpose.msra.mxu0 0
      %1693 = vmatprep.subr.bf16.mxu0 0
      %1694 = vmatpush2.bf16.xpose.msra.mxu0 0
      %1695 = vmatprep.subr.bf16.mxu0 0
      %1696 = vmatpush2.bf16.xpose.msra.mxu0 0
      %1697 = vmatprep.mubr.bf16.mxu0 0
      %1698 = vmatmul.mubr.bf16.gmra.mxu0 %v1660
      %v1699 = vpop.f32.mrf.mxu0
      %v1700 = vadd.f32 0.0, %v1699
      %v1701 = vpop.f32.mrf.mxu0
      %v1702 = vpop.f32.mrf.mxu0
      %v1703 = vadd.f32 0.0, %v1702
      %v1704 = vpop.f32.mrf.mxu0
      %1705 = vdwg.mxu0
      %1707 = vrot.lane.b32.xlu0 %v1603, 96
      %v1708 = vpop.permute.xlu0 %1707
      %v1710 = vsel %vm1608, %v1603, 0
      %v1713 = vsel %vm1608, %v1708, 0
      %1715 = vmatprep.subr.bf16.mxu0 0
      %1716 = vmatpush1.bf16.xpose.msra.mxu0 0
      %1717 = vmatprep.subr.bf16.mxu0 0
      %1718 = vmatpush1.bf16.xpose.msra.mxu0 0
      %1719 = vmatprep.subr.bf16.mxu0 0
      %1720 = vmatpush1.bf16.xpose.msra.mxu0 0
      %1721 = vmatprep.subr.bf16.mxu0 0
      %1722 = vmatpush1.bf16.xpose.msra.mxu0 0
      %1723 = vmatprep.subr.bf16.mxu0 0
      %1724 = vmatpush1.bf16.xpose.msra.mxu0 0
      %1725 = vmatprep.subr.bf16.mxu0 0
      %1726 = vmatpush1.bf16.xpose.msra.mxu0 0
      %1727 = vmatprep.subr.bf16.mxu0 0
      %1728 = vmatpush1.bf16.xpose.msra.mxu0 0
      %1729 = vmatprep.subr.bf16.mxu0 0
      %1730 = vmatpush1.bf16.xpose.msra.mxu0 %v1713
      %1731 = vmatprep.subr.bf16.mxu0 0
      %1732 = vmatpush2.bf16.xpose.msra.mxu0 0
      %1733 = vmatprep.subr.bf16.mxu0 0
      %1734 = vmatpush2.bf16.xpose.msra.mxu0 0
      %1735 = vmatprep.subr.bf16.mxu0 0
      %1736 = vmatpush2.bf16.xpose.msra.mxu0 0
      %1737 = vmatprep.subr.bf16.mxu0 0
      %1738 = vmatpush2.bf16.xpose.msra.mxu0 0
      %1739 = vmatprep.subr.bf16.mxu0 0
      %1740 = vmatpush2.bf16.xpose.msra.mxu0 0
      %1741 = vmatprep.subr.bf16.mxu0 0
      %1742 = vmatpush2.bf16.xpose.msra.mxu0 0
      %1743 = vmatprep.subr.bf16.mxu0 0
      %1744 = vmatpush2.bf16.xpose.msra.mxu0 0
      %1745 = vmatprep.subr.bf16.mxu0 0
      %1746 = vmatpush2.bf16.xpose.msra.mxu0 0
      %1747 = vmatprep.mubr.bf16.mxu0 0
      %1748 = vmatmul.mubr.bf16.gmra.mxu0 %v1710
      %v1749 = vpop.f32.mrf.mxu0
      %v1750 = vadd.f32 0.0, %v1749
      %v1751 = vpop.f32.mrf.mxu0
      %v1752 = vpop.f32.mrf.mxu0
      %v1753 = vadd.f32 0.0, %v1752
      %v1754 = vpop.f32.mrf.mxu0
      %1755 = vdwg.mxu0
      %1757 = vrot.lane.b32.xlu0 %v1604, 96
      %v1758 = vpop.permute.xlu0 %1757
      %v1760 = vsel %vm1608, %v1604, 0
      %v1763 = vsel %vm1608, %v1758, 0
      %1765 = vmatprep.subr.bf16.mxu0 0
      %1766 = vmatpush1.bf16.xpose.msra.mxu0 0
      %1767 = vmatprep.subr.bf16.mxu0 0
      %1768 = vmatpush1.bf16.xpose.msra.mxu0 0
      %1769 = vmatprep.subr.bf16.mxu0 0
      %1770 = vmatpush1.bf16.xpose.msra.mxu0 0
      %1771 = vmatprep.subr.bf16.mxu0 0
      %1772 = vmatpush1.bf16.xpose.msra.mxu0 0
      %1773 = vmatprep.subr.bf16.mxu0 0
      %1774 = vmatpush1.bf16.xpose.msra.mxu0 0
      %1775 = vmatprep.subr.bf16.mxu0 0
      %1776 = vmatpush1.bf16.xpose.msra.mxu0 0
      %1777 = vmatprep.subr.bf16.mxu0 0
      %1778 = vmatpush1.bf16.xpose.msra.mxu0 0
      %1779 = vmatprep.subr.bf16.mxu0 0
      %1780 = vmatpush1.bf16.xpose.msra.mxu0 %v1763
      %1781 = vmatprep.subr.bf16.mxu0 0
      %1782 = vmatpush2.bf16.xpose.msra.mxu0 0
      %1783 = vmatprep.subr.bf16.mxu0 0
      %1784 = vmatpush2.bf16.xpose.msra.mxu0 0
      %1785 = vmatprep.subr.bf16.mxu0 0
      %1786 = vmatpush2.bf16.xpose.msra.mxu0 0
      %1787 = vmatprep.subr.bf16.mxu0 0
      %1788 = vmatpush2.bf16.xpose.msra.mxu0 0
      %1789 = vmatprep.subr.bf16.mxu0 0
      %1790 = vmatpush2.bf16.xpose.msra.mxu0 0
      %1791 = vmatprep.subr.bf16.mxu0 0
      %1792 = vmatpush2.bf16.xpose.msra.mxu0 0
      %1793 = vmatprep.subr.bf16.mxu0 0
      %1794 = vmatpush2.bf16.xpose.msra.mxu0 0
      %1795 = vmatprep.subr.bf16.mxu0 0
      %1796 = vmatpush2.bf16.xpose.msra.mxu0 0
      %1797 = vmatprep.mubr.bf16.mxu0 0
      %1798 = vmatmul.mubr.bf16.gmra.mxu0 %v1760
      %v1799 = vpop.f32.mrf.mxu0
      %v1800 = vadd.f32 0.0, %v1799
      %v1801 = vpop.f32.mrf.mxu0
      %v1802 = vpop.f32.mrf.mxu0
      %v1803 = vadd.f32 0.0, %v1802
      %v1804 = vpop.f32.mrf.mxu0
      %1805 = vdwg.mxu0
      %v1806 = vmul.f32 %v1650, 0.35355338
      %v1807 = vmul.f32 %v1653, 0.35355338
      %v1808 = vmul.f32 %v1700, 0.35355338
      %v1809 = vmul.f32 %v1703, 0.35355338
      %v1810 = vmul.f32 %v1750, 0.35355338
      %v1811 = vmul.f32 %v1753, 0.35355338
      %v1812 = vmul.f32 %v1800, 0.35355338
      %v1813 = vmul.f32 %v1803, 0.35355338
      %v1814 = vsel %vm1596, %v1806, -1e+30
      %v1815 = vsel %vm1596, %v1807, -1e+30
      %v1816 = vsel %vm1596, %v1808, -1e+30
      %v1817 = vsel %vm1596, %v1809, -1e+30
      %v1818 = vsel %vm1596, %v1810, -1e+30
      %v1819 = vsel %vm1596, %v1811, -1e+30
      %v1820 = vsel %vm1596, %v1812, -1e+30
      %v1821 = vsel %vm1596, %v1813, -1e+30
      %vm1822 = vcmask 130048
      %v1823 = vsel %vm1822, %v1814, -inf
      %1824 = vmax.xlane.f32.xlu0 %v1823
      %v1825 = vpop.xlane.xlu0 %1824
      %v1826 = vsel %vm1822, %v1815, -inf
      %1827 = vmax.xlane.f32.xlu0 %v1826
      %v1828 = vpop.xlane.xlu0 %1827
      %v1829 = vsel %vm1822, %v1816, -inf
      %1830 = vmax.xlane.f32.xlu0 %v1829
      %v1831 = vpop.xlane.xlu0 %1830
      %v1832 = vsel %vm1822, %v1817, -inf
      %1833 = vmax.xlane.f32.xlu0 %v1832
      %v1834 = vpop.xlane.xlu0 %1833
      %v1835 = vsel %vm1822, %v1818, -inf
      %1836 = vmax.xlane.f32.xlu0 %v1835
      %v1837 = vpop.xlane.xlu0 %1836
      %v1838 = vsel %vm1822, %v1819, -inf
      %1839 = vmax.xlane.f32.xlu0 %v1838
      %v1840 = vpop.xlane.xlu0 %1839
      %v1841 = vsel %vm1822, %v1820, -inf
      %1842 = vmax.xlane.f32.xlu0 %v1841
      %v1843 = vpop.xlane.xlu0 %1842
      %v1844 = vsel %vm1822, %v1821, -inf
      %1845 = vmax.xlane.f32.xlu0 %v1844
      %v1846 = vpop.xlane.xlu0 %1845
      %v1847 = vsub.f32 %v1814, %v1825
      %v1848 = vsub.f32 %v1815, %v1828
      %v1849 = vsub.f32 %v1816, %v1831
      %v1850 = vsub.f32 %v1817, %v1834
      %v1851 = vsub.f32 %v1818, %v1837
      %v1852 = vsub.f32 %v1819, %v1840
      %v1853 = vsub.f32 %v1820, %v1843
      %v1854 = vsub.f32 %v1821, %v1846
      %v1855 = vmul.f32 %v1847, 1.442695
      %v1856 = vpow.pop %v1855
      %v1857 = vmul.f32 %v1848, 1.442695
      %v1858 = vpow.pop %v1857
      %v1859 = vmul.f32 %v1849, 1.442695
      %v1860 = vpow.pop %v1859
      %v1861 = vmul.f32 %v1850, 1.442695
      %v1862 = vpow.pop %v1861
      %v1863 = vmul.f32 %v1851, 1.442695
      %v1864 = vpow.pop %v1863
      %v1865 = vmul.f32 %v1852, 1.442695
      %v1866 = vpow.pop %v1865
      %v1867 = vmul.f32 %v1853, 1.442695
      %v1868 = vpow.pop %v1867
      %v1869 = vmul.f32 %v1854, 1.442695
      %v1870 = vpow.pop %v1869
      %v1871 = vsel %vm1822, %v1856, 0.0
      %1872 = vadd.xlane.f32.xlu0 %v1871
      %v1873 = vpop.xlane.xlu0 %1872
      %v1874 = vsel %vm1822, %v1858, 0.0
      %1875 = vadd.xlane.f32.xlu0 %v1874
      %v1876 = vpop.xlane.xlu0 %1875
      %v1877 = vsel %vm1822, %v1860, 0.0
      %1878 = vadd.xlane.f32.xlu0 %v1877
      %v1879 = vpop.xlane.xlu0 %1878
      %v1880 = vsel %vm1822, %v1862, 0.0
      %1881 = vadd.xlane.f32.xlu0 %v1880
      %v1882 = vpop.xlane.xlu0 %1881
      %v1883 = vsel %vm1822, %v1864, 0.0
      %1884 = vadd.xlane.f32.xlu0 %v1883
      %v1885 = vpop.xlane.xlu0 %1884
      %v1886 = vsel %vm1822, %v1866, 0.0
      %1887 = vadd.xlane.f32.xlu0 %v1886
      %v1888 = vpop.xlane.xlu0 %1887
      %v1889 = vsel %vm1822, %v1868, 0.0
      %1890 = vadd.xlane.f32.xlu0 %v1889
      %v1891 = vpop.xlane.xlu0 %1890
      %v1892 = vsel %vm1822, %v1870, 0.0
      %1893 = vadd.xlane.f32.xlu0 %v1892
      %v1894 = vpop.xlane.xlu0 %1893
      %v1895 = vrcp.pop %v1873
      %v1896 = vrcp.pop %v1876
      %v1897 = vrcp.pop %v1879
      %v1898 = vrcp.pop %v1882
      %v1899 = vrcp.pop %v1885
      %v1900 = vrcp.pop %v1888
      %v1901 = vrcp.pop %v1891
      %v1902 = vrcp.pop %v1894
      %v1903 = vmul.f32 %v1856, %v1895
      %v1904 = vmul.f32 %v1858, %v1896
      %v1905 = vmul.f32 %v1860, %v1897
      %v1906 = vmul.f32 %v1862, %v1898
      %v1907 = vmul.f32 %v1864, %v1899
      %v1908 = vmul.f32 %v1866, %v1900
      %v1909 = vmul.f32 %v1868, %v1901
      %v1910 = vmul.f32 %v1870, %v1902
      %v1911 = vpack.c.bf16 %v1904, %v1903
      %v1912 = vpack.c.bf16 %v1906, %v1905
      %v1913 = vpack.c.bf16 %v1908, %v1907
      %v1914 = vpack.c.bf16 %v1910, %v1909
      %1915 = vrot.lane.b32.xlu0 %v1601, 64
      %v1916 = vpop.permute.xlu0 %1915
      %v1919 = vsel %vm1822, %v1911, 0
      %1921 = vmatprep.subr.bf16.mxu0 0
      %1922 = vmatpush1.bf16.msra.mxu0 0
      %1923 = vmatprep.subr.bf16.mxu0 0
      %1924 = vmatpush1.bf16.msra.mxu0 0
      %1925 = vmatprep.subr.bf16.mxu0 0
      %1926 = vmatpush1.bf16.msra.mxu0 0
      %1927 = vmatprep.subr.bf16.mxu0 0
      %1928 = vmatpush1.bf16.msra.mxu0 0
      %1929 = vmatprep.subr.bf16.mxu0 0
      %1930 = vmatpush1.bf16.msra.mxu0 0
      %1931 = vmatprep.subr.bf16.mxu0 0
      %1932 = vmatpush1.bf16.msra.mxu0 0
      %1933 = vmatprep.subr.bf16.mxu0 0
      %1934 = vmatpush1.bf16.msra.mxu0 0
      %1935 = vmatprep.subr.bf16.mxu0 0
      %1936 = vmatpush1.bf16.msra.mxu0 %v1916
      %1937 = vmatprep.subr.bf16.mxu0 0
      %1938 = vmatpush2.bf16.msra.mxu0 0
      %1939 = vmatprep.subr.bf16.mxu0 0
      %1940 = vmatpush2.bf16.msra.mxu0 0
      %1941 = vmatprep.subr.bf16.mxu0 0
      %1942 = vmatpush2.bf16.msra.mxu0 0
      %1943 = vmatprep.subr.bf16.mxu0 0
      %1944 = vmatpush2.bf16.msra.mxu0 0
      %1945 = vmatprep.subr.bf16.mxu0 0
      %1946 = vmatpush2.bf16.msra.mxu0 0
      %1947 = vmatprep.subr.bf16.mxu0 0
      %1948 = vmatpush2.bf16.msra.mxu0 0
      %1949 = vmatprep.subr.bf16.mxu0 0
      %1950 = vmatpush2.bf16.msra.mxu0 0
      %1951 = vmatprep.subr.bf16.mxu0 0
      %1952 = vmatpush2.bf16.msra.mxu0 0
      %1953 = vmatprep.mubr.bf16.mxu0 0
      %1954 = vmatmul.mubr.bf16.gmra.mxu0 %v1919
      %v1955 = vpop.f32.mrf.mxu0
      %v1956 = vadd.f32 0.0, %v1955
      %v1957 = vpop.f32.mrf.mxu0
      %v1958 = vpop.f32.mrf.mxu0
      %v1959 = vadd.f32 0.0, %v1958
      %v1960 = vpop.f32.mrf.mxu0
      %1961 = vdwg.mxu0
      %1962 = vrot.lane.b32.xlu0 %v1602, 64
      %v1963 = vpop.permute.xlu0 %1962
      %v1966 = vsel %vm1822, %v1912, 0
      %1968 = vmatprep.subr.bf16.mxu0 0
      %1969 = vmatpush1.bf16.msra.mxu0 0
      %1970 = vmatprep.subr.bf16.mxu0 0
      %1971 = vmatpush1.bf16.msra.mxu0 0
      %1972 = vmatprep.subr.bf16.mxu0 0
      %1973 = vmatpush1.bf16.msra.mxu0 0
      %1974 = vmatprep.subr.bf16.mxu0 0
      %1975 = vmatpush1.bf16.msra.mxu0 0
      %1976 = vmatprep.subr.bf16.mxu0 0
      %1977 = vmatpush1.bf16.msra.mxu0 0
      %1978 = vmatprep.subr.bf16.mxu0 0
      %1979 = vmatpush1.bf16.msra.mxu0 0
      %1980 = vmatprep.subr.bf16.mxu0 0
      %1981 = vmatpush1.bf16.msra.mxu0 0
      %1982 = vmatprep.subr.bf16.mxu0 0
      %1983 = vmatpush1.bf16.msra.mxu0 %v1963
      %1984 = vmatprep.subr.bf16.mxu0 0
      %1985 = vmatpush2.bf16.msra.mxu0 0
      %1986 = vmatprep.subr.bf16.mxu0 0
      %1987 = vmatpush2.bf16.msra.mxu0 0
      %1988 = vmatprep.subr.bf16.mxu0 0
      %1989 = vmatpush2.bf16.msra.mxu0 0
      %1990 = vmatprep.subr.bf16.mxu0 0
      %1991 = vmatpush2.bf16.msra.mxu0 0
      %1992 = vmatprep.subr.bf16.mxu0 0
      %1993 = vmatpush2.bf16.msra.mxu0 0
      %1994 = vmatprep.subr.bf16.mxu0 0
      %1995 = vmatpush2.bf16.msra.mxu0 0
      %1996 = vmatprep.subr.bf16.mxu0 0
      %1997 = vmatpush2.bf16.msra.mxu0 0
      %1998 = vmatprep.subr.bf16.mxu0 0
      %1999 = vmatpush2.bf16.msra.mxu0 0
      %2000 = vmatprep.mubr.bf16.mxu0 0
      %2001 = vmatmul.mubr.bf16.gmra.mxu0 %v1966
      %v2002 = vpop.f32.mrf.mxu0
      %v2003 = vadd.f32 0.0, %v2002
      %v2004 = vpop.f32.mrf.mxu0
      %v2005 = vpop.f32.mrf.mxu0
      %v2006 = vadd.f32 0.0, %v2005
      %v2007 = vpop.f32.mrf.mxu0
      %2008 = vdwg.mxu0
      %2009 = vrot.lane.b32.xlu0 %v1603, 64
      %v2010 = vpop.permute.xlu0 %2009
      %v2013 = vsel %vm1822, %v1913, 0
      %2015 = vmatprep.subr.bf16.mxu0 0
      %2016 = vmatpush1.bf16.msra.mxu0 0
      %2017 = vmatprep.subr.bf16.mxu0 0
      %2018 = vmatpush1.bf16.msra.mxu0 0
      %2019 = vmatprep.subr.bf16.mxu0 0
      %2020 = vmatpush1.bf16.msra.mxu0 0
      %2021 = vmatprep.subr.bf16.mxu0 0
      %2022 = vmatpush1.bf16.msra.mxu0 0
      %2023 = vmatprep.subr.bf16.mxu0 0
      %2024 = vmatpush1.bf16.msra.mxu0 0
      %2025 = vmatprep.subr.bf16.mxu0 0
      %2026 = vmatpush1.bf16.msra.mxu0 0
      %2027 = vmatprep.subr.bf16.mxu0 0
      %2028 = vmatpush1.bf16.msra.mxu0 0
      %2029 = vmatprep.subr.bf16.mxu0 0
      %2030 = vmatpush1.bf16.msra.mxu0 %v2010
      %2031 = vmatprep.subr.bf16.mxu0 0
      %2032 = vmatpush2.bf16.msra.mxu0 0
      %2033 = vmatprep.subr.bf16.mxu0 0
      %2034 = vmatpush2.bf16.msra.mxu0 0
      %2035 = vmatprep.subr.bf16.mxu0 0
      %2036 = vmatpush2.bf16.msra.mxu0 0
      %2037 = vmatprep.subr.bf16.mxu0 0
      %2038 = vmatpush2.bf16.msra.mxu0 0
      %2039 = vmatprep.subr.bf16.mxu0 0
      %2040 = vmatpush2.bf16.msra.mxu0 0
      %2041 = vmatprep.subr.bf16.mxu0 0
      %2042 = vmatpush2.bf16.msra.mxu0 0
      %2043 = vmatprep.subr.bf16.mxu0 0
      %2044 = vmatpush2.bf16.msra.mxu0 0
      %2045 = vmatprep.subr.bf16.mxu0 0
      %2046 = vmatpush2.bf16.msra.mxu0 0
      %2047 = vmatprep.mubr.bf16.mxu0 0
      %2048 = vmatmul.mubr.bf16.gmra.mxu0 %v2013
      %v2049 = vpop.f32.mrf.mxu0
      %v2050 = vadd.f32 0.0, %v2049
      %v2051 = vpop.f32.mrf.mxu0
      %v2052 = vpop.f32.mrf.mxu0
      %v2053 = vadd.f32 0.0, %v2052
      %v2054 = vpop.f32.mrf.mxu0
      %2055 = vdwg.mxu0
      %2056 = vrot.lane.b32.xlu0 %v1604, 64
      %v2057 = vpop.permute.xlu0 %2056
      %v2060 = vsel %vm1822, %v1914, 0
      %2062 = vmatprep.subr.bf16.mxu0 0
      %2063 = vmatpush1.bf16.msra.mxu0 0
      %2064 = vmatprep.subr.bf16.mxu0 0
      %2065 = vmatpush1.bf16.msra.mxu0 0
      %2066 = vmatprep.subr.bf16.mxu0 0
      %2067 = vmatpush1.bf16.msra.mxu0 0
      %2068 = vmatprep.subr.bf16.mxu0 0
      %2069 = vmatpush1.bf16.msra.mxu0 0
      %2070 = vmatprep.subr.bf16.mxu0 0
      %2071 = vmatpush1.bf16.msra.mxu0 0
      %2072 = vmatprep.subr.bf16.mxu0 0
      %2073 = vmatpush1.bf16.msra.mxu0 0
      %2074 = vmatprep.subr.bf16.mxu0 0
      %2075 = vmatpush1.bf16.msra.mxu0 0
      %2076 = vmatprep.subr.bf16.mxu0 0
      %2077 = vmatpush1.bf16.msra.mxu0 %v2057
      %2078 = vmatprep.subr.bf16.mxu0 0
      %2079 = vmatpush2.bf16.msra.mxu0 0
      %2080 = vmatprep.subr.bf16.mxu0 0
      %2081 = vmatpush2.bf16.msra.mxu0 0
      %2082 = vmatprep.subr.bf16.mxu0 0
      %2083 = vmatpush2.bf16.msra.mxu0 0
      %2084 = vmatprep.subr.bf16.mxu0 0
      %2085 = vmatpush2.bf16.msra.mxu0 0
      %2086 = vmatprep.subr.bf16.mxu0 0
      %2087 = vmatpush2.bf16.msra.mxu0 0
      %2088 = vmatprep.subr.bf16.mxu0 0
      %2089 = vmatpush2.bf16.msra.mxu0 0
      %2090 = vmatprep.subr.bf16.mxu0 0
      %2091 = vmatpush2.bf16.msra.mxu0 0
      %2092 = vmatprep.subr.bf16.mxu0 0
      %2093 = vmatpush2.bf16.msra.mxu0 0
      %2094 = vmatprep.mubr.bf16.mxu0 0
      %2095 = vmatmul.mubr.bf16.gmra.mxu0 %v2060
      %v2096 = vpop.f32.mrf.mxu0
      %v2097 = vadd.f32 0.0, %v2096
      %v2098 = vpop.f32.mrf.mxu0
      %v2099 = vpop.f32.mrf.mxu0
      %v2100 = vadd.f32 0.0, %v2099
      %v2101 = vpop.f32.mrf.mxu0
      %2102 = vdwg.mxu0
      %v2103 = vpack.c.bf16 %v1959, %v1956
      %v2104 = vpack.c.bf16 %v2006, %v2003
      %v2105 = vpack.c.bf16 %v2053, %v2050
      %v2106 = vpack.c.bf16 %v2100, %v2097
      %2107 = vrot.lane.b32.xlu0 %v1601, 120
      %v2108 = vpop.permute.xlu0 %2107
      %2109 = vrot.lane.b32.xlu0 %v1601, 88
      %v2110 = vpop.permute.xlu0 %2109
      %v2112 = vsel %vm1608, %v2108, 0
      %v2115 = vsel %vm1608, %v2110, 0
      %2117 = vmatprep.subr.bf16.mxu0 0
      %2118 = vmatpush1.bf16.xpose.msra.mxu0 0
      %2119 = vmatprep.subr.bf16.mxu0 0
      %2120 = vmatpush1.bf16.xpose.msra.mxu0 0
      %2121 = vmatprep.subr.bf16.mxu0 0
      %2122 = vmatpush1.bf16.xpose.msra.mxu0 0
      %2123 = vmatprep.subr.bf16.mxu0 0
      %2124 = vmatpush1.bf16.xpose.msra.mxu0 0
      %2125 = vmatprep.subr.bf16.mxu0 0
      %2126 = vmatpush1.bf16.xpose.msra.mxu0 0
      %2127 = vmatprep.subr.bf16.mxu0 0
      %2128 = vmatpush1.bf16.xpose.msra.mxu0 0
      %2129 = vmatprep.subr.bf16.mxu0 0
      %2130 = vmatpush1.bf16.xpose.msra.mxu0 0
      %2131 = vmatprep.subr.bf16.mxu0 0
      %2132 = vmatpush1.bf16.xpose.msra.mxu0 %v2115
      %2133 = vmatprep.subr.bf16.mxu0 0
      %2134 = vmatpush2.bf16.xpose.msra.mxu0 0
      %2135 = vmatprep.subr.bf16.mxu0 0
      %2136 = vmatpush2.bf16.xpose.msra.mxu0 0
      %2137 = vmatprep.subr.bf16.mxu0 0
      %2138 = vmatpush2.bf16.xpose.msra.mxu0 0
      %2139 = vmatprep.subr.bf16.mxu0 0
      %2140 = vmatpush2.bf16.xpose.msra.mxu0 0
      %2141 = vmatprep.subr.bf16.mxu0 0
      %2142 = vmatpush2.bf16.xpose.msra.mxu0 0
      %2143 = vmatprep.subr.bf16.mxu0 0
      %2144 = vmatpush2.bf16.xpose.msra.mxu0 0
      %2145 = vmatprep.subr.bf16.mxu0 0
      %2146 = vmatpush2.bf16.xpose.msra.mxu0 0
      %2147 = vmatprep.subr.bf16.mxu0 0
      %2148 = vmatpush2.bf16.xpose.msra.mxu0 0
      %2149 = vmatprep.mubr.bf16.mxu0 0
      %2150 = vmatmul.mubr.bf16.gmra.mxu0 %v2112
      %v2151 = vpop.f32.mrf.mxu0
      %v2152 = vadd.f32 0.0, %v2151
      %v2153 = vpop.f32.mrf.mxu0
      %v2154 = vpop.f32.mrf.mxu0
      %v2155 = vadd.f32 0.0, %v2154
      %v2156 = vpop.f32.mrf.mxu0
      %2157 = vdwg.mxu0
      %2158 = vrot.lane.b32.xlu0 %v1602, 120
      %v2159 = vpop.permute.xlu0 %2158
      %2160 = vrot.lane.b32.xlu0 %v1602, 88
      %v2161 = vpop.permute.xlu0 %2160
      %v2163 = vsel %vm1608, %v2159, 0
      %v2166 = vsel %vm1608, %v2161, 0
      %2168 = vmatprep.subr.bf16.mxu0 0
      %2169 = vmatpush1.bf16.xpose.msra.mxu0 0
      %2170 = vmatprep.subr.bf16.mxu0 0
      %2171 = vmatpush1.bf16.xpose.msra.mxu0 0
      %2172 = vmatprep.subr.bf16.mxu0 0
      %2173 = vmatpush1.bf16.xpose.msra.mxu0 0
      %2174 = vmatprep.subr.bf16.mxu0 0
      %2175 = vmatpush1.bf16.xpose.msra.mxu0 0
      %2176 = vmatprep.subr.bf16.mxu0 0
      %2177 = vmatpush1.bf16.xpose.msra.mxu0 0
      %2178 = vmatprep.subr.bf16.mxu0 0
      %2179 = vmatpush1.bf16.xpose.msra.mxu0 0
      %2180 = vmatprep.subr.bf16.mxu0 0
      %2181 = vmatpush1.bf16.xpose.msra.mxu0 0
      %2182 = vmatprep.subr.bf16.mxu0 0
      %2183 = vmatpush1.bf16.xpose.msra.mxu0 %v2166
      %2184 = vmatprep.subr.bf16.mxu0 0
      %2185 = vmatpush2.bf16.xpose.msra.mxu0 0
      %2186 = vmatprep.subr.bf16.mxu0 0
      %2187 = vmatpush2.bf16.xpose.msra.mxu0 0
      %2188 = vmatprep.subr.bf16.mxu0 0
      %2189 = vmatpush2.bf16.xpose.msra.mxu0 0
      %2190 = vmatprep.subr.bf16.mxu0 0
      %2191 = vmatpush2.bf16.xpose.msra.mxu0 0
      %2192 = vmatprep.subr.bf16.mxu0 0
      %2193 = vmatpush2.bf16.xpose.msra.mxu0 0
      %2194 = vmatprep.subr.bf16.mxu0 0
      %2195 = vmatpush2.bf16.xpose.msra.mxu0 0
      %2196 = vmatprep.subr.bf16.mxu0 0
      %2197 = vmatpush2.bf16.xpose.msra.mxu0 0
      %2198 = vmatprep.subr.bf16.mxu0 0
      %2199 = vmatpush2.bf16.xpose.msra.mxu0 0
      %2200 = vmatprep.mubr.bf16.mxu0 0
      %2201 = vmatmul.mubr.bf16.gmra.mxu0 %v2163
      %v2202 = vpop.f32.mrf.mxu0
      %v2203 = vadd.f32 0.0, %v2202
      %v2204 = vpop.f32.mrf.mxu0
      %v2205 = vpop.f32.mrf.mxu0
      %v2206 = vadd.f32 0.0, %v2205
      %v2207 = vpop.f32.mrf.mxu0
      %2208 = vdwg.mxu0
      %2209 = vrot.lane.b32.xlu0 %v1603, 120
      %v2210 = vpop.permute.xlu0 %2209
      %2211 = vrot.lane.b32.xlu0 %v1603, 88
      %v2212 = vpop.permute.xlu0 %2211
      %v2214 = vsel %vm1608, %v2210, 0
      %v2217 = vsel %vm1608, %v2212, 0
      %2219 = vmatprep.subr.bf16.mxu0 0
      %2220 = vmatpush1.bf16.xpose.msra.mxu0 0
      %2221 = vmatprep.subr.bf16.mxu0 0
      %2222 = vmatpush1.bf16.xpose.msra.mxu0 0
      %2223 = vmatprep.subr.bf16.mxu0 0
      %2224 = vmatpush1.bf16.xpose.msra.mxu0 0
      %2225 = vmatprep.subr.bf16.mxu0 0
      %2226 = vmatpush1.bf16.xpose.msra.mxu0 0
      %2227 = vmatprep.subr.bf16.mxu0 0
      %2228 = vmatpush1.bf16.xpose.msra.mxu0 0
      %2229 = vmatprep.subr.bf16.mxu0 0
      %2230 = vmatpush1.bf16.xpose.msra.mxu0 0
      %2231 = vmatprep.subr.bf16.mxu0 0
      %2232 = vmatpush1.bf16.xpose.msra.mxu0 0
      %2233 = vmatprep.subr.bf16.mxu0 0
      %2234 = vmatpush1.bf16.xpose.msra.mxu0 %v2217
      %2235 = vmatprep.subr.bf16.mxu0 0
      %2236 = vmatpush2.bf16.xpose.msra.mxu0 0
      %2237 = vmatprep.subr.bf16.mxu0 0
      %2238 = vmatpush2.bf16.xpose.msra.mxu0 0
      %2239 = vmatprep.subr.bf16.mxu0 0
      %2240 = vmatpush2.bf16.xpose.msra.mxu0 0
      %2241 = vmatprep.subr.bf16.mxu0 0
      %2242 = vmatpush2.bf16.xpose.msra.mxu0 0
      %2243 = vmatprep.subr.bf16.mxu0 0
      %2244 = vmatpush2.bf16.xpose.msra.mxu0 0
      %2245 = vmatprep.subr.bf16.mxu0 0
      %2246 = vmatpush2.bf16.xpose.msra.mxu0 0
      %2247 = vmatprep.subr.bf16.mxu0 0
      %2248 = vmatpush2.bf16.xpose.msra.mxu0 0
      %2249 = vmatprep.subr.bf16.mxu0 0
      %2250 = vmatpush2.bf16.xpose.msra.mxu0 0
      %2251 = vmatprep.mubr.bf16.mxu0 0
      %2252 = vmatmul.mubr.bf16.gmra.mxu0 %v2214
      %v2253 = vpop.f32.mrf.mxu0
      %v2254 = vadd.f32 0.0, %v2253
      %v2255 = vpop.f32.mrf.mxu0
      %v2256 = vpop.f32.mrf.mxu0
      %v2257 = vadd.f32 0.0, %v2256
      %v2258 = vpop.f32.mrf.mxu0
      %2259 = vdwg.mxu0
      %2260 = vrot.lane.b32.xlu0 %v1604, 120
      %v2261 = vpop.permute.xlu0 %2260
      %2262 = vrot.lane.b32.xlu0 %v1604, 88
      %v2263 = vpop.permute.xlu0 %2262
      %v2265 = vsel %vm1608, %v2261, 0
      %v2268 = vsel %vm1608, %v2263, 0
      %2270 = vmatprep.subr.bf16.mxu0 0
      %2271 = vmatpush1.bf16.xpose.msra.mxu0 0
      %2272 = vmatprep.subr.bf16.mxu0 0
      %2273 = vmatpush1.bf16.xpose.msra.mxu0 0
      %2274 = vmatprep.subr.bf16.mxu0 0
      %2275 = vmatpush1.bf16.xpose.msra.mxu0 0
      %2276 = vmatprep.subr.bf16.mxu0 0
      %2277 = vmatpush1.bf16.xpose.msra.mxu0 0
      %2278 = vmatprep.subr.bf16.mxu0 0
      %2279 = vmatpush1.bf16.xpose.msra.mxu0 0
      %2280 = vmatprep.subr.bf16.mxu0 0
      %2281 = vmatpush1.bf16.xpose.msra.mxu0 0
      %2282 = vmatprep.subr.bf16.mxu0 0
      %2283 = vmatpush1.bf16.xpose.msra.mxu0 0
      %2284 = vmatprep.subr.bf16.mxu0 0
      %2285 = vmatpush1.bf16.xpose.msra.mxu0 %v2268
      %2286 = vmatprep.subr.bf16.mxu0 0
      %2287 = vmatpush2.bf16.xpose.msra.mxu0 0
      %2288 = vmatprep.subr.bf16.mxu0 0
      %2289 = vmatpush2.bf16.xpose.msra.mxu0 0
      %2290 = vmatprep.subr.bf16.mxu0 0
      %2291 = vmatpush2.bf16.xpose.msra.mxu0 0
      %2292 = vmatprep.subr.bf16.mxu0 0
      %2293 = vmatpush2.bf16.xpose.msra.mxu0 0
      %2294 = vmatprep.subr.bf16.mxu0 0
      %2295 = vmatpush2.bf16.xpose.msra.mxu0 0
      %2296 = vmatprep.subr.bf16.mxu0 0
      %2297 = vmatpush2.bf16.xpose.msra.mxu0 0
      %2298 = vmatprep.subr.bf16.mxu0 0
      %2299 = vmatpush2.bf16.xpose.msra.mxu0 0
      %2300 = vmatprep.subr.bf16.mxu0 0
      %2301 = vmatpush2.bf16.xpose.msra.mxu0 0
      %2302 = vmatprep.mubr.bf16.mxu0 0
      %2303 = vmatmul.mubr.bf16.gmra.mxu0 %v2265
      %v2304 = vpop.f32.mrf.mxu0
      %v2305 = vadd.f32 0.0, %v2304
      %v2306 = vpop.f32.mrf.mxu0
      %v2307 = vpop.f32.mrf.mxu0
      %v2308 = vadd.f32 0.0, %v2307
      %v2309 = vpop.f32.mrf.mxu0
      %2310 = vdwg.mxu0
      %v2311 = vmul.f32 %v2152, 0.35355338
      %v2312 = vmul.f32 %v2155, 0.35355338
      %v2313 = vmul.f32 %v2203, 0.35355338
      %v2314 = vmul.f32 %v2206, 0.35355338
      %v2315 = vmul.f32 %v2254, 0.35355338
      %v2316 = vmul.f32 %v2257, 0.35355338
      %v2317 = vmul.f32 %v2305, 0.35355338
      %v2318 = vmul.f32 %v2308, 0.35355338
      %v2319 = vsel %vm1596, %v2311, -1e+30
      %v2320 = vsel %vm1596, %v2312, -1e+30
      %v2321 = vsel %vm1596, %v2313, -1e+30
      %v2322 = vsel %vm1596, %v2314, -1e+30
      %v2323 = vsel %vm1596, %v2315, -1e+30
      %v2324 = vsel %vm1596, %v2316, -1e+30
      %v2325 = vsel %vm1596, %v2317, -1e+30
      %v2326 = vsel %vm1596, %v2318, -1e+30
      %v2327 = vsel %vm1822, %v2319, -inf
      %2328 = vmax.xlane.f32.xlu0 %v2327
      %v2329 = vpop.xlane.xlu0 %2328
      %v2330 = vsel %vm1822, %v2320, -inf
      %2331 = vmax.xlane.f32.xlu0 %v2330
      %v2332 = vpop.xlane.xlu0 %2331
      %v2333 = vsel %vm1822, %v2321, -inf
      %2334 = vmax.xlane.f32.xlu0 %v2333
      %v2335 = vpop.xlane.xlu0 %2334
      %v2336 = vsel %vm1822, %v2322, -inf
      %2337 = vmax.xlane.f32.xlu0 %v2336
      %v2338 = vpop.xlane.xlu0 %2337
      %v2339 = vsel %vm1822, %v2323, -inf
      %2340 = vmax.xlane.f32.xlu0 %v2339
      %v2341 = vpop.xlane.xlu0 %2340
      %v2342 = vsel %vm1822, %v2324, -inf
      %2343 = vmax.xlane.f32.xlu0 %v2342
      %v2344 = vpop.xlane.xlu0 %2343
      %v2345 = vsel %vm1822, %v2325, -inf
      %2346 = vmax.xlane.f32.xlu0 %v2345
      %v2347 = vpop.xlane.xlu0 %2346
      %v2348 = vsel %vm1822, %v2326, -inf
      %2349 = vmax.xlane.f32.xlu0 %v2348
      %v2350 = vpop.xlane.xlu0 %2349
      %v2351 = vsub.f32 %v2319, %v2329
      %v2352 = vsub.f32 %v2320, %v2332
      %v2353 = vsub.f32 %v2321, %v2335
      %v2354 = vsub.f32 %v2322, %v2338
      %v2355 = vsub.f32 %v2323, %v2341
      %v2356 = vsub.f32 %v2324, %v2344
      %v2357 = vsub.f32 %v2325, %v2347
      %v2358 = vsub.f32 %v2326, %v2350
      %v2359 = vmul.f32 %v2351, 1.442695
      %v2360 = vpow.pop %v2359
      %v2361 = vmul.f32 %v2352, 1.442695
      %v2362 = vpow.pop %v2361
      %v2363 = vmul.f32 %v2353, 1.442695
      %v2364 = vpow.pop %v2363
      %v2365 = vmul.f32 %v2354, 1.442695
      %v2366 = vpow.pop %v2365
      %v2367 = vmul.f32 %v2355, 1.442695
      %v2368 = vpow.pop %v2367
      %v2369 = vmul.f32 %v2356, 1.442695
      %v2370 = vpow.pop %v2369
      %v2371 = vmul.f32 %v2357, 1.442695
      %v2372 = vpow.pop %v2371
      %v2373 = vmul.f32 %v2358, 1.442695
      %v2374 = vpow.pop %v2373
      %v2375 = vsel %vm1822, %v2360, 0.0
      %2376 = vadd.xlane.f32.xlu0 %v2375
      %v2377 = vpop.xlane.xlu0 %2376
      %v2378 = vsel %vm1822, %v2362, 0.0
      %2379 = vadd.xlane.f32.xlu0 %v2378
      %v2380 = vpop.xlane.xlu0 %2379
      %v2381 = vsel %vm1822, %v2364, 0.0
      %2382 = vadd.xlane.f32.xlu0 %v2381
      %v2383 = vpop.xlane.xlu0 %2382
      %v2384 = vsel %vm1822, %v2366, 0.0
      %2385 = vadd.xlane.f32.xlu0 %v2384
      %v2386 = vpop.xlane.xlu0 %2385
      %v2387 = vsel %vm1822, %v2368, 0.0
      %2388 = vadd.xlane.f32.xlu0 %v2387
      %v2389 = vpop.xlane.xlu0 %2388
      %v2390 = vsel %vm1822, %v2370, 0.0
      %2391 = vadd.xlane.f32.xlu0 %v2390
      %v2392 = vpop.xlane.xlu0 %2391
      %v2393 = vsel %vm1822, %v2372, 0.0
      %2394 = vadd.xlane.f32.xlu0 %v2393
      %v2395 = vpop.xlane.xlu0 %2394
      %v2396 = vsel %vm1822, %v2374, 0.0
      %2397 = vadd.xlane.f32.xlu0 %v2396
      %v2398 = vpop.xlane.xlu0 %2397
      %v2399 = vrcp.pop %v2377
      %v2400 = vrcp.pop %v2380
      %v2401 = vrcp.pop %v2383
      %v2402 = vrcp.pop %v2386
      %v2403 = vrcp.pop %v2389
      %v2404 = vrcp.pop %v2392
      %v2405 = vrcp.pop %v2395
      %v2406 = vrcp.pop %v2398
      %v2407 = vmul.f32 %v2360, %v2399
      %v2408 = vmul.f32 %v2362, %v2400
      %v2409 = vmul.f32 %v2364, %v2401
      %v2410 = vmul.f32 %v2366, %v2402
      %v2411 = vmul.f32 %v2368, %v2403
      %v2412 = vmul.f32 %v2370, %v2404
      %v2413 = vmul.f32 %v2372, %v2405
      %v2414 = vmul.f32 %v2374, %v2406
      %v2415 = vpack.c.bf16 %v2408, %v2407
      %v2416 = vpack.c.bf16 %v2410, %v2409
      %v2417 = vpack.c.bf16 %v2412, %v2411
      %v2418 = vpack.c.bf16 %v2414, %v2413
      %2419 = vrot.lane.b32.xlu0 %v1601, 56
      %v2420 = vpop.permute.xlu0 %2419
      %v2423 = vsel %vm1822, %v2415, 0
      %2425 = vmatprep.subr.bf16.mxu0 0
      %2426 = vmatpush1.bf16.msra.mxu0 0
      %2427 = vmatprep.subr.bf16.mxu0 0
      %2428 = vmatpush1.bf16.msra.mxu0 0
      %2429 = vmatprep.subr.bf16.mxu0 0
      %2430 = vmatpush1.bf16.msra.mxu0 0
      %2431 = vmatprep.subr.bf16.mxu0 0
      %2432 = vmatpush1.bf16.msra.mxu0 0
      %2433 = vmatprep.subr.bf16.mxu0 0
      %2434 = vmatpush1.bf16.msra.mxu0 0
      %2435 = vmatprep.subr.bf16.mxu0 0
      %2436 = vmatpush1.bf16.msra.mxu0 0
      %2437 = vmatprep.subr.bf16.mxu0 0
      %2438 = vmatpush1.bf16.msra.mxu0 0
      %2439 = vmatprep.subr.bf16.mxu0 0
      %2440 = vmatpush1.bf16.msra.mxu0 %v2420
      %2441 = vmatprep.subr.bf16.mxu0 0
      %2442 = vmatpush2.bf16.msra.mxu0 0
      %2443 = vmatprep.subr.bf16.mxu0 0
      %2444 = vmatpush2.bf16.msra.mxu0 0
      %2445 = vmatprep.subr.bf16.mxu0 0
      %2446 = vmatpush2.bf16.msra.mxu0 0
      %2447 = vmatprep.subr.bf16.mxu0 0
      %2448 = vmatpush2.bf16.msra.mxu0 0
      %2449 = vmatprep.subr.bf16.mxu0 0
      %2450 = vmatpush2.bf16.msra.mxu0 0
      %2451 = vmatprep.subr.bf16.mxu0 0
      %2452 = vmatpush2.bf16.msra.mxu0 0
      %2453 = vmatprep.subr.bf16.mxu0 0
      %2454 = vmatpush2.bf16.msra.mxu0 0
      %2455 = vmatprep.subr.bf16.mxu0 0
      %2456 = vmatpush2.bf16.msra.mxu0 0
      %2457 = vmatprep.mubr.bf16.mxu0 0
      %2458 = vmatmul.mubr.bf16.gmra.mxu0 %v2423
      %v2459 = vpop.f32.mrf.mxu0
      %v2460 = vadd.f32 0.0, %v2459
      %v2461 = vpop.f32.mrf.mxu0
      %v2462 = vpop.f32.mrf.mxu0
      %v2463 = vadd.f32 0.0, %v2462
      %v2464 = vpop.f32.mrf.mxu0
      %2465 = vdwg.mxu0
      %2466 = vrot.lane.b32.xlu0 %v1602, 56
      %v2467 = vpop.permute.xlu0 %2466
      %v2470 = vsel %vm1822, %v2416, 0
      %2472 = vmatprep.subr.bf16.mxu0 0
      %2473 = vmatpush1.bf16.msra.mxu0 0
      %2474 = vmatprep.subr.bf16.mxu0 0
      %2475 = vmatpush1.bf16.msra.mxu0 0
      %2476 = vmatprep.subr.bf16.mxu0 0
      %2477 = vmatpush1.bf16.msra.mxu0 0
      %2478 = vmatprep.subr.bf16.mxu0 0
      %2479 = vmatpush1.bf16.msra.mxu0 0
      %2480 = vmatprep.subr.bf16.mxu0 0
      %2481 = vmatpush1.bf16.msra.mxu0 0
      %2482 = vmatprep.subr.bf16.mxu0 0
      %2483 = vmatpush1.bf16.msra.mxu0 0
      %2484 = vmatprep.subr.bf16.mxu0 0
      %2485 = vmatpush1.bf16.msra.mxu0 0
      %2486 = vmatprep.subr.bf16.mxu0 0
      %2487 = vmatpush1.bf16.msra.mxu0 %v2467
      %2488 = vmatprep.subr.bf16.mxu0 0
      %2489 = vmatpush2.bf16.msra.mxu0 0
      %2490 = vmatprep.subr.bf16.mxu0 0
      %2491 = vmatpush2.bf16.msra.mxu0 0
      %2492 = vmatprep.subr.bf16.mxu0 0
      %2493 = vmatpush2.bf16.msra.mxu0 0
      %2494 = vmatprep.subr.bf16.mxu0 0
      %2495 = vmatpush2.bf16.msra.mxu0 0
      %2496 = vmatprep.subr.bf16.mxu0 0
      %2497 = vmatpush2.bf16.msra.mxu0 0
      %2498 = vmatprep.subr.bf16.mxu0 0
      %2499 = vmatpush2.bf16.msra.mxu0 0
      %2500 = vmatprep.subr.bf16.mxu0 0
      %2501 = vmatpush2.bf16.msra.mxu0 0
      %2502 = vmatprep.subr.bf16.mxu0 0
      %2503 = vmatpush2.bf16.msra.mxu0 0
      %2504 = vmatprep.mubr.bf16.mxu0 0
      %2505 = vmatmul.mubr.bf16.gmra.mxu0 %v2470
      %v2506 = vpop.f32.mrf.mxu0
      %v2507 = vadd.f32 0.0, %v2506
      %v2508 = vpop.f32.mrf.mxu0
      %v2509 = vpop.f32.mrf.mxu0
      %v2510 = vadd.f32 0.0, %v2509
      %v2511 = vpop.f32.mrf.mxu0
      %2512 = vdwg.mxu0
      %2513 = vrot.lane.b32.xlu0 %v1603, 56
      %v2514 = vpop.permute.xlu0 %2513
      %v2517 = vsel %vm1822, %v2417, 0
      %2519 = vmatprep.subr.bf16.mxu0 0
      %2520 = vmatpush1.bf16.msra.mxu0 0
      %2521 = vmatprep.subr.bf16.mxu0 0
      %2522 = vmatpush1.bf16.msra.mxu0 0
      %2523 = vmatprep.subr.bf16.mxu0 0
      %2524 = vmatpush1.bf16.msra.mxu0 0
      %2525 = vmatprep.subr.bf16.mxu0 0
      %2526 = vmatpush1.bf16.msra.mxu0 0
      %2527 = vmatprep.subr.bf16.mxu0 0
      %2528 = vmatpush1.bf16.msra.mxu0 0
      %2529 = vmatprep.subr.bf16.mxu0 0
      %2530 = vmatpush1.bf16.msra.mxu0 0
      %2531 = vmatprep.subr.bf16.mxu0 0
      %2532 = vmatpush1.bf16.msra.mxu0 0
      %2533 = vmatprep.subr.bf16.mxu0 0
      %2534 = vmatpush1.bf16.msra.mxu0 %v2514
      %2535 = vmatprep.subr.bf16.mxu0 0
      %2536 = vmatpush2.bf16.msra.mxu0 0
      %2537 = vmatprep.subr.bf16.mxu0 0
      %2538 = vmatpush2.bf16.msra.mxu0 0
      %2539 = vmatprep.subr.bf16.mxu0 0
      %2540 = vmatpush2.bf16.msra.mxu0 0
      %2541 = vmatprep.subr.bf16.mxu0 0
      %2542 = vmatpush2.bf16.msra.mxu0 0
      %2543 = vmatprep.subr.bf16.mxu0 0
      %2544 = vmatpush2.bf16.msra.mxu0 0
      %2545 = vmatprep.subr.bf16.mxu0 0
      %2546 = vmatpush2.bf16.msra.mxu0 0
      %2547 = vmatprep.subr.bf16.mxu0 0
      %2548 = vmatpush2.bf16.msra.mxu0 0
      %2549 = vmatprep.subr.bf16.mxu0 0
      %2550 = vmatpush2.bf16.msra.mxu0 0
      %2551 = vmatprep.mubr.bf16.mxu0 0
      %2552 = vmatmul.mubr.bf16.gmra.mxu0 %v2517
      %v2553 = vpop.f32.mrf.mxu0
      %v2554 = vadd.f32 0.0, %v2553
      %v2555 = vpop.f32.mrf.mxu0
      %v2556 = vpop.f32.mrf.mxu0
      %v2557 = vadd.f32 0.0, %v2556
      %v2558 = vpop.f32.mrf.mxu0
      %2559 = vdwg.mxu0
      %2560 = vrot.lane.b32.xlu0 %v1604, 56
      %v2561 = vpop.permute.xlu0 %2560
      %v2564 = vsel %vm1822, %v2418, 0
      %2566 = vmatprep.subr.bf16.mxu0 0
      %2567 = vmatpush1.bf16.msra.mxu0 0
      %2568 = vmatprep.subr.bf16.mxu0 0
      %2569 = vmatpush1.bf16.msra.mxu0 0
      %2570 = vmatprep.subr.bf16.mxu0 0
      %2571 = vmatpush1.bf16.msra.mxu0 0
      %2572 = vmatprep.subr.bf16.mxu0 0
      %2573 = vmatpush1.bf16.msra.mxu0 0
      %2574 = vmatprep.subr.bf16.mxu0 0
      %2575 = vmatpush1.bf16.msra.mxu0 0
      %2576 = vmatprep.subr.bf16.mxu0 0
      %2577 = vmatpush1.bf16.msra.mxu0 0
      %2578 = vmatprep.subr.bf16.mxu0 0
      %2579 = vmatpush1.bf16.msra.mxu0 0
      %2580 = vmatprep.subr.bf16.mxu0 0
      %2581 = vmatpush1.bf16.msra.mxu0 %v2561
      %2582 = vmatprep.subr.bf16.mxu0 0
      %2583 = vmatpush2.bf16.msra.mxu0 0
      %2584 = vmatprep.subr.bf16.mxu0 0
      %2585 = vmatpush2.bf16.msra.mxu0 0
      %2586 = vmatprep.subr.bf16.mxu0 0
      %2587 = vmatpush2.bf16.msra.mxu0 0
      %2588 = vmatprep.subr.bf16.mxu0 0
      %2589 = vmatpush2.bf16.msra.mxu0 0
      %2590 = vmatprep.subr.bf16.mxu0 0
      %2591 = vmatpush2.bf16.msra.mxu0 0
      %2592 = vmatprep.subr.bf16.mxu0 0
      %2593 = vmatpush2.bf16.msra.mxu0 0
      %2594 = vmatprep.subr.bf16.mxu0 0
      %2595 = vmatpush2.bf16.msra.mxu0 0
      %2596 = vmatprep.subr.bf16.mxu0 0
      %2597 = vmatpush2.bf16.msra.mxu0 0
      %2598 = vmatprep.mubr.bf16.mxu0 0
      %2599 = vmatmul.mubr.bf16.gmra.mxu0 %v2564
      %v2600 = vpop.f32.mrf.mxu0
      %v2601 = vadd.f32 0.0, %v2600
      %v2602 = vpop.f32.mrf.mxu0
      %v2603 = vpop.f32.mrf.mxu0
      %v2604 = vadd.f32 0.0, %v2603
      %v2605 = vpop.f32.mrf.mxu0
      %2606 = vdwg.mxu0
      %v2607 = vpack.c.bf16 %v2463, %v2460
      %v2608 = vpack.c.bf16 %v2510, %v2507
      %v2609 = vpack.c.bf16 %v2557, %v2554
      %v2610 = vpack.c.bf16 %v2604, %v2601
      %v2612 = vsel %vm1608, %v2607, 0
      %v2615 = vsel %vm1608, %v2608, 0
      %v2618 = vsel %vm1608, %v2609, 0
      %v2621 = vsel %vm1608, %v2610, 0
      %vm2623 = vcmask 1043456
      %v2625 = vsel %vm2623, %v1598, 0
      %2627 = vmatprep.subr.bf16.mxu0 0
      %2628 = vmatpush1.bf16.msra.mxu0 0
      %2629 = vmatprep.subr.bf16.mxu0 0
      %2630 = vmatpush1.bf16.msra.mxu0 0
      %2631 = vmatprep.subr.bf16.mxu0 0
      %2632 = vmatpush1.bf16.msra.mxu0 0
      %2633 = vmatprep.subr.bf16.mxu0 0
      %2634 = vmatpush1.bf16.msra.mxu0 0
      %2635 = vmatprep.subr.bf16.mxu0 0
      %2636 = vmatpush1.bf16.msra.mxu0 0
      %2637 = vmatprep.subr.bf16.mxu0 0
      %2638 = vmatpush1.bf16.msra.mxu0 0
      %2639 = vmatprep.subr.bf16.mxu0 0
      %2640 = vmatpush1.bf16.msra.mxu0 0
      %2641 = vmatprep.subr.bf16.mxu0 0
      %2642 = vmatpush1.bf16.msra.mxu0 %v2625
      %2643 = vmatprep.subr.bf16.mxu0 0
      %2644 = vmatpush2.bf16.msra.mxu0 0
      %2645 = vmatprep.subr.bf16.mxu0 0
      %2646 = vmatpush2.bf16.msra.mxu0 0
      %2647 = vmatprep.subr.bf16.mxu0 0
      %2648 = vmatpush2.bf16.msra.mxu0 0
      %2649 = vmatprep.subr.bf16.mxu0 0
      %2650 = vmatpush2.bf16.msra.mxu0 0
      %2651 = vmatprep.subr.bf16.mxu0 0
      %2652 = vmatpush2.bf16.msra.mxu0 0
      %2653 = vmatprep.subr.bf16.mxu0 0
      %2654 = vmatpush2.bf16.msra.mxu0 0
      %2655 = vmatprep.subr.bf16.mxu0 0
      %2656 = vmatpush2.bf16.msra.mxu0 0
      %2657 = vmatprep.subr.bf16.mxu0 0
      %2658 = vmatpush2.bf16.msra.mxu0 0
      %2659 = vmatprep.mubr.bf16.mxu0 0
      %2660 = vmatmul.mubr.bf16.gmra.mxu0 %v2612
      %v2661 = vpop.f32.mrf.mxu0
      %v2662 = vadd.f32 0.0, %v2661
      %v2663 = vpop.f32.mrf.mxu0
      %v2664 = vpop.f32.mrf.mxu0
      %v2665 = vadd.f32 0.0, %v2664
      %v2666 = vpop.f32.mrf.mxu0
      %2667 = vmatprep.mubr.bf16.mxu0 0
      %2668 = vmatmul.mubr.bf16.gmra.mxu0 %v2615
      %v2669 = vpop.f32.mrf.mxu0
      %v2670 = vadd.f32 0.0, %v2669
      %v2671 = vpop.f32.mrf.mxu0
      %v2672 = vpop.f32.mrf.mxu0
      %v2673 = vadd.f32 0.0, %v2672
      %v2674 = vpop.f32.mrf.mxu0
      %2675 = vmatprep.mubr.bf16.mxu0 0
      %2676 = vmatmul.mubr.bf16.gmra.mxu0 %v2618
      %v2677 = vpop.f32.mrf.mxu0
      %v2678 = vadd.f32 0.0, %v2677
      %v2679 = vpop.f32.mrf.mxu0
      %v2680 = vpop.f32.mrf.mxu0
      %v2681 = vadd.f32 0.0, %v2680
      %v2682 = vpop.f32.mrf.mxu0
      %2683 = vmatprep.mubr.bf16.mxu0 0
      %2684 = vmatmul.mubr.bf16.gmra.mxu0 %v2621
      %v2685 = vpop.f32.mrf.mxu0
      %v2686 = vadd.f32 0.0, %v2685
      %v2687 = vpop.f32.mrf.mxu0
      %v2688 = vpop.f32.mrf.mxu0
      %v2689 = vadd.f32 0.0, %v2688
      %v2690 = vpop.f32.mrf.mxu0
      %2691 = vdwg.mxu0
      %v2693 = vsel %vm1608, %v2103, 0
      %v2696 = vsel %vm1608, %v2104, 0
      %v2699 = vsel %vm1608, %v2105, 0
      %v2702 = vsel %vm1608, %v2106, 0
      %v2705 = vsel %vm2623, %v1597, 0
      %2707 = vmatprep.subr.bf16.mxu0 0
      %2708 = vmatpush1.bf16.msra.mxu0 0
      %2709 = vmatprep.subr.bf16.mxu0 0
      %2710 = vmatpush1.bf16.msra.mxu0 0
      %2711 = vmatprep.subr.bf16.mxu0 0
      %2712 = vmatpush1.bf16.msra.mxu0 0
      %2713 = vmatprep.subr.bf16.mxu0 0
      %2714 = vmatpush1.bf16.msra.mxu0 0
      %2715 = vmatprep.subr.bf16.mxu0 0
      %2716 = vmatpush1.bf16.msra.mxu0 0
      %2717 = vmatprep.subr.bf16.mxu0 0
      %2718 = vmatpush1.bf16.msra.mxu0 0
      %2719 = vmatprep.subr.bf16.mxu0 0
      %2720 = vmatpush1.bf16.msra.mxu0 0
      %2721 = vmatprep.subr.bf16.mxu0 0
      %2722 = vmatpush1.bf16.msra.mxu0 %v2705
      %2723 = vmatprep.subr.bf16.mxu0 0
      %2724 = vmatpush2.bf16.msra.mxu0 0
      %2725 = vmatprep.subr.bf16.mxu0 0
      %2726 = vmatpush2.bf16.msra.mxu0 0
      %2727 = vmatprep.subr.bf16.mxu0 0
      %2728 = vmatpush2.bf16.msra.mxu0 0
      %2729 = vmatprep.subr.bf16.mxu0 0
      %2730 = vmatpush2.bf16.msra.mxu0 0
      %2731 = vmatprep.subr.bf16.mxu0 0
      %2732 = vmatpush2.bf16.msra.mxu0 0
      %2733 = vmatprep.subr.bf16.mxu0 0
      %2734 = vmatpush2.bf16.msra.mxu0 0
      %2735 = vmatprep.subr.bf16.mxu0 0
      %2736 = vmatpush2.bf16.msra.mxu0 0
      %2737 = vmatprep.subr.bf16.mxu0 0
      %2738 = vmatpush2.bf16.msra.mxu0 0
      %2739 = vmatprep.mubr.bf16.mxu0 0
      %2740 = vmatmul.mubr.bf16.gmra.mxu0 %v2693
      %v2741 = vpop.f32.mrf.mxu0
      %v2742 = vadd.f32 %v2662, %v2741
      %v2743 = vpop.f32.mrf.mxu0
      %v2744 = vpop.f32.mrf.mxu0
      %v2745 = vadd.f32 %v2665, %v2744
      %v2746 = vpop.f32.mrf.mxu0
      %2747 = vmatprep.mubr.bf16.mxu0 0
      %2748 = vmatmul.mubr.bf16.gmra.mxu0 %v2696
      %v2749 = vpop.f32.mrf.mxu0
      %v2750 = vadd.f32 %v2670, %v2749
      %v2751 = vpop.f32.mrf.mxu0
      %v2752 = vpop.f32.mrf.mxu0
      %v2753 = vadd.f32 %v2673, %v2752
      %v2754 = vpop.f32.mrf.mxu0
      %2755 = vmatprep.mubr.bf16.mxu0 0
      %2756 = vmatmul.mubr.bf16.gmra.mxu0 %v2699
      %v2757 = vpop.f32.mrf.mxu0
      %v2758 = vadd.f32 %v2678, %v2757
      %v2759 = vpop.f32.mrf.mxu0
      %v2760 = vpop.f32.mrf.mxu0
      %v2761 = vadd.f32 %v2681, %v2760
      %v2762 = vpop.f32.mrf.mxu0
      %2763 = vmatprep.mubr.bf16.mxu0 0
      %2764 = vmatmul.mubr.bf16.gmra.mxu0 %v2702
      %v2765 = vpop.f32.mrf.mxu0
      %v2766 = vadd.f32 %v2686, %v2765
      %v2767 = vpop.f32.mrf.mxu0
      %v2768 = vpop.f32.mrf.mxu0
      %v2769 = vadd.f32 %v2689, %v2768
      %v2770 = vpop.f32.mrf.mxu0
      %2771 = vdwg.mxu0
      %2772 = vrot.lane.b32.xlu0 %v1601, 112
      %v2773 = vpop.permute.xlu0 %2772
      %2774 = vrot.lane.b32.xlu0 %v1601, 80
      %v2775 = vpop.permute.xlu0 %2774
      %v2777 = vsel %vm1608, %v2773, 0
      %v2780 = vsel %vm1608, %v2775, 0
      %2782 = vmatprep.subr.bf16.mxu0 0
      %2783 = vmatpush1.bf16.xpose.msra.mxu0 0
      %2784 = vmatprep.subr.bf16.mxu0 0
      %2785 = vmatpush1.bf16.xpose.msra.mxu0 0
      %2786 = vmatprep.subr.bf16.mxu0 0
      %2787 = vmatpush1.bf16.xpose.msra.mxu0 0
      %2788 = vmatprep.subr.bf16.mxu0 0
      %2789 = vmatpush1.bf16.xpose.msra.mxu0 0
      %2790 = vmatprep.subr.bf16.mxu0 0
      %2791 = vmatpush1.bf16.xpose.msra.mxu0 0
      %2792 = vmatprep.subr.bf16.mxu0 0
      %2793 = vmatpush1.bf16.xpose.msra.mxu0 0
      %2794 = vmatprep.subr.bf16.mxu0 0
      %2795 = vmatpush1.bf16.xpose.msra.mxu0 0
      %2796 = vmatprep.subr.bf16.mxu0 0
      %2797 = vmatpush1.bf16.xpose.msra.mxu0 %v2780
      %2798 = vmatprep.subr.bf16.mxu0 0
      %2799 = vmatpush2.bf16.xpose.msra.mxu0 0
      %2800 = vmatprep.subr.bf16.mxu0 0
      %2801 = vmatpush2.bf16.xpose.msra.mxu0 0
      %2802 = vmatprep.subr.bf16.mxu0 0
      %2803 = vmatpush2.bf16.xpose.msra.mxu0 0
      %2804 = vmatprep.subr.bf16.mxu0 0
      %2805 = vmatpush2.bf16.xpose.msra.mxu0 0
      %2806 = vmatprep.subr.bf16.mxu0 0
      %2807 = vmatpush2.bf16.xpose.msra.mxu0 0
      %2808 = vmatprep.subr.bf16.mxu0 0
      %2809 = vmatpush2.bf16.xpose.msra.mxu0 0
      %2810 = vmatprep.subr.bf16.mxu0 0
      %2811 = vmatpush2.bf16.xpose.msra.mxu0 0
      %2812 = vmatprep.subr.bf16.mxu0 0
      %2813 = vmatpush2.bf16.xpose.msra.mxu0 0
      %2814 = vmatprep.mubr.bf16.mxu0 0
      %2815 = vmatmul.mubr.bf16.gmra.mxu0 %v2777
      %v2816 = vpop.f32.mrf.mxu0
      %v2817 = vadd.f32 0.0, %v2816
      %v2818 = vpop.f32.mrf.mxu0
      %v2819 = vpop.f32.mrf.mxu0
      %v2820 = vadd.f32 0.0, %v2819
      %v2821 = vpop.f32.mrf.mxu0
      %2822 = vdwg.mxu0
      %2823 = vrot.lane.b32.xlu0 %v1602, 112
      %v2824 = vpop.permute.xlu0 %2823
      %2825 = vrot.lane.b32.xlu0 %v1602, 80
      %v2826 = vpop.permute.xlu0 %2825
      %v2828 = vsel %vm1608, %v2824, 0
      %v2831 = vsel %vm1608, %v2826, 0
      %2833 = vmatprep.subr.bf16.mxu0 0
      %2834 = vmatpush1.bf16.xpose.msra.mxu0 0
      %2835 = vmatprep.subr.bf16.mxu0 0
      %2836 = vmatpush1.bf16.xpose.msra.mxu0 0
      %2837 = vmatprep.subr.bf16.mxu0 0
      %2838 = vmatpush1.bf16.xpose.msra.mxu0 0
      %2839 = vmatprep.subr.bf16.mxu0 0
      %2840 = vmatpush1.bf16.xpose.msra.mxu0 0
      %2841 = vmatprep.subr.bf16.mxu0 0
      %2842 = vmatpush1.bf16.xpose.msra.mxu0 0
      %2843 = vmatprep.subr.bf16.mxu0 0
      %2844 = vmatpush1.bf16.xpose.msra.mxu0 0
      %2845 = vmatprep.subr.bf16.mxu0 0
      %2846 = vmatpush1.bf16.xpose.msra.mxu0 0
      %2847 = vmatprep.subr.bf16.mxu0 0
      %2848 = vmatpush1.bf16.xpose.msra.mxu0 %v2831
      %2849 = vmatprep.subr.bf16.mxu0 0
      %2850 = vmatpush2.bf16.xpose.msra.mxu0 0
      %2851 = vmatprep.subr.bf16.mxu0 0
      %2852 = vmatpush2.bf16.xpose.msra.mxu0 0
      %2853 = vmatprep.subr.bf16.mxu0 0
      %2854 = vmatpush2.bf16.xpose.msra.mxu0 0
      %2855 = vmatprep.subr.bf16.mxu0 0
      %2856 = vmatpush2.bf16.xpose.msra.mxu0 0
      %2857 = vmatprep.subr.bf16.mxu0 0
      %2858 = vmatpush2.bf16.xpose.msra.mxu0 0
      %2859 = vmatprep.subr.bf16.mxu0 0
      %2860 = vmatpush2.bf16.xpose.msra.mxu0 0
      %2861 = vmatprep.subr.bf16.mxu0 0
      %2862 = vmatpush2.bf16.xpose.msra.mxu0 0
      %2863 = vmatprep.subr.bf16.mxu0 0
      %2864 = vmatpush2.bf16.xpose.msra.mxu0 0
      %2865 = vmatprep.mubr.bf16.mxu0 0
      %2866 = vmatmul.mubr.bf16.gmra.mxu0 %v2828
      %v2867 = vpop.f32.mrf.mxu0
      %v2868 = vadd.f32 0.0, %v2867
      %v2869 = vpop.f32.mrf.mxu0
      %v2870 = vpop.f32.mrf.mxu0
      %v2871 = vadd.f32 0.0, %v2870
      %v2872 = vpop.f32.mrf.mxu0
      %2873 = vdwg.mxu0
      %2874 = vrot.lane.b32.xlu0 %v1603, 112
      %v2875 = vpop.permute.xlu0 %2874
      %2876 = vrot.lane.b32.xlu0 %v1603, 80
      %v2877 = vpop.permute.xlu0 %2876
      %v2879 = vsel %vm1608, %v2875, 0
      %v2882 = vsel %vm1608, %v2877, 0
      %2884 = vmatprep.subr.bf16.mxu0 0
      %2885 = vmatpush1.bf16.xpose.msra.mxu0 0
      %2886 = vmatprep.subr.bf16.mxu0 0
      %2887 = vmatpush1.bf16.xpose.msra.mxu0 0
      %2888 = vmatprep.subr.bf16.mxu0 0
      %2889 = vmatpush1.bf16.xpose.msra.mxu0 0
      %2890 = vmatprep.subr.bf16.mxu0 0
      %2891 = vmatpush1.bf16.xpose.msra.mxu0 0
      %2892 = vmatprep.subr.bf16.mxu0 0
      %2893 = vmatpush1.bf16.xpose.msra.mxu0 0
      %2894 = vmatprep.subr.bf16.mxu0 0
      %2895 = vmatpush1.bf16.xpose.msra.mxu0 0
      %2896 = vmatprep.subr.bf16.mxu0 0
      %2897 = vmatpush1.bf16.xpose.msra.mxu0 0
      %2898 = vmatprep.subr.bf16.mxu0 0
      %2899 = vmatpush1.bf16.xpose.msra.mxu0 %v2882
      %2900 = vmatprep.subr.bf16.mxu0 0
      %2901 = vmatpush2.bf16.xpose.msra.mxu0 0
      %2902 = vmatprep.subr.bf16.mxu0 0
      %2903 = vmatpush2.bf16.xpose.msra.mxu0 0
      %2904 = vmatprep.subr.bf16.mxu0 0
      %2905 = vmatpush2.bf16.xpose.msra.mxu0 0
      %2906 = vmatprep.subr.bf16.mxu0 0
      %2907 = vmatpush2.bf16.xpose.msra.mxu0 0
      %2908 = vmatprep.subr.bf16.mxu0 0
      %2909 = vmatpush2.bf16.xpose.msra.mxu0 0
      %2910 = vmatprep.subr.bf16.mxu0 0
      %2911 = vmatpush2.bf16.xpose.msra.mxu0 0
      %2912 = vmatprep.subr.bf16.mxu0 0
      %2913 = vmatpush2.bf16.xpose.msra.mxu0 0
      %2914 = vmatprep.subr.bf16.mxu0 0
      %2915 = vmatpush2.bf16.xpose.msra.mxu0 0
      %2916 = vmatprep.mubr.bf16.mxu0 0
      %2917 = vmatmul.mubr.bf16.gmra.mxu0 %v2879
      %v2918 = vpop.f32.mrf.mxu0
      %v2919 = vadd.f32 0.0, %v2918
      %v2920 = vpop.f32.mrf.mxu0
      %v2921 = vpop.f32.mrf.mxu0
      %v2922 = vadd.f32 0.0, %v2921
      %v2923 = vpop.f32.mrf.mxu0
      %2924 = vdwg.mxu0
      %2925 = vrot.lane.b32.xlu0 %v1604, 112
      %v2926 = vpop.permute.xlu0 %2925
      %2927 = vrot.lane.b32.xlu0 %v1604, 80
      %v2928 = vpop.permute.xlu0 %2927
      %v2930 = vsel %vm1608, %v2926, 0
      %v2933 = vsel %vm1608, %v2928, 0
      %2935 = vmatprep.subr.bf16.mxu0 0
      %2936 = vmatpush1.bf16.xpose.msra.mxu0 0
      %2937 = vmatprep.subr.bf16.mxu0 0
      %2938 = vmatpush1.bf16.xpose.msra.mxu0 0
      %2939 = vmatprep.subr.bf16.mxu0 0
      %2940 = vmatpush1.bf16.xpose.msra.mxu0 0
      %2941 = vmatprep.subr.bf16.mxu0 0
      %2942 = vmatpush1.bf16.xpose.msra.mxu0 0
      %2943 = vmatprep.subr.bf16.mxu0 0
      %2944 = vmatpush1.bf16.xpose.msra.mxu0 0
      %2945 = vmatprep.subr.bf16.mxu0 0
      %2946 = vmatpush1.bf16.xpose.msra.mxu0 0
      %2947 = vmatprep.subr.bf16.mxu0 0
      %2948 = vmatpush1.bf16.xpose.msra.mxu0 0
      %2949 = vmatprep.subr.bf16.mxu0 0
      %2950 = vmatpush1.bf16.xpose.msra.mxu0 %v2933
      %2951 = vmatprep.subr.bf16.mxu0 0
      %2952 = vmatpush2.bf16.xpose.msra.mxu0 0
      %2953 = vmatprep.subr.bf16.mxu0 0
      %2954 = vmatpush2.bf16.xpose.msra.mxu0 0
      %2955 = vmatprep.subr.bf16.mxu0 0
      %2956 = vmatpush2.bf16.xpose.msra.mxu0 0
      %2957 = vmatprep.subr.bf16.mxu0 0
      %2958 = vmatpush2.bf16.xpose.msra.mxu0 0
      %2959 = vmatprep.subr.bf16.mxu0 0
      %2960 = vmatpush2.bf16.xpose.msra.mxu0 0
      %2961 = vmatprep.subr.bf16.mxu0 0
      %2962 = vmatpush2.bf16.xpose.msra.mxu0 0
      %2963 = vmatprep.subr.bf16.mxu0 0
      %2964 = vmatpush2.bf16.xpose.msra.mxu0 0
      %2965 = vmatprep.subr.bf16.mxu0 0
      %2966 = vmatpush2.bf16.xpose.msra.mxu0 0
      %2967 = vmatprep.mubr.bf16.mxu0 0
      %2968 = vmatmul.mubr.bf16.gmra.mxu0 %v2930
      %v2969 = vpop.f32.mrf.mxu0
      %v2970 = vadd.f32 0.0, %v2969
      %v2971 = vpop.f32.mrf.mxu0
      %v2972 = vpop.f32.mrf.mxu0
      %v2973 = vadd.f32 0.0, %v2972
      %v2974 = vpop.f32.mrf.mxu0
      %2975 = vdwg.mxu0
      %v2976 = vmul.f32 %v2817, 0.35355338
      %v2977 = vmul.f32 %v2820, 0.35355338
      %v2978 = vmul.f32 %v2868, 0.35355338
      %v2979 = vmul.f32 %v2871, 0.35355338
      %v2980 = vmul.f32 %v2919, 0.35355338
      %v2981 = vmul.f32 %v2922, 0.35355338
      %v2982 = vmul.f32 %v2970, 0.35355338
      %v2983 = vmul.f32 %v2973, 0.35355338
      %v2984 = vsel %vm1596, %v2976, -1e+30
      %v2985 = vsel %vm1596, %v2977, -1e+30
      %v2986 = vsel %vm1596, %v2978, -1e+30
      %v2987 = vsel %vm1596, %v2979, -1e+30
      %v2988 = vsel %vm1596, %v2980, -1e+30
      %v2989 = vsel %vm1596, %v2981, -1e+30
      %v2990 = vsel %vm1596, %v2982, -1e+30
      %v2991 = vsel %vm1596, %v2983, -1e+30
      %v2992 = vsel %vm1822, %v2984, -inf
      %2993 = vmax.xlane.f32.xlu0 %v2992
      %v2994 = vpop.xlane.xlu0 %2993
      %v2995 = vsel %vm1822, %v2985, -inf
      %2996 = vmax.xlane.f32.xlu0 %v2995
      %v2997 = vpop.xlane.xlu0 %2996
      %v2998 = vsel %vm1822, %v2986, -inf
      %2999 = vmax.xlane.f32.xlu0 %v2998
      %v3000 = vpop.xlane.xlu0 %2999
      %v3001 = vsel %vm1822, %v2987, -inf
      %3002 = vmax.xlane.f32.xlu0 %v3001
      %v3003 = vpop.xlane.xlu0 %3002
      %v3004 = vsel %vm1822, %v2988, -inf
      %3005 = vmax.xlane.f32.xlu0 %v3004
      %v3006 = vpop.xlane.xlu0 %3005
      %v3007 = vsel %vm1822, %v2989, -inf
      %3008 = vmax.xlane.f32.xlu0 %v3007
      %v3009 = vpop.xlane.xlu0 %3008
      %v3010 = vsel %vm1822, %v2990, -inf
      %3011 = vmax.xlane.f32.xlu0 %v3010
      %v3012 = vpop.xlane.xlu0 %3011
      %v3013 = vsel %vm1822, %v2991, -inf
      %3014 = vmax.xlane.f32.xlu0 %v3013
      %v3015 = vpop.xlane.xlu0 %3014
      %v3016 = vsub.f32 %v2984, %v2994
      %v3017 = vsub.f32 %v2985, %v2997
      %v3018 = vsub.f32 %v2986, %v3000
      %v3019 = vsub.f32 %v2987, %v3003
      %v3020 = vsub.f32 %v2988, %v3006
      %v3021 = vsub.f32 %v2989, %v3009
      %v3022 = vsub.f32 %v2990, %v3012
      %v3023 = vsub.f32 %v2991, %v3015
      %v3024 = vmul.f32 %v3016, 1.442695
      %v3025 = vpow.pop %v3024
      %v3026 = vmul.f32 %v3017, 1.442695
      %v3027 = vpow.pop %v3026
      %v3028 = vmul.f32 %v3018, 1.442695
      %v3029 = vpow.pop %v3028
      %v3030 = vmul.f32 %v3019, 1.442695
      %v3031 = vpow.pop %v3030
      %v3032 = vmul.f32 %v3020, 1.442695
      %v3033 = vpow.pop %v3032
      %v3034 = vmul.f32 %v3021, 1.442695
      %v3035 = vpow.pop %v3034
      %v3036 = vmul.f32 %v3022, 1.442695
      %v3037 = vpow.pop %v3036
      %v3038 = vmul.f32 %v3023, 1.442695
      %v3039 = vpow.pop %v3038
      %v3040 = vsel %vm1822, %v3025, 0.0
      %3041 = vadd.xlane.f32.xlu0 %v3040
      %v3042 = vpop.xlane.xlu0 %3041
      %v3043 = vsel %vm1822, %v3027, 0.0
      %3044 = vadd.xlane.f32.xlu0 %v3043
      %v3045 = vpop.xlane.xlu0 %3044
      %v3046 = vsel %vm1822, %v3029, 0.0
      %3047 = vadd.xlane.f32.xlu0 %v3046
      %v3048 = vpop.xlane.xlu0 %3047
      %v3049 = vsel %vm1822, %v3031, 0.0
      %3050 = vadd.xlane.f32.xlu0 %v3049
      %v3051 = vpop.xlane.xlu0 %3050
      %v3052 = vsel %vm1822, %v3033, 0.0
      %3053 = vadd.xlane.f32.xlu0 %v3052
      %v3054 = vpop.xlane.xlu0 %3053
      %v3055 = vsel %vm1822, %v3035, 0.0
      %3056 = vadd.xlane.f32.xlu0 %v3055
      %v3057 = vpop.xlane.xlu0 %3056
      %v3058 = vsel %vm1822, %v3037, 0.0
      %3059 = vadd.xlane.f32.xlu0 %v3058
      %v3060 = vpop.xlane.xlu0 %3059
      %v3061 = vsel %vm1822, %v3039, 0.0
      %3062 = vadd.xlane.f32.xlu0 %v3061
      %v3063 = vpop.xlane.xlu0 %3062
      %v3064 = vrcp.pop %v3042
      %v3065 = vrcp.pop %v3045
      %v3066 = vrcp.pop %v3048
      %v3067 = vrcp.pop %v3051
      %v3068 = vrcp.pop %v3054
      %v3069 = vrcp.pop %v3057
      %v3070 = vrcp.pop %v3060
      %v3071 = vrcp.pop %v3063
      %v3072 = vmul.f32 %v3025, %v3064
      %v3073 = vmul.f32 %v3027, %v3065
      %v3074 = vmul.f32 %v3029, %v3066
      %v3075 = vmul.f32 %v3031, %v3067
      %v3076 = vmul.f32 %v3033, %v3068
      %v3077 = vmul.f32 %v3035, %v3069
      %v3078 = vmul.f32 %v3037, %v3070
      %v3079 = vmul.f32 %v3039, %v3071
      %v3080 = vpack.c.bf16 %v3073, %v3072
      %v3081 = vpack.c.bf16 %v3075, %v3074
      %v3082 = vpack.c.bf16 %v3077, %v3076
      %v3083 = vpack.c.bf16 %v3079, %v3078
      %3084 = vrot.lane.b32.xlu0 %v1601, 48
      %v3085 = vpop.permute.xlu0 %3084
      %v3088 = vsel %vm1822, %v3080, 0
      %3090 = vmatprep.subr.bf16.mxu0 0
      %3091 = vmatpush1.bf16.msra.mxu0 0
      %3092 = vmatprep.subr.bf16.mxu0 0
      %3093 = vmatpush1.bf16.msra.mxu0 0
      %3094 = vmatprep.subr.bf16.mxu0 0
      %3095 = vmatpush1.bf16.msra.mxu0 0
      %3096 = vmatprep.subr.bf16.mxu0 0
      %3097 = vmatpush1.bf16.msra.mxu0 0
      %3098 = vmatprep.subr.bf16.mxu0 0
      %3099 = vmatpush1.bf16.msra.mxu0 0
      %3100 = vmatprep.subr.bf16.mxu0 0
      %3101 = vmatpush1.bf16.msra.mxu0 0
      %3102 = vmatprep.subr.bf16.mxu0 0
      %3103 = vmatpush1.bf16.msra.mxu0 0
      %3104 = vmatprep.subr.bf16.mxu0 0
      %3105 = vmatpush1.bf16.msra.mxu0 %v3085
      %3106 = vmatprep.subr.bf16.mxu0 0
      %3107 = vmatpush2.bf16.msra.mxu0 0
      %3108 = vmatprep.subr.bf16.mxu0 0
      %3109 = vmatpush2.bf16.msra.mxu0 0
      %3110 = vmatprep.subr.bf16.mxu0 0
      %3111 = vmatpush2.bf16.msra.mxu0 0
      %3112 = vmatprep.subr.bf16.mxu0 0
      %3113 = vmatpush2.bf16.msra.mxu0 0
      %3114 = vmatprep.subr.bf16.mxu0 0
      %3115 = vmatpush2.bf16.msra.mxu0 0
      %3116 = vmatprep.subr.bf16.mxu0 0
      %3117 = vmatpush2.bf16.msra.mxu0 0
      %3118 = vmatprep.subr.bf16.mxu0 0
      %3119 = vmatpush2.bf16.msra.mxu0 0
      %3120 = vmatprep.subr.bf16.mxu0 0
      %3121 = vmatpush2.bf16.msra.mxu0 0
      %3122 = vmatprep.mubr.bf16.mxu0 0
      %3123 = vmatmul.mubr.bf16.gmra.mxu0 %v3088
      %v3124 = vpop.f32.mrf.mxu0
      %v3125 = vadd.f32 0.0, %v3124
      %v3126 = vpop.f32.mrf.mxu0
      %v3127 = vpop.f32.mrf.mxu0
      %v3128 = vadd.f32 0.0, %v3127
      %v3129 = vpop.f32.mrf.mxu0
      %3130 = vdwg.mxu0
      %3131 = vrot.lane.b32.xlu0 %v1602, 48
      %v3132 = vpop.permute.xlu0 %3131
      %v3135 = vsel %vm1822, %v3081, 0
      %3137 = vmatprep.subr.bf16.mxu0 0
      %3138 = vmatpush1.bf16.msra.mxu0 0
      %3139 = vmatprep.subr.bf16.mxu0 0
      %3140 = vmatpush1.bf16.msra.mxu0 0
      %3141 = vmatprep.subr.bf16.mxu0 0
      %3142 = vmatpush1.bf16.msra.mxu0 0
      %3143 = vmatprep.subr.bf16.mxu0 0
      %3144 = vmatpush1.bf16.msra.mxu0 0
      %3145 = vmatprep.subr.bf16.mxu0 0
      %3146 = vmatpush1.bf16.msra.mxu0 0
      %3147 = vmatprep.subr.bf16.mxu0 0
      %3148 = vmatpush1.bf16.msra.mxu0 0
      %3149 = vmatprep.subr.bf16.mxu0 0
      %3150 = vmatpush1.bf16.msra.mxu0 0
      %3151 = vmatprep.subr.bf16.mxu0 0
      %3152 = vmatpush1.bf16.msra.mxu0 %v3132
      %3153 = vmatprep.subr.bf16.mxu0 0
      %3154 = vmatpush2.bf16.msra.mxu0 0
      %3155 = vmatprep.subr.bf16.mxu0 0
      %3156 = vmatpush2.bf16.msra.mxu0 0
      %3157 = vmatprep.subr.bf16.mxu0 0
      %3158 = vmatpush2.bf16.msra.mxu0 0
      %3159 = vmatprep.subr.bf16.mxu0 0
      %3160 = vmatpush2.bf16.msra.mxu0 0
      %3161 = vmatprep.subr.bf16.mxu0 0
      %3162 = vmatpush2.bf16.msra.mxu0 0
      %3163 = vmatprep.subr.bf16.mxu0 0
      %3164 = vmatpush2.bf16.msra.mxu0 0
      %3165 = vmatprep.subr.bf16.mxu0 0
      %3166 = vmatpush2.bf16.msra.mxu0 0
      %3167 = vmatprep.subr.bf16.mxu0 0
      %3168 = vmatpush2.bf16.msra.mxu0 0
      %3169 = vmatprep.mubr.bf16.mxu0 0
      %3170 = vmatmul.mubr.bf16.gmra.mxu0 %v3135
      %v3171 = vpop.f32.mrf.mxu0
      %v3172 = vadd.f32 0.0, %v3171
      %v3173 = vpop.f32.mrf.mxu0
      %v3174 = vpop.f32.mrf.mxu0
      %v3175 = vadd.f32 0.0, %v3174
      %v3176 = vpop.f32.mrf.mxu0
      %3177 = vdwg.mxu0
      %3178 = vrot.lane.b32.xlu0 %v1603, 48
      %v3179 = vpop.permute.xlu0 %3178
      %v3182 = vsel %vm1822, %v3082, 0
      %3184 = vmatprep.subr.bf16.mxu0 0
      %3185 = vmatpush1.bf16.msra.mxu0 0
      %3186 = vmatprep.subr.bf16.mxu0 0
      %3187 = vmatpush1.bf16.msra.mxu0 0
      %3188 = vmatprep.subr.bf16.mxu0 0
      %3189 = vmatpush1.bf16.msra.mxu0 0
      %3190 = vmatprep.subr.bf16.mxu0 0
      %3191 = vmatpush1.bf16.msra.mxu0 0
      %3192 = vmatprep.subr.bf16.mxu0 0
      %3193 = vmatpush1.bf16.msra.mxu0 0
      %3194 = vmatprep.subr.bf16.mxu0 0
      %3195 = vmatpush1.bf16.msra.mxu0 0
      %3196 = vmatprep.subr.bf16.mxu0 0
      %3197 = vmatpush1.bf16.msra.mxu0 0
      %3198 = vmatprep.subr.bf16.mxu0 0
      %3199 = vmatpush1.bf16.msra.mxu0 %v3179
      %3200 = vmatprep.subr.bf16.mxu0 0
      %3201 = vmatpush2.bf16.msra.mxu0 0
      %3202 = vmatprep.subr.bf16.mxu0 0
      %3203 = vmatpush2.bf16.msra.mxu0 0
      %3204 = vmatprep.subr.bf16.mxu0 0
      %3205 = vmatpush2.bf16.msra.mxu0 0
      %3206 = vmatprep.subr.bf16.mxu0 0
      %3207 = vmatpush2.bf16.msra.mxu0 0
      %3208 = vmatprep.subr.bf16.mxu0 0
      %3209 = vmatpush2.bf16.msra.mxu0 0
      %3210 = vmatprep.subr.bf16.mxu0 0
      %3211 = vmatpush2.bf16.msra.mxu0 0
      %3212 = vmatprep.subr.bf16.mxu0 0
      %3213 = vmatpush2.bf16.msra.mxu0 0
      %3214 = vmatprep.subr.bf16.mxu0 0
      %3215 = vmatpush2.bf16.msra.mxu0 0
      %3216 = vmatprep.mubr.bf16.mxu0 0
      %3217 = vmatmul.mubr.bf16.gmra.mxu0 %v3182
      %v3218 = vpop.f32.mrf.mxu0
      %v3219 = vadd.f32 0.0, %v3218
      %v3220 = vpop.f32.mrf.mxu0
      %v3221 = vpop.f32.mrf.mxu0
      %v3222 = vadd.f32 0.0, %v3221
      %v3223 = vpop.f32.mrf.mxu0
      %3224 = vdwg.mxu0
      %3225 = vrot.lane.b32.xlu0 %v1604, 48
      %v3226 = vpop.permute.xlu0 %3225
      %v3229 = vsel %vm1822, %v3083, 0
      %3231 = vmatprep.subr.bf16.mxu0 0
      %3232 = vmatpush1.bf16.msra.mxu0 0
      %3233 = vmatprep.subr.bf16.mxu0 0
      %3234 = vmatpush1.bf16.msra.mxu0 0
      %3235 = vmatprep.subr.bf16.mxu0 0
      %3236 = vmatpush1.bf16.msra.mxu0 0
      %3237 = vmatprep.subr.bf16.mxu0 0
      %3238 = vmatpush1.bf16.msra.mxu0 0
      %3239 = vmatprep.subr.bf16.mxu0 0
      %3240 = vmatpush1.bf16.msra.mxu0 0
      %3241 = vmatprep.subr.bf16.mxu0 0
      %3242 = vmatpush1.bf16.msra.mxu0 0
      %3243 = vmatprep.subr.bf16.mxu0 0
      %3244 = vmatpush1.bf16.msra.mxu0 0
      %3245 = vmatprep.subr.bf16.mxu0 0
      %3246 = vmatpush1.bf16.msra.mxu0 %v3226
      %3247 = vmatprep.subr.bf16.mxu0 0
      %3248 = vmatpush2.bf16.msra.mxu0 0
      %3249 = vmatprep.subr.bf16.mxu0 0
      %3250 = vmatpush2.bf16.msra.mxu0 0
      %3251 = vmatprep.subr.bf16.mxu0 0
      %3252 = vmatpush2.bf16.msra.mxu0 0
      %3253 = vmatprep.subr.bf16.mxu0 0
      %3254 = vmatpush2.bf16.msra.mxu0 0
      %3255 = vmatprep.subr.bf16.mxu0 0
      %3256 = vmatpush2.bf16.msra.mxu0 0
      %3257 = vmatprep.subr.bf16.mxu0 0
      %3258 = vmatpush2.bf16.msra.mxu0 0
      %3259 = vmatprep.subr.bf16.mxu0 0
      %3260 = vmatpush2.bf16.msra.mxu0 0
      %3261 = vmatprep.subr.bf16.mxu0 0
      %3262 = vmatpush2.bf16.msra.mxu0 0
      %3263 = vmatprep.mubr.bf16.mxu0 0
      %3264 = vmatmul.mubr.bf16.gmra.mxu0 %v3229
      %v3265 = vpop.f32.mrf.mxu0
      %v3266 = vadd.f32 0.0, %v3265
      %v3267 = vpop.f32.mrf.mxu0
      %v3268 = vpop.f32.mrf.mxu0
      %v3269 = vadd.f32 0.0, %v3268
      %v3270 = vpop.f32.mrf.mxu0
      %3271 = vdwg.mxu0
      %v3272 = vpack.c.bf16 %v3128, %v3125
      %v3273 = vpack.c.bf16 %v3175, %v3172
      %v3274 = vpack.c.bf16 %v3222, %v3219
      %v3275 = vpack.c.bf16 %v3269, %v3266
      %v3277 = vsel %vm1608, %v3272, 0
      %v3280 = vsel %vm1608, %v3273, 0
      %v3283 = vsel %vm1608, %v3274, 0
      %v3286 = vsel %vm1608, %v3275, 0
      %v3289 = vsel %vm2623, %v1599, 0
      %3291 = vmatprep.subr.bf16.mxu0 0
      %3292 = vmatpush1.bf16.msra.mxu0 0
      %3293 = vmatprep.subr.bf16.mxu0 0
      %3294 = vmatpush1.bf16.msra.mxu0 0
      %3295 = vmatprep.subr.bf16.mxu0 0
      %3296 = vmatpush1.bf16.msra.mxu0 0
      %3297 = vmatprep.subr.bf16.mxu0 0
      %3298 = vmatpush1.bf16.msra.mxu0 0
      %3299 = vmatprep.subr.bf16.mxu0 0
      %3300 = vmatpush1.bf16.msra.mxu0 0
      %3301 = vmatprep.subr.bf16.mxu0 0
      %3302 = vmatpush1.bf16.msra.mxu0 0
      %3303 = vmatprep.subr.bf16.mxu0 0
      %3304 = vmatpush1.bf16.msra.mxu0 0
      %3305 = vmatprep.subr.bf16.mxu0 0
      %3306 = vmatpush1.bf16.msra.mxu0 %v3289
      %3307 = vmatprep.subr.bf16.mxu0 0
      %3308 = vmatpush2.bf16.msra.mxu0 0
      %3309 = vmatprep.subr.bf16.mxu0 0
      %3310 = vmatpush2.bf16.msra.mxu0 0
      %3311 = vmatprep.subr.bf16.mxu0 0
      %3312 = vmatpush2.bf16.msra.mxu0 0
      %3313 = vmatprep.subr.bf16.mxu0 0
      %3314 = vmatpush2.bf16.msra.mxu0 0
      %3315 = vmatprep.subr.bf16.mxu0 0
      %3316 = vmatpush2.bf16.msra.mxu0 0
      %3317 = vmatprep.subr.bf16.mxu0 0
      %3318 = vmatpush2.bf16.msra.mxu0 0
      %3319 = vmatprep.subr.bf16.mxu0 0
      %3320 = vmatpush2.bf16.msra.mxu0 0
      %3321 = vmatprep.subr.bf16.mxu0 0
      %3322 = vmatpush2.bf16.msra.mxu0 0
      %3323 = vmatprep.mubr.bf16.mxu0 0
      %3324 = vmatmul.mubr.bf16.gmra.mxu0 %v3277
      %v3325 = vpop.f32.mrf.mxu0
      %v3326 = vadd.f32 0.0, %v3325
      %v3327 = vpop.f32.mrf.mxu0
      %v3328 = vpop.f32.mrf.mxu0
      %v3329 = vadd.f32 0.0, %v3328
      %v3330 = vpop.f32.mrf.mxu0
      %3331 = vmatprep.mubr.bf16.mxu0 0
      %3332 = vmatmul.mubr.bf16.gmra.mxu0 %v3280
      %v3333 = vpop.f32.mrf.mxu0
      %v3334 = vadd.f32 0.0, %v3333
      %v3335 = vpop.f32.mrf.mxu0
      %v3336 = vpop.f32.mrf.mxu0
      %v3337 = vadd.f32 0.0, %v3336
      %v3338 = vpop.f32.mrf.mxu0
      %3339 = vmatprep.mubr.bf16.mxu0 0
      %3340 = vmatmul.mubr.bf16.gmra.mxu0 %v3283
      %v3341 = vpop.f32.mrf.mxu0
      %v3342 = vadd.f32 0.0, %v3341
      %v3343 = vpop.f32.mrf.mxu0
      %v3344 = vpop.f32.mrf.mxu0
      %v3345 = vadd.f32 0.0, %v3344
      %v3346 = vpop.f32.mrf.mxu0
      %3347 = vmatprep.mubr.bf16.mxu0 0
      %3348 = vmatmul.mubr.bf16.gmra.mxu0 %v3286
      %v3349 = vpop.f32.mrf.mxu0
      %v3350 = vadd.f32 0.0, %v3349
      %v3351 = vpop.f32.mrf.mxu0
      %v3352 = vpop.f32.mrf.mxu0
      %v3353 = vadd.f32 0.0, %v3352
      %v3354 = vpop.f32.mrf.mxu0
      %3355 = vdwg.mxu0
      %v3356 = vadd.f32 %v2742, %v3326
      %v3357 = vadd.f32 %v2745, %v3329
      %v3358 = vadd.f32 %v2750, %v3334
      %v3359 = vadd.f32 %v2753, %v3337
      %v3360 = vadd.f32 %v2758, %v3342
      %v3361 = vadd.f32 %v2761, %v3345
      %v3362 = vadd.f32 %v2766, %v3350
      %v3363 = vadd.f32 %v2769, %v3353
      %3364 = vrot.lane.b32.xlu0 %v1601, 104
      %v3365 = vpop.permute.xlu0 %3364
      %3366 = vrot.lane.b32.xlu0 %v1601, 72
      %v3367 = vpop.permute.xlu0 %3366
      %v3369 = vsel %vm1608, %v3365, 0
      %v3372 = vsel %vm1608, %v3367, 0
      %3374 = vmatprep.subr.bf16.mxu0 0
      %3375 = vmatpush1.bf16.xpose.msra.mxu0 0
      %3376 = vmatprep.subr.bf16.mxu0 0
      %3377 = vmatpush1.bf16.xpose.msra.mxu0 0
      %3378 = vmatprep.subr.bf16.mxu0 0
      %3379 = vmatpush1.bf16.xpose.msra.mxu0 0
      %3380 = vmatprep.subr.bf16.mxu0 0
      %3381 = vmatpush1.bf16.xpose.msra.mxu0 0
      %3382 = vmatprep.subr.bf16.mxu0 0
      %3383 = vmatpush1.bf16.xpose.msra.mxu0 0
      %3384 = vmatprep.subr.bf16.mxu0 0
      %3385 = vmatpush1.bf16.xpose.msra.mxu0 0
      %3386 = vmatprep.subr.bf16.mxu0 0
      %3387 = vmatpush1.bf16.xpose.msra.mxu0 0
      %3388 = vmatprep.subr.bf16.mxu0 0
      %3389 = vmatpush1.bf16.xpose.msra.mxu0 %v3372
      %3390 = vmatprep.subr.bf16.mxu0 0
      %3391 = vmatpush2.bf16.xpose.msra.mxu0 0
      %3392 = vmatprep.subr.bf16.mxu0 0
      %3393 = vmatpush2.bf16.xpose.msra.mxu0 0
      %3394 = vmatprep.subr.bf16.mxu0 0
      %3395 = vmatpush2.bf16.xpose.msra.mxu0 0
      %3396 = vmatprep.subr.bf16.mxu0 0
      %3397 = vmatpush2.bf16.xpose.msra.mxu0 0
      %3398 = vmatprep.subr.bf16.mxu0 0
      %3399 = vmatpush2.bf16.xpose.msra.mxu0 0
      %3400 = vmatprep.subr.bf16.mxu0 0
      %3401 = vmatpush2.bf16.xpose.msra.mxu0 0
      %3402 = vmatprep.subr.bf16.mxu0 0
      %3403 = vmatpush2.bf16.xpose.msra.mxu0 0
      %3404 = vmatprep.subr.bf16.mxu0 0
      %3405 = vmatpush2.bf16.xpose.msra.mxu0 0
      %3406 = vmatprep.mubr.bf16.mxu0 0
      %3407 = vmatmul.mubr.bf16.gmra.mxu0 %v3369
      %v3408 = vpop.f32.mrf.mxu0
      %v3409 = vadd.f32 0.0, %v3408
      %v3410 = vpop.f32.mrf.mxu0
      %v3411 = vpop.f32.mrf.mxu0
      %v3412 = vadd.f32 0.0, %v3411
      %v3413 = vpop.f32.mrf.mxu0
      %3414 = vdwg.mxu0
      %3415 = vrot.lane.b32.xlu0 %v1602, 104
      %v3416 = vpop.permute.xlu0 %3415
      %3417 = vrot.lane.b32.xlu0 %v1602, 72
      %v3418 = vpop.permute.xlu0 %3417
      %v3420 = vsel %vm1608, %v3416, 0
      %v3423 = vsel %vm1608, %v3418, 0
      %3425 = vmatprep.subr.bf16.mxu0 0
      %3426 = vmatpush1.bf16.xpose.msra.mxu0 0
      %3427 = vmatprep.subr.bf16.mxu0 0
      %3428 = vmatpush1.bf16.xpose.msra.mxu0 0
      %3429 = vmatprep.subr.bf16.mxu0 0
      %3430 = vmatpush1.bf16.xpose.msra.mxu0 0
      %3431 = vmatprep.subr.bf16.mxu0 0
      %3432 = vmatpush1.bf16.xpose.msra.mxu0 0
      %3433 = vmatprep.subr.bf16.mxu0 0
      %3434 = vmatpush1.bf16.xpose.msra.mxu0 0
      %3435 = vmatprep.subr.bf16.mxu0 0
      %3436 = vmatpush1.bf16.xpose.msra.mxu0 0
      %3437 = vmatprep.subr.bf16.mxu0 0
      %3438 = vmatpush1.bf16.xpose.msra.mxu0 0
      %3439 = vmatprep.subr.bf16.mxu0 0
      %3440 = vmatpush1.bf16.xpose.msra.mxu0 %v3423
      %3441 = vmatprep.subr.bf16.mxu0 0
      %3442 = vmatpush2.bf16.xpose.msra.mxu0 0
      %3443 = vmatprep.subr.bf16.mxu0 0
      %3444 = vmatpush2.bf16.xpose.msra.mxu0 0
      %3445 = vmatprep.subr.bf16.mxu0 0
      %3446 = vmatpush2.bf16.xpose.msra.mxu0 0
      %3447 = vmatprep.subr.bf16.mxu0 0
      %3448 = vmatpush2.bf16.xpose.msra.mxu0 0
      %3449 = vmatprep.subr.bf16.mxu0 0
      %3450 = vmatpush2.bf16.xpose.msra.mxu0 0
      %3451 = vmatprep.subr.bf16.mxu0 0
      %3452 = vmatpush2.bf16.xpose.msra.mxu0 0
      %3453 = vmatprep.subr.bf16.mxu0 0
      %3454 = vmatpush2.bf16.xpose.msra.mxu0 0
      %3455 = vmatprep.subr.bf16.mxu0 0
      %3456 = vmatpush2.bf16.xpose.msra.mxu0 0
      %3457 = vmatprep.mubr.bf16.mxu0 0
      %3458 = vmatmul.mubr.bf16.gmra.mxu0 %v3420
      %v3459 = vpop.f32.mrf.mxu0
      %v3460 = vadd.f32 0.0, %v3459
      %v3461 = vpop.f32.mrf.mxu0
      %v3462 = vpop.f32.mrf.mxu0
      %v3463 = vadd.f32 0.0, %v3462
      %v3464 = vpop.f32.mrf.mxu0
      %3465 = vdwg.mxu0
      %3466 = vrot.lane.b32.xlu0 %v1603, 104
      %v3467 = vpop.permute.xlu0 %3466
      %3468 = vrot.lane.b32.xlu0 %v1603, 72
      %v3469 = vpop.permute.xlu0 %3468
      %v3471 = vsel %vm1608, %v3467, 0
      %v3474 = vsel %vm1608, %v3469, 0
      %3476 = vmatprep.subr.bf16.mxu0 0
      %3477 = vmatpush1.bf16.xpose.msra.mxu0 0
      %3478 = vmatprep.subr.bf16.mxu0 0
      %3479 = vmatpush1.bf16.xpose.msra.mxu0 0
      %3480 = vmatprep.subr.bf16.mxu0 0
      %3481 = vmatpush1.bf16.xpose.msra.mxu0 0
      %3482 = vmatprep.subr.bf16.mxu0 0
      %3483 = vmatpush1.bf16.xpose.msra.mxu0 0
      %3484 = vmatprep.subr.bf16.mxu0 0
      %3485 = vmatpush1.bf16.xpose.msra.mxu0 0
      %3486 = vmatprep.subr.bf16.mxu0 0
      %3487 = vmatpush1.bf16.xpose.msra.mxu0 0
      %3488 = vmatprep.subr.bf16.mxu0 0
      %3489 = vmatpush1.bf16.xpose.msra.mxu0 0
      %3490 = vmatprep.subr.bf16.mxu0 0
      %3491 = vmatpush1.bf16.xpose.msra.mxu0 %v3474
      %3492 = vmatprep.subr.bf16.mxu0 0
      %3493 = vmatpush2.bf16.xpose.msra.mxu0 0
      %3494 = vmatprep.subr.bf16.mxu0 0
      %3495 = vmatpush2.bf16.xpose.msra.mxu0 0
      %3496 = vmatprep.subr.bf16.mxu0 0
      %3497 = vmatpush2.bf16.xpose.msra.mxu0 0
      %3498 = vmatprep.subr.bf16.mxu0 0
      %3499 = vmatpush2.bf16.xpose.msra.mxu0 0
      %3500 = vmatprep.subr.bf16.mxu0 0
      %3501 = vmatpush2.bf16.xpose.msra.mxu0 0
      %3502 = vmatprep.subr.bf16.mxu0 0
      %3503 = vmatpush2.bf16.xpose.msra.mxu0 0
      %3504 = vmatprep.subr.bf16.mxu0 0
      %3505 = vmatpush2.bf16.xpose.msra.mxu0 0
      %3506 = vmatprep.subr.bf16.mxu0 0
      %3507 = vmatpush2.bf16.xpose.msra.mxu0 0
      %3508 = vmatprep.mubr.bf16.mxu0 0
      %3509 = vmatmul.mubr.bf16.gmra.mxu0 %v3471
      %v3510 = vpop.f32.mrf.mxu0
      %v3511 = vadd.f32 0.0, %v3510
      %v3512 = vpop.f32.mrf.mxu0
      %v3513 = vpop.f32.mrf.mxu0
      %v3514 = vadd.f32 0.0, %v3513
      %v3515 = vpop.f32.mrf.mxu0
      %3516 = vdwg.mxu0
      %3517 = vrot.lane.b32.xlu0 %v1604, 104
      %v3518 = vpop.permute.xlu0 %3517
      %3519 = vrot.lane.b32.xlu0 %v1604, 72
      %v3520 = vpop.permute.xlu0 %3519
      %v3522 = vsel %vm1608, %v3518, 0
      %v3525 = vsel %vm1608, %v3520, 0
      %3527 = vmatprep.subr.bf16.mxu0 0
      %3528 = vmatpush1.bf16.xpose.msra.mxu0 0
      %3529 = vmatprep.subr.bf16.mxu0 0
      %3530 = vmatpush1.bf16.xpose.msra.mxu0 0
      %3531 = vmatprep.subr.bf16.mxu0 0
      %3532 = vmatpush1.bf16.xpose.msra.mxu0 0
      %3533 = vmatprep.subr.bf16.mxu0 0
      %3534 = vmatpush1.bf16.xpose.msra.mxu0 0
      %3535 = vmatprep.subr.bf16.mxu0 0
      %3536 = vmatpush1.bf16.xpose.msra.mxu0 0
      %3537 = vmatprep.subr.bf16.mxu0 0
      %3538 = vmatpush1.bf16.xpose.msra.mxu0 0
      %3539 = vmatprep.subr.bf16.mxu0 0
      %3540 = vmatpush1.bf16.xpose.msra.mxu0 0
      %3541 = vmatprep.subr.bf16.mxu0 0
      %3542 = vmatpush1.bf16.xpose.msra.mxu0 %v3525
      %3543 = vmatprep.subr.bf16.mxu0 0
      %3544 = vmatpush2.bf16.xpose.msra.mxu0 0
      %3545 = vmatprep.subr.bf16.mxu0 0
      %3546 = vmatpush2.bf16.xpose.msra.mxu0 0
      %3547 = vmatprep.subr.bf16.mxu0 0
      %3548 = vmatpush2.bf16.xpose.msra.mxu0 0
      %3549 = vmatprep.subr.bf16.mxu0 0
      %3550 = vmatpush2.bf16.xpose.msra.mxu0 0
      %3551 = vmatprep.subr.bf16.mxu0 0
      %3552 = vmatpush2.bf16.xpose.msra.mxu0 0
      %3553 = vmatprep.subr.bf16.mxu0 0
      %3554 = vmatpush2.bf16.xpose.msra.mxu0 0
      %3555 = vmatprep.subr.bf16.mxu0 0
      %3556 = vmatpush2.bf16.xpose.msra.mxu0 0
      %3557 = vmatprep.subr.bf16.mxu0 0
      %3558 = vmatpush2.bf16.xpose.msra.mxu0 0
      %3559 = vmatprep.mubr.bf16.mxu0 0
      %3560 = vmatmul.mubr.bf16.gmra.mxu0 %v3522
      %v3561 = vpop.f32.mrf.mxu0
      %v3562 = vadd.f32 0.0, %v3561
      %v3563 = vpop.f32.mrf.mxu0
      %v3564 = vpop.f32.mrf.mxu0
      %v3565 = vadd.f32 0.0, %v3564
      %v3566 = vpop.f32.mrf.mxu0
      %3567 = vdwg.mxu0
      %v3568 = vmul.f32 %v3409, 0.35355338
      %v3569 = vmul.f32 %v3412, 0.35355338
      %v3570 = vmul.f32 %v3460, 0.35355338
      %v3571 = vmul.f32 %v3463, 0.35355338
      %v3572 = vmul.f32 %v3511, 0.35355338
      %v3573 = vmul.f32 %v3514, 0.35355338
      %v3574 = vmul.f32 %v3562, 0.35355338
      %v3575 = vmul.f32 %v3565, 0.35355338
      %v3576 = vsel %vm1596, %v3568, -1e+30
      %v3577 = vsel %vm1596, %v3569, -1e+30
      %v3578 = vsel %vm1596, %v3570, -1e+30
      %v3579 = vsel %vm1596, %v3571, -1e+30
      %v3580 = vsel %vm1596, %v3572, -1e+30
      %v3581 = vsel %vm1596, %v3573, -1e+30
      %v3582 = vsel %vm1596, %v3574, -1e+30
      %v3583 = vsel %vm1596, %v3575, -1e+30
      %v3584 = vsel %vm1822, %v3576, -inf
      %3585 = vmax.xlane.f32.xlu0 %v3584
      %v3586 = vpop.xlane.xlu0 %3585
      %v3587 = vsel %vm1822, %v3577, -inf
      %3588 = vmax.xlane.f32.xlu0 %v3587
      %v3589 = vpop.xlane.xlu0 %3588
      %v3590 = vsel %vm1822, %v3578, -inf
      %3591 = vmax.xlane.f32.xlu0 %v3590
      %v3592 = vpop.xlane.xlu0 %3591
      %v3593 = vsel %vm1822, %v3579, -inf
      %3594 = vmax.xlane.f32.xlu0 %v3593
      %v3595 = vpop.xlane.xlu0 %3594
      %v3596 = vsel %vm1822, %v3580, -inf
      %3597 = vmax.xlane.f32.xlu0 %v3596
      %v3598 = vpop.xlane.xlu0 %3597
      %v3599 = vsel %vm1822, %v3581, -inf
      %3600 = vmax.xlane.f32.xlu0 %v3599
      %v3601 = vpop.xlane.xlu0 %3600
      %v3602 = vsel %vm1822, %v3582, -inf
      %3603 = vmax.xlane.f32.xlu0 %v3602
      %v3604 = vpop.xlane.xlu0 %3603
      %v3605 = vsel %vm1822, %v3583, -inf
      %3606 = vmax.xlane.f32.xlu0 %v3605
      %v3607 = vpop.xlane.xlu0 %3606
      %v3608 = vsub.f32 %v3576, %v3586
      %v3609 = vsub.f32 %v3577, %v3589
      %v3610 = vsub.f32 %v3578, %v3592
      %v3611 = vsub.f32 %v3579, %v3595
      %v3612 = vsub.f32 %v3580, %v3598
      %v3613 = vsub.f32 %v3581, %v3601
      %v3614 = vsub.f32 %v3582, %v3604
      %v3615 = vsub.f32 %v3583, %v3607
      %v3616 = vmul.f32 %v3608, 1.442695
      %v3617 = vpow.pop %v3616
      %v3618 = vmul.f32 %v3609, 1.442695
      %v3619 = vpow.pop %v3618
      %v3620 = vmul.f32 %v3610, 1.442695
      %v3621 = vpow.pop %v3620
      %v3622 = vmul.f32 %v3611, 1.442695
      %v3623 = vpow.pop %v3622
      %v3624 = vmul.f32 %v3612, 1.442695
      %v3625 = vpow.pop %v3624
      %v3626 = vmul.f32 %v3613, 1.442695
      %v3627 = vpow.pop %v3626
      %v3628 = vmul.f32 %v3614, 1.442695
      %v3629 = vpow.pop %v3628
      %v3630 = vmul.f32 %v3615, 1.442695
      %v3631 = vpow.pop %v3630
      %v3632 = vsel %vm1822, %v3617, 0.0
      %3633 = vadd.xlane.f32.xlu0 %v3632
      %v3634 = vpop.xlane.xlu0 %3633
      %v3635 = vsel %vm1822, %v3619, 0.0
      %3636 = vadd.xlane.f32.xlu0 %v3635
      %v3637 = vpop.xlane.xlu0 %3636
      %v3638 = vsel %vm1822, %v3621, 0.0
      %3639 = vadd.xlane.f32.xlu0 %v3638
      %v3640 = vpop.xlane.xlu0 %3639
      %v3641 = vsel %vm1822, %v3623, 0.0
      %3642 = vadd.xlane.f32.xlu0 %v3641
      %v3643 = vpop.xlane.xlu0 %3642
      %v3644 = vsel %vm1822, %v3625, 0.0
      %3645 = vadd.xlane.f32.xlu0 %v3644
      %v3646 = vpop.xlane.xlu0 %3645
      %v3647 = vsel %vm1822, %v3627, 0.0
      %3648 = vadd.xlane.f32.xlu0 %v3647
      %v3649 = vpop.xlane.xlu0 %3648
      %v3650 = vsel %vm1822, %v3629, 0.0
      %3651 = vadd.xlane.f32.xlu0 %v3650
      %v3652 = vpop.xlane.xlu0 %3651
      %v3653 = vsel %vm1822, %v3631, 0.0
      %3654 = vadd.xlane.f32.xlu0 %v3653
      %v3655 = vpop.xlane.xlu0 %3654
      %v3656 = vrcp.pop %v3634
      %v3657 = vrcp.pop %v3637
      %v3658 = vrcp.pop %v3640
      %v3659 = vrcp.pop %v3643
      %v3660 = vrcp.pop %v3646
      %v3661 = vrcp.pop %v3649
      %v3662 = vrcp.pop %v3652
      %v3663 = vrcp.pop %v3655
      %v3664 = vmul.f32 %v3617, %v3656
      %v3665 = vmul.f32 %v3619, %v3657
      %v3666 = vmul.f32 %v3621, %v3658
      %v3667 = vmul.f32 %v3623, %v3659
      %v3668 = vmul.f32 %v3625, %v3660
      %v3669 = vmul.f32 %v3627, %v3661
      %v3670 = vmul.f32 %v3629, %v3662
      %v3671 = vmul.f32 %v3631, %v3663
      %v3672 = vpack.c.bf16 %v3665, %v3664
      %v3673 = vpack.c.bf16 %v3667, %v3666
      %v3674 = vpack.c.bf16 %v3669, %v3668
      %v3675 = vpack.c.bf16 %v3671, %v3670
      %3676 = vrot.lane.b32.xlu0 %v1601, 40
      %v3677 = vpop.permute.xlu0 %3676
      %v3680 = vsel %vm1822, %v3672, 0
      %3682 = vmatprep.subr.bf16.mxu0 0
      %3683 = vmatpush1.bf16.msra.mxu0 0
      %3684 = vmatprep.subr.bf16.mxu0 0
      %3685 = vmatpush1.bf16.msra.mxu0 0
      %3686 = vmatprep.subr.bf16.mxu0 0
      %3687 = vmatpush1.bf16.msra.mxu0 0
      %3688 = vmatprep.subr.bf16.mxu0 0
      %3689 = vmatpush1.bf16.msra.mxu0 0
      %3690 = vmatprep.subr.bf16.mxu0 0
      %3691 = vmatpush1.bf16.msra.mxu0 0
      %3692 = vmatprep.subr.bf16.mxu0 0
      %3693 = vmatpush1.bf16.msra.mxu0 0
      %3694 = vmatprep.subr.bf16.mxu0 0
      %3695 = vmatpush1.bf16.msra.mxu0 0
      %3696 = vmatprep.subr.bf16.mxu0 0
      %3697 = vmatpush1.bf16.msra.mxu0 %v3677
      %3698 = vmatprep.subr.bf16.mxu0 0
      %3699 = vmatpush2.bf16.msra.mxu0 0
      %3700 = vmatprep.subr.bf16.mxu0 0
      %3701 = vmatpush2.bf16.msra.mxu0 0
      %3702 = vmatprep.subr.bf16.mxu0 0
      %3703 = vmatpush2.bf16.msra.mxu0 0
      %3704 = vmatprep.subr.bf16.mxu0 0
      %3705 = vmatpush2.bf16.msra.mxu0 0
      %3706 = vmatprep.subr.bf16.mxu0 0
      %3707 = vmatpush2.bf16.msra.mxu0 0
      %3708 = vmatprep.subr.bf16.mxu0 0
      %3709 = vmatpush2.bf16.msra.mxu0 0
      %3710 = vmatprep.subr.bf16.mxu0 0
      %3711 = vmatpush2.bf16.msra.mxu0 0
      %3712 = vmatprep.subr.bf16.mxu0 0
      %3713 = vmatpush2.bf16.msra.mxu0 0
      %3714 = vmatprep.mubr.bf16.mxu0 0
      %3715 = vmatmul.mubr.bf16.gmra.mxu0 %v3680
      %v3716 = vpop.f32.mrf.mxu0
      %v3717 = vadd.f32 0.0, %v3716
      %v3718 = vpop.f32.mrf.mxu0
      %v3719 = vpop.f32.mrf.mxu0
      %v3720 = vadd.f32 0.0, %v3719
      %v3721 = vpop.f32.mrf.mxu0
      %3722 = vdwg.mxu0
      %3723 = vrot.lane.b32.xlu0 %v1602, 40
      %v3724 = vpop.permute.xlu0 %3723
      %v3727 = vsel %vm1822, %v3673, 0
      %3729 = vmatprep.subr.bf16.mxu0 0
      %3730 = vmatpush1.bf16.msra.mxu0 0
      %3731 = vmatprep.subr.bf16.mxu0 0
      %3732 = vmatpush1.bf16.msra.mxu0 0
      %3733 = vmatprep.subr.bf16.mxu0 0
      %3734 = vmatpush1.bf16.msra.mxu0 0
      %3735 = vmatprep.subr.bf16.mxu0 0
      %3736 = vmatpush1.bf16.msra.mxu0 0
      %3737 = vmatprep.subr.bf16.mxu0 0
      %3738 = vmatpush1.bf16.msra.mxu0 0
      %3739 = vmatprep.subr.bf16.mxu0 0
      %3740 = vmatpush1.bf16.msra.mxu0 0
      %3741 = vmatprep.subr.bf16.mxu0 0
      %3742 = vmatpush1.bf16.msra.mxu0 0
      %3743 = vmatprep.subr.bf16.mxu0 0
      %3744 = vmatpush1.bf16.msra.mxu0 %v3724
      %3745 = vmatprep.subr.bf16.mxu0 0
      %3746 = vmatpush2.bf16.msra.mxu0 0
      %3747 = vmatprep.subr.bf16.mxu0 0
      %3748 = vmatpush2.bf16.msra.mxu0 0
      %3749 = vmatprep.subr.bf16.mxu0 0
      %3750 = vmatpush2.bf16.msra.mxu0 0
      %3751 = vmatprep.subr.bf16.mxu0 0
      %3752 = vmatpush2.bf16.msra.mxu0 0
      %3753 = vmatprep.subr.bf16.mxu0 0
      %3754 = vmatpush2.bf16.msra.mxu0 0
      %3755 = vmatprep.subr.bf16.mxu0 0
      %3756 = vmatpush2.bf16.msra.mxu0 0
      %3757 = vmatprep.subr.bf16.mxu0 0
      %3758 = vmatpush2.bf16.msra.mxu0 0
      %3759 = vmatprep.subr.bf16.mxu0 0
      %3760 = vmatpush2.bf16.msra.mxu0 0
      %3761 = vmatprep.mubr.bf16.mxu0 0
      %3762 = vmatmul.mubr.bf16.gmra.mxu0 %v3727
      %v3763 = vpop.f32.mrf.mxu0
      %v3764 = vadd.f32 0.0, %v3763
      %v3765 = vpop.f32.mrf.mxu0
      %v3766 = vpop.f32.mrf.mxu0
      %v3767 = vadd.f32 0.0, %v3766
      %v3768 = vpop.f32.mrf.mxu0
      %3769 = vdwg.mxu0
      %3770 = vrot.lane.b32.xlu0 %v1603, 40
      %v3771 = vpop.permute.xlu0 %3770
      %v3774 = vsel %vm1822, %v3674, 0
      %3776 = vmatprep.subr.bf16.mxu0 0
      %3777 = vmatpush1.bf16.msra.mxu0 0
      %3778 = vmatprep.subr.bf16.mxu0 0
      %3779 = vmatpush1.bf16.msra.mxu0 0
      %3780 = vmatprep.subr.bf16.mxu0 0
      %3781 = vmatpush1.bf16.msra.mxu0 0
      %3782 = vmatprep.subr.bf16.mxu0 0
      %3783 = vmatpush1.bf16.msra.mxu0 0
      %3784 = vmatprep.subr.bf16.mxu0 0
      %3785 = vmatpush1.bf16.msra.mxu0 0
      %3786 = vmatprep.subr.bf16.mxu0 0
      %3787 = vmatpush1.bf16.msra.mxu0 0
      %3788 = vmatprep.subr.bf16.mxu0 0
      %3789 = vmatpush1.bf16.msra.mxu0 0
      %3790 = vmatprep.subr.bf16.mxu0 0
      %3791 = vmatpush1.bf16.msra.mxu0 %v3771
      %3792 = vmatprep.subr.bf16.mxu0 0
      %3793 = vmatpush2.bf16.msra.mxu0 0
      %3794 = vmatprep.subr.bf16.mxu0 0
      %3795 = vmatpush2.bf16.msra.mxu0 0
      %3796 = vmatprep.subr.bf16.mxu0 0
      %3797 = vmatpush2.bf16.msra.mxu0 0
      %3798 = vmatprep.subr.bf16.mxu0 0
      %3799 = vmatpush2.bf16.msra.mxu0 0
      %3800 = vmatprep.subr.bf16.mxu0 0
      %3801 = vmatpush2.bf16.msra.mxu0 0
      %3802 = vmatprep.subr.bf16.mxu0 0
      %3803 = vmatpush2.bf16.msra.mxu0 0
      %3804 = vmatprep.subr.bf16.mxu0 0
      %3805 = vmatpush2.bf16.msra.mxu0 0
      %3806 = vmatprep.subr.bf16.mxu0 0
      %3807 = vmatpush2.bf16.msra.mxu0 0
      %3808 = vmatprep.mubr.bf16.mxu0 0
      %3809 = vmatmul.mubr.bf16.gmra.mxu0 %v3774
      %v3810 = vpop.f32.mrf.mxu0
      %v3811 = vadd.f32 0.0, %v3810
      %v3812 = vpop.f32.mrf.mxu0
      %v3813 = vpop.f32.mrf.mxu0
      %v3814 = vadd.f32 0.0, %v3813
      %v3815 = vpop.f32.mrf.mxu0
      %3816 = vdwg.mxu0
      %3817 = vrot.lane.b32.xlu0 %v1604, 40
      %v3818 = vpop.permute.xlu0 %3817
      %v3821 = vsel %vm1822, %v3675, 0
      %3823 = vmatprep.subr.bf16.mxu0 0
      %3824 = vmatpush1.bf16.msra.mxu0 0
      %3825 = vmatprep.subr.bf16.mxu0 0
      %3826 = vmatpush1.bf16.msra.mxu0 0
      %3827 = vmatprep.subr.bf16.mxu0 0
      %3828 = vmatpush1.bf16.msra.mxu0 0
      %3829 = vmatprep.subr.bf16.mxu0 0
      %3830 = vmatpush1.bf16.msra.mxu0 0
      %3831 = vmatprep.subr.bf16.mxu0 0
      %3832 = vmatpush1.bf16.msra.mxu0 0
      %3833 = vmatprep.subr.bf16.mxu0 0
      %3834 = vmatpush1.bf16.msra.mxu0 0
      %3835 = vmatprep.subr.bf16.mxu0 0
      %3836 = vmatpush1.bf16.msra.mxu0 0
      %3837 = vmatprep.subr.bf16.mxu0 0
      %3838 = vmatpush1.bf16.msra.mxu0 %v3818
      %3839 = vmatprep.subr.bf16.mxu0 0
      %3840 = vmatpush2.bf16.msra.mxu0 0
      %3841 = vmatprep.subr.bf16.mxu0 0
      %3842 = vmatpush2.bf16.msra.mxu0 0
      %3843 = vmatprep.subr.bf16.mxu0 0
      %3844 = vmatpush2.bf16.msra.mxu0 0
      %3845 = vmatprep.subr.bf16.mxu0 0
      %3846 = vmatpush2.bf16.msra.mxu0 0
      %3847 = vmatprep.subr.bf16.mxu0 0
      %3848 = vmatpush2.bf16.msra.mxu0 0
      %3849 = vmatprep.subr.bf16.mxu0 0
      %3850 = vmatpush2.bf16.msra.mxu0 0
      %3851 = vmatprep.subr.bf16.mxu0 0
      %3852 = vmatpush2.bf16.msra.mxu0 0
      %3853 = vmatprep.subr.bf16.mxu0 0
      %3854 = vmatpush2.bf16.msra.mxu0 0
      %3855 = vmatprep.mubr.bf16.mxu0 0
      %3856 = vmatmul.mubr.bf16.gmra.mxu0 %v3821
      %v3857 = vpop.f32.mrf.mxu0
      %v3858 = vadd.f32 0.0, %v3857
      %v3859 = vpop.f32.mrf.mxu0
      %v3860 = vpop.f32.mrf.mxu0
      %v3861 = vadd.f32 0.0, %v3860
      %v3862 = vpop.f32.mrf.mxu0
      %3863 = vdwg.mxu0
      %v3864 = vpack.c.bf16 %v3720, %v3717
      %v3865 = vpack.c.bf16 %v3767, %v3764
      %v3866 = vpack.c.bf16 %v3814, %v3811
      %v3867 = vpack.c.bf16 %v3861, %v3858
      %v3869 = vsel %vm1608, %v3864, 0
      %v3872 = vsel %vm1608, %v3865, 0
      %v3875 = vsel %vm1608, %v3866, 0
      %v3878 = vsel %vm1608, %v3867, 0
      %v3881 = vsel %vm2623, %v1600, 0
      %3883 = vmatprep.subr.bf16.mxu0 0
      %3884 = vmatpush1.bf16.msra.mxu0 0
      %3885 = vmatprep.subr.bf16.mxu0 0
      %3886 = vmatpush1.bf16.msra.mxu0 0
      %3887 = vmatprep.subr.bf16.mxu0 0
      %3888 = vmatpush1.bf16.msra.mxu0 0
      %3889 = vmatprep.subr.bf16.mxu0 0
      %3890 = vmatpush1.bf16.msra.mxu0 0
      %3891 = vmatprep.subr.bf16.mxu0 0
      %3892 = vmatpush1.bf16.msra.mxu0 0
      %3893 = vmatprep.subr.bf16.mxu0 0
      %3894 = vmatpush1.bf16.msra.mxu0 0
      %3895 = vmatprep.subr.bf16.mxu0 0
      %3896 = vmatpush1.bf16.msra.mxu0 0
      %3897 = vmatprep.subr.bf16.mxu0 0
      %3898 = vmatpush1.bf16.msra.mxu0 %v3881
      %3899 = vmatprep.subr.bf16.mxu0 0
      %3900 = vmatpush2.bf16.msra.mxu0 0
      %3901 = vmatprep.subr.bf16.mxu0 0
      %3902 = vmatpush2.bf16.msra.mxu0 0
      %3903 = vmatprep.subr.bf16.mxu0 0
      %3904 = vmatpush2.bf16.msra.mxu0 0
      %3905 = vmatprep.subr.bf16.mxu0 0
      %3906 = vmatpush2.bf16.msra.mxu0 0
      %3907 = vmatprep.subr.bf16.mxu0 0
      %3908 = vmatpush2.bf16.msra.mxu0 0
      %3909 = vmatprep.subr.bf16.mxu0 0
      %3910 = vmatpush2.bf16.msra.mxu0 0
      %3911 = vmatprep.subr.bf16.mxu0 0
      %3912 = vmatpush2.bf16.msra.mxu0 0
      %3913 = vmatprep.subr.bf16.mxu0 0
      %3914 = vmatpush2.bf16.msra.mxu0 0
      %3915 = vmatprep.mubr.bf16.mxu0 0
      %3916 = vmatmul.mubr.bf16.gmra.mxu0 %v3869
      %v3917 = vpop.f32.mrf.mxu0
      %v3918 = vadd.f32 0.0, %v3917
      %v3919 = vpop.f32.mrf.mxu0
      %v3920 = vpop.f32.mrf.mxu0
      %v3921 = vadd.f32 0.0, %v3920
      %v3922 = vpop.f32.mrf.mxu0
      %3923 = vmatprep.mubr.bf16.mxu0 0
      %3924 = vmatmul.mubr.bf16.gmra.mxu0 %v3872
      %v3925 = vpop.f32.mrf.mxu0
      %v3926 = vadd.f32 0.0, %v3925
      %v3927 = vpop.f32.mrf.mxu0
      %v3928 = vpop.f32.mrf.mxu0
      %v3929 = vadd.f32 0.0, %v3928
      %v3930 = vpop.f32.mrf.mxu0
      %3931 = vmatprep.mubr.bf16.mxu0 0
      %3932 = vmatmul.mubr.bf16.gmra.mxu0 %v3875
      %v3933 = vpop.f32.mrf.mxu0
      %v3934 = vadd.f32 0.0, %v3933
      %v3935 = vpop.f32.mrf.mxu0
      %v3936 = vpop.f32.mrf.mxu0
      %v3937 = vadd.f32 0.0, %v3936
      %v3938 = vpop.f32.mrf.mxu0
      %3939 = vmatprep.mubr.bf16.mxu0 0
      %3940 = vmatmul.mubr.bf16.gmra.mxu0 %v3878
      %v3941 = vpop.f32.mrf.mxu0
      %v3942 = vadd.f32 0.0, %v3941
      %v3943 = vpop.f32.mrf.mxu0
      %v3944 = vpop.f32.mrf.mxu0
      %v3945 = vadd.f32 0.0, %v3944
      %v3946 = vpop.f32.mrf.mxu0
      %3947 = vdwg.mxu0
      %v3948 = vadd.f32 %v3356, %v3918
      %v3949 = vadd.f32 %v3357, %v3921
      %v3950 = vadd.f32 %v3358, %v3926
      %v3951 = vadd.f32 %v3359, %v3929
      %v3952 = vadd.f32 %v3360, %v3934
      %v3953 = vadd.f32 %v3361, %v3937
      %v3954 = vadd.f32 %v3362, %v3942
      %v3955 = vadd.f32 %v3363, %v3945
      %v3956 = vld [vmem:[%s896] sm:$0x1]
      %v3958 = vlaneseq
      %v3959 = vshrl.u32 %v3958, 7
      %v3960 = vsub.s32 0, %v3959
      %v3961 = vrot.slane %v3956, %v3960
      %v3963 = vadd.f32 %v3948, %v3961
      %v3964 = vadd.f32 %v3949, %v3961
      %v3965 = vadd.f32 %v3950, %v3961
      %v3966 = vadd.f32 %v3951, %v3961
      %v3967 = vadd.f32 %v3952, %v3961
      %v3968 = vadd.f32 %v3953, %v3961
      %v3969 = vadd.f32 %v3954, %v3961
      %v3970 = vadd.f32 %v3955, %v3961
      %v3971 = vadd.f32 %v1353, %v3963
      %v3972 = vadd.f32 %v1354, %v3964
      %v3973 = vadd.f32 %v1355, %v3965
      %v3974 = vadd.f32 %v1356, %v3966
      %v3975 = vadd.f32 %v1357, %v3967
      %v3976 = vadd.f32 %v1358, %v3968
      %v3977 = vadd.f32 %v1359, %v3969
      %v3978 = vadd.f32 %v1360, %v3970
      %v3979 = vld [vmem:[%s899] sm:$0x1]
      %v3980 = vld [vmem:[%s902] sm:$0x1]
      %v3981 = vsel %vm1363, %v3971, 0.0
      %3982 = vadd.xlane.f32.xlu0 %v3981
      %v3983 = vpop.xlane.xlu0 %3982
      %v3984 = vsel %vm1363, %v3972, 0.0
      %3985 = vadd.xlane.f32.xlu0 %v3984
      %v3986 = vpop.xlane.xlu0 %3985
      %v3987 = vsel %vm1363, %v3973, 0.0
      %3988 = vadd.xlane.f32.xlu0 %v3987
      %v3989 = vpop.xlane.xlu0 %3988
      %v3990 = vsel %vm1363, %v3974, 0.0
      %3991 = vadd.xlane.f32.xlu0 %v3990
      %v3992 = vpop.xlane.xlu0 %3991
      %v3993 = vsel %vm1363, %v3975, 0.0
      %3994 = vadd.xlane.f32.xlu0 %v3993
      %v3995 = vpop.xlane.xlu0 %3994
      %v3996 = vsel %vm1363, %v3976, 0.0
      %3997 = vadd.xlane.f32.xlu0 %v3996
      %v3998 = vpop.xlane.xlu0 %3997
      %v3999 = vsel %vm1363, %v3977, 0.0
      %4000 = vadd.xlane.f32.xlu0 %v3999
      %v4001 = vpop.xlane.xlu0 %4000
      %v4002 = vsel %vm1363, %v3978, 0.0
      %4003 = vadd.xlane.f32.xlu0 %v4002
      %v4004 = vpop.xlane.xlu0 %4003
      %v4005 = vmul.f32 %v3983, %v1388
      %v4006 = vmul.f32 %v3986, %v1388
      %v4007 = vmul.f32 %v3989, %v1388
      %v4008 = vmul.f32 %v3992, %v1388
      %v4009 = vmul.f32 %v3995, %v1388
      %v4010 = vmul.f32 %v3998, %v1388
      %v4011 = vmul.f32 %v4001, %v1388
      %v4012 = vmul.f32 %v4004, %v1388
      %v4013 = vsub.f32 %v3971, %v4005
      %v4014 = vsub.f32 %v3972, %v4006
      %v4015 = vsub.f32 %v3973, %v4007
      %v4016 = vsub.f32 %v3974, %v4008
      %v4017 = vsub.f32 %v3975, %v4009
      %v4018 = vsub.f32 %v3976, %v4010
      %v4019 = vsub.f32 %v3977, %v4011
      %v4020 = vsub.f32 %v3978, %v4012
      %v4021 = vmul.f32 %v4013, %v4013
      %v4022 = vmul.f32 %v4014, %v4014
      %v4023 = vmul.f32 %v4015, %v4015
      %v4024 = vmul.f32 %v4016, %v4016
      %v4025 = vmul.f32 %v4017, %v4017
      %v4026 = vmul.f32 %v4018, %v4018
      %v4027 = vmul.f32 %v4019, %v4019
      %v4028 = vmul.f32 %v4020, %v4020
      %v4029 = vsel %vm1363, %v4021, 0.0
      %4030 = vadd.xlane.f32.xlu0 %v4029
      %v4031 = vpop.xlane.xlu0 %4030
      %v4032 = vsel %vm1363, %v4022, 0.0
      %4033 = vadd.xlane.f32.xlu0 %v4032
      %v4034 = vpop.xlane.xlu0 %4033
      %v4035 = vsel %vm1363, %v4023, 0.0
      %4036 = vadd.xlane.f32.xlu0 %v4035
      %v4037 = vpop.xlane.xlu0 %4036
      %v4038 = vsel %vm1363, %v4024, 0.0
      %4039 = vadd.xlane.f32.xlu0 %v4038
      %v4040 = vpop.xlane.xlu0 %4039
      %v4041 = vsel %vm1363, %v4025, 0.0
      %4042 = vadd.xlane.f32.xlu0 %v4041
      %v4043 = vpop.xlane.xlu0 %4042
      %v4044 = vsel %vm1363, %v4026, 0.0
      %4045 = vadd.xlane.f32.xlu0 %v4044
      %v4046 = vpop.xlane.xlu0 %4045
      %v4047 = vsel %vm1363, %v4027, 0.0
      %4048 = vadd.xlane.f32.xlu0 %v4047
      %v4049 = vpop.xlane.xlu0 %4048
      %v4050 = vsel %vm1363, %v4028, 0.0
      %4051 = vadd.xlane.f32.xlu0 %v4050
      %v4052 = vpop.xlane.xlu0 %4051
      %v4053 = vmul.f32 %v4031, %v1388
      %v4054 = vmul.f32 %v4034, %v1388
      %v4055 = vmul.f32 %v4037, %v1388
      %v4056 = vmul.f32 %v4040, %v1388
      %v4057 = vmul.f32 %v4043, %v1388
      %v4058 = vmul.f32 %v4046, %v1388
      %v4059 = vmul.f32 %v4049, %v1388
      %v4060 = vmul.f32 %v4052, %v1388
      %v4061 = vadd.f32 %v4053, 1e-05
      %v4062 = vadd.f32 %v4054, 1e-05
      %v4063 = vadd.f32 %v4055, 1e-05
      %v4064 = vadd.f32 %v4056, 1e-05
      %v4065 = vadd.f32 %v4057, 1e-05
      %v4066 = vadd.f32 %v4058, 1e-05
      %v4067 = vadd.f32 %v4059, 1e-05
      %v4068 = vadd.f32 %v4060, 1e-05
      %v4069 = vrsqrt.pop %v4061
      %v4070 = vrsqrt.pop %v4062
      %v4071 = vrsqrt.pop %v4063
      %v4072 = vrsqrt.pop %v4064
      %v4073 = vrsqrt.pop %v4065
      %v4074 = vrsqrt.pop %v4066
      %v4075 = vrsqrt.pop %v4067
      %v4076 = vrsqrt.pop %v4068
      %v4077 = vmul.f32 %v4013, %v4069
      %v4078 = vmul.f32 %v4014, %v4070
      %v4079 = vmul.f32 %v4015, %v4071
      %v4080 = vmul.f32 %v4016, %v4072
      %v4081 = vmul.f32 %v4017, %v4073
      %v4082 = vmul.f32 %v4018, %v4074
      %v4083 = vmul.f32 %v4019, %v4075
      %v4084 = vmul.f32 %v4020, %v4076
      %v4086 = vlaneseq
      %v4087 = vshrl.u32 %v4086, 7
      %v4088 = vsub.s32 0, %v4087
      %v4089 = vrot.slane %v3979, %v4088
      %v4091 = vmul.f32 %v4077, %v4089
      %v4092 = vmul.f32 %v4078, %v4089
      %v4093 = vmul.f32 %v4079, %v4089
      %v4094 = vmul.f32 %v4080, %v4089
      %v4095 = vmul.f32 %v4081, %v4089
      %v4096 = vmul.f32 %v4082, %v4089
      %v4097 = vmul.f32 %v4083, %v4089
      %v4098 = vmul.f32 %v4084, %v4089
      %v4100 = vlaneseq
      %v4101 = vshrl.u32 %v4100, 7
      %v4102 = vsub.s32 0, %v4101
      %v4103 = vrot.slane %v3980, %v4102
      %v4105 = vadd.f32 %v4091, %v4103
      %v4106 = vadd.f32 %v4092, %v4103
      %v4107 = vadd.f32 %v4093, %v4103
      %v4108 = vadd.f32 %v4094, %v4103
      %v4109 = vadd.f32 %v4095, %v4103
      %v4110 = vadd.f32 %v4096, %v4103
      %v4111 = vadd.f32 %v4097, %v4103
      %v4112 = vadd.f32 %v4098, %v4103
      %v4113 = vpack.c.bf16 %v4106, %v4105
      %v4114 = vpack.c.bf16 %v4108, %v4107
      %v4115 = vpack.c.bf16 %v4110, %v4109
      %v4116 = vpack.c.bf16 %v4112, %v4111
      %v4117 = vld [vmem:[%s907] sm:$0xf]
      %v4118 = vld [vmem:[%s907 + $0x4] sm:$0xf]
      %v4119 = vld [vmem:[%s907 + $0x8] sm:$0xf]
      %v4120 = vld [vmem:[%s907 + $0xc] sm:$0xf]
      %v4121 = vld [vmem:[%s910] sm:$0x1]
      %v4123 = vlaneseq
      %v4124 = vshrl.u32 %v4123, 7
      %v4125 = vsub.s32 0, %v4124
      %v4126 = vrot.slane %v4121, %v4125
      %v4132 = vunpack.c.l.b16 %v4117
      %v4133 = vunpack.c.l.b16 %v4118
      %v4134 = vunpack.c.l.b16 %v4119
      %v4135 = vunpack.c.l.b16 %v4120
      %v4136 = vpack.c.b16 %v4133, %v4132
      %v4137 = vpack.c.b16 %v4135, %v4134
      %v4141 = vsel %vm1363, %v4113, 0
      %v4144 = vsel %vm1363, %v4114, 0
      %v4147 = vsel %vm1363, %v4115, 0
      %v4150 = vsel %vm1363, %v4116, 0
      %4152 = vmatprep.subr.bf16.mxu0 0
      %4153 = vmatpush1.bf16.msra.mxu0 0
      %4154 = vmatprep.subr.bf16.mxu0 0
      %4155 = vmatpush1.bf16.msra.mxu0 0
      %4156 = vmatprep.subr.bf16.mxu0 0
      %4157 = vmatpush1.bf16.msra.mxu0 0
      %4158 = vmatprep.subr.bf16.mxu0 0
      %4159 = vmatpush1.bf16.msra.mxu0 0
      %4160 = vmatprep.subr.bf16.mxu0 0
      %4161 = vmatpush1.bf16.msra.mxu0 0
      %4162 = vmatprep.subr.bf16.mxu0 0
      %4163 = vmatpush1.bf16.msra.mxu0 0
      %4164 = vmatprep.subr.bf16.mxu0 0
      %4165 = vmatpush1.bf16.msra.mxu0 %v4137
      %4166 = vmatprep.subr.bf16.mxu0 0
      %4167 = vmatpush1.bf16.msra.mxu0 %v4136
      %4168 = vmatprep.subr.bf16.mxu0 0
      %4169 = vmatpush2.bf16.msra.mxu0 0
      %4170 = vmatprep.subr.bf16.mxu0 0
      %4171 = vmatpush2.bf16.msra.mxu0 0
      %4172 = vmatprep.subr.bf16.mxu0 0
      %4173 = vmatpush2.bf16.msra.mxu0 0
      %4174 = vmatprep.subr.bf16.mxu0 0
      %4175 = vmatpush2.bf16.msra.mxu0 0
      %4176 = vmatprep.subr.bf16.mxu0 0
      %4177 = vmatpush2.bf16.msra.mxu0 0
      %4178 = vmatprep.subr.bf16.mxu0 0
      %4179 = vmatpush2.bf16.msra.mxu0 0
      %4180 = vmatprep.subr.bf16.mxu0 0
      %4181 = vmatpush2.bf16.msra.mxu0 0
      %4182 = vmatprep.subr.bf16.mxu0 0
      %4183 = vmatpush2.bf16.msra.mxu0 0
      %4184 = vmatprep.mubr.bf16.mxu0 0
      %4185 = vmatmul.mubr.bf16.gmra.mxu0 %v4141
      %v4186 = vpop.f32.mrf.mxu0
      %v4187 = vadd.f32 %v4126, %v4186
      %v4188 = vpop.f32.mrf.mxu0
      %v4189 = vpop.f32.mrf.mxu0
      %v4190 = vadd.f32 %v4126, %v4189
      %v4191 = vpop.f32.mrf.mxu0
      %4192 = vmatprep.mubr.bf16.mxu0 0
      %4193 = vmatmul.mubr.bf16.gmra.mxu0 %v4144
      %v4194 = vpop.f32.mrf.mxu0
      %v4195 = vadd.f32 %v4126, %v4194
      %v4196 = vpop.f32.mrf.mxu0
      %v4197 = vpop.f32.mrf.mxu0
      %v4198 = vadd.f32 %v4126, %v4197
      %v4199 = vpop.f32.mrf.mxu0
      %4200 = vmatprep.mubr.bf16.mxu0 0
      %4201 = vmatmul.mubr.bf16.gmra.mxu0 %v4147
      %v4202 = vpop.f32.mrf.mxu0
      %v4203 = vadd.f32 %v4126, %v4202
      %v4204 = vpop.f32.mrf.mxu0
      %v4205 = vpop.f32.mrf.mxu0
      %v4206 = vadd.f32 %v4126, %v4205
      %v4207 = vpop.f32.mrf.mxu0
      %4208 = vmatprep.mubr.bf16.mxu0 0
      %4209 = vmatmul.mubr.bf16.gmra.mxu0 %v4150
      %v4210 = vpop.f32.mrf.mxu0
      %v4211 = vadd.f32 %v4126, %v4210
      %v4212 = vpop.f32.mrf.mxu0
      %v4213 = vpop.f32.mrf.mxu0
      %v4214 = vadd.f32 %v4126, %v4213
      %v4215 = vpop.f32.mrf.mxu0
      %4216 = vdwg.mxu0
      %v4217 = vmul.f32 %v4187, 0.5
      %v4218 = vmul.f32 %v4190, 0.5
      %v4219 = vmul.f32 %v4195, 0.5
      %v4220 = vmul.f32 %v4198, 0.5
      %v4221 = vmul.f32 %v4203, 0.5
      %v4222 = vmul.f32 %v4206, 0.5
      %v4223 = vmul.f32 %v4211, 0.5
      %v4224 = vmul.f32 %v4214, 0.5
      %v4225 = vmul.f32 %v4187, 0.044715
      %v4226 = vmul.f32 %v4190, 0.044715
      %v4227 = vmul.f32 %v4195, 0.044715
      %v4228 = vmul.f32 %v4198, 0.044715
      %v4229 = vmul.f32 %v4203, 0.044715
      %v4230 = vmul.f32 %v4206, 0.044715
      %v4231 = vmul.f32 %v4211, 0.044715
      %v4232 = vmul.f32 %v4214, 0.044715
      %v4233 = vmul.f32 %v4225, %v4187
      %v4234 = vmul.f32 %v4226, %v4190
      %v4235 = vmul.f32 %v4227, %v4195
      %v4236 = vmul.f32 %v4228, %v4198
      %v4237 = vmul.f32 %v4229, %v4203
      %v4238 = vmul.f32 %v4230, %v4206
      %v4239 = vmul.f32 %v4231, %v4211
      %v4240 = vmul.f32 %v4232, %v4214
      %v4241 = vmul.f32 %v4233, %v4187
      %v4242 = vmul.f32 %v4234, %v4190
      %v4243 = vmul.f32 %v4235, %v4195
      %v4244 = vmul.f32 %v4236, %v4198
      %v4245 = vmul.f32 %v4237, %v4203
      %v4246 = vmul.f32 %v4238, %v4206
      %v4247 = vmul.f32 %v4239, %v4211
      %v4248 = vmul.f32 %v4240, %v4214
      %v4249 = vadd.f32 %v4187, %v4241
      %v4250 = vadd.f32 %v4190, %v4242
      %v4251 = vadd.f32 %v4195, %v4243
      %v4252 = vadd.f32 %v4198, %v4244
      %v4253 = vadd.f32 %v4203, %v4245
      %v4254 = vadd.f32 %v4206, %v4246
      %v4255 = vadd.f32 %v4211, %v4247
      %v4256 = vadd.f32 %v4214, %v4248
      %v4257 = vmul.f32 %v4249, 0.7978846
      %v4258 = vmul.f32 %v4250, 0.7978846
      %v4259 = vmul.f32 %v4251, 0.7978846
      %v4260 = vmul.f32 %v4252, 0.7978846
      %v4261 = vmul.f32 %v4253, 0.7978846
      %v4262 = vmul.f32 %v4254, 0.7978846
      %v4263 = vmul.f32 %v4255, 0.7978846
      %v4264 = vmul.f32 %v4256, 0.7978846
      %v4265 = vtanh.pop %v4257
      %v4266 = vtanh.pop %v4258
      %v4267 = vtanh.pop %v4259
      %v4268 = vtanh.pop %v4260
      %v4269 = vtanh.pop %v4261
      %v4270 = vtanh.pop %v4262
      %v4271 = vtanh.pop %v4263
      %v4272 = vtanh.pop %v4264
      %v4273 = vadd.f32 %v4265, 1.0
      %v4274 = vadd.f32 %v4266, 1.0
      %v4275 = vadd.f32 %v4267, 1.0
      %v4276 = vadd.f32 %v4268, 1.0
      %v4277 = vadd.f32 %v4269, 1.0
      %v4278 = vadd.f32 %v4270, 1.0
      %v4279 = vadd.f32 %v4271, 1.0
      %v4280 = vadd.f32 %v4272, 1.0
      %v4281 = vmul.f32 %v4217, %v4273
      %v4282 = vmul.f32 %v4218, %v4274
      %v4283 = vmul.f32 %v4219, %v4275
      %v4284 = vmul.f32 %v4220, %v4276
      %v4285 = vmul.f32 %v4221, %v4277
      %v4286 = vmul.f32 %v4222, %v4278
      %v4287 = vmul.f32 %v4223, %v4279
      %v4288 = vmul.f32 %v4224, %v4280
      %v4289 = vpack.c.bf16 %v4282, %v4281
      %v4290 = vpack.c.bf16 %v4284, %v4283
      %v4291 = vpack.c.bf16 %v4286, %v4285
      %v4292 = vpack.c.bf16 %v4288, %v4287
      %v4293 = vld [vmem:[%s915] sm:$0xf]
      %v4294 = vld [vmem:[%s915 + $0x4] sm:$0xf]
      %v4295 = vld [vmem:[%s915 + $0x8] sm:$0xf]
      %v4296 = vld [vmem:[%s915 + $0xc] sm:$0xf]
      %v4297 = vld [vmem:[%s915 + $0x10] sm:$0xf]
      %v4298 = vld [vmem:[%s915 + $0x14] sm:$0xf]
      %v4299 = vld [vmem:[%s915 + $0x18] sm:$0xf]
      %v4300 = vld [vmem:[%s915 + $0x1c] sm:$0xf]
      %v4301 = vld [vmem:[%s915 + $0x20] sm:$0xf]
      %v4302 = vld [vmem:[%s915 + $0x24] sm:$0xf]
      %v4303 = vld [vmem:[%s915 + $0x28] sm:$0xf]
      %v4304 = vld [vmem:[%s915 + $0x2c] sm:$0xf]
      %v4305 = vld [vmem:[%s915 + $0x30] sm:$0xf]
      %v4306 = vld [vmem:[%s915 + $0x34] sm:$0xf]
      %v4307 = vld [vmem:[%s915 + $0x38] sm:$0xf]
      %v4308 = vld [vmem:[%s915 + $0x3c] sm:$0xf]
      %v4309 = vld [vmem:[%s918] sm:$0x1]
      %v4311 = vlaneseq
      %v4312 = vshrl.u32 %v4311, 7
      %v4313 = vsub.s32 0, %v4312
      %v4314 = vrot.slane %v4309, %v4313
      %v4332 = vunpack.c.l.b16 %v4293
      %v4333 = vunpack.c.l.b16 %v4294
      %v4334 = vunpack.c.l.b16 %v4295
      %v4335 = vunpack.c.l.b16 %v4296
      %v4336 = vunpack.c.l.b16 %v4297
      %v4337 = vunpack.c.l.b16 %v4298
      %v4338 = vunpack.c.l.b16 %v4299
      %v4339 = vunpack.c.l.b16 %v4300
      %v4340 = vunpack.c.l.b16 %v4301
      %v4341 = vunpack.c.l.b16 %v4302
      %v4342 = vunpack.c.l.b16 %v4303
      %v4343 = vunpack.c.l.b16 %v4304
      %v4344 = vunpack.c.l.b16 %v4305
      %v4345 = vunpack.c.l.b16 %v4306
      %v4346 = vunpack.c.l.b16 %v4307
      %v4347 = vunpack.c.l.b16 %v4308
      %v4348 = vpack.c.b16 %v4333, %v4332
      %v4349 = vpack.c.b16 %v4335, %v4334
      %v4350 = vpack.c.b16 %v4337, %v4336
      %v4351 = vpack.c.b16 %v4339, %v4338
      %v4352 = vpack.c.b16 %v4341, %v4340
      %v4353 = vpack.c.b16 %v4343, %v4342
      %v4354 = vpack.c.b16 %v4345, %v4344
      %v4355 = vpack.c.b16 %v4347, %v4346
      %4364 = vmatprep.subr.bf16.mxu0 0
      %4365 = vmatpush1.bf16.msra.mxu0 %v4355
      %4366 = vmatprep.subr.bf16.mxu0 0
      %4367 = vmatpush1.bf16.msra.mxu0 %v4354
      %4368 = vmatprep.subr.bf16.mxu0 0
      %4369 = vmatpush1.bf16.msra.mxu0 %v4353
      %4370 = vmatprep.subr.bf16.mxu0 0
      %4371 = vmatpush1.bf16.msra.mxu0 %v4352
      %4372 = vmatprep.subr.bf16.mxu0 0
      %4373 = vmatpush1.bf16.msra.mxu0 %v4351
      %4374 = vmatprep.subr.bf16.mxu0 0
      %4375 = vmatpush1.bf16.msra.mxu0 %v4350
      %4376 = vmatprep.subr.bf16.mxu0 0
      %4377 = vmatpush1.bf16.msra.mxu0 %v4349
      %4378 = vmatprep.subr.bf16.mxu0 0
      %4379 = vmatpush1.bf16.msra.mxu0 %v4348
      %4380 = vmatprep.subr.bf16.mxu0 0
      %4381 = vmatpush2.bf16.msra.mxu0 0
      %4382 = vmatprep.subr.bf16.mxu0 0
      %4383 = vmatpush2.bf16.msra.mxu0 0
      %4384 = vmatprep.subr.bf16.mxu0 0
      %4385 = vmatpush2.bf16.msra.mxu0 0
      %4386 = vmatprep.subr.bf16.mxu0 0
      %4387 = vmatpush2.bf16.msra.mxu0 0
      %4388 = vmatprep.subr.bf16.mxu0 0
      %4389 = vmatpush2.bf16.msra.mxu0 0
      %4390 = vmatprep.subr.bf16.mxu0 0
      %4391 = vmatpush2.bf16.msra.mxu0 0
      %4392 = vmatprep.subr.bf16.mxu0 0
      %4393 = vmatpush2.bf16.msra.mxu0 0
      %4394 = vmatprep.subr.bf16.mxu0 0
      %4395 = vmatpush2.bf16.msra.mxu0 0
      %4396 = vmatprep.mubr.bf16.mxu0 0
      %4397 = vmatmul.mubr.bf16.gmra.mxu0 %v4289
      %v4398 = vpop.f32.mrf.mxu0
      %v4399 = vadd.f32 %v4314, %v4398
      %v4400 = vpop.f32.mrf.mxu0
      %v4401 = vpop.f32.mrf.mxu0
      %v4402 = vadd.f32 %v4314, %v4401
      %v4403 = vpop.f32.mrf.mxu0
      %4404 = vmatprep.mubr.bf16.mxu0 0
      %4405 = vmatmul.mubr.bf16.gmra.mxu0 %v4290
      %v4406 = vpop.f32.mrf.mxu0
      %v4407 = vadd.f32 %v4314, %v4406
      %v4408 = vpop.f32.mrf.mxu0
      %v4409 = vpop.f32.mrf.mxu0
      %v4410 = vadd.f32 %v4314, %v4409
      %v4411 = vpop.f32.mrf.mxu0
      %4412 = vmatprep.mubr.bf16.mxu0 0
      %4413 = vmatmul.mubr.bf16.gmra.mxu0 %v4291
      %v4414 = vpop.f32.mrf.mxu0
      %v4415 = vadd.f32 %v4314, %v4414
      %v4416 = vpop.f32.mrf.mxu0
      %v4417 = vpop.f32.mrf.mxu0
      %v4418 = vadd.f32 %v4314, %v4417
      %v4419 = vpop.f32.mrf.mxu0
      %4420 = vmatprep.mubr.bf16.mxu0 0
      %4421 = vmatmul.mubr.bf16.gmra.mxu0 %v4292
      %v4422 = vpop.f32.mrf.mxu0
      %v4423 = vadd.f32 %v4314, %v4422
      %v4424 = vpop.f32.mrf.mxu0
      %v4425 = vpop.f32.mrf.mxu0
      %v4426 = vadd.f32 %v4314, %v4425
      %v4427 = vpop.f32.mrf.mxu0
      %4428 = vdwg.mxu0
      %v4429 = vadd.f32 %v3971, %v4399
      %v4430 = vadd.f32 %v3972, %v4402
      %v4431 = vadd.f32 %v3973, %v4407
      %v4432 = vadd.f32 %v3974, %v4410
      %v4433 = vadd.f32 %v3975, %v4415
      %v4434 = vadd.f32 %v3976, %v4418
      %v4435 = vadd.f32 %v3977, %v4423
      %v4436 = vadd.f32 %v3978, %v4426
      %4437 = vst.msk [vmem:[#allocation2] sm:$0xff] %vm1363, %v4429
      %4438 = vst.msk [vmem:[#allocation2 + $0x8] sm:$0xff] %vm1363, %v4430
      %4439 = vst.msk [vmem:[#allocation2 + $0x10] sm:$0xff] %vm1363, %v4431
      %4440 = vst.msk [vmem:[#allocation2 + $0x18] sm:$0xff] %vm1363, %v4432
      %4441 = vst.msk [vmem:[#allocation2 + $0x20] sm:$0xff] %vm1363, %v4433
      %4442 = vst.msk [vmem:[#allocation2 + $0x28] sm:$0xff] %vm1363, %v4434
      %4443 = vst.msk [vmem:[#allocation2 + $0x30] sm:$0xff] %vm1363, %v4435
      %4444 = vst.msk [vmem:[#allocation2 + $0x38] sm:$0xff] %vm1363, %v4436
      %p4445 = scmp.eq.s32.totalorder %s39, 1
      // Predicated region
      $region117: #{_lambda_.3} parent=111 // pred_check
        %p4446 = pneg %p4445
      $region118: #{_lambda_.3} parent=111 // pred_check_branch
        %4448 = sbr.rel (%p4446) target = $region120
      $region119: #{_lambda_.3} parent=111 // pred_region
        %v4449 = vld [vmem:[%s21] sm:$0x1]
        %v4450 = vld [vmem:[%s22] sm:$0x1]
        %v4451 = vsel %vm1363, %v4429, 0.0
        %4452 = vadd.xlane.f32.xlu0 %v4451
        %v4453 = vpop.xlane.xlu0 %4452
        %v4454 = vsel %vm1363, %v4430, 0.0
        %4455 = vadd.xlane.f32.xlu0 %v4454
        %v4456 = vpop.xlane.xlu0 %4455
        %v4457 = vsel %vm1363, %v4431, 0.0
        %4458 = vadd.xlane.f32.xlu0 %v4457
        %v4459 = vpop.xlane.xlu0 %4458
        %v4460 = vsel %vm1363, %v4432, 0.0
        %4461 = vadd.xlane.f32.xlu0 %v4460
        %v4462 = vpop.xlane.xlu0 %4461
        %v4463 = vsel %vm1363, %v4433, 0.0
        %4464 = vadd.xlane.f32.xlu0 %v4463
        %v4465 = vpop.xlane.xlu0 %4464
        %v4466 = vsel %vm1363, %v4434, 0.0
        %4467 = vadd.xlane.f32.xlu0 %v4466
        %v4468 = vpop.xlane.xlu0 %4467
        %v4469 = vsel %vm1363, %v4435, 0.0
        %4470 = vadd.xlane.f32.xlu0 %v4469
        %v4471 = vpop.xlane.xlu0 %4470
        %v4472 = vsel %vm1363, %v4436, 0.0
        %4473 = vadd.xlane.f32.xlu0 %v4472
        %v4474 = vpop.xlane.xlu0 %4473
        %v4475 = vmul.f32 %v4453, %v1388
        %v4476 = vmul.f32 %v4456, %v1388
        %v4477 = vmul.f32 %v4459, %v1388
        %v4478 = vmul.f32 %v4462, %v1388
        %v4479 = vmul.f32 %v4465, %v1388
        %v4480 = vmul.f32 %v4468, %v1388
        %v4481 = vmul.f32 %v4471, %v1388
        %v4482 = vmul.f32 %v4474, %v1388
        %v4483 = vsub.f32 %v4429, %v4475
        %v4484 = vsub.f32 %v4430, %v4476
        %v4485 = vsub.f32 %v4431, %v4477
        %v4486 = vsub.f32 %v4432, %v4478
        %v4487 = vsub.f32 %v4433, %v4479
        %v4488 = vsub.f32 %v4434, %v4480
        %v4489 = vsub.f32 %v4435, %v4481
        %v4490 = vsub.f32 %v4436, %v4482
        %v4491 = vmul.f32 %v4483, %v4483
        %v4492 = vmul.f32 %v4484, %v4484
        %v4493 = vmul.f32 %v4485, %v4485
        %v4494 = vmul.f32 %v4486, %v4486
        %v4495 = vmul.f32 %v4487, %v4487
        %v4496 = vmul.f32 %v4488, %v4488
        %v4497 = vmul.f32 %v4489, %v4489
        %v4498 = vmul.f32 %v4490, %v4490
        %v4499 = vsel %vm1363, %v4491, 0.0
        %4500 = vadd.xlane.f32.xlu0 %v4499
        %v4501 = vpop.xlane.xlu0 %4500
        %v4502 = vsel %vm1363, %v4492, 0.0
        %4503 = vadd.xlane.f32.xlu0 %v4502
        %v4504 = vpop.xlane.xlu0 %4503
        %v4505 = vsel %vm1363, %v4493, 0.0
        %4506 = vadd.xlane.f32.xlu0 %v4505
        %v4507 = vpop.xlane.xlu0 %4506
        %v4508 = vsel %vm1363, %v4494, 0.0
        %4509 = vadd.xlane.f32.xlu0 %v4508
        %v4510 = vpop.xlane.xlu0 %4509
        %v4511 = vsel %vm1363, %v4495, 0.0
        %4512 = vadd.xlane.f32.xlu0 %v4511
        %v4513 = vpop.xlane.xlu0 %4512
        %v4514 = vsel %vm1363, %v4496, 0.0
        %4515 = vadd.xlane.f32.xlu0 %v4514
        %v4516 = vpop.xlane.xlu0 %4515
        %v4517 = vsel %vm1363, %v4497, 0.0
        %4518 = vadd.xlane.f32.xlu0 %v4517
        %v4519 = vpop.xlane.xlu0 %4518
        %v4520 = vsel %vm1363, %v4498, 0.0
        %4521 = vadd.xlane.f32.xlu0 %v4520
        %v4522 = vpop.xlane.xlu0 %4521
        %v4523 = vmul.f32 %v4501, %v1388
        %v4524 = vmul.f32 %v4504, %v1388
        %v4525 = vmul.f32 %v4507, %v1388
        %v4526 = vmul.f32 %v4510, %v1388
        %v4527 = vmul.f32 %v4513, %v1388
        %v4528 = vmul.f32 %v4516, %v1388
        %v4529 = vmul.f32 %v4519, %v1388
        %v4530 = vmul.f32 %v4522, %v1388
        %v4531 = vadd.f32 %v4523, 1e-05
        %v4532 = vadd.f32 %v4524, 1e-05
        %v4533 = vadd.f32 %v4525, 1e-05
        %v4534 = vadd.f32 %v4526, 1e-05
        %v4535 = vadd.f32 %v4527, 1e-05
        %v4536 = vadd.f32 %v4528, 1e-05
        %v4537 = vadd.f32 %v4529, 1e-05
        %v4538 = vadd.f32 %v4530, 1e-05
        %v4539 = vrsqrt.pop %v4531
        %v4540 = vrsqrt.pop %v4532
        %v4541 = vrsqrt.pop %v4533
        %v4542 = vrsqrt.pop %v4534
        %v4543 = vrsqrt.pop %v4535
        %v4544 = vrsqrt.pop %v4536
        %v4545 = vrsqrt.pop %v4537
        %v4546 = vrsqrt.pop %v4538
        %v4547 = vmul.f32 %v4483, %v4539
        %v4548 = vmul.f32 %v4484, %v4540
        %v4549 = vmul.f32 %v4485, %v4541
        %v4550 = vmul.f32 %v4486, %v4542
        %v4551 = vmul.f32 %v4487, %v4543
        %v4552 = vmul.f32 %v4488, %v4544
        %v4553 = vmul.f32 %v4489, %v4545
        %v4554 = vmul.f32 %v4490, %v4546
        %v4556 = vlaneseq
        %v4557 = vshrl.u32 %v4556, 7
        %v4558 = vsub.s32 0, %v4557
        %v4559 = vrot.slane %v4449, %v4558
        %v4561 = vmul.f32 %v4547, %v4559
        %v4562 = vmul.f32 %v4548, %v4559
        %v4563 = vmul.f32 %v4549, %v4559
        %v4564 = vmul.f32 %v4550, %v4559
        %v4565 = vmul.f32 %v4551, %v4559
        %v4566 = vmul.f32 %v4552, %v4559
        %v4567 = vmul.f32 %v4553, %v4559
        %v4568 = vmul.f32 %v4554, %v4559
        %v4570 = vlaneseq
        %v4571 = vshrl.u32 %v4570, 7
        %v4572 = vsub.s32 0, %v4571
        %v4573 = vrot.slane %v4450, %v4572
        %v4575 = vadd.f32 %v4561, %v4573
        %v4576 = vadd.f32 %v4562, %v4573
        %v4577 = vadd.f32 %v4563, %v4573
        %v4578 = vadd.f32 %v4564, %v4573
        %v4579 = vadd.f32 %v4565, %v4573
        %v4580 = vadd.f32 %v4566, %v4573
        %v4581 = vadd.f32 %v4567, %v4573
        %v4582 = vadd.f32 %v4568, %v4573
        %v4583 = vlaneseq
        %v4584 = vshrl.u32 %v4583, 7
        %v4585 = vadd.s32 %v4584, 8
        %vm4586 = vcmp.eq.s32.totalorder %v4584, 8
        %vm4587 = vcmp.eq.s32.totalorder %v4585, 8
        %v4588 = vsel %vm4586, %v4575, -1e+30
        %v4589 = vsel %vm4587, %v4576, -1e+30
        %v4590 = vsel %vm4586, %v4577, -1e+30
        %v4591 = vsel %vm4587, %v4578, -1e+30
        %v4592 = vsel %vm4586, %v4579, -1e+30
        %v4593 = vsel %vm4587, %v4580, -1e+30
        %v4594 = vsel %vm4586, %v4581, -1e+30
        %v4595 = vsel %vm4587, %v4582, -1e+30
        %v4596 = vsel %vm1363, %v4588, -inf
        %v4597 = vsel %vm1363, %v4589, -inf
        %v4598 = vmax.f32 %v4596, %v4597
        %v4599 = vrot.slane %v4598, 4
        %v4600 = vmax.f32 %v4598, %v4599
        %v4601 = vrot.slane %v4600, 2
        %v4602 = vmax.f32 %v4600, %v4601
        %v4603 = vrot.slane %v4602, 1
        %v4604 = vmax.f32 %v4602, %v4603
        %v4605 = vsel %vm1363, %v4590, -inf
        %v4606 = vsel %vm1363, %v4591, -inf
        %v4607 = vmax.f32 %v4605, %v4606
        %v4608 = vrot.slane %v4607, 4
        %v4609 = vmax.f32 %v4607, %v4608
        %v4610 = vrot.slane %v4609, 2
        %v4611 = vmax.f32 %v4609, %v4610
        %v4612 = vrot.slane %v4611, 1
        %v4613 = vmax.f32 %v4611, %v4612
        %v4614 = vsel %vm1363, %v4592, -inf
        %v4615 = vsel %vm1363, %v4593, -inf
        %v4616 = vmax.f32 %v4614, %v4615
        %v4617 = vrot.slane %v4616, 4
        %v4618 = vmax.f32 %v4616, %v4617
        %v4619 = vrot.slane %v4618, 2
        %v4620 = vmax.f32 %v4618, %v4619
        %v4621 = vrot.slane %v4620, 1
        %v4622 = vmax.f32 %v4620, %v4621
        %v4623 = vsel %vm1363, %v4594, -inf
        %v4624 = vsel %vm1363, %v4595, -inf
        %v4625 = vmax.f32 %v4623, %v4624
        %v4626 = vrot.slane %v4625, 4
        %v4627 = vmax.f32 %v4625, %v4626
        %v4628 = vrot.slane %v4627, 2
        %v4629 = vmax.f32 %v4627, %v4628
        %v4630 = vrot.slane %v4629, 1
        %v4631 = vmax.f32 %v4629, %v4630
        %vm4632 = vcmp.lt.s32.totalorder %v4584, 8
        %vm4633 = vcmp.lt.s32.totalorder %v4585, 8
        %v4634 = vsel %vm4632, %v4575, -1e+30
        %v4635 = vsel %vm4633, %v4576, -1e+30
        %v4636 = vsel %vm4632, %v4577, -1e+30
        %v4637 = vsel %vm4633, %v4578, -1e+30
        %v4638 = vsel %vm4632, %v4579, -1e+30
        %v4639 = vsel %vm4633, %v4580, -1e+30
        %v4640 = vsel %vm4632, %v4581, -1e+30
        %v4641 = vsel %vm4633, %v4582, -1e+30
        %v4642 = vsel %vm1363, %v4634, -inf
        %v4643 = vsel %vm1363, %v4635, -inf
        %v4644 = vmax.f32 %v4642, %v4643
        %v4645 = vrot.slane %v4644, 4
        %v4646 = vmax.f32 %v4644, %v4645
        %v4647 = vrot.slane %v4646, 2
        %v4648 = vmax.f32 %v4646, %v4647
        %v4649 = vrot.slane %v4648, 1
        %v4650 = vmax.f32 %v4648, %v4649
        %v4651 = vsel %vm1363, %v4636, -inf
        %v4652 = vsel %vm1363, %v4637, -inf
        %v4653 = vmax.f32 %v4651, %v4652
        %v4654 = vrot.slane %v4653, 4
        %v4655 = vmax.f32 %v4653, %v4654
        %v4656 = vrot.slane %v4655, 2
        %v4657 = vmax.f32 %v4655, %v4656
        %v4658 = vrot.slane %v4657, 1
        %v4659 = vmax.f32 %v4657, %v4658
        %v4660 = vsel %vm1363, %v4638, -inf
        %v4661 = vsel %vm1363, %v4639, -inf
        %v4662 = vmax.f32 %v4660, %v4661
        %v4663 = vrot.slane %v4662, 4
        %v4664 = vmax.f32 %v4662, %v4663
        %v4665 = vrot.slane %v4664, 2
        %v4666 = vmax.f32 %v4664, %v4665
        %v4667 = vrot.slane %v4666, 1
        %v4668 = vmax.f32 %v4666, %v4667
        %v4669 = vsel %vm1363, %v4640, -inf
        %v4670 = vsel %vm1363, %v4641, -inf
        %v4671 = vmax.f32 %v4669, %v4670
        %v4672 = vrot.slane %v4671, 4
        %v4673 = vmax.f32 %v4671, %v4672
        %v4674 = vrot.slane %v4673, 2
        %v4675 = vmax.f32 %v4673, %v4674
        %v4676 = vrot.slane %v4675, 1
        %v4677 = vmax.f32 %v4675, %v4676
        %vm4682 = vcmask 1041409
        %v4683 = vsel %vm4682, %v4613, %v4604
        %vm4684 = vcmask 1042434
        %v4685 = vsel %vm4684, %v4622, %v4683
        %vm4686 = vcmask 1043459
        %v4687 = vsel %vm4686, %v4631, %v4685
        %v4693 = vsel %vm4682, %v4659, %v4650
        %v4694 = vsel %vm4684, %v4668, %v4693
        %v4695 = vsel %vm4686, %v4677, %v4694
        %4696 = vrot.lane.b32.xlu0 %v4695, 32
        %v4697 = vpop.permute.xlu0 %4696
        %v4699 = vsel %vm1363, %v4687, %v4697
        %vm4700 = vcmask 519168
        %4701 = vst.msk [vmem:[%s922] sm:$0xf] %vm4700, %v4699
      $region120: #{_lambda_.3} parent=111 // pred_fallthru
        _
      %p4702 = scmp.lt.s32.totalorder %s38, 0
      %s4703 = scalar_select %p4702, %s38, 0
      %s4704 = smul.addr %s4703, 4
      %s4705 = scalar_lea.vmem %s23, %s4704
      // Predicated region
      $region121: #{_lambda_.3} parent=111 // pred_check
        %p4706 = pneg %p612
      $region122: #{_lambda_.3} parent=111 // pred_check_branch
        %4708 = sbr.rel (%p4706) target = $region124
      $region123: #{_lambda_.3} parent=111 // pred_region
        _
      $region124: #{_lambda_.3} parent=111 // pred_fallthru
        _
      // Predicated region
      $region125: #{_lambda_.3} parent=111 // pred_check
        %p4709 = pneg %p612
      $region126: #{_lambda_.3} parent=111 // pred_check_branch
        %4711 = sbr.rel (%p4709) target = $region128
      $region127: #{_lambda_.3} parent=111 // pred_region
        %p4712 = scmp.lt.s32.totalorder %s38, 0
        %s4713 = scalar_select %p4712, %s38, 0
        %s4714 = smul.addr %s4713, 4
        %s4715 = scalar_lea.vmem %s23, %s4714
      $region128: #{_lambda_.3} parent=111 // pred_fallthru
        _
    $region112: #{_lambda_.3} parent=5 // pred_fallthru
      _
    %p4716 = scmp.le.s32.totalorder 2, %s29
    // Predicated region
    $region129: #{_lambda_.3} parent=5 // pred_check
      %p4717 = pneg %p4716
    $region130: #{_lambda_.3} parent=5 // pred_check_branch
      %4719 = sbr.rel (%p4717) target = $region132
    $region131: #{_lambda_.3} parent=5 // pred_region
      %s4720 = ssub.s32 %s29, 2
    $region132: #{_lambda_.3} parent=5 // pred_fallthru
      _
  $region6: #{_lambda_.3} parent=0 // loop_footer
    %s33 = sadd.s32 1, %s29
  $region7: #{_lambda_.3} parent=0 // loop_footer_branch
    %28 = sbr.rel target = $region3
  $region8: #{_lambda_.3} parent=0 // loop_exit
    _

</llo_original>
